<compile_context>
chip_gen: v7x
topology: tpu7x:2x2x1
jax: 0.10.0
libtpu: 0.0.40
codegen_flags: <defaults>
</compile_context>

<pallas_src>
import functools

import jax
import jax.numpy as jnp
from jax.experimental import pallas as pl
from jax.experimental.pallas import tpu as pltpu

OMEGA_0 = 30.0  # SIREN first/hidden-layer frequency


def _round_up(x, m):
    return (x + m - 1) // m * m


def siren_packed_kernel(x_ref, w_in_ref, b_in_ref, w_hid_ref, b_hid_ref,
                        w_out_ref, b_out_ref, o_ref, *, num_hidden_layers):
    """One grid step: (rows, pack*F) packed coords -> (rows, pack*Fo) packed SDF values.

    Weights are block-diagonal packed and already scaled by omega, so each layer is a
    single lane-dense matmul + bias + sin on (rows, pack*H) slabs.  Hidden-layer matmuls
    run with bf16 operands (if packed that way) and f32 accumulation; the first layer
    (K = pack*F, essentially free) and the output layer stay f32.
    """
    hdt = w_hid_ref.dtype  # bf16 by default (MXU-native); f32 when use_bf16=False
    h = jnp.sin(jnp.dot(x_ref[...], w_in_ref[...],
                        preferred_element_type=jnp.float32) + b_in_ref[...])
    for i in range(num_hidden_layers):  # static unroll (6 iterations)
        h = jnp.sin(jnp.dot(h.astype(hdt), w_hid_ref[i],
                            preferred_element_type=jnp.float32) + b_hid_ref[i])
    o_ref[...] = (jnp.dot(h, w_out_ref[...],
                          preferred_element_type=jnp.float32)
                  + b_out_ref[...]).astype(o_ref.dtype)


def init_siren_params(key, in_features=3, hidden_features=32, out_features=1,
                      num_hidden_layers=6, final_layer_factor=1.0):
    """Deterministic SIREN-style init (weights stored as (in, out): y = x @ W + b)."""
    n_layers = num_hidden_layers + 2
    keys = jax.random.split(key, 2 * n_layers)

    def u(k, shape, bound):
        return jax.random.uniform(k, shape, jnp.float32, minval=-bound, maxval=bound)

    H = hidden_features
    w_in = u(keys[0], (in_features, H), 1.0 / in_features)
    b_in = u(keys[1], (1, H), 1.0 / jnp.sqrt(in_features))
    hid_bound = jnp.sqrt(6.0 / H) / OMEGA_0
    w_hid = jnp.stack([u(keys[2 + 2 * i], (H, H), hid_bound)
                       for i in range(num_hidden_layers)])          # (L, H, H)
    b_hid = jnp.stack([u(keys[3 + 2 * i], (1, H), 1.0 / jnp.sqrt(H))
                       for i in range(num_hidden_layers)])          # (L, 1, H)
    k_wo = keys[2 + 2 * num_hidden_layers]
    k_bo = keys[3 + 2 * num_hidden_layers]
    w_out = u(k_wo, (H, out_features), hid_bound * final_layer_factor)
    b_out = u(k_bo, (1, out_features), 1.0 / jnp.sqrt(H))
    return dict(w_in=w_in, b_in=b_in, w_hid=w_hid, b_hid=b_hid,
                w_out=w_out, b_out=b_out)


def pack_siren_params(params, use_bf16=True, lanes=128):
    """One-time kernel prep: fold omega into W/b and block-diagonal pack so that `pack`
    points share one lane-dense row of width pack*H (= `lanes` for H=32).

    use_bf16: store the hidden-layer block-diagonal weights in bf16 (MXU-native operands,
              f32 accumulation).  W_in / W_out / biases always stay f32 (first matmul is
              K=pack*3 and costs nothing; keeps omega-amplified coord error out).
    lanes:    128 (default, safe on all chips) or 256 (v6e/v7x 256x256 MXU experiment).
    """
    w_in, b_in = params["w_in"], params["b_in"]
    w_hid, b_hid = params["w_hid"], params["b_hid"]
    w_out, b_out = params["w_out"], params["b_out"]
    F, H = w_in.shape
    L = w_hid.shape[0]
    Fo = w_out.shape[1]
    pack = max(1, lanes // H)

    def block_diag(w):
        a, b = w.shape
        out = jnp.zeros((pack * a, pack * b), w.dtype)
        for i in range(pack):
            out = out.at[i * a:(i + 1) * a, i * b:(i + 1) * b].set(w)
        return out

    hdt = jnp.bfloat16 if use_bf16 else jnp.float32  # hidden matmul operand dtype
    return dict(
        pack=pack, F=F, H=H, L=L, Fo=Fo,
        w_in=block_diag(w_in * OMEGA_0).astype(jnp.float32),               # (pack*F, pack*H)
        b_in=jnp.tile(b_in * OMEGA_0, (1, pack)).astype(jnp.float32),      # (1, pack*H)
        w_hid=jnp.stack([block_diag(w_hid[i] * OMEGA_0)
                         for i in range(L)]).astype(hdt),                  # (L, pack*H, pack*H)
        b_hid=jnp.tile(b_hid * OMEGA_0, (1, 1, pack)).astype(jnp.float32),  # (L, 1, pack*H)
        w_out=block_diag(w_out).astype(jnp.float32),                       # (pack*H, pack*Fo)
        b_out=jnp.tile(b_out, (1, pack)).astype(jnp.float32),              # (1, pack*Fo)
    )


def sdf_decoder_forward(coords, packed, *, tile_n=8192):
    """coords: (B, N, 3) -> model_out: (B, N, 1)."""
    B, N, F = coords.shape
    assert F == packed["F"], (F, packed["F"])
    pack, H, L, Fo = packed["pack"], packed["H"], packed["L"], packed["Fo"]
    P = B * N

    # Large tiles amortize per-step overhead; clamp so tiny inputs don't over-pad, and
    # guarantee >= 2 grid steps when P allows so v7x's two TensorCores both get work.
    gran = 8 * pack                                   # packed rows per tile must be % 8
    tile_n = max(gran, _round_up(tile_n, gran))
    tile_n = min(tile_n, _round_up(P, gran))
    if P > gran:
        tile_n = min(tile_n, _round_up(-(-P // 2), gran))
    tile_n = max(tile_n, gran)
    Pp = _round_up(P, tile_n)
    rows = tile_n // pack                             # packed rows per grid step

    x = coords.reshape(P, F).astype(jnp.float32)
    if Pp != P:
        x = jnp.pad(x, ((0, Pp - P), (0, 0)))
    # Row r of the packed slab = coords of points [pack*r, ..., pack*r + pack - 1].
    x_packed = x.reshape(Pp // pack, pack * F)

    w_in, b_in = packed["w_in"], packed["b_in"]
    w_hid, b_hid = packed["w_hid"], packed["b_hid"]
    w_out, b_out = packed["w_out"], packed["b_out"]

    # Packed (actually pushed-through-MXU) FLOPs: block-diag packing multiplies the
    # useful FLOPs by `pack`.
    flops = Pp * pack * (2 * F * H + L * 2 * H * H + 2 * H * Fo)
    transcendentals = Pp * H * (L + 1)
    weight_bytes = sum(int(a.size) * a.dtype.itemsize
                       for a in (w_in, b_in, w_hid, b_hid, w_out, b_out))
    bytes_accessed = int(x_packed.size) * 4 + Pp * Fo * 4 + weight_bytes

    out = pl.pallas_call(
        functools.partial(siren_packed_kernel, num_hidden_layers=L),
        out_shape=jax.ShapeDtypeStruct((Pp // pack, pack * Fo), jnp.float32),
        grid=(Pp // tile_n,),
        in_specs=[
            pl.BlockSpec((rows, pack * F), lambda i: (i, 0)),             # packed coord tile
            pl.BlockSpec((pack * F, pack * H), lambda i: (0, 0)),         # W_in (block-diag, f32)
            pl.BlockSpec((1, pack * H), lambda i: (0, 0)),                # b_in
            pl.BlockSpec((L, pack * H, pack * H), lambda i: (0, 0, 0)),   # hidden W (block-diag)
            pl.BlockSpec((L, 1, pack * H), lambda i: (0, 0, 0)),          # hidden b
            pl.BlockSpec((pack * H, pack * Fo), lambda i: (0, 0)),        # W_out (block-diag)
            pl.BlockSpec((1, pack * Fo), lambda i: (0, 0)),               # b_out
        ],
        out_specs=pl.BlockSpec((rows, pack * Fo), lambda i: (i, 0)),
        compiler_params=pltpu.CompilerParams(
            dimension_semantics=("parallel",)),       # shard point tiles across TCs (v7x)
        cost_estimate=pl.CostEstimate(flops=flops,
                                      transcendentals=transcendentals,
                                      bytes_accessed=bytes_accessed),
    )(x_packed, w_in, b_in, w_hid, b_hid, w_out, b_out)

    return out.reshape(Pp, Fo)[:P].reshape(B, N, Fo)


def sdf_decoder_forward_ref(coords, params, use_bf16=False):
    """Pure-JAX reference (original, un-folded / un-packed formulation).

    use_bf16=True mirrors the kernel's bf16 hidden-matmul-operand quantization so the
    kernel can be checked tightly against an identically-quantized reference.
    """
    B, N, F = coords.shape
    x = coords.reshape(B * N, F).astype(jnp.float32)
    h = jnp.sin(OMEGA_0 * (x @ params["w_in"] + params["b_in"]))
    for i in range(params["w_hid"].shape[0]):
        w = OMEGA_0 * params["w_hid"][i]
        b = OMEGA_0 * params["b_hid"][i]
        if use_bf16:
            pre = jnp.dot(h.astype(jnp.bfloat16), w.astype(jnp.bfloat16),
                          preferred_element_type=jnp.float32) + b
        else:
            pre = h @ w + b
        h = jnp.sin(pre)
    y = h @ params["w_out"] + params["b_out"]
    return y.reshape(B, N, -1)


if __name__ == "__main__":
    key = jax.random.PRNGKey(0)
    k_params, k_coords = jax.random.split(key)

    hidden_features = 32
    params = init_siren_params(k_params, in_features=3,
                               hidden_features=hidden_features,
                               out_features=1, num_hidden_layers=6)

    # small example: batch=2, 256 query points, 3D coords in [-1, 1]
    coords = jax.random.uniform(k_coords, (2, 256, 3), jnp.float32,
                                minval=-1.0, maxval=1.0)

    # --- pure-f32 path: tight check against the un-packed reference ----------------
    packed_f32 = pack_siren_params(params, use_bf16=False)
    out_f32 = jax.block_until_ready(sdf_decoder_forward(coords, packed_f32))
    ref_f32 = sdf_decoder_forward_ref(coords, params, use_bf16=False)
    assert out_f32.shape == (2, 256, 1), out_f32.shape
    err_f32 = float(jnp.max(jnp.abs(out_f32 - ref_f32)))
    # omega-folding + block-diag packing change f32 op order slightly; 5e-4 is >>10x margin.
    assert err_f32 < 5e-4, err_f32

    # --- default bf16-operand path: check against identically-quantized reference ---
    packed_bf16 = pack_siren_params(params)            # use_bf16=True default
    out_bf16 = jax.block_until_ready(sdf_decoder_forward(coords, packed_bf16))
    ref_bf16 = sdf_decoder_forward_ref(coords, params, use_bf16=True)
    assert out_bf16.shape == (2, 256, 1), out_bf16.shape
    err_bf16 = float(jnp.max(jnp.abs(out_bf16 - ref_bf16)))
    assert err_bf16 < 2e-2, err_bf16

    print("KERNEL_OK")
</pallas_src>

<mosaic_0001>
module attributes {stable_mosaic.version = 11 : i64} {
  func.func @siren_packed_kernel(%arg0: i32, %arg1: memref<64x12xf32, #tpu.memory_space<vmem>>, %arg2: memref<12x128xf32, #tpu.memory_space<vmem>>, %arg3: memref<1x128xf32, #tpu.memory_space<vmem>>, %arg4: memref<6x128x128xf32, #tpu.memory_space<vmem>>, %arg5: memref<6x1x128xf32, #tpu.memory_space<vmem>>, %arg6: memref<128x4xf32, #tpu.memory_space<vmem>>, %arg7: memref<1x4xf32, #tpu.memory_space<vmem>>, %arg8: memref<64x4xf32, #tpu.memory_space<vmem>>) attributes {dimension_semantics = [#tpu.dimension_semantics<parallel>], iteration_bounds = array<i64: 2>, scalar_prefetch = 0 : i64, scratch_operands = 0 : i64, tpu.core_type = #tpu.core_type<tc>, window_params = [{transform_indices = @transform_0, window_bounds = array<i64: 64, 12>}, {pipeline_mode = #tpu.pipeline_mode<synchronous>, transform_indices = @transform_1, window_bounds = array<i64: 12, 128>}, {pipeline_mode = #tpu.pipeline_mode<synchronous>, transform_indices = @transform_2, window_bounds = array<i64: 1, 128>}, {pipeline_mode = #tpu.pipeline_mode<synchronous>, transform_indices = @transform_3, window_bounds = array<i64: 6, 128, 128>}, {pipeline_mode = #tpu.pipeline_mode<synchronous>, transform_indices = @transform_4, window_bounds = array<i64: 6, 1, 128>}, {pipeline_mode = #tpu.pipeline_mode<synchronous>, transform_indices = @transform_5, window_bounds = array<i64: 128, 4>}, {pipeline_mode = #tpu.pipeline_mode<synchronous>, transform_indices = @transform_6, window_bounds = array<i64: 1, 4>}, {transform_indices = @transform_7, window_bounds = array<i64: 64, 4>}]} {
    %c0 = arith.constant 0 : index
    %c0_0 = arith.constant 0 : index
    %0 = vector.load %arg1[%c0, %c0_0] : memref<64x12xf32, #tpu.memory_space<vmem>>, vector<64x12xf32>
    %c0_1 = arith.constant 0 : index
    %c0_2 = arith.constant 0 : index
    %1 = vector.load %arg2[%c0_1, %c0_2] : memref<12x128xf32, #tpu.memory_space<vmem>>, vector<12x128xf32>
    %cst = arith.constant dense<0.000000e+00> : vector<64x128xf32>
    %2 = tpu.matmul %0, %1, %cst {dimension_numbers = #tpu.dot_dimension_numbers<[1], [0], [0], [1], [0, 0, 1, 1], [], []>} : vector<64x12xf32>, vector<12x128xf32>, vector<64x128xf32> -> vector<64x128xf32>
    %c0_3 = arith.constant 0 : index
    %c0_4 = arith.constant 0 : index
    %3 = vector.load %arg3[%c0_3, %c0_4] : memref<1x128xf32, #tpu.memory_space<vmem>>, vector<1x128xf32>
    %4 = vector.broadcast %3 : vector<1x128xf32> to vector<64x128xf32>
    %5 = arith.addf %2, %4 : vector<64x128xf32>
    %6 = math.sin %5 : vector<64x128xf32>
    %c0_5 = arith.constant 0 : index
    %c0_6 = arith.constant 0 : index
    %c0_7 = arith.constant 0 : index
    %7 = vector.load %arg4[%c0_5, %c0_6, %c0_7] : memref<6x128x128xf32, #tpu.memory_space<vmem>>, vector<1x128x128xf32>
    %8 = vector.shape_cast %7 : vector<1x128x128xf32> to vector<128x128xf32>
    %cst_8 = arith.constant dense<0.000000e+00> : vector<64x128xf32>
    %9 = tpu.matmul %6, %8, %cst_8 {dimension_numbers = #tpu.dot_dimension_numbers<[1], [0], [0], [1], [0, 0, 1, 1], [], []>} : vector<64x128xf32>, vector<128x128xf32>, vector<64x128xf32> -> vector<64x128xf32>
    %c0_9 = arith.constant 0 : index
    %c0_10 = arith.constant 0 : index
    %c0_11 = arith.constant 0 : index
    %10 = vector.load %arg5[%c0_9, %c0_10, %c0_11] : memref<6x1x128xf32, #tpu.memory_space<vmem>>, vector<1x1x128xf32>
    %11 = vector.shape_cast %10 : vector<1x1x128xf32> to vector<1x128xf32>
    %12 = vector.broadcast %11 : vector<1x128xf32> to vector<64x128xf32>
    %13 = arith.addf %9, %12 : vector<64x128xf32>
    %14 = math.sin %13 : vector<64x128xf32>
    %c1 = arith.constant 1 : index
    %c0_12 = arith.constant 0 : index
    %c0_13 = arith.constant 0 : index
    %15 = vector.load %arg4[%c1, %c0_12, %c0_13] : memref<6x128x128xf32, #tpu.memory_space<vmem>>, vector<1x128x128xf32>
    %16 = vector.shape_cast %15 : vector<1x128x128xf32> to vector<128x128xf32>
    %cst_14 = arith.constant dense<0.000000e+00> : vector<64x128xf32>
    %17 = tpu.matmul %14, %16, %cst_14 {dimension_numbers = #tpu.dot_dimension_numbers<[1], [0], [0], [1], [0, 0, 1, 1], [], []>} : vector<64x128xf32>, vector<128x128xf32>, vector<64x128xf32> -> vector<64x128xf32>
    %c1_15 = arith.constant 1 : index
    %c0_16 = arith.constant 0 : index
    %c0_17 = arith.constant 0 : index
    %18 = vector.load %arg5[%c1_15, %c0_16, %c0_17] : memref<6x1x128xf32, #tpu.memory_space<vmem>>, vector<1x1x128xf32>
    %19 = vector.shape_cast %18 : vector<1x1x128xf32> to vector<1x128xf32>
    %20 = vector.broadcast %19 : vector<1x128xf32> to vector<64x128xf32>
    %21 = arith.addf %17, %20 : vector<64x128xf32>
    %22 = math.sin %21 : vector<64x128xf32>
    %c2 = arith.constant 2 : index
    %c0_18 = arith.constant 0 : index
    %c0_19 = arith.constant 0 : index
    %23 = vector.load %arg4[%c2, %c0_18, %c0_19] : memref<6x128x128xf32, #tpu.memory_space<vmem>>, vector<1x128x128xf32>
    %24 = vector.shape_cast %23 : vector<1x128x128xf32> to vector<128x128xf32>
    %cst_20 = arith.constant dense<0.000000e+00> : vector<64x128xf32>
    %25 = tpu.matmul %22, %24, %cst_20 {dimension_numbers = #tpu.dot_dimension_numbers<[1], [0], [0], [1], [0, 0, 1, 1], [], []>} : vector<64x128xf32>, vector<128x128xf32>, vector<64x128xf32> -> vector<64x128xf32>
    %c2_21 = arith.constant 2 : index
    %c0_22 = arith.constant 0 : index
    %c0_23 = arith.constant 0 : index
    %26 = vector.load %arg5[%c2_21, %c0_22, %c0_23] : memref<6x1x128xf32, #tpu.memory_space<vmem>>, vector<1x1x128xf32>
    %27 = vector.shape_cast %26 : vector<1x1x128xf32> to vector<1x128xf32>
    %28 = vector.broadcast %27 : vector<1x128xf32> to vector<64x128xf32>
    %29 = arith.addf %25, %28 : vector<64x128xf32>
    %30 = math.sin %29 : vector<64x128xf32>
    %c3 = arith.constant 3 : index
    %c0_24 = arith.constant 0 : index
    %c0_25 = arith.constant 0 : index
    %31 = vector.load %arg4[%c3, %c0_24, %c0_25] : memref<6x128x128xf32, #tpu.memory_space<vmem>>, vector<1x128x128xf32>
    %32 = vector.shape_cast %31 : vector<1x128x128xf32> to vector<128x128xf32>
    %cst_26 = arith.constant dense<0.000000e+00> : vector<64x128xf32>
    %33 = tpu.matmul %30, %32, %cst_26 {dimension_numbers = #tpu.dot_dimension_numbers<[1], [0], [0], [1], [0, 0, 1, 1], [], []>} : vector<64x128xf32>, vector<128x128xf32>, vector<64x128xf32> -> vector<64x128xf32>
    %c3_27 = arith.constant 3 : index
    %c0_28 = arith.constant 0 : index
    %c0_29 = arith.constant 0 : index
    %34 = vector.load %arg5[%c3_27, %c0_28, %c0_29] : memref<6x1x128xf32, #tpu.memory_space<vmem>>, vector<1x1x128xf32>
    %35 = vector.shape_cast %34 : vector<1x1x128xf32> to vector<1x128xf32>
    %36 = vector.broadcast %35 : vector<1x128xf32> to vector<64x128xf32>
    %37 = arith.addf %33, %36 : vector<64x128xf32>
    %38 = math.sin %37 : vector<64x128xf32>
    %c4 = arith.constant 4 : index
    %c0_30 = arith.constant 0 : index
    %c0_31 = arith.constant 0 : index
    %39 = vector.load %arg4[%c4, %c0_30, %c0_31] : memref<6x128x128xf32, #tpu.memory_space<vmem>>, vector<1x128x128xf32>
    %40 = vector.shape_cast %39 : vector<1x128x128xf32> to vector<128x128xf32>
    %cst_32 = arith.constant dense<0.000000e+00> : vector<64x128xf32>
    %41 = tpu.matmul %38, %40, %cst_32 {dimension_numbers = #tpu.dot_dimension_numbers<[1], [0], [0], [1], [0, 0, 1, 1], [], []>} : vector<64x128xf32>, vector<128x128xf32>, vector<64x128xf32> -> vector<64x128xf32>
    %c4_33 = arith.constant 4 : index
    %c0_34 = arith.constant 0 : index
    %c0_35 = arith.constant 0 : index
    %42 = vector.load %arg5[%c4_33, %c0_34, %c0_35] : memref<6x1x128xf32, #tpu.memory_space<vmem>>, vector<1x1x128xf32>
    %43 = vector.shape_cast %42 : vector<1x1x128xf32> to vector<1x128xf32>
    %44 = vector.broadcast %43 : vector<1x128xf32> to vector<64x128xf32>
    %45 = arith.addf %41, %44 : vector<64x128xf32>
    %46 = math.sin %45 : vector<64x128xf32>
    %c5 = arith.constant 5 : index
    %c0_36 = arith.constant 0 : index
    %c0_37 = arith.constant 0 : index
    %47 = vector.load %arg4[%c5, %c0_36, %c0_37] : memref<6x128x128xf32, #tpu.memory_space<vmem>>, vector<1x128x128xf32>
    %48 = vector.shape_cast %47 : vector<1x128x128xf32> to vector<128x128xf32>
    %cst_38 = arith.constant dense<0.000000e+00> : vector<64x128xf32>
    %49 = tpu.matmul %46, %48, %cst_38 {dimension_numbers = #tpu.dot_dimension_numbers<[1], [0], [0], [1], [0, 0, 1, 1], [], []>} : vector<64x128xf32>, vector<128x128xf32>, vector<64x128xf32> -> vector<64x128xf32>
    %c5_39 = arith.constant 5 : index
    %c0_40 = arith.constant 0 : index
    %c0_41 = arith.constant 0 : index
    %50 = vector.load %arg5[%c5_39, %c0_40, %c0_41] : memref<6x1x128xf32, #tpu.memory_space<vmem>>, vector<1x1x128xf32>
    %51 = vector.shape_cast %50 : vector<1x1x128xf32> to vector<1x128xf32>
    %52 = vector.broadcast %51 : vector<1x128xf32> to vector<64x128xf32>
    %53 = arith.addf %49, %52 : vector<64x128xf32>
    %54 = math.sin %53 : vector<64x128xf32>
    %c0_42 = arith.constant 0 : index
    %c0_43 = arith.constant 0 : index
    %55 = vector.load %arg6[%c0_42, %c0_43] : memref<128x4xf32, #tpu.memory_space<vmem>>, vector<128x4xf32>
    %cst_44 = arith.constant dense<0.000000e+00> : vector<64x4xf32>
    %56 = tpu.matmul %54, %55, %cst_44 {dimension_numbers = #tpu.dot_dimension_numbers<[1], [0], [0], [1], [0, 0, 1, 1], [], []>} : vector<64x128xf32>, vector<128x4xf32>, vector<64x4xf32> -> vector<64x4xf32>
    %c0_45 = arith.constant 0 : index
    %c0_46 = arith.constant 0 : index
    %57 = vector.load %arg7[%c0_45, %c0_46] : memref<1x4xf32, #tpu.memory_space<vmem>>, vector<1x4xf32>
    %58 = vector.broadcast %57 : vector<1x4xf32> to vector<64x4xf32>
    %59 = arith.addf %56, %58 : vector<64x4xf32>
    %c0_47 = arith.constant 0 : index
    %c0_48 = arith.constant 0 : index
    %60 = vector.load %arg8[%c0_47, %c0_48] : memref<64x4xf32, #tpu.memory_space<vmem>>, vector<64x4xf32>
    tpu.vector_store %arg8[%c0_47, %c0_48], %59 {strides = array<i32>} : memref<64x4xf32, #tpu.memory_space<vmem>>, vector<64x4xf32>,
    return
  }
  func.func @transform_0(%arg0: i32) -> (i32, i32) {
    %c0_i32 = arith.constant 0 : i32
    %c0_i32_0 = arith.constant 0 : i32
    return %arg0, %c0_i32 : i32, i32
  }
  func.func @transform_1(%arg0: i32) -> (i32, i32) {
    %c0_i32 = arith.constant 0 : i32
    %c0_i32_0 = arith.constant 0 : i32
    %c0_i32_1 = arith.constant 0 : i32
    return %c0_i32, %c0_i32_0 : i32, i32
  }
  func.func @transform_2(%arg0: i32) -> (i32, i32) {
    %c0_i32 = arith.constant 0 : i32
    %c0_i32_0 = arith.constant 0 : i32
    %c0_i32_1 = arith.constant 0 : i32
    return %c0_i32, %c0_i32_0 : i32, i32
  }
  func.func @transform_3(%arg0: i32) -> (i32, i32, i32) {
    %c0_i32 = arith.constant 0 : i32
    %c0_i32_0 = arith.constant 0 : i32
    %c0_i32_1 = arith.constant 0 : i32
    %c0_i32_2 = arith.constant 0 : i32
    return %c0_i32, %c0_i32_0, %c0_i32_1 : i32, i32, i32
  }
  func.func @transform_4(%arg0: i32) -> (i32, i32, i32) {
    %c0_i32 = arith.constant 0 : i32
    %c0_i32_0 = arith.constant 0 : i32
    %c0_i32_1 = arith.constant 0 : i32
    %c0_i32_2 = arith.constant 0 : i32
    return %c0_i32, %c0_i32_0, %c0_i32_1 : i32, i32, i32
  }
  func.func @transform_5(%arg0: i32) -> (i32, i32) {
    %c0_i32 = arith.constant 0 : i32
    %c0_i32_0 = arith.constant 0 : i32
    %c0_i32_1 = arith.constant 0 : i32
    return %c0_i32, %c0_i32_0 : i32, i32
  }
  func.func @transform_6(%arg0: i32) -> (i32, i32) {
    %c0_i32 = arith.constant 0 : i32
    %c0_i32_0 = arith.constant 0 : i32
    %c0_i32_1 = arith.constant 0 : i32
    return %c0_i32, %c0_i32_0 : i32, i32
  }
  func.func @transform_7(%arg0: i32) -> (i32, i32) {
    %c0_i32 = arith.constant 0 : i32
    %c0_i32_0 = arith.constant 0 : i32
    return %arg0, %c0_i32 : i32, i32
  }
}

</mosaic_0001>

<llo_original>
// kernel: tpu_custom_call.1
$region0: #{tpu_custom_call.1}
  #allocation0 [shape = 'u32[]', space=smem, size = 0x4, offset = 0x4, fixed_abs, tag = 'smem constant byte address 0x4 - core index']
  #allocation1 [shape = 'u32[144,128]{1,0:T(1,128)}', space=vmem, size = 0x12000, scoped, tag = 'internal scratch']
  %s0 = inlined_call_operand.vmem [shape: f32[128,12], index: 0, kind: input, shape index: {}]
  %s1 = inlined_call_operand.vmem [shape: f32[12,128], index: 1, kind: input, shape index: {}]
  %s2 = inlined_call_operand.vmem [shape: f32[1,128], index: 2, kind: input, shape index: {}]
  %s3 = inlined_call_operand.hbm [shape: f32[6,128,128], index: 3, kind: input, shape index: {}]
  %s4 = inlined_call_operand.vmem [shape: f32[6,1,128], index: 4, kind: input, shape index: {}]
  %s5 = inlined_call_operand.vmem [shape: f32[128,4], index: 5, kind: input, shape index: {}]
  %s6 = inlined_call_operand.vmem [shape: f32[1,4], index: 6, kind: input, shape index: {}]
  %s7 = inlined_call_operand.vmem [shape: f32[128,4], index: 7, kind: output, shape index: {}]
  %s8 = sld [smem:[#allocation0]]
  $region65: #{tpu_custom_call.1} parent=0
    _
  %s10 = ssub.s32 1, %s8
  %s11 = scalar_select 0, %s10, %s8
  $region1: #{tpu_custom_call.1} parent=0
    #allocation2 [shape = 'u8[393216]{0}', space=vmem, size = 0x60000, scoped, tag = 'input window, operand 3, single buffered']
    #allocation3 [shape = 's32[2]{0}', space=sflag, size = 0x8, scoped, tag = 'scoped memory for tpu_custom_call.1']
    %12 = vsyncpa [#allocation3], 0
    loop: start=0, step=1, limit=4
    $region2: #{tpu_custom_call.1} parent=1 // loop_pre_header
      _
    $region3: #{tpu_custom_call.1} parent=1 // loop_header
      %s14 = sphi 0, %s18
      %p15 = scmp.ge.s32.totalorder %s14, 4
      %s24 = sphi 0, %s26
      %s27 = sphi 0, %s24
      %s28 = sphi 0, %s27
      %s44 = sphi 0, %s28
      %s48 = sphi 0, %s48
      %s50 = sphi 0, %s48
      %s51 = sphi 0, %s50
      %s65 = sphi 0, %s51
      %s69 = sphi 0, %s69
      %s71 = sphi 0, %s69
      %s72 = sphi 0, %s71
      %s86 = sphi 0, %s72
      %s90 = sphi 0, %s90
      %s92 = sphi 0, %s90
      %s93 = sphi 0, %s92
      %s107 = sphi 0, %s93
      %s111 = sphi 0, %s111
      %s113 = sphi 0, %s111
      %s114 = sphi 0, %s113
      %s128 = sphi 0, %s114
      %s132 = sphi 0, %s132
      %s134 = sphi 0, %s132
      %s135 = sphi 0, %s134
      %s149 = sphi 0, %s135
      %s153 = sphi 0, %s153
      %s155 = sphi 0, %s153
      %s156 = sphi 0, %s155
      %s170 = sphi 0, %s156
      %s176 = sphi 0, %s178
      %s179 = sphi 0, %s176
      %s180 = sphi 0, %s179
      %s196 = sphi 0, %s180
    $region4: #{tpu_custom_call.1} parent=1 // loop_header_branch
      %17 = sbr.rel (%p15) target = $region8
    $region5: #{tpu_custom_call.1} parent=1 // loop_body
      %s19 = ssub.s32 %s14, 1
      %s20 = ssub.s32 %s14, 2
      %s21 = sadd.s32 %s14, 1
      %s22 = ssub.s32 %s14, %s21
      %p23 = scmp.eq.s32.totalorder %s22, 0
      %s25 = sadd.s32 %s24, 1
      %s26 = scalar_select %p23, %s24, %s25
      %p29 = pneg %p23
      %p30 = scmp.eq.s32.totalorder %s14, 1
      %p31 = por %p29, %p30
      %p32 = scmp.ne.s32.totalorder %s24, %s27
      %p33 = scmp.eq.s32.totalorder %s14, 0
      %p34 = por %p32, %p33
      %p35 = scmp.ne.s32.totalorder %s24, %s27
      %p36 = scmp.eq.s32.totalorder %s19, 1
      %p37 = por %p35, %p36
      %p38 = scmp.ne.s32.totalorder %s27, %s28
      %p39 = scmp.eq.s32.totalorder %s19, 0
      %p40 = por %p38, %p39
      %p41 = scmp.ne.s32.totalorder %s27, %s28
      %p42 = scmp.eq.s32.totalorder %s20, 1
      %p43 = por %p41, %p42
      %p45 = scmp.ne.s32.totalorder %s28, %s44
      %p46 = scmp.eq.s32.totalorder %s20, 0
      %p47 = por %p45, %p46
      %s49 = sadd.s32 %s48, 1
      %p52 = scmp.eq.s32.totalorder %s14, 1
      %p53 = scmp.ne.s32.totalorder %s48, %s50
      %p54 = scmp.eq.s32.totalorder %s14, 0
      %p55 = por %p53, %p54
      %p56 = scmp.ne.s32.totalorder %s48, %s50
      %p57 = scmp.eq.s32.totalorder %s19, 1
      %p58 = por %p56, %p57
      %p59 = scmp.ne.s32.totalorder %s50, %s51
      %p60 = scmp.eq.s32.totalorder %s19, 0
      %p61 = por %p59, %p60
      %p62 = scmp.ne.s32.totalorder %s50, %s51
      %p63 = scmp.eq.s32.totalorder %s20, 1
      %p64 = por %p62, %p63
      %p66 = scmp.ne.s32.totalorder %s51, %s65
      %p67 = scmp.eq.s32.totalorder %s20, 0
      %p68 = por %p66, %p67
      %s70 = sadd.s32 %s69, 1
      %p73 = scmp.eq.s32.totalorder %s14, 1
      %p74 = scmp.ne.s32.totalorder %s69, %s71
      %p75 = scmp.eq.s32.totalorder %s14, 0
      %p76 = por %p74, %p75
      %p77 = scmp.ne.s32.totalorder %s69, %s71
      %p78 = scmp.eq.s32.totalorder %s19, 1
      %p79 = por %p77, %p78
      %p80 = scmp.ne.s32.totalorder %s71, %s72
      %p81 = scmp.eq.s32.totalorder %s19, 0
      %p82 = por %p80, %p81
      %p83 = scmp.ne.s32.totalorder %s71, %s72
      %p84 = scmp.eq.s32.totalorder %s20, 1
      %p85 = por %p83, %p84
      %p87 = scmp.ne.s32.totalorder %s72, %s86
      %p88 = scmp.eq.s32.totalorder %s20, 0
      %p89 = por %p87, %p88
      %s91 = sadd.s32 %s90, 1
      %p94 = scmp.eq.s32.totalorder %s14, 1
      %p95 = scmp.ne.s32.totalorder %s90, %s92
      %p96 = scmp.eq.s32.totalorder %s14, 0
      %p97 = por %p95, %p96
      %p98 = scmp.ne.s32.totalorder %s90, %s92
      %p99 = scmp.eq.s32.totalorder %s19, 1
      %p100 = por %p98, %p99
      %p101 = scmp.ne.s32.totalorder %s92, %s93
      %p102 = scmp.eq.s32.totalorder %s19, 0
      %p103 = por %p101, %p102
      %p104 = scmp.ne.s32.totalorder %s92, %s93
      %p105 = scmp.eq.s32.totalorder %s20, 1
      %p106 = por %p104, %p105
      %p108 = scmp.ne.s32.totalorder %s93, %s107
      %p109 = scmp.eq.s32.totalorder %s20, 0
      %p110 = por %p108, %p109
      %s112 = sadd.s32 %s111, 1
      %p115 = scmp.eq.s32.totalorder %s14, 1
      %p116 = scmp.ne.s32.totalorder %s111, %s113
      %p117 = scmp.eq.s32.totalorder %s14, 0
      %p118 = por %p116, %p117
      %p119 = scmp.ne.s32.totalorder %s111, %s113
      %p120 = scmp.eq.s32.totalorder %s19, 1
      %p121 = por %p119, %p120
      %p122 = scmp.ne.s32.totalorder %s113, %s114
      %p123 = scmp.eq.s32.totalorder %s19, 0
      %p124 = por %p122, %p123
      %p125 = scmp.ne.s32.totalorder %s113, %s114
      %p126 = scmp.eq.s32.totalorder %s20, 1
      %p127 = por %p125, %p126
      %p129 = scmp.ne.s32.totalorder %s114, %s128
      %p130 = scmp.eq.s32.totalorder %s20, 0
      %p131 = por %p129, %p130
      %s133 = sadd.s32 %s132, 1
      %p136 = scmp.eq.s32.totalorder %s14, 1
      %p137 = scmp.ne.s32.totalorder %s132, %s134
      %p138 = scmp.eq.s32.totalorder %s14, 0
      %p139 = por %p137, %p138
      %p140 = scmp.ne.s32.totalorder %s132, %s134
      %p141 = scmp.eq.s32.totalorder %s19, 1
      %p142 = por %p140, %p141
      %p143 = scmp.ne.s32.totalorder %s134, %s135
      %p144 = scmp.eq.s32.totalorder %s19, 0
      %p145 = por %p143, %p144
      %p146 = scmp.ne.s32.totalorder %s134, %s135
      %p147 = scmp.eq.s32.totalorder %s20, 1
      %p148 = por %p146, %p147
      %p150 = scmp.ne.s32.totalorder %s135, %s149
      %p151 = scmp.eq.s32.totalorder %s20, 0
      %p152 = por %p150, %p151
      %s154 = sadd.s32 %s153, 1
      %p157 = scmp.eq.s32.totalorder %s14, 1
      %p158 = scmp.ne.s32.totalorder %s153, %s155
      %p159 = scmp.eq.s32.totalorder %s14, 0
      %p160 = por %p158, %p159
      %p161 = scmp.ne.s32.totalorder %s153, %s155
      %p162 = scmp.eq.s32.totalorder %s19, 1
      %p163 = por %p161, %p162
      %p164 = scmp.ne.s32.totalorder %s155, %s156
      %p165 = scmp.eq.s32.totalorder %s19, 0
      %p166 = por %p164, %p165
      %p167 = scmp.ne.s32.totalorder %s155, %s156
      %p168 = scmp.eq.s32.totalorder %s20, 1
      %p169 = por %p167, %p168
      %p171 = scmp.ne.s32.totalorder %s156, %s170
      %p172 = scmp.eq.s32.totalorder %s20, 0
      %p173 = por %p171, %p172
      %s174 = ssub.s32 %s14, %s21
      %p175 = scmp.eq.s32.totalorder %s174, 0
      %s177 = sadd.s32 %s176, 1
      %s178 = scalar_select %p175, %s176, %s177
      %p181 = pneg %p175
      %p182 = scmp.eq.s32.totalorder %s14, 1
      %p183 = por %p181, %p182
      %p184 = scmp.ne.s32.totalorder %s176, %s179
      %p185 = scmp.eq.s32.totalorder %s14, 0
      %p186 = por %p184, %p185
      %p187 = scmp.ne.s32.totalorder %s176, %s179
      %p188 = scmp.eq.s32.totalorder %s19, 1
      %p189 = por %p187, %p188
      %p190 = scmp.ne.s32.totalorder %s179, %s180
      %p191 = scmp.eq.s32.totalorder %s19, 0
      %p192 = por %p190, %p191
      %p193 = scmp.ne.s32.totalorder %s179, %s180
      %p194 = scmp.eq.s32.totalorder %s20, 1
      %p195 = por %p193, %p194
      %p197 = scmp.ne.s32.totalorder %s180, %s196
      %p198 = scmp.eq.s32.totalorder %s20, 0
      %p199 = por %p197, %p198
      %p200 = scmp.le.s32.totalorder 1, %s14
      %p201 = scmp.lt.s32.totalorder %s14, 3
      %p202 = pnand %p200, %p201
      %p203 = pneg %p202
      // Predicated region
      $region9: #{tpu_custom_call.1} parent=5 // pred_check
        _
      $region10: #{tpu_custom_call.1} parent=5 // pred_check_branch
        %205 = sbr.rel (%p202) target = $region12
      $region11: #{tpu_custom_call.1} parent=5 // pred_region
        %s206 = ssub.s32 %s14, 1
        // Predicated region
        $region13: #{tpu_custom_call.1} parent=11 // pred_check
          %p207 = pneg %p61
        $region14: #{tpu_custom_call.1} parent=11 // pred_check_branch
          %209 = sbr.rel (%p207) target = $region16
        $region15: #{tpu_custom_call.1} parent=11 // pred_region
          _
        $region16: #{tpu_custom_call.1} parent=11 // pred_fallthru
          _
        // Predicated region
        $region17: #{tpu_custom_call.1} parent=11 // pred_check
          %p210 = pneg %p82
        $region18: #{tpu_custom_call.1} parent=11 // pred_check_branch
          %212 = sbr.rel (%p210) target = $region20
        $region19: #{tpu_custom_call.1} parent=11 // pred_region
          _
        $region20: #{tpu_custom_call.1} parent=11 // pred_fallthru
          _
        // Predicated region
        $region21: #{tpu_custom_call.1} parent=11 // pred_check
          %p213 = pneg %p103
        $region22: #{tpu_custom_call.1} parent=11 // pred_check_branch
          %215 = sbr.rel (%p213) target = $region24
        $region23: #{tpu_custom_call.1} parent=11 // pred_region
          %s217 = ssub.s32 12288, 12288
          %218 = vsyncadd [#allocation3], %s217
          %s219 = sshll.u32 [#allocation2], 4
          %s220 = int_to_ptr.vmem [resolvable:$true] %s219
          %225 = dma.hbm_to_vmem [thread:$0]  %s3, 12288, %s220, [#allocation3], 128, 128, 8
        $region24: #{tpu_custom_call.1} parent=11 // pred_fallthru
          _
        // Predicated region
        $region25: #{tpu_custom_call.1} parent=11 // pred_check
          %p226 = pneg %p124
        $region26: #{tpu_custom_call.1} parent=11 // pred_check_branch
          %228 = sbr.rel (%p226) target = $region28
        $region27: #{tpu_custom_call.1} parent=11 // pred_region
          _
        $region28: #{tpu_custom_call.1} parent=11 // pred_fallthru
          _
        // Predicated region
        $region29: #{tpu_custom_call.1} parent=11 // pred_check
          %p229 = pneg %p145
        $region30: #{tpu_custom_call.1} parent=11 // pred_check_branch
          %231 = sbr.rel (%p229) target = $region32
        $region31: #{tpu_custom_call.1} parent=11 // pred_region
          _
        $region32: #{tpu_custom_call.1} parent=11 // pred_fallthru
          _
        // Predicated region
        $region33: #{tpu_custom_call.1} parent=11 // pred_check
          %p232 = pneg %p166
        $region34: #{tpu_custom_call.1} parent=11 // pred_check_branch
          %234 = sbr.rel (%p232) target = $region36
        $region35: #{tpu_custom_call.1} parent=11 // pred_region
          _
        $region36: #{tpu_custom_call.1} parent=11 // pred_fallthru
          _
      $region12: #{tpu_custom_call.1} parent=5 // pred_fallthru
        _
      %p235 = scmp.lt.s32.totalorder %s14, 2
      // Predicated region
      $region37: #{tpu_custom_call.1} parent=5 // pred_check
        %p236 = pneg %p235
      $region38: #{tpu_custom_call.1} parent=5 // pred_check_branch
        %238 = sbr.rel (%p236) target = $region40
      $region39: #{tpu_custom_call.1} parent=5 // pred_region
        // Predicated region
        $region41: #{tpu_custom_call.1} parent=39 // pred_check
          %p239 = pneg %p34
        $region42: #{tpu_custom_call.1} parent=39 // pred_check_branch
          %241 = sbr.rel (%p239) target = $region44
        $region43: #{tpu_custom_call.1} parent=39 // pred_region
          %s242 = smul.u32 8, %s14
          %p243 = scmp.lt.s32.totalorder %s242, 15
          %s244 = scalar_select %p243, %s242, 15
          %s245 = smul.addr %s244, 8
          %s246 = scalar_lea.vmem %s0, %s245
          %s247 = smul.u32 8, %s14
        $region44: #{tpu_custom_call.1} parent=39 // pred_fallthru
          _
      $region40: #{tpu_custom_call.1} parent=5 // pred_fallthru
        _
      %p248 = scmp.le.s32.totalorder 1, %s14
      %p249 = scmp.lt.s32.totalorder %s14, 3
      %p250 = pnand %p248, %p249
      %p251 = pneg %p250
      // Predicated region
      $region45: #{tpu_custom_call.1} parent=5 // pred_check
        _
      $region46: #{tpu_custom_call.1} parent=5 // pred_check_branch
        %253 = sbr.rel (%p250) target = $region48
      $region47: #{tpu_custom_call.1} parent=5 // pred_region
        %s254 = ssub.s32 %s14, 1
        // Predicated region
        $region49: #{tpu_custom_call.1} parent=47 // pred_check
          %p255 = pneg %p103
        $region50: #{tpu_custom_call.1} parent=47 // pred_check_branch
          %257 = sbr.rel (%p255) target = $region52
        $region51: #{tpu_custom_call.1} parent=47 // pred_region
          %258 = dma.done [#allocation3], 12288
        $region52: #{tpu_custom_call.1} parent=47 // pred_fallthru
          _
        %s259 = smul.u32 8, %s19
        %p260 = scmp.lt.s32.totalorder %s259, 15
        %s261 = scalar_select %p260, %s259, 15
        %s262 = smul.addr %s261, 8
        %s263 = scalar_lea.vmem %s0, %s262
        %p264 = pneg %p40
        %p265 = pneg %p37
        %p266 = pneg %p61
        %p267 = pneg %p58
        %p268 = pneg %p82
        %p269 = pneg %p79
        %p270 = pneg %p103
        %p271 = pneg %p100
        %p272 = pneg %p124
        %p273 = pneg %p121
        %p274 = pneg %p145
        %p275 = pneg %p142
        %p276 = pneg %p166
        %p277 = pneg %p163
        %p278 = pneg %p192
        %p279 = pneg %p189
        %s280 = smul.u32 8, %s19
        %p281 = scmp.lt.s32.totalorder %s280, 15
        %s282 = scalar_select %p281, %s280, 15
        %s283 = smul.addr %s282, 8
        %s284 = scalar_lea.vmem %s7, %s283
        %s285 = smul.u32 8, %s19
        %p286 = scmp.lt.s32.totalorder %s285, 15
        %s287 = scalar_select %p286, %s285, 15
        %s288 = smul.addr %s287, 8
        %s289 = scalar_lea.vmem %s0, %s288
        %s290 = smul.u32 8, %s19
        %s291 = smul.u32 8, %s19
        %p292 = scmp.lt.s32.totalorder %s291, 15
        %s293 = scalar_select %p292, %s291, 15
        %s294 = smul.addr %s293, 8
        %s295 = scalar_lea.vmem %s7, %s294
        %s296 = smul.u32 8, %s19
        %v297 = vld [vmem:[%s289] sm:$0xff]
        %v298 = vld [vmem:[%s289 + $0x8] sm:$0xff]
        %v299 = vld [vmem:[%s289 + $0x10] sm:$0xff]
        %v300 = vld [vmem:[%s289 + $0x18] sm:$0xff]
        %v301 = vld [vmem:[%s289 + $0x20] sm:$0xff]
        %v302 = vld [vmem:[%s289 + $0x28] sm:$0xff]
        %v303 = vld [vmem:[%s289 + $0x30] sm:$0xff]
        %v304 = vld [vmem:[%s289 + $0x38] sm:$0xff]
        %v305 = vld [vmem:[%s1] sm:$0xff]
        %v306 = vld [vmem:[%s1 + $0x8] sm:$0xf]
        %v307 = vld [vmem:[%s2] sm:$0x1]
        %v309 = vlaneseq
        %v310 = vshrl.u32 %v309, 7
        %v311 = vsub.s32 0, %v310
        %v312 = vrot.slane %v307, %v311
        %vm314 = vcmask 97280
        %v316 = vsel %vm314, %v297, 0
        %v319 = vsel %vm314, %v298, 0
        %v322 = vsel %vm314, %v299, 0
        %v325 = vsel %vm314, %v300, 0
        %v328 = vsel %vm314, %v301, 0
        %v331 = vsel %vm314, %v302, 0
        %v334 = vsel %vm314, %v303, 0
        %v337 = vsel %vm314, %v304, 0
        %vm339 = vcmask 1043456
        %v341 = vsel %vm339, %v306, 0
        %343 = vmatprep.subr.mxu0 0.0
        %344 = vmatpush1.msra.mxu0 %v305
        %345 = vmatprep.subr.mxu0 0.0
        %346 = vmatpush1.msra.mxu0 %v341
        %347 = vmatprep.subr.mxu0 0.0
        %348 = vmatpush1.msra.mxu0 0.0
        %349 = vmatprep.subr.mxu0 0.0
        %350 = vmatpush1.msra.mxu0 0.0
        %351 = vmatprep.subr.mxu0 0.0
        %352 = vmatpush1.msra.mxu0 0.0
        %353 = vmatprep.subr.mxu0 0.0
        %354 = vmatpush1.msra.mxu0 0.0
        %355 = vmatprep.subr.mxu0 0.0
        %356 = vmatpush1.msra.mxu0 0.0
        %357 = vmatprep.subr.mxu0 0.0
        %358 = vmatpush1.msra.mxu0 0.0
        %359 = vmatprep.subr.mxu0 0.0
        %360 = vmatpush1.msra.mxu0 0.0
        %361 = vmatprep.subr.mxu0 0.0
        %362 = vmatpush1.msra.mxu0 0.0
        %363 = vmatprep.subr.mxu0 0.0
        %364 = vmatpush1.msra.mxu0 0.0
        %365 = vmatprep.subr.mxu0 0.0
        %366 = vmatpush1.msra.mxu0 0.0
        %367 = vmatprep.subr.mxu0 0.0
        %368 = vmatpush1.msra.mxu0 0.0
        %369 = vmatprep.subr.mxu0 0.0
        %370 = vmatpush1.msra.mxu0 0.0
        %371 = vmatprep.subr.mxu0 0.0
        %372 = vmatpush1.msra.mxu0 0.0
        %373 = vmatprep.subr.mxu0 0.0
        %374 = vmatpush1.msra.mxu0 0.0
        %375 = vmatprep.subr.mxu0 0.0
        %376 = vmatpush1.msra.mxu0 0.0
        %377 = vmatprep.subr.mxu0 0.0
        %378 = vmatpush1.msra.mxu0 0.0
        %379 = vmatprep.subr.mxu0 0.0
        %380 = vmatpush1.msra.mxu0 0.0
        %381 = vmatprep.subr.mxu0 0.0
        %382 = vmatpush1.msra.mxu0 0.0
        %383 = vmatprep.subr.mxu0 0.0
        %384 = vmatpush1.msra.mxu0 0.0
        %385 = vmatprep.subr.mxu0 0.0
        %386 = vmatpush1.msra.mxu0 0.0
        %387 = vmatprep.subr.mxu0 0.0
        %388 = vmatpush1.msra.mxu0 0.0
        %389 = vmatprep.subr.mxu0 0.0
        %390 = vmatpush1.msra.mxu0 0.0
        %391 = vmatprep.subr.mxu0 0.0
        %392 = vmatpush1.msra.mxu0 0.0
        %393 = vmatprep.subr.mxu0 0.0
        %394 = vmatpush1.msra.mxu0 0.0
        %395 = vmatprep.subr.mxu0 0.0
        %396 = vmatpush1.msra.mxu0 0.0
        %397 = vmatprep.subr.mxu0 0.0
        %398 = vmatpush1.msra.mxu0 0.0
        %399 = vmatprep.subr.mxu0 0.0
        %400 = vmatpush1.msra.mxu0 0.0
        %401 = vmatprep.subr.mxu0 0.0
        %402 = vmatpush1.msra.mxu0 0.0
        %403 = vmatprep.subr.mxu0 0.0
        %404 = vmatpush1.msra.mxu0 0.0
        %405 = vmatprep.subr.mxu0 0.0
        %406 = vmatpush1.msra.mxu0 0.0
        %407 = vmatprep.mubr.f32.mxu0 0.0
        %408 = vmatmul.mubr.f32.gmra.mrb[0].mxu0 %v316
        %v409 = vpop.f32.mrb[0].mxu0
        %v410 = vadd.f32 %v312, %v409
        %v411 = vpop.f32.mrb[0].mxu0
        %412 = vmatprep.mubr.f32.mxu0 0.0
        %413 = vmatmul.mubr.f32.gmra.mrb[0].mxu0 %v319
        %v414 = vpop.f32.mrb[0].mxu0
        %v415 = vadd.f32 %v312, %v414
        %v416 = vpop.f32.mrb[0].mxu0
        %417 = vmatprep.mubr.f32.mxu0 0.0
        %418 = vmatmul.mubr.f32.gmra.mrb[0].mxu0 %v322
        %v419 = vpop.f32.mrb[0].mxu0
        %v420 = vadd.f32 %v312, %v419
        %v421 = vpop.f32.mrb[0].mxu0
        %422 = vmatprep.mubr.f32.mxu0 0.0
        %423 = vmatmul.mubr.f32.gmra.mrb[0].mxu0 %v325
        %v424 = vpop.f32.mrb[0].mxu0
        %v425 = vadd.f32 %v312, %v424
        %v426 = vpop.f32.mrb[0].mxu0
        %427 = vmatprep.mubr.f32.mxu0 0.0
        %428 = vmatmul.mubr.f32.gmra.mrb[0].mxu0 %v328
        %v429 = vpop.f32.mrb[0].mxu0
        %v430 = vadd.f32 %v312, %v429
        %v431 = vpop.f32.mrb[0].mxu0
        %432 = vmatprep.mubr.f32.mxu0 0.0
        %433 = vmatmul.mubr.f32.gmra.mrb[0].mxu0 %v331
        %v434 = vpop.f32.mrb[0].mxu0
        %v435 = vadd.f32 %v312, %v434
        %v436 = vpop.f32.mrb[0].mxu0
        %437 = vmatprep.mubr.f32.mxu0 0.0
        %438 = vmatmul.mubr.f32.gmra.mrb[0].mxu0 %v334
        %v439 = vpop.f32.mrb[0].mxu0
        %v440 = vadd.f32 %v312, %v439
        %v441 = vpop.f32.mrb[0].mxu0
        %442 = vmatprep.mubr.f32.mxu0 0.0
        %443 = vmatmul.mubr.f32.gmra.mrb[0].mxu0 %v337
        %v444 = vpop.f32.mrb[0].mxu0
        %v445 = vadd.f32 %v312, %v444
        %v446 = vpop.f32.mrb[0].mxu0
        %447 = vdwg.mxu0
        %v448 = vand.u32 2147483647, %v410
        %vm449 = vcmp.le.f32.partialorder %v448, 0.7853982
        %vm450 = vcmp.lt.s32.totalorder %v410, 0
        %v451 = vand.u32 %v410, 2139095040
        %v452 = vshrl.u32 %v451, 23
        %v453 = vsub.s32 %v452, 127
        %v454 = vand.u32 2147483647, %v410
        %v455 = vand.u32 %v454, 8388607
        %v456 = vor.u32 %v455, 8388608
        %v457 = vsub.s32 0, %v456
        %v458 = vadd.s32 %v453, 1
        %vm459 = vcmp.gt.s32.totalorder %v458, 0
        %v460 = vsel %vm459, %v458, 0
        %v461 = vshrl.u32 %v460, 5
        %v462 = vand.u32 %v460, 31
        %v463 = vsub.s32 32, %v462
        %v464 = vshrl.u32 683565275, %v463
        %v465 = vshll.u32 683565275, %v462
        %v466 = vshrl.u32 2475754826, %v463
        %v467 = vor.u32 %v465, %v466
        %v468 = vshll.u32 2475754826, %v462
        %v469 = vshrl.u32 2131351028, %v463
        %v470 = vor.u32 %v468, %v469
        %v471 = vshll.u32 2131351028, %v462
        %v472 = vshrl.u32 2102212464, %v463
        %v473 = vor.u32 %v471, %v472
        %v474 = vshll.u32 2102212464, %v462
        %v475 = vshrl.u32 920167782, %v463
        %v476 = vor.u32 %v474, %v475
        %v477 = vshll.u32 920167782, %v462
        %v478 = vshrl.u32 1326507024, %v463
        %v479 = vor.u32 %v477, %v478
        %vm480 = vcmp.lt.s32.totalorder %v461, 1
        %vm481 = vcmp.lt.s32.totalorder %v461, 2
        %vm482 = vcmp.lt.s32.totalorder %v461, 3
        %vm483 = vcmp.lt.s32.totalorder %v461, 4
        %v484 = vsel %vm480, %v464, %v467
        %v485 = vsel %vm483, %v473, 2102212464
        %v486 = vsel %vm482, %v470, %v485
        %v487 = vsel %vm481, %v484, %v486
        %v488 = vsel %vm480, %v467, %v470
        %v489 = vsel %vm483, %v476, 920167782
        %v490 = vsel %vm482, %v473, %v489
        %v491 = vsel %vm481, %v488, %v490
        %v492 = vsel %vm480, %v470, %v473
        %v493 = vsel %vm483, %v479, 1326507024
        %v494 = vsel %vm482, %v476, %v493
        %v495 = vsel %vm481, %v492, %v494
        %v496 = vshll.u32 %v456, 8
        %v497 = vmul.u32.u64.compose %v496, %v495
        %v498 = vextract.low.u32 %v497
        %v499 = vextract.high.u32 %v497
        %v500 = vmul.u32.u64.compose %v496, %v491
        %v501 = vextract.low.u32 %v500
        %v502 = vextract.high.u32 %v500
        %v503 = vmul.u32 %v496, %v487
        %v504 = vadd.s32 %v499, %v501
        %vm505 = vc.u32 %v499, %v501
        %v506 = vadd.s32 %v502, 1
        %v507 = vsel %vm505, %v506, %v502
        %v508 = vadd.s32 %v503, %v507
        %v509 = vadd.s32 %v508, 536870912
        %v510 = vshrl.u32 %v509, 30
        %v511 = vshll.u32 %v510, 30
        %v512 = vsub.s32 %v508, %v511
        %vm513 = vcmp.lt.s32.totalorder %v512, 0
        %v514 = vsub.s32 0, %v512
        %v515 = vsel %vm513, %v514, %v512
        %v516 = vclz %v515
        %v517 = vsub.s32 %v516, 2
        %vm518 = vcmp.gt.s32.totalorder 0, %v517
        %v519 = vsel %vm518, 0, %v517
        %v520 = vsub.s32 32, %v519
        %v521 = vshll.u32 %v512, %v519
        %v522 = vshrl.u32 %v504, %v520
        %v523 = vor.u32 %v521, %v522
        %v524 = vsub.s32 4294967266, %v519
        %v525 = vadd.s32 %v524, 127
        %v526 = vshll.u32 %v525, 23
        %v527 = vor.u32 4788187, %v526
        %v528 = vand.u32 2147483647, %v527
        %v530 = vcvt.s32.f32 %v523
        %v531 = vmul.f32 %v530, %v528
        %v532 = vxor.u32 %v531, 2147483648
        %v533 = vsel %vm450, %v532, %v531
        %v534 = vsub.s32 4, %v510
        %v535 = vsel %vm450, %v534, %v510
        %v536 = vsel %vm449, %v410, %v533
        %v537 = vsel %vm449, 0, %v535
        %v538 = vcosq.f32.pop %v536
        %v539 = vsinq.f32.pop %v536
        %vm540 = vweird.f32 %v410
        %v541 = vadd.s32 %v537, 3
        %v542 = vand.u32 %v541, 3
        %vm543 = vcmp.lt.s32.totalorder %v542, 2
        %vm544 = vcmp.eq.s32.totalorder %v542, 0
        %v545 = vxor.u32 %v539, 2147483648
        %v546 = vsel %vm544, %v538, %v545
        %vm547 = vcmp.eq.s32.totalorder %v542, 2
        %v548 = vxor.u32 %v538, 2147483648
        %v549 = vsel %vm547, %v548, %v539
        %v550 = vsel %vm543, %v546, %v549
        %v551 = vsel %vm540, nan, %v550
        %v552 = vand.u32 2147483647, %v415
        %vm553 = vcmp.le.f32.partialorder %v552, 0.7853982
        %vm554 = vcmp.lt.s32.totalorder %v415, 0
        %v555 = vand.u32 %v415, 2139095040
        %v556 = vshrl.u32 %v555, 23
        %v557 = vsub.s32 %v556, 127
        %v558 = vand.u32 2147483647, %v415
        %v559 = vand.u32 %v558, 8388607
        %v560 = vor.u32 %v559, 8388608
        %v561 = vsub.s32 0, %v560
        %v562 = vadd.s32 %v557, 1
        %vm563 = vcmp.gt.s32.totalorder %v562, 0
        %v564 = vsel %vm563, %v562, 0
        %v565 = vshrl.u32 %v564, 5
        %v566 = vand.u32 %v564, 31
        %v567 = vsub.s32 32, %v566
        %v568 = vshrl.u32 683565275, %v567
        %v569 = vshll.u32 683565275, %v566
        %v570 = vshrl.u32 2475754826, %v567
        %v571 = vor.u32 %v569, %v570
        %v572 = vshll.u32 2475754826, %v566
        %v573 = vshrl.u32 2131351028, %v567
        %v574 = vor.u32 %v572, %v573
        %v575 = vshll.u32 2131351028, %v566
        %v576 = vshrl.u32 2102212464, %v567
        %v577 = vor.u32 %v575, %v576
        %v578 = vshll.u32 2102212464, %v566
        %v579 = vshrl.u32 920167782, %v567
        %v580 = vor.u32 %v578, %v579
        %v581 = vshll.u32 920167782, %v566
        %v582 = vshrl.u32 1326507024, %v567
        %v583 = vor.u32 %v581, %v582
        %vm584 = vcmp.lt.s32.totalorder %v565, 1
        %vm585 = vcmp.lt.s32.totalorder %v565, 2
        %vm586 = vcmp.lt.s32.totalorder %v565, 3
        %vm587 = vcmp.lt.s32.totalorder %v565, 4
        %v588 = vsel %vm584, %v568, %v571
        %v589 = vsel %vm587, %v577, 2102212464
        %v590 = vsel %vm586, %v574, %v589
        %v591 = vsel %vm585, %v588, %v590
        %v592 = vsel %vm584, %v571, %v574
        %v593 = vsel %vm587, %v580, 920167782
        %v594 = vsel %vm586, %v577, %v593
        %v595 = vsel %vm585, %v592, %v594
        %v596 = vsel %vm584, %v574, %v577
        %v597 = vsel %vm587, %v583, 1326507024
        %v598 = vsel %vm586, %v580, %v597
        %v599 = vsel %vm585, %v596, %v598
        %v600 = vshll.u32 %v560, 8
        %v601 = vmul.u32.u64.compose %v600, %v599
        %v602 = vextract.low.u32 %v601
        %v603 = vextract.high.u32 %v601
        %v604 = vmul.u32.u64.compose %v600, %v595
        %v605 = vextract.low.u32 %v604
        %v606 = vextract.high.u32 %v604
        %v607 = vmul.u32 %v600, %v591
        %v608 = vadd.s32 %v603, %v605
        %vm609 = vc.u32 %v603, %v605
        %v610 = vadd.s32 %v606, 1
        %v611 = vsel %vm609, %v610, %v606
        %v612 = vadd.s32 %v607, %v611
        %v613 = vadd.s32 %v612, 536870912
        %v614 = vshrl.u32 %v613, 30
        %v615 = vshll.u32 %v614, 30
        %v616 = vsub.s32 %v612, %v615
        %vm617 = vcmp.lt.s32.totalorder %v616, 0
        %v618 = vsub.s32 0, %v616
        %v619 = vsel %vm617, %v618, %v616
        %v620 = vclz %v619
        %v621 = vsub.s32 %v620, 2
        %vm622 = vcmp.gt.s32.totalorder 0, %v621
        %v623 = vsel %vm622, 0, %v621
        %v624 = vsub.s32 32, %v623
        %v625 = vshll.u32 %v616, %v623
        %v626 = vshrl.u32 %v608, %v624
        %v627 = vor.u32 %v625, %v626
        %v628 = vsub.s32 4294967266, %v623
        %v629 = vadd.s32 %v628, 127
        %v630 = vshll.u32 %v629, 23
        %v631 = vor.u32 4788187, %v630
        %v632 = vand.u32 2147483647, %v631
        %v634 = vcvt.s32.f32 %v627
        %v635 = vmul.f32 %v634, %v632
        %v636 = vxor.u32 %v635, 2147483648
        %v637 = vsel %vm554, %v636, %v635
        %v638 = vsub.s32 4, %v614
        %v639 = vsel %vm554, %v638, %v614
        %v640 = vsel %vm553, %v415, %v637
        %v641 = vsel %vm553, 0, %v639
        %v642 = vcosq.f32.pop %v640
        %v643 = vsinq.f32.pop %v640
        %vm644 = vweird.f32 %v415
        %v645 = vadd.s32 %v641, 3
        %v646 = vand.u32 %v645, 3
        %vm647 = vcmp.lt.s32.totalorder %v646, 2
        %vm648 = vcmp.eq.s32.totalorder %v646, 0
        %v649 = vxor.u32 %v643, 2147483648
        %v650 = vsel %vm648, %v642, %v649
        %vm651 = vcmp.eq.s32.totalorder %v646, 2
        %v652 = vxor.u32 %v642, 2147483648
        %v653 = vsel %vm651, %v652, %v643
        %v654 = vsel %vm647, %v650, %v653
        %v655 = vsel %vm644, nan, %v654
        %v656 = vand.u32 2147483647, %v420
        %vm657 = vcmp.le.f32.partialorder %v656, 0.7853982
        %vm658 = vcmp.lt.s32.totalorder %v420, 0
        %v659 = vand.u32 %v420, 2139095040
        %v660 = vshrl.u32 %v659, 23
        %v661 = vsub.s32 %v660, 127
        %v662 = vand.u32 2147483647, %v420
        %v663 = vand.u32 %v662, 8388607
        %v664 = vor.u32 %v663, 8388608
        %v665 = vsub.s32 0, %v664
        %v666 = vadd.s32 %v661, 1
        %vm667 = vcmp.gt.s32.totalorder %v666, 0
        %v668 = vsel %vm667, %v666, 0
        %v669 = vshrl.u32 %v668, 5
        %v670 = vand.u32 %v668, 31
        %v671 = vsub.s32 32, %v670
        %v672 = vshrl.u32 683565275, %v671
        %v673 = vshll.u32 683565275, %v670
        %v674 = vshrl.u32 2475754826, %v671
        %v675 = vor.u32 %v673, %v674
        %v676 = vshll.u32 2475754826, %v670
        %v677 = vshrl.u32 2131351028, %v671
        %v678 = vor.u32 %v676, %v677
        %v679 = vshll.u32 2131351028, %v670
        %v680 = vshrl.u32 2102212464, %v671
        %v681 = vor.u32 %v679, %v680
        %v682 = vshll.u32 2102212464, %v670
        %v683 = vshrl.u32 920167782, %v671
        %v684 = vor.u32 %v682, %v683
        %v685 = vshll.u32 920167782, %v670
        %v686 = vshrl.u32 1326507024, %v671
        %v687 = vor.u32 %v685, %v686
        %vm688 = vcmp.lt.s32.totalorder %v669, 1
        %vm689 = vcmp.lt.s32.totalorder %v669, 2
        %vm690 = vcmp.lt.s32.totalorder %v669, 3
        %vm691 = vcmp.lt.s32.totalorder %v669, 4
        %v692 = vsel %vm688, %v672, %v675
        %v693 = vsel %vm691, %v681, 2102212464
        %v694 = vsel %vm690, %v678, %v693
        %v695 = vsel %vm689, %v692, %v694
        %v696 = vsel %vm688, %v675, %v678
        %v697 = vsel %vm691, %v684, 920167782
        %v698 = vsel %vm690, %v681, %v697
        %v699 = vsel %vm689, %v696, %v698
        %v700 = vsel %vm688, %v678, %v681
        %v701 = vsel %vm691, %v687, 1326507024
        %v702 = vsel %vm690, %v684, %v701
        %v703 = vsel %vm689, %v700, %v702
        %v704 = vshll.u32 %v664, 8
        %v705 = vmul.u32.u64.compose %v704, %v703
        %v706 = vextract.low.u32 %v705
        %v707 = vextract.high.u32 %v705
        %v708 = vmul.u32.u64.compose %v704, %v699
        %v709 = vextract.low.u32 %v708
        %v710 = vextract.high.u32 %v708
        %v711 = vmul.u32 %v704, %v695
        %v712 = vadd.s32 %v707, %v709
        %vm713 = vc.u32 %v707, %v709
        %v714 = vadd.s32 %v710, 1
        %v715 = vsel %vm713, %v714, %v710
        %v716 = vadd.s32 %v711, %v715
        %v717 = vadd.s32 %v716, 536870912
        %v718 = vshrl.u32 %v717, 30
        %v719 = vshll.u32 %v718, 30
        %v720 = vsub.s32 %v716, %v719
        %vm721 = vcmp.lt.s32.totalorder %v720, 0
        %v722 = vsub.s32 0, %v720
        %v723 = vsel %vm721, %v722, %v720
        %v724 = vclz %v723
        %v725 = vsub.s32 %v724, 2
        %vm726 = vcmp.gt.s32.totalorder 0, %v725
        %v727 = vsel %vm726, 0, %v725
        %v728 = vsub.s32 32, %v727
        %v729 = vshll.u32 %v720, %v727
        %v730 = vshrl.u32 %v712, %v728
        %v731 = vor.u32 %v729, %v730
        %v732 = vsub.s32 4294967266, %v727
        %v733 = vadd.s32 %v732, 127
        %v734 = vshll.u32 %v733, 23
        %v735 = vor.u32 4788187, %v734
        %v736 = vand.u32 2147483647, %v735
        %v738 = vcvt.s32.f32 %v731
        %v739 = vmul.f32 %v738, %v736
        %v740 = vxor.u32 %v739, 2147483648
        %v741 = vsel %vm658, %v740, %v739
        %v742 = vsub.s32 4, %v718
        %v743 = vsel %vm658, %v742, %v718
        %v744 = vsel %vm657, %v420, %v741
        %v745 = vsel %vm657, 0, %v743
        %v746 = vcosq.f32.pop %v744
        %v747 = vsinq.f32.pop %v744
        %vm748 = vweird.f32 %v420
        %v749 = vadd.s32 %v745, 3
        %v750 = vand.u32 %v749, 3
        %vm751 = vcmp.lt.s32.totalorder %v750, 2
        %vm752 = vcmp.eq.s32.totalorder %v750, 0
        %v753 = vxor.u32 %v747, 2147483648
        %v754 = vsel %vm752, %v746, %v753
        %vm755 = vcmp.eq.s32.totalorder %v750, 2
        %v756 = vxor.u32 %v746, 2147483648
        %v757 = vsel %vm755, %v756, %v747
        %v758 = vsel %vm751, %v754, %v757
        %v759 = vsel %vm748, nan, %v758
        %v760 = vand.u32 2147483647, %v425
        %vm761 = vcmp.le.f32.partialorder %v760, 0.7853982
        %vm762 = vcmp.lt.s32.totalorder %v425, 0
        %v763 = vand.u32 %v425, 2139095040
        %v764 = vshrl.u32 %v763, 23
        %v765 = vsub.s32 %v764, 127
        %v766 = vand.u32 2147483647, %v425
        %v767 = vand.u32 %v766, 8388607
        %v768 = vor.u32 %v767, 8388608
        %v769 = vsub.s32 0, %v768
        %v770 = vadd.s32 %v765, 1
        %vm771 = vcmp.gt.s32.totalorder %v770, 0
        %v772 = vsel %vm771, %v770, 0
        %v773 = vshrl.u32 %v772, 5
        %v774 = vand.u32 %v772, 31
        %v775 = vsub.s32 32, %v774
        %v776 = vshrl.u32 683565275, %v775
        %v777 = vshll.u32 683565275, %v774
        %v778 = vshrl.u32 2475754826, %v775
        %v779 = vor.u32 %v777, %v778
        %v780 = vshll.u32 2475754826, %v774
        %v781 = vshrl.u32 2131351028, %v775
        %v782 = vor.u32 %v780, %v781
        %v783 = vshll.u32 2131351028, %v774
        %v784 = vshrl.u32 2102212464, %v775
        %v785 = vor.u32 %v783, %v784
        %v786 = vshll.u32 2102212464, %v774
        %v787 = vshrl.u32 920167782, %v775
        %v788 = vor.u32 %v786, %v787
        %v789 = vshll.u32 920167782, %v774
        %v790 = vshrl.u32 1326507024, %v775
        %v791 = vor.u32 %v789, %v790
        %vm792 = vcmp.lt.s32.totalorder %v773, 1
        %vm793 = vcmp.lt.s32.totalorder %v773, 2
        %vm794 = vcmp.lt.s32.totalorder %v773, 3
        %vm795 = vcmp.lt.s32.totalorder %v773, 4
        %v796 = vsel %vm792, %v776, %v779
        %v797 = vsel %vm795, %v785, 2102212464
        %v798 = vsel %vm794, %v782, %v797
        %v799 = vsel %vm793, %v796, %v798
        %v800 = vsel %vm792, %v779, %v782
        %v801 = vsel %vm795, %v788, 920167782
        %v802 = vsel %vm794, %v785, %v801
        %v803 = vsel %vm793, %v800, %v802
        %v804 = vsel %vm792, %v782, %v785
        %v805 = vsel %vm795, %v791, 1326507024
        %v806 = vsel %vm794, %v788, %v805
        %v807 = vsel %vm793, %v804, %v806
        %v808 = vshll.u32 %v768, 8
        %v809 = vmul.u32.u64.compose %v808, %v807
        %v810 = vextract.low.u32 %v809
        %v811 = vextract.high.u32 %v809
        %v812 = vmul.u32.u64.compose %v808, %v803
        %v813 = vextract.low.u32 %v812
        %v814 = vextract.high.u32 %v812
        %v815 = vmul.u32 %v808, %v799
        %v816 = vadd.s32 %v811, %v813
        %vm817 = vc.u32 %v811, %v813
        %v818 = vadd.s32 %v814, 1
        %v819 = vsel %vm817, %v818, %v814
        %v820 = vadd.s32 %v815, %v819
        %v821 = vadd.s32 %v820, 536870912
        %v822 = vshrl.u32 %v821, 30
        %v823 = vshll.u32 %v822, 30
        %v824 = vsub.s32 %v820, %v823
        %vm825 = vcmp.lt.s32.totalorder %v824, 0
        %v826 = vsub.s32 0, %v824
        %v827 = vsel %vm825, %v826, %v824
        %v828 = vclz %v827
        %v829 = vsub.s32 %v828, 2
        %vm830 = vcmp.gt.s32.totalorder 0, %v829
        %v831 = vsel %vm830, 0, %v829
        %v832 = vsub.s32 32, %v831
        %v833 = vshll.u32 %v824, %v831
        %v834 = vshrl.u32 %v816, %v832
        %v835 = vor.u32 %v833, %v834
        %v836 = vsub.s32 4294967266, %v831
        %v837 = vadd.s32 %v836, 127
        %v838 = vshll.u32 %v837, 23
        %v839 = vor.u32 4788187, %v838
        %v840 = vand.u32 2147483647, %v839
        %v842 = vcvt.s32.f32 %v835
        %v843 = vmul.f32 %v842, %v840
        %v844 = vxor.u32 %v843, 2147483648
        %v845 = vsel %vm762, %v844, %v843
        %v846 = vsub.s32 4, %v822
        %v847 = vsel %vm762, %v846, %v822
        %v848 = vsel %vm761, %v425, %v845
        %v849 = vsel %vm761, 0, %v847
        %v850 = vcosq.f32.pop %v848
        %v851 = vsinq.f32.pop %v848
        %vm852 = vweird.f32 %v425
        %v853 = vadd.s32 %v849, 3
        %v854 = vand.u32 %v853, 3
        %vm855 = vcmp.lt.s32.totalorder %v854, 2
        %vm856 = vcmp.eq.s32.totalorder %v854, 0
        %v857 = vxor.u32 %v851, 2147483648
        %v858 = vsel %vm856, %v850, %v857
        %vm859 = vcmp.eq.s32.totalorder %v854, 2
        %v860 = vxor.u32 %v850, 2147483648
        %v861 = vsel %vm859, %v860, %v851
        %v862 = vsel %vm855, %v858, %v861
        %v863 = vsel %vm852, nan, %v862
        %v864 = vand.u32 2147483647, %v430
        %vm865 = vcmp.le.f32.partialorder %v864, 0.7853982
        %vm866 = vcmp.lt.s32.totalorder %v430, 0
        %v867 = vand.u32 %v430, 2139095040
        %v868 = vshrl.u32 %v867, 23
        %v869 = vsub.s32 %v868, 127
        %v870 = vand.u32 2147483647, %v430
        %v871 = vand.u32 %v870, 8388607
        %v872 = vor.u32 %v871, 8388608
        %v873 = vsub.s32 0, %v872
        %v874 = vadd.s32 %v869, 1
        %vm875 = vcmp.gt.s32.totalorder %v874, 0
        %v876 = vsel %vm875, %v874, 0
        %v877 = vshrl.u32 %v876, 5
        %v878 = vand.u32 %v876, 31
        %v879 = vsub.s32 32, %v878
        %v880 = vshrl.u32 683565275, %v879
        %v881 = vshll.u32 683565275, %v878
        %v882 = vshrl.u32 2475754826, %v879
        %v883 = vor.u32 %v881, %v882
        %v884 = vshll.u32 2475754826, %v878
        %v885 = vshrl.u32 2131351028, %v879
        %v886 = vor.u32 %v884, %v885
        %v887 = vshll.u32 2131351028, %v878
        %v888 = vshrl.u32 2102212464, %v879
        %v889 = vor.u32 %v887, %v888
        %v890 = vshll.u32 2102212464, %v878
        %v891 = vshrl.u32 920167782, %v879
        %v892 = vor.u32 %v890, %v891
        %v893 = vshll.u32 920167782, %v878
        %v894 = vshrl.u32 1326507024, %v879
        %v895 = vor.u32 %v893, %v894
        %vm896 = vcmp.lt.s32.totalorder %v877, 1
        %vm897 = vcmp.lt.s32.totalorder %v877, 2
        %vm898 = vcmp.lt.s32.totalorder %v877, 3
        %vm899 = vcmp.lt.s32.totalorder %v877, 4
        %v900 = vsel %vm896, %v880, %v883
        %v901 = vsel %vm899, %v889, 2102212464
        %v902 = vsel %vm898, %v886, %v901
        %v903 = vsel %vm897, %v900, %v902
        %v904 = vsel %vm896, %v883, %v886
        %v905 = vsel %vm899, %v892, 920167782
        %v906 = vsel %vm898, %v889, %v905
        %v907 = vsel %vm897, %v904, %v906
        %v908 = vsel %vm896, %v886, %v889
        %v909 = vsel %vm899, %v895, 1326507024
        %v910 = vsel %vm898, %v892, %v909
        %v911 = vsel %vm897, %v908, %v910
        %v912 = vshll.u32 %v872, 8
        %v913 = vmul.u32.u64.compose %v912, %v911
        %v914 = vextract.low.u32 %v913
        %v915 = vextract.high.u32 %v913
        %v916 = vmul.u32.u64.compose %v912, %v907
        %v917 = vextract.low.u32 %v916
        %v918 = vextract.high.u32 %v916
        %v919 = vmul.u32 %v912, %v903
        %v920 = vadd.s32 %v915, %v917
        %vm921 = vc.u32 %v915, %v917
        %v922 = vadd.s32 %v918, 1
        %v923 = vsel %vm921, %v922, %v918
        %v924 = vadd.s32 %v919, %v923
        %v925 = vadd.s32 %v924, 536870912
        %v926 = vshrl.u32 %v925, 30
        %v927 = vshll.u32 %v926, 30
        %v928 = vsub.s32 %v924, %v927
        %vm929 = vcmp.lt.s32.totalorder %v928, 0
        %v930 = vsub.s32 0, %v928
        %v931 = vsel %vm929, %v930, %v928
        %v932 = vclz %v931
        %v933 = vsub.s32 %v932, 2
        %vm934 = vcmp.gt.s32.totalorder 0, %v933
        %v935 = vsel %vm934, 0, %v933
        %v936 = vsub.s32 32, %v935
        %v937 = vshll.u32 %v928, %v935
        %v938 = vshrl.u32 %v920, %v936
        %v939 = vor.u32 %v937, %v938
        %v940 = vsub.s32 4294967266, %v935
        %v941 = vadd.s32 %v940, 127
        %v942 = vshll.u32 %v941, 23
        %v943 = vor.u32 4788187, %v942
        %v944 = vand.u32 2147483647, %v943
        %v946 = vcvt.s32.f32 %v939
        %v947 = vmul.f32 %v946, %v944
        %v948 = vxor.u32 %v947, 2147483648
        %v949 = vsel %vm866, %v948, %v947
        %v950 = vsub.s32 4, %v926
        %v951 = vsel %vm866, %v950, %v926
        %v952 = vsel %vm865, %v430, %v949
        %v953 = vsel %vm865, 0, %v951
        %v954 = vcosq.f32.pop %v952
        %v955 = vsinq.f32.pop %v952
        %vm956 = vweird.f32 %v430
        %v957 = vadd.s32 %v953, 3
        %v958 = vand.u32 %v957, 3
        %vm959 = vcmp.lt.s32.totalorder %v958, 2
        %vm960 = vcmp.eq.s32.totalorder %v958, 0
        %v961 = vxor.u32 %v955, 2147483648
        %v962 = vsel %vm960, %v954, %v961
        %vm963 = vcmp.eq.s32.totalorder %v958, 2
        %v964 = vxor.u32 %v954, 2147483648
        %v965 = vsel %vm963, %v964, %v955
        %v966 = vsel %vm959, %v962, %v965
        %v967 = vsel %vm956, nan, %v966
        %v968 = vand.u32 2147483647, %v435
        %vm969 = vcmp.le.f32.partialorder %v968, 0.7853982
        %vm970 = vcmp.lt.s32.totalorder %v435, 0
        %v971 = vand.u32 %v435, 2139095040
        %v972 = vshrl.u32 %v971, 23
        %v973 = vsub.s32 %v972, 127
        %v974 = vand.u32 2147483647, %v435
        %v975 = vand.u32 %v974, 8388607
        %v976 = vor.u32 %v975, 8388608
        %v977 = vsub.s32 0, %v976
        %v978 = vadd.s32 %v973, 1
        %vm979 = vcmp.gt.s32.totalorder %v978, 0
        %v980 = vsel %vm979, %v978, 0
        %v981 = vshrl.u32 %v980, 5
        %v982 = vand.u32 %v980, 31
        %v983 = vsub.s32 32, %v982
        %v984 = vshrl.u32 683565275, %v983
        %v985 = vshll.u32 683565275, %v982
        %v986 = vshrl.u32 2475754826, %v983
        %v987 = vor.u32 %v985, %v986
        %v988 = vshll.u32 2475754826, %v982
        %v989 = vshrl.u32 2131351028, %v983
        %v990 = vor.u32 %v988, %v989
        %v991 = vshll.u32 2131351028, %v982
        %v992 = vshrl.u32 2102212464, %v983
        %v993 = vor.u32 %v991, %v992
        %v994 = vshll.u32 2102212464, %v982
        %v995 = vshrl.u32 920167782, %v983
        %v996 = vor.u32 %v994, %v995
        %v997 = vshll.u32 920167782, %v982
        %v998 = vshrl.u32 1326507024, %v983
        %v999 = vor.u32 %v997, %v998
        %vm1000 = vcmp.lt.s32.totalorder %v981, 1
        %vm1001 = vcmp.lt.s32.totalorder %v981, 2
        %vm1002 = vcmp.lt.s32.totalorder %v981, 3
        %vm1003 = vcmp.lt.s32.totalorder %v981, 4
        %v1004 = vsel %vm1000, %v984, %v987
        %v1005 = vsel %vm1003, %v993, 2102212464
        %v1006 = vsel %vm1002, %v990, %v1005
        %v1007 = vsel %vm1001, %v1004, %v1006
        %v1008 = vsel %vm1000, %v987, %v990
        %v1009 = vsel %vm1003, %v996, 920167782
        %v1010 = vsel %vm1002, %v993, %v1009
        %v1011 = vsel %vm1001, %v1008, %v1010
        %v1012 = vsel %vm1000, %v990, %v993
        %v1013 = vsel %vm1003, %v999, 1326507024
        %v1014 = vsel %vm1002, %v996, %v1013
        %v1015 = vsel %vm1001, %v1012, %v1014
        %v1016 = vshll.u32 %v976, 8
        %v1017 = vmul.u32.u64.compose %v1016, %v1015
        %v1018 = vextract.low.u32 %v1017
        %v1019 = vextract.high.u32 %v1017
        %v1020 = vmul.u32.u64.compose %v1016, %v1011
        %v1021 = vextract.low.u32 %v1020
        %v1022 = vextract.high.u32 %v1020
        %v1023 = vmul.u32 %v1016, %v1007
        %v1024 = vadd.s32 %v1019, %v1021
        %vm1025 = vc.u32 %v1019, %v1021
        %v1026 = vadd.s32 %v1022, 1
        %v1027 = vsel %vm1025, %v1026, %v1022
        %v1028 = vadd.s32 %v1023, %v1027
        %v1029 = vadd.s32 %v1028, 536870912
        %v1030 = vshrl.u32 %v1029, 30
        %v1031 = vshll.u32 %v1030, 30
        %v1032 = vsub.s32 %v1028, %v1031
        %vm1033 = vcmp.lt.s32.totalorder %v1032, 0
        %v1034 = vsub.s32 0, %v1032
        %v1035 = vsel %vm1033, %v1034, %v1032
        %v1036 = vclz %v1035
        %v1037 = vsub.s32 %v1036, 2
        %vm1038 = vcmp.gt.s32.totalorder 0, %v1037
        %v1039 = vsel %vm1038, 0, %v1037
        %v1040 = vsub.s32 32, %v1039
        %v1041 = vshll.u32 %v1032, %v1039
        %v1042 = vshrl.u32 %v1024, %v1040
        %v1043 = vor.u32 %v1041, %v1042
        %v1044 = vsub.s32 4294967266, %v1039
        %v1045 = vadd.s32 %v1044, 127
        %v1046 = vshll.u32 %v1045, 23
        %v1047 = vor.u32 4788187, %v1046
        %v1048 = vand.u32 2147483647, %v1047
        %v1050 = vcvt.s32.f32 %v1043
        %v1051 = vmul.f32 %v1050, %v1048
        %v1052 = vxor.u32 %v1051, 2147483648
        %v1053 = vsel %vm970, %v1052, %v1051
        %v1054 = vsub.s32 4, %v1030
        %v1055 = vsel %vm970, %v1054, %v1030
        %v1056 = vsel %vm969, %v435, %v1053
        %v1057 = vsel %vm969, 0, %v1055
        %v1058 = vcosq.f32.pop %v1056
        %v1059 = vsinq.f32.pop %v1056
        %vm1060 = vweird.f32 %v435
        %v1061 = vadd.s32 %v1057, 3
        %v1062 = vand.u32 %v1061, 3
        %vm1063 = vcmp.lt.s32.totalorder %v1062, 2
        %vm1064 = vcmp.eq.s32.totalorder %v1062, 0
        %v1065 = vxor.u32 %v1059, 2147483648
        %v1066 = vsel %vm1064, %v1058, %v1065
        %vm1067 = vcmp.eq.s32.totalorder %v1062, 2
        %v1068 = vxor.u32 %v1058, 2147483648
        %v1069 = vsel %vm1067, %v1068, %v1059
        %v1070 = vsel %vm1063, %v1066, %v1069
        %v1071 = vsel %vm1060, nan, %v1070
        %v1072 = vand.u32 2147483647, %v440
        %vm1073 = vcmp.le.f32.partialorder %v1072, 0.7853982
        %vm1074 = vcmp.lt.s32.totalorder %v440, 0
        %v1075 = vand.u32 %v440, 2139095040
        %v1076 = vshrl.u32 %v1075, 23
        %v1077 = vsub.s32 %v1076, 127
        %v1078 = vand.u32 2147483647, %v440
        %v1079 = vand.u32 %v1078, 8388607
        %v1080 = vor.u32 %v1079, 8388608
        %v1081 = vsub.s32 0, %v1080
        %v1082 = vadd.s32 %v1077, 1
        %vm1083 = vcmp.gt.s32.totalorder %v1082, 0
        %v1084 = vsel %vm1083, %v1082, 0
        %v1085 = vshrl.u32 %v1084, 5
        %v1086 = vand.u32 %v1084, 31
        %v1087 = vsub.s32 32, %v1086
        %v1088 = vshrl.u32 683565275, %v1087
        %v1089 = vshll.u32 683565275, %v1086
        %v1090 = vshrl.u32 2475754826, %v1087
        %v1091 = vor.u32 %v1089, %v1090
        %v1092 = vshll.u32 2475754826, %v1086
        %v1093 = vshrl.u32 2131351028, %v1087
        %v1094 = vor.u32 %v1092, %v1093
        %v1095 = vshll.u32 2131351028, %v1086
        %v1096 = vshrl.u32 2102212464, %v1087
        %v1097 = vor.u32 %v1095, %v1096
        %v1098 = vshll.u32 2102212464, %v1086
        %v1099 = vshrl.u32 920167782, %v1087
        %v1100 = vor.u32 %v1098, %v1099
        %v1101 = vshll.u32 920167782, %v1086
        %v1102 = vshrl.u32 1326507024, %v1087
        %v1103 = vor.u32 %v1101, %v1102
        %vm1104 = vcmp.lt.s32.totalorder %v1085, 1
        %vm1105 = vcmp.lt.s32.totalorder %v1085, 2
        %vm1106 = vcmp.lt.s32.totalorder %v1085, 3
        %vm1107 = vcmp.lt.s32.totalorder %v1085, 4
        %v1108 = vsel %vm1104, %v1088, %v1091
        %v1109 = vsel %vm1107, %v1097, 2102212464
        %v1110 = vsel %vm1106, %v1094, %v1109
        %v1111 = vsel %vm1105, %v1108, %v1110
        %v1112 = vsel %vm1104, %v1091, %v1094
        %v1113 = vsel %vm1107, %v1100, 920167782
        %v1114 = vsel %vm1106, %v1097, %v1113
        %v1115 = vsel %vm1105, %v1112, %v1114
        %v1116 = vsel %vm1104, %v1094, %v1097
        %v1117 = vsel %vm1107, %v1103, 1326507024
        %v1118 = vsel %vm1106, %v1100, %v1117
        %v1119 = vsel %vm1105, %v1116, %v1118
        %v1120 = vshll.u32 %v1080, 8
        %v1121 = vmul.u32.u64.compose %v1120, %v1119
        %v1122 = vextract.low.u32 %v1121
        %v1123 = vextract.high.u32 %v1121
        %v1124 = vmul.u32.u64.compose %v1120, %v1115
        %v1125 = vextract.low.u32 %v1124
        %v1126 = vextract.high.u32 %v1124
        %v1127 = vmul.u32 %v1120, %v1111
        %v1128 = vadd.s32 %v1123, %v1125
        %vm1129 = vc.u32 %v1123, %v1125
        %v1130 = vadd.s32 %v1126, 1
        %v1131 = vsel %vm1129, %v1130, %v1126
        %v1132 = vadd.s32 %v1127, %v1131
        %v1133 = vadd.s32 %v1132, 536870912
        %v1134 = vshrl.u32 %v1133, 30
        %v1135 = vshll.u32 %v1134, 30
        %v1136 = vsub.s32 %v1132, %v1135
        %vm1137 = vcmp.lt.s32.totalorder %v1136, 0
        %v1138 = vsub.s32 0, %v1136
        %v1139 = vsel %vm1137, %v1138, %v1136
        %v1140 = vclz %v1139
        %v1141 = vsub.s32 %v1140, 2
        %vm1142 = vcmp.gt.s32.totalorder 0, %v1141
        %v1143 = vsel %vm1142, 0, %v1141
        %v1144 = vsub.s32 32, %v1143
        %v1145 = vshll.u32 %v1136, %v1143
        %v1146 = vshrl.u32 %v1128, %v1144
        %v1147 = vor.u32 %v1145, %v1146
        %v1148 = vsub.s32 4294967266, %v1143
        %v1149 = vadd.s32 %v1148, 127
        %v1150 = vshll.u32 %v1149, 23
        %v1151 = vor.u32 4788187, %v1150
        %v1152 = vand.u32 2147483647, %v1151
        %v1154 = vcvt.s32.f32 %v1147
        %v1155 = vmul.f32 %v1154, %v1152
        %v1156 = vxor.u32 %v1155, 2147483648
        %v1157 = vsel %vm1074, %v1156, %v1155
        %v1158 = vsub.s32 4, %v1134
        %v1159 = vsel %vm1074, %v1158, %v1134
        %v1160 = vsel %vm1073, %v440, %v1157
        %v1161 = vsel %vm1073, 0, %v1159
        %v1162 = vcosq.f32.pop %v1160
        %v1163 = vsinq.f32.pop %v1160
        %vm1164 = vweird.f32 %v440
        %v1165 = vadd.s32 %v1161, 3
        %v1166 = vand.u32 %v1165, 3
        %vm1167 = vcmp.lt.s32.totalorder %v1166, 2
        %vm1168 = vcmp.eq.s32.totalorder %v1166, 0
        %v1169 = vxor.u32 %v1163, 2147483648
        %v1170 = vsel %vm1168, %v1162, %v1169
        %vm1171 = vcmp.eq.s32.totalorder %v1166, 2
        %v1172 = vxor.u32 %v1162, 2147483648
        %v1173 = vsel %vm1171, %v1172, %v1163
        %v1174 = vsel %vm1167, %v1170, %v1173
        %v1175 = vsel %vm1164, nan, %v1174
        %v1176 = vand.u32 2147483647, %v445
        %vm1177 = vcmp.le.f32.partialorder %v1176, 0.7853982
        %vm1178 = vcmp.lt.s32.totalorder %v445, 0
        %v1179 = vand.u32 %v445, 2139095040
        %v1180 = vshrl.u32 %v1179, 23
        %v1181 = vsub.s32 %v1180, 127
        %v1182 = vand.u32 2147483647, %v445
        %v1183 = vand.u32 %v1182, 8388607
        %v1184 = vor.u32 %v1183, 8388608
        %v1185 = vsub.s32 0, %v1184
        %v1186 = vadd.s32 %v1181, 1
        %vm1187 = vcmp.gt.s32.totalorder %v1186, 0
        %v1188 = vsel %vm1187, %v1186, 0
        %v1189 = vshrl.u32 %v1188, 5
        %v1190 = vand.u32 %v1188, 31
        %v1191 = vsub.s32 32, %v1190
        %v1192 = vshrl.u32 683565275, %v1191
        %v1193 = vshll.u32 683565275, %v1190
        %v1194 = vshrl.u32 2475754826, %v1191
        %v1195 = vor.u32 %v1193, %v1194
        %v1196 = vshll.u32 2475754826, %v1190
        %v1197 = vshrl.u32 2131351028, %v1191
        %v1198 = vor.u32 %v1196, %v1197
        %v1199 = vshll.u32 2131351028, %v1190
        %v1200 = vshrl.u32 2102212464, %v1191
        %v1201 = vor.u32 %v1199, %v1200
        %v1202 = vshll.u32 2102212464, %v1190
        %v1203 = vshrl.u32 920167782, %v1191
        %v1204 = vor.u32 %v1202, %v1203
        %v1205 = vshll.u32 920167782, %v1190
        %v1206 = vshrl.u32 1326507024, %v1191
        %v1207 = vor.u32 %v1205, %v1206
        %vm1208 = vcmp.lt.s32.totalorder %v1189, 1
        %vm1209 = vcmp.lt.s32.totalorder %v1189, 2
        %vm1210 = vcmp.lt.s32.totalorder %v1189, 3
        %vm1211 = vcmp.lt.s32.totalorder %v1189, 4
        %v1212 = vsel %vm1208, %v1192, %v1195
        %v1213 = vsel %vm1211, %v1201, 2102212464
        %v1214 = vsel %vm1210, %v1198, %v1213
        %v1215 = vsel %vm1209, %v1212, %v1214
        %v1216 = vsel %vm1208, %v1195, %v1198
        %v1217 = vsel %vm1211, %v1204, 920167782
        %v1218 = vsel %vm1210, %v1201, %v1217
        %v1219 = vsel %vm1209, %v1216, %v1218
        %v1220 = vsel %vm1208, %v1198, %v1201
        %v1221 = vsel %vm1211, %v1207, 1326507024
        %v1222 = vsel %vm1210, %v1204, %v1221
        %v1223 = vsel %vm1209, %v1220, %v1222
        %v1224 = vshll.u32 %v1184, 8
        %v1225 = vmul.u32.u64.compose %v1224, %v1223
        %v1226 = vextract.low.u32 %v1225
        %v1227 = vextract.high.u32 %v1225
        %v1228 = vmul.u32.u64.compose %v1224, %v1219
        %v1229 = vextract.low.u32 %v1228
        %v1230 = vextract.high.u32 %v1228
        %v1231 = vmul.u32 %v1224, %v1215
        %v1232 = vadd.s32 %v1227, %v1229
        %vm1233 = vc.u32 %v1227, %v1229
        %v1234 = vadd.s32 %v1230, 1
        %v1235 = vsel %vm1233, %v1234, %v1230
        %v1236 = vadd.s32 %v1231, %v1235
        %v1237 = vadd.s32 %v1236, 536870912
        %v1238 = vshrl.u32 %v1237, 30
        %v1239 = vshll.u32 %v1238, 30
        %v1240 = vsub.s32 %v1236, %v1239
        %vm1241 = vcmp.lt.s32.totalorder %v1240, 0
        %v1242 = vsub.s32 0, %v1240
        %v1243 = vsel %vm1241, %v1242, %v1240
        %v1244 = vclz %v1243
        %v1245 = vsub.s32 %v1244, 2
        %vm1246 = vcmp.gt.s32.totalorder 0, %v1245
        %v1247 = vsel %vm1246, 0, %v1245
        %v1248 = vsub.s32 32, %v1247
        %v1249 = vshll.u32 %v1240, %v1247
        %v1250 = vshrl.u32 %v1232, %v1248
        %v1251 = vor.u32 %v1249, %v1250
        %v1252 = vsub.s32 4294967266, %v1247
        %v1253 = vadd.s32 %v1252, 127
        %v1254 = vshll.u32 %v1253, 23
        %v1255 = vor.u32 4788187, %v1254
        %v1256 = vand.u32 2147483647, %v1255
        %v1258 = vcvt.s32.f32 %v1251
        %v1259 = vmul.f32 %v1258, %v1256
        %v1260 = vxor.u32 %v1259, 2147483648
        %v1261 = vsel %vm1178, %v1260, %v1259
        %v1262 = vsub.s32 4, %v1238
        %v1263 = vsel %vm1178, %v1262, %v1238
        %v1264 = vsel %vm1177, %v445, %v1261
        %v1265 = vsel %vm1177, 0, %v1263
        %v1266 = vcosq.f32.pop %v1264
        %v1267 = vsinq.f32.pop %v1264
        %vm1268 = vweird.f32 %v445
        %v1269 = vadd.s32 %v1265, 3
        %v1270 = vand.u32 %v1269, 3
        %vm1271 = vcmp.lt.s32.totalorder %v1270, 2
        %vm1272 = vcmp.eq.s32.totalorder %v1270, 0
        %v1273 = vxor.u32 %v1267, 2147483648
        %v1274 = vsel %vm1272, %v1266, %v1273
        %vm1275 = vcmp.eq.s32.totalorder %v1270, 2
        %v1276 = vxor.u32 %v1266, 2147483648
        %v1277 = vsel %vm1275, %v1276, %v1267
        %v1278 = vsel %vm1271, %v1274, %v1277
        %v1279 = vsel %vm1268, nan, %v1278
        %v1280 = vld [vmem:[#allocation2] sm:$0xff]
        %v1281 = vld [vmem:[#allocation2 + $0x8] sm:$0xff]
        %v1282 = vld [vmem:[#allocation2 + $0x10] sm:$0xff]
        %v1283 = vld [vmem:[#allocation2 + $0x18] sm:$0xff]
        %v1284 = vld [vmem:[#allocation2 + $0x20] sm:$0xff]
        %v1285 = vld [vmem:[#allocation2 + $0x28] sm:$0xff]
        %v1286 = vld [vmem:[#allocation2 + $0x30] sm:$0xff]
        %v1287 = vld [vmem:[#allocation2 + $0x38] sm:$0xff]
        %v1288 = vld [vmem:[#allocation2 + $0x40] sm:$0xff]
        %v1289 = vld [vmem:[#allocation2 + $0x48] sm:$0xff]
        %v1290 = vld [vmem:[#allocation2 + $0x50] sm:$0xff]
        %v1291 = vld [vmem:[#allocation2 + $0x58] sm:$0xff]
        %v1292 = vld [vmem:[#allocation2 + $0x60] sm:$0xff]
        %v1293 = vld [vmem:[#allocation2 + $0x68] sm:$0xff]
        %v1294 = vld [vmem:[#allocation2 + $0x70] sm:$0xff]
        %v1295 = vld [vmem:[#allocation2 + $0x78] sm:$0xff]
        %v1296 = vld [vmem:[%s4] sm:$0x1]
        %v1298 = vlaneseq
        %v1299 = vshrl.u32 %v1298, 7
        %v1300 = vsub.s32 0, %v1299
        %v1301 = vrot.slane %v1296, %v1300
        %1303 = vmatprep.subr.mxu0 0.0
        %1304 = vmatpush1.msra.mxu0 %v1280
        %1305 = vmatprep.subr.mxu0 0.0
        %1306 = vmatpush1.msra.mxu0 %v1281
        %1307 = vmatprep.subr.mxu0 0.0
        %1308 = vmatpush1.msra.mxu0 %v1282
        %1309 = vmatprep.subr.mxu0 0.0
        %1310 = vmatpush1.msra.mxu0 %v1283
        %1311 = vmatprep.subr.mxu0 0.0
        %1312 = vmatpush1.msra.mxu0 %v1284
        %1313 = vmatprep.subr.mxu0 0.0
        %1314 = vmatpush1.msra.mxu0 %v1285
        %1315 = vmatprep.subr.mxu0 0.0
        %1316 = vmatpush1.msra.mxu0 %v1286
        %1317 = vmatprep.subr.mxu0 0.0
        %1318 = vmatpush1.msra.mxu0 %v1287
        %1319 = vmatprep.subr.mxu0 0.0
        %1320 = vmatpush1.msra.mxu0 %v1288
        %1321 = vmatprep.subr.mxu0 0.0
        %1322 = vmatpush1.msra.mxu0 %v1289
        %1323 = vmatprep.subr.mxu0 0.0
        %1324 = vmatpush1.msra.mxu0 %v1290
        %1325 = vmatprep.subr.mxu0 0.0
        %1326 = vmatpush1.msra.mxu0 %v1291
        %1327 = vmatprep.subr.mxu0 0.0
        %1328 = vmatpush1.msra.mxu0 %v1292
        %1329 = vmatprep.subr.mxu0 0.0
        %1330 = vmatpush1.msra.mxu0 %v1293
        %1331 = vmatprep.subr.mxu0 0.0
        %1332 = vmatpush1.msra.mxu0 %v1294
        %1333 = vmatprep.subr.mxu0 0.0
        %1334 = vmatpush1.msra.mxu0 %v1295
        %1335 = vmatprep.subr.mxu0 0.0
        %1336 = vmatpush1.msra.mxu0 0.0
        %1337 = vmatprep.subr.mxu0 0.0
        %1338 = vmatpush1.msra.mxu0 0.0
        %1339 = vmatprep.subr.mxu0 0.0
        %1340 = vmatpush1.msra.mxu0 0.0
        %1341 = vmatprep.subr.mxu0 0.0
        %1342 = vmatpush1.msra.mxu0 0.0
        %1343 = vmatprep.subr.mxu0 0.0
        %1344 = vmatpush1.msra.mxu0 0.0
        %1345 = vmatprep.subr.mxu0 0.0
        %1346 = vmatpush1.msra.mxu0 0.0
        %1347 = vmatprep.subr.mxu0 0.0
        %1348 = vmatpush1.msra.mxu0 0.0
        %1349 = vmatprep.subr.mxu0 0.0
        %1350 = vmatpush1.msra.mxu0 0.0
        %1351 = vmatprep.subr.mxu0 0.0
        %1352 = vmatpush1.msra.mxu0 0.0
        %1353 = vmatprep.subr.mxu0 0.0
        %1354 = vmatpush1.msra.mxu0 0.0
        %1355 = vmatprep.subr.mxu0 0.0
        %1356 = vmatpush1.msra.mxu0 0.0
        %1357 = vmatprep.subr.mxu0 0.0
        %1358 = vmatpush1.msra.mxu0 0.0
        %1359 = vmatprep.subr.mxu0 0.0
        %1360 = vmatpush1.msra.mxu0 0.0
        %1361 = vmatprep.subr.mxu0 0.0
        %1362 = vmatpush1.msra.mxu0 0.0
        %1363 = vmatprep.subr.mxu0 0.0
        %1364 = vmatpush1.msra.mxu0 0.0
        %1365 = vmatprep.subr.mxu0 0.0
        %1366 = vmatpush1.msra.mxu0 0.0
        %1367 = vmatprep.mubr.f32.mxu0 0.0
        %1368 = vmatmul.mubr.f32.gmra.mrb[0].mxu0 %v551
        %v1369 = vpop.f32.mrb[0].mxu0
        %v1370 = vadd.f32 %v1301, %v1369
        %v1371 = vpop.f32.mrb[0].mxu0
        %1372 = vmatprep.mubr.f32.mxu0 0.0
        %1373 = vmatmul.mubr.f32.gmra.mrb[0].mxu0 %v655
        %v1374 = vpop.f32.mrb[0].mxu0
        %v1375 = vadd.f32 %v1301, %v1374
        %v1376 = vpop.f32.mrb[0].mxu0
        %1377 = vmatprep.mubr.f32.mxu0 0.0
        %1378 = vmatmul.mubr.f32.gmra.mrb[0].mxu0 %v759
        %v1379 = vpop.f32.mrb[0].mxu0
        %v1380 = vadd.f32 %v1301, %v1379
        %v1381 = vpop.f32.mrb[0].mxu0
        %1382 = vmatprep.mubr.f32.mxu0 0.0
        %1383 = vmatmul.mubr.f32.gmra.mrb[0].mxu0 %v863
        %v1384 = vpop.f32.mrb[0].mxu0
        %v1385 = vadd.f32 %v1301, %v1384
        %v1386 = vpop.f32.mrb[0].mxu0
        %1387 = vmatprep.mubr.f32.mxu0 0.0
        %1388 = vmatmul.mubr.f32.gmra.mrb[0].mxu0 %v967
        %v1389 = vpop.f32.mrb[0].mxu0
        %v1390 = vadd.f32 %v1301, %v1389
        %v1391 = vpop.f32.mrb[0].mxu0
        %1392 = vmatprep.mubr.f32.mxu0 0.0
        %1393 = vmatmul.mubr.f32.gmra.mrb[0].mxu0 %v1071
        %v1394 = vpop.f32.mrb[0].mxu0
        %v1395 = vadd.f32 %v1301, %v1394
        %v1396 = vpop.f32.mrb[0].mxu0
        %1397 = vmatprep.mubr.f32.mxu0 0.0
        %1398 = vmatmul.mubr.f32.gmra.mrb[0].mxu0 %v1175
        %v1399 = vpop.f32.mrb[0].mxu0
        %v1400 = vadd.f32 %v1301, %v1399
        %v1401 = vpop.f32.mrb[0].mxu0
        %1402 = vmatprep.mubr.f32.mxu0 0.0
        %1403 = vmatmul.mubr.f32.gmra.mrb[0].mxu0 %v1279
        %v1404 = vpop.f32.mrb[0].mxu0
        %v1405 = vadd.f32 %v1301, %v1404
        %v1406 = vpop.f32.mrb[0].mxu0
        %1407 = vdwg.mxu0
        %v1408 = vand.u32 2147483647, %v1370
        %vm1409 = vcmp.le.f32.partialorder %v1408, 0.7853982
        %vm1410 = vcmp.lt.s32.totalorder %v1370, 0
        %v1411 = vand.u32 %v1370, 2139095040
        %v1412 = vshrl.u32 %v1411, 23
        %v1413 = vsub.s32 %v1412, 127
        %v1414 = vand.u32 2147483647, %v1370
        %v1415 = vand.u32 %v1414, 8388607
        %v1416 = vor.u32 %v1415, 8388608
        %v1417 = vsub.s32 0, %v1416
        %v1418 = vadd.s32 %v1413, 1
        %vm1419 = vcmp.gt.s32.totalorder %v1418, 0
        %v1420 = vsel %vm1419, %v1418, 0
        %v1421 = vshrl.u32 %v1420, 5
        %v1422 = vand.u32 %v1420, 31
        %v1423 = vsub.s32 32, %v1422
        %v1424 = vshrl.u32 683565275, %v1423
        %v1425 = vshll.u32 683565275, %v1422
        %v1426 = vshrl.u32 2475754826, %v1423
        %v1427 = vor.u32 %v1425, %v1426
        %v1428 = vshll.u32 2475754826, %v1422
        %v1429 = vshrl.u32 2131351028, %v1423
        %v1430 = vor.u32 %v1428, %v1429
        %v1431 = vshll.u32 2131351028, %v1422
        %v1432 = vshrl.u32 2102212464, %v1423
        %v1433 = vor.u32 %v1431, %v1432
        %v1434 = vshll.u32 2102212464, %v1422
        %v1435 = vshrl.u32 920167782, %v1423
        %v1436 = vor.u32 %v1434, %v1435
        %v1437 = vshll.u32 920167782, %v1422
        %v1438 = vshrl.u32 1326507024, %v1423
        %v1439 = vor.u32 %v1437, %v1438
        %vm1440 = vcmp.lt.s32.totalorder %v1421, 1
        %vm1441 = vcmp.lt.s32.totalorder %v1421, 2
        %vm1442 = vcmp.lt.s32.totalorder %v1421, 3
        %vm1443 = vcmp.lt.s32.totalorder %v1421, 4
        %v1444 = vsel %vm1440, %v1424, %v1427
        %v1445 = vsel %vm1443, %v1433, 2102212464
        %v1446 = vsel %vm1442, %v1430, %v1445
        %v1447 = vsel %vm1441, %v1444, %v1446
        %v1448 = vsel %vm1440, %v1427, %v1430
        %v1449 = vsel %vm1443, %v1436, 920167782
        %v1450 = vsel %vm1442, %v1433, %v1449
        %v1451 = vsel %vm1441, %v1448, %v1450
        %v1452 = vsel %vm1440, %v1430, %v1433
        %v1453 = vsel %vm1443, %v1439, 1326507024
        %v1454 = vsel %vm1442, %v1436, %v1453
        %v1455 = vsel %vm1441, %v1452, %v1454
        %v1456 = vshll.u32 %v1416, 8
        %v1457 = vmul.u32.u64.compose %v1456, %v1455
        %v1458 = vextract.low.u32 %v1457
        %v1459 = vextract.high.u32 %v1457
        %v1460 = vmul.u32.u64.compose %v1456, %v1451
        %v1461 = vextract.low.u32 %v1460
        %v1462 = vextract.high.u32 %v1460
        %v1463 = vmul.u32 %v1456, %v1447
        %v1464 = vadd.s32 %v1459, %v1461
        %vm1465 = vc.u32 %v1459, %v1461
        %v1466 = vadd.s32 %v1462, 1
        %v1467 = vsel %vm1465, %v1466, %v1462
        %v1468 = vadd.s32 %v1463, %v1467
        %v1469 = vadd.s32 %v1468, 536870912
        %v1470 = vshrl.u32 %v1469, 30
        %v1471 = vshll.u32 %v1470, 30
        %v1472 = vsub.s32 %v1468, %v1471
        %vm1473 = vcmp.lt.s32.totalorder %v1472, 0
        %v1474 = vsub.s32 0, %v1472
        %v1475 = vsel %vm1473, %v1474, %v1472
        %v1476 = vclz %v1475
        %v1477 = vsub.s32 %v1476, 2
        %vm1478 = vcmp.gt.s32.totalorder 0, %v1477
        %v1479 = vsel %vm1478, 0, %v1477
        %v1480 = vsub.s32 32, %v1479
        %v1481 = vshll.u32 %v1472, %v1479
        %v1482 = vshrl.u32 %v1464, %v1480
        %v1483 = vor.u32 %v1481, %v1482
        %v1484 = vsub.s32 4294967266, %v1479
        %v1485 = vadd.s32 %v1484, 127
        %v1486 = vshll.u32 %v1485, 23
        %v1487 = vor.u32 4788187, %v1486
        %v1488 = vand.u32 2147483647, %v1487
        %v1490 = vcvt.s32.f32 %v1483
        %v1491 = vmul.f32 %v1490, %v1488
        %v1492 = vxor.u32 %v1491, 2147483648
        %v1493 = vsel %vm1410, %v1492, %v1491
        %v1494 = vsub.s32 4, %v1470
        %v1495 = vsel %vm1410, %v1494, %v1470
        %v1496 = vsel %vm1409, %v1370, %v1493
        %v1497 = vsel %vm1409, 0, %v1495
        %v1498 = vcosq.f32.pop %v1496
        %v1499 = vsinq.f32.pop %v1496
        %vm1500 = vweird.f32 %v1370
        %v1501 = vadd.s32 %v1497, 3
        %v1502 = vand.u32 %v1501, 3
        %vm1503 = vcmp.lt.s32.totalorder %v1502, 2
        %vm1504 = vcmp.eq.s32.totalorder %v1502, 0
        %v1505 = vxor.u32 %v1499, 2147483648
        %v1506 = vsel %vm1504, %v1498, %v1505
        %vm1507 = vcmp.eq.s32.totalorder %v1502, 2
        %v1508 = vxor.u32 %v1498, 2147483648
        %v1509 = vsel %vm1507, %v1508, %v1499
        %v1510 = vsel %vm1503, %v1506, %v1509
        %v1511 = vsel %vm1500, nan, %v1510
        %v1512 = vand.u32 2147483647, %v1375
        %vm1513 = vcmp.le.f32.partialorder %v1512, 0.7853982
        %vm1514 = vcmp.lt.s32.totalorder %v1375, 0
        %v1515 = vand.u32 %v1375, 2139095040
        %v1516 = vshrl.u32 %v1515, 23
        %v1517 = vsub.s32 %v1516, 127
        %v1518 = vand.u32 2147483647, %v1375
        %v1519 = vand.u32 %v1518, 8388607
        %v1520 = vor.u32 %v1519, 8388608
        %v1521 = vsub.s32 0, %v1520
        %v1522 = vadd.s32 %v1517, 1
        %vm1523 = vcmp.gt.s32.totalorder %v1522, 0
        %v1524 = vsel %vm1523, %v1522, 0
        %v1525 = vshrl.u32 %v1524, 5
        %v1526 = vand.u32 %v1524, 31
        %v1527 = vsub.s32 32, %v1526
        %v1528 = vshrl.u32 683565275, %v1527
        %v1529 = vshll.u32 683565275, %v1526
        %v1530 = vshrl.u32 2475754826, %v1527
        %v1531 = vor.u32 %v1529, %v1530
        %v1532 = vshll.u32 2475754826, %v1526
        %v1533 = vshrl.u32 2131351028, %v1527
        %v1534 = vor.u32 %v1532, %v1533
        %v1535 = vshll.u32 2131351028, %v1526
        %v1536 = vshrl.u32 2102212464, %v1527
        %v1537 = vor.u32 %v1535, %v1536
        %v1538 = vshll.u32 2102212464, %v1526
        %v1539 = vshrl.u32 920167782, %v1527
        %v1540 = vor.u32 %v1538, %v1539
        %v1541 = vshll.u32 920167782, %v1526
        %v1542 = vshrl.u32 1326507024, %v1527
        %v1543 = vor.u32 %v1541, %v1542
        %vm1544 = vcmp.lt.s32.totalorder %v1525, 1
        %vm1545 = vcmp.lt.s32.totalorder %v1525, 2
        %vm1546 = vcmp.lt.s32.totalorder %v1525, 3
        %vm1547 = vcmp.lt.s32.totalorder %v1525, 4
        %v1548 = vsel %vm1544, %v1528, %v1531
        %v1549 = vsel %vm1547, %v1537, 2102212464
        %v1550 = vsel %vm1546, %v1534, %v1549
        %v1551 = vsel %vm1545, %v1548, %v1550
        %v1552 = vsel %vm1544, %v1531, %v1534
        %v1553 = vsel %vm1547, %v1540, 920167782
        %v1554 = vsel %vm1546, %v1537, %v1553
        %v1555 = vsel %vm1545, %v1552, %v1554
        %v1556 = vsel %vm1544, %v1534, %v1537
        %v1557 = vsel %vm1547, %v1543, 1326507024
        %v1558 = vsel %vm1546, %v1540, %v1557
        %v1559 = vsel %vm1545, %v1556, %v1558
        %v1560 = vshll.u32 %v1520, 8
        %v1561 = vmul.u32.u64.compose %v1560, %v1559
        %v1562 = vextract.low.u32 %v1561
        %v1563 = vextract.high.u32 %v1561
        %v1564 = vmul.u32.u64.compose %v1560, %v1555
        %v1565 = vextract.low.u32 %v1564
        %v1566 = vextract.high.u32 %v1564
        %v1567 = vmul.u32 %v1560, %v1551
        %v1568 = vadd.s32 %v1563, %v1565
        %vm1569 = vc.u32 %v1563, %v1565
        %v1570 = vadd.s32 %v1566, 1
        %v1571 = vsel %vm1569, %v1570, %v1566
        %v1572 = vadd.s32 %v1567, %v1571
        %v1573 = vadd.s32 %v1572, 536870912
        %v1574 = vshrl.u32 %v1573, 30
        %v1575 = vshll.u32 %v1574, 30
        %v1576 = vsub.s32 %v1572, %v1575
        %vm1577 = vcmp.lt.s32.totalorder %v1576, 0
        %v1578 = vsub.s32 0, %v1576
        %v1579 = vsel %vm1577, %v1578, %v1576
        %v1580 = vclz %v1579
        %v1581 = vsub.s32 %v1580, 2
        %vm1582 = vcmp.gt.s32.totalorder 0, %v1581
        %v1583 = vsel %vm1582, 0, %v1581
        %v1584 = vsub.s32 32, %v1583
        %v1585 = vshll.u32 %v1576, %v1583
        %v1586 = vshrl.u32 %v1568, %v1584
        %v1587 = vor.u32 %v1585, %v1586
        %v1588 = vsub.s32 4294967266, %v1583
        %v1589 = vadd.s32 %v1588, 127
        %v1590 = vshll.u32 %v1589, 23
        %v1591 = vor.u32 4788187, %v1590
        %v1592 = vand.u32 2147483647, %v1591
        %v1594 = vcvt.s32.f32 %v1587
        %v1595 = vmul.f32 %v1594, %v1592
        %v1596 = vxor.u32 %v1595, 2147483648
        %v1597 = vsel %vm1514, %v1596, %v1595
        %v1598 = vsub.s32 4, %v1574
        %v1599 = vsel %vm1514, %v1598, %v1574
        %v1600 = vsel %vm1513, %v1375, %v1597
        %v1601 = vsel %vm1513, 0, %v1599
        %v1602 = vcosq.f32.pop %v1600
        %v1603 = vsinq.f32.pop %v1600
        %vm1604 = vweird.f32 %v1375
        %v1605 = vadd.s32 %v1601, 3
        %v1606 = vand.u32 %v1605, 3
        %vm1607 = vcmp.lt.s32.totalorder %v1606, 2
        %vm1608 = vcmp.eq.s32.totalorder %v1606, 0
        %v1609 = vxor.u32 %v1603, 2147483648
        %v1610 = vsel %vm1608, %v1602, %v1609
        %vm1611 = vcmp.eq.s32.totalorder %v1606, 2
        %v1612 = vxor.u32 %v1602, 2147483648
        %v1613 = vsel %vm1611, %v1612, %v1603
        %v1614 = vsel %vm1607, %v1610, %v1613
        %v1615 = vsel %vm1604, nan, %v1614
        %v1616 = vand.u32 2147483647, %v1380
        %vm1617 = vcmp.le.f32.partialorder %v1616, 0.7853982
        %vm1618 = vcmp.lt.s32.totalorder %v1380, 0
        %v1619 = vand.u32 %v1380, 2139095040
        %v1620 = vshrl.u32 %v1619, 23
        %v1621 = vsub.s32 %v1620, 127
        %v1622 = vand.u32 2147483647, %v1380
        %v1623 = vand.u32 %v1622, 8388607
        %v1624 = vor.u32 %v1623, 8388608
        %v1625 = vsub.s32 0, %v1624
        %v1626 = vadd.s32 %v1621, 1
        %vm1627 = vcmp.gt.s32.totalorder %v1626, 0
        %v1628 = vsel %vm1627, %v1626, 0
        %v1629 = vshrl.u32 %v1628, 5
        %v1630 = vand.u32 %v1628, 31
        %v1631 = vsub.s32 32, %v1630
        %v1632 = vshrl.u32 683565275, %v1631
        %v1633 = vshll.u32 683565275, %v1630
        %v1634 = vshrl.u32 2475754826, %v1631
        %v1635 = vor.u32 %v1633, %v1634
        %v1636 = vshll.u32 2475754826, %v1630
        %v1637 = vshrl.u32 2131351028, %v1631
        %v1638 = vor.u32 %v1636, %v1637
        %v1639 = vshll.u32 2131351028, %v1630
        %v1640 = vshrl.u32 2102212464, %v1631
        %v1641 = vor.u32 %v1639, %v1640
        %v1642 = vshll.u32 2102212464, %v1630
        %v1643 = vshrl.u32 920167782, %v1631
        %v1644 = vor.u32 %v1642, %v1643
        %v1645 = vshll.u32 920167782, %v1630
        %v1646 = vshrl.u32 1326507024, %v1631
        %v1647 = vor.u32 %v1645, %v1646
        %vm1648 = vcmp.lt.s32.totalorder %v1629, 1
        %vm1649 = vcmp.lt.s32.totalorder %v1629, 2
        %vm1650 = vcmp.lt.s32.totalorder %v1629, 3
        %vm1651 = vcmp.lt.s32.totalorder %v1629, 4
        %v1652 = vsel %vm1648, %v1632, %v1635
        %v1653 = vsel %vm1651, %v1641, 2102212464
        %v1654 = vsel %vm1650, %v1638, %v1653
        %v1655 = vsel %vm1649, %v1652, %v1654
        %v1656 = vsel %vm1648, %v1635, %v1638
        %v1657 = vsel %vm1651, %v1644, 920167782
        %v1658 = vsel %vm1650, %v1641, %v1657
        %v1659 = vsel %vm1649, %v1656, %v1658
        %v1660 = vsel %vm1648, %v1638, %v1641
        %v1661 = vsel %vm1651, %v1647, 1326507024
        %v1662 = vsel %vm1650, %v1644, %v1661
        %v1663 = vsel %vm1649, %v1660, %v1662
        %v1664 = vshll.u32 %v1624, 8
        %v1665 = vmul.u32.u64.compose %v1664, %v1663
        %v1666 = vextract.low.u32 %v1665
        %v1667 = vextract.high.u32 %v1665
        %v1668 = vmul.u32.u64.compose %v1664, %v1659
        %v1669 = vextract.low.u32 %v1668
        %v1670 = vextract.high.u32 %v1668
        %v1671 = vmul.u32 %v1664, %v1655
        %v1672 = vadd.s32 %v1667, %v1669
        %vm1673 = vc.u32 %v1667, %v1669
        %v1674 = vadd.s32 %v1670, 1
        %v1675 = vsel %vm1673, %v1674, %v1670
        %v1676 = vadd.s32 %v1671, %v1675
        %v1677 = vadd.s32 %v1676, 536870912
        %v1678 = vshrl.u32 %v1677, 30
        %v1679 = vshll.u32 %v1678, 30
        %v1680 = vsub.s32 %v1676, %v1679
        %vm1681 = vcmp.lt.s32.totalorder %v1680, 0
        %v1682 = vsub.s32 0, %v1680
        %v1683 = vsel %vm1681, %v1682, %v1680
        %v1684 = vclz %v1683
        %v1685 = vsub.s32 %v1684, 2
        %vm1686 = vcmp.gt.s32.totalorder 0, %v1685
        %v1687 = vsel %vm1686, 0, %v1685
        %v1688 = vsub.s32 32, %v1687
        %v1689 = vshll.u32 %v1680, %v1687
        %v1690 = vshrl.u32 %v1672, %v1688
        %v1691 = vor.u32 %v1689, %v1690
        %v1692 = vsub.s32 4294967266, %v1687
        %v1693 = vadd.s32 %v1692, 127
        %v1694 = vshll.u32 %v1693, 23
        %v1695 = vor.u32 4788187, %v1694
        %v1696 = vand.u32 2147483647, %v1695
        %v1698 = vcvt.s32.f32 %v1691
        %v1699 = vmul.f32 %v1698, %v1696
        %v1700 = vxor.u32 %v1699, 2147483648
        %v1701 = vsel %vm1618, %v1700, %v1699
        %v1702 = vsub.s32 4, %v1678
        %v1703 = vsel %vm1618, %v1702, %v1678
        %v1704 = vsel %vm1617, %v1380, %v1701
        %v1705 = vsel %vm1617, 0, %v1703
        %v1706 = vcosq.f32.pop %v1704
        %v1707 = vsinq.f32.pop %v1704
        %vm1708 = vweird.f32 %v1380
        %v1709 = vadd.s32 %v1705, 3
        %v1710 = vand.u32 %v1709, 3
        %vm1711 = vcmp.lt.s32.totalorder %v1710, 2
        %vm1712 = vcmp.eq.s32.totalorder %v1710, 0
        %v1713 = vxor.u32 %v1707, 2147483648
        %v1714 = vsel %vm1712, %v1706, %v1713
        %vm1715 = vcmp.eq.s32.totalorder %v1710, 2
        %v1716 = vxor.u32 %v1706, 2147483648
        %v1717 = vsel %vm1715, %v1716, %v1707
        %v1718 = vsel %vm1711, %v1714, %v1717
        %v1719 = vsel %vm1708, nan, %v1718
        %v1720 = vand.u32 2147483647, %v1385
        %vm1721 = vcmp.le.f32.partialorder %v1720, 0.7853982
        %vm1722 = vcmp.lt.s32.totalorder %v1385, 0
        %v1723 = vand.u32 %v1385, 2139095040
        %v1724 = vshrl.u32 %v1723, 23
        %v1725 = vsub.s32 %v1724, 127
        %v1726 = vand.u32 2147483647, %v1385
        %v1727 = vand.u32 %v1726, 8388607
        %v1728 = vor.u32 %v1727, 8388608
        %v1729 = vsub.s32 0, %v1728
        %v1730 = vadd.s32 %v1725, 1
        %vm1731 = vcmp.gt.s32.totalorder %v1730, 0
        %v1732 = vsel %vm1731, %v1730, 0
        %v1733 = vshrl.u32 %v1732, 5
        %v1734 = vand.u32 %v1732, 31
        %v1735 = vsub.s32 32, %v1734
        %v1736 = vshrl.u32 683565275, %v1735
        %v1737 = vshll.u32 683565275, %v1734
        %v1738 = vshrl.u32 2475754826, %v1735
        %v1739 = vor.u32 %v1737, %v1738
        %v1740 = vshll.u32 2475754826, %v1734
        %v1741 = vshrl.u32 2131351028, %v1735
        %v1742 = vor.u32 %v1740, %v1741
        %v1743 = vshll.u32 2131351028, %v1734
        %v1744 = vshrl.u32 2102212464, %v1735
        %v1745 = vor.u32 %v1743, %v1744
        %v1746 = vshll.u32 2102212464, %v1734
        %v1747 = vshrl.u32 920167782, %v1735
        %v1748 = vor.u32 %v1746, %v1747
        %v1749 = vshll.u32 920167782, %v1734
        %v1750 = vshrl.u32 1326507024, %v1735
        %v1751 = vor.u32 %v1749, %v1750
        %vm1752 = vcmp.lt.s32.totalorder %v1733, 1
        %vm1753 = vcmp.lt.s32.totalorder %v1733, 2
        %vm1754 = vcmp.lt.s32.totalorder %v1733, 3
        %vm1755 = vcmp.lt.s32.totalorder %v1733, 4
        %v1756 = vsel %vm1752, %v1736, %v1739
        %v1757 = vsel %vm1755, %v1745, 2102212464
        %v1758 = vsel %vm1754, %v1742, %v1757
        %v1759 = vsel %vm1753, %v1756, %v1758
        %v1760 = vsel %vm1752, %v1739, %v1742
        %v1761 = vsel %vm1755, %v1748, 920167782
        %v1762 = vsel %vm1754, %v1745, %v1761
        %v1763 = vsel %vm1753, %v1760, %v1762
        %v1764 = vsel %vm1752, %v1742, %v1745
        %v1765 = vsel %vm1755, %v1751, 1326507024
        %v1766 = vsel %vm1754, %v1748, %v1765
        %v1767 = vsel %vm1753, %v1764, %v1766
        %v1768 = vshll.u32 %v1728, 8
        %v1769 = vmul.u32.u64.compose %v1768, %v1767
        %v1770 = vextract.low.u32 %v1769
        %v1771 = vextract.high.u32 %v1769
        %v1772 = vmul.u32.u64.compose %v1768, %v1763
        %v1773 = vextract.low.u32 %v1772
        %v1774 = vextract.high.u32 %v1772
        %v1775 = vmul.u32 %v1768, %v1759
        %v1776 = vadd.s32 %v1771, %v1773
        %vm1777 = vc.u32 %v1771, %v1773
        %v1778 = vadd.s32 %v1774, 1
        %v1779 = vsel %vm1777, %v1778, %v1774
        %v1780 = vadd.s32 %v1775, %v1779
        %v1781 = vadd.s32 %v1780, 536870912
        %v1782 = vshrl.u32 %v1781, 30
        %v1783 = vshll.u32 %v1782, 30
        %v1784 = vsub.s32 %v1780, %v1783
        %vm1785 = vcmp.lt.s32.totalorder %v1784, 0
        %v1786 = vsub.s32 0, %v1784
        %v1787 = vsel %vm1785, %v1786, %v1784
        %v1788 = vclz %v1787
        %v1789 = vsub.s32 %v1788, 2
        %vm1790 = vcmp.gt.s32.totalorder 0, %v1789
        %v1791 = vsel %vm1790, 0, %v1789
        %v1792 = vsub.s32 32, %v1791
        %v1793 = vshll.u32 %v1784, %v1791
        %v1794 = vshrl.u32 %v1776, %v1792
        %v1795 = vor.u32 %v1793, %v1794
        %v1796 = vsub.s32 4294967266, %v1791
        %v1797 = vadd.s32 %v1796, 127
        %v1798 = vshll.u32 %v1797, 23
        %v1799 = vor.u32 4788187, %v1798
        %v1800 = vand.u32 2147483647, %v1799
        %v1802 = vcvt.s32.f32 %v1795
        %v1803 = vmul.f32 %v1802, %v1800
        %v1804 = vxor.u32 %v1803, 2147483648
        %v1805 = vsel %vm1722, %v1804, %v1803
        %v1806 = vsub.s32 4, %v1782
        %v1807 = vsel %vm1722, %v1806, %v1782
        %v1808 = vsel %vm1721, %v1385, %v1805
        %v1809 = vsel %vm1721, 0, %v1807
        %v1810 = vcosq.f32.pop %v1808
        %v1811 = vsinq.f32.pop %v1808
        %vm1812 = vweird.f32 %v1385
        %v1813 = vadd.s32 %v1809, 3
        %v1814 = vand.u32 %v1813, 3
        %vm1815 = vcmp.lt.s32.totalorder %v1814, 2
        %vm1816 = vcmp.eq.s32.totalorder %v1814, 0
        %v1817 = vxor.u32 %v1811, 2147483648
        %v1818 = vsel %vm1816, %v1810, %v1817
        %vm1819 = vcmp.eq.s32.totalorder %v1814, 2
        %v1820 = vxor.u32 %v1810, 2147483648
        %v1821 = vsel %vm1819, %v1820, %v1811
        %v1822 = vsel %vm1815, %v1818, %v1821
        %v1823 = vsel %vm1812, nan, %v1822
        %v1824 = vand.u32 2147483647, %v1390
        %vm1825 = vcmp.le.f32.partialorder %v1824, 0.7853982
        %vm1826 = vcmp.lt.s32.totalorder %v1390, 0
        %v1827 = vand.u32 %v1390, 2139095040
        %v1828 = vshrl.u32 %v1827, 23
        %v1829 = vsub.s32 %v1828, 127
        %v1830 = vand.u32 2147483647, %v1390
        %v1831 = vand.u32 %v1830, 8388607
        %v1832 = vor.u32 %v1831, 8388608
        %v1833 = vsub.s32 0, %v1832
        %v1834 = vadd.s32 %v1829, 1
        %vm1835 = vcmp.gt.s32.totalorder %v1834, 0
        %v1836 = vsel %vm1835, %v1834, 0
        %v1837 = vshrl.u32 %v1836, 5
        %v1838 = vand.u32 %v1836, 31
        %v1839 = vsub.s32 32, %v1838
        %v1840 = vshrl.u32 683565275, %v1839
        %v1841 = vshll.u32 683565275, %v1838
        %v1842 = vshrl.u32 2475754826, %v1839
        %v1843 = vor.u32 %v1841, %v1842
        %v1844 = vshll.u32 2475754826, %v1838
        %v1845 = vshrl.u32 2131351028, %v1839
        %v1846 = vor.u32 %v1844, %v1845
        %v1847 = vshll.u32 2131351028, %v1838
        %v1848 = vshrl.u32 2102212464, %v1839
        %v1849 = vor.u32 %v1847, %v1848
        %v1850 = vshll.u32 2102212464, %v1838
        %v1851 = vshrl.u32 920167782, %v1839
        %v1852 = vor.u32 %v1850, %v1851
        %v1853 = vshll.u32 920167782, %v1838
        %v1854 = vshrl.u32 1326507024, %v1839
        %v1855 = vor.u32 %v1853, %v1854
        %vm1856 = vcmp.lt.s32.totalorder %v1837, 1
        %vm1857 = vcmp.lt.s32.totalorder %v1837, 2
        %vm1858 = vcmp.lt.s32.totalorder %v1837, 3
        %vm1859 = vcmp.lt.s32.totalorder %v1837, 4
        %v1860 = vsel %vm1856, %v1840, %v1843
        %v1861 = vsel %vm1859, %v1849, 2102212464
        %v1862 = vsel %vm1858, %v1846, %v1861
        %v1863 = vsel %vm1857, %v1860, %v1862
        %v1864 = vsel %vm1856, %v1843, %v1846
        %v1865 = vsel %vm1859, %v1852, 920167782
        %v1866 = vsel %vm1858, %v1849, %v1865
        %v1867 = vsel %vm1857, %v1864, %v1866
        %v1868 = vsel %vm1856, %v1846, %v1849
        %v1869 = vsel %vm1859, %v1855, 1326507024
        %v1870 = vsel %vm1858, %v1852, %v1869
        %v1871 = vsel %vm1857, %v1868, %v1870
        %v1872 = vshll.u32 %v1832, 8
        %v1873 = vmul.u32.u64.compose %v1872, %v1871
        %v1874 = vextract.low.u32 %v1873
        %v1875 = vextract.high.u32 %v1873
        %v1876 = vmul.u32.u64.compose %v1872, %v1867
        %v1877 = vextract.low.u32 %v1876
        %v1878 = vextract.high.u32 %v1876
        %v1879 = vmul.u32 %v1872, %v1863
        %v1880 = vadd.s32 %v1875, %v1877
        %vm1881 = vc.u32 %v1875, %v1877
        %v1882 = vadd.s32 %v1878, 1
        %v1883 = vsel %vm1881, %v1882, %v1878
        %v1884 = vadd.s32 %v1879, %v1883
        %v1885 = vadd.s32 %v1884, 536870912
        %v1886 = vshrl.u32 %v1885, 30
        %v1887 = vshll.u32 %v1886, 30
        %v1888 = vsub.s32 %v1884, %v1887
        %vm1889 = vcmp.lt.s32.totalorder %v1888, 0
        %v1890 = vsub.s32 0, %v1888
        %v1891 = vsel %vm1889, %v1890, %v1888
        %v1892 = vclz %v1891
        %v1893 = vsub.s32 %v1892, 2
        %vm1894 = vcmp.gt.s32.totalorder 0, %v1893
        %v1895 = vsel %vm1894, 0, %v1893
        %v1896 = vsub.s32 32, %v1895
        %v1897 = vshll.u32 %v1888, %v1895
        %v1898 = vshrl.u32 %v1880, %v1896
        %v1899 = vor.u32 %v1897, %v1898
        %v1900 = vsub.s32 4294967266, %v1895
        %v1901 = vadd.s32 %v1900, 127
        %v1902 = vshll.u32 %v1901, 23
        %v1903 = vor.u32 4788187, %v1902
        %v1904 = vand.u32 2147483647, %v1903
        %v1906 = vcvt.s32.f32 %v1899
        %v1907 = vmul.f32 %v1906, %v1904
        %v1908 = vxor.u32 %v1907, 2147483648
        %v1909 = vsel %vm1826, %v1908, %v1907
        %v1910 = vsub.s32 4, %v1886
        %v1911 = vsel %vm1826, %v1910, %v1886
        %v1912 = vsel %vm1825, %v1390, %v1909
        %v1913 = vsel %vm1825, 0, %v1911
        %v1914 = vcosq.f32.pop %v1912
        %v1915 = vsinq.f32.pop %v1912
        %vm1916 = vweird.f32 %v1390
        %v1917 = vadd.s32 %v1913, 3
        %v1918 = vand.u32 %v1917, 3
        %vm1919 = vcmp.lt.s32.totalorder %v1918, 2
        %vm1920 = vcmp.eq.s32.totalorder %v1918, 0
        %v1921 = vxor.u32 %v1915, 2147483648
        %v1922 = vsel %vm1920, %v1914, %v1921
        %vm1923 = vcmp.eq.s32.totalorder %v1918, 2
        %v1924 = vxor.u32 %v1914, 2147483648
        %v1925 = vsel %vm1923, %v1924, %v1915
        %v1926 = vsel %vm1919, %v1922, %v1925
        %v1927 = vsel %vm1916, nan, %v1926
        %v1928 = vand.u32 2147483647, %v1395
        %vm1929 = vcmp.le.f32.partialorder %v1928, 0.7853982
        %vm1930 = vcmp.lt.s32.totalorder %v1395, 0
        %v1931 = vand.u32 %v1395, 2139095040
        %v1932 = vshrl.u32 %v1931, 23
        %v1933 = vsub.s32 %v1932, 127
        %v1934 = vand.u32 2147483647, %v1395
        %v1935 = vand.u32 %v1934, 8388607
        %v1936 = vor.u32 %v1935, 8388608
        %v1937 = vsub.s32 0, %v1936
        %v1938 = vadd.s32 %v1933, 1
        %vm1939 = vcmp.gt.s32.totalorder %v1938, 0
        %v1940 = vsel %vm1939, %v1938, 0
        %v1941 = vshrl.u32 %v1940, 5
        %v1942 = vand.u32 %v1940, 31
        %v1943 = vsub.s32 32, %v1942
        %v1944 = vshrl.u32 683565275, %v1943
        %v1945 = vshll.u32 683565275, %v1942
        %v1946 = vshrl.u32 2475754826, %v1943
        %v1947 = vor.u32 %v1945, %v1946
        %v1948 = vshll.u32 2475754826, %v1942
        %v1949 = vshrl.u32 2131351028, %v1943
        %v1950 = vor.u32 %v1948, %v1949
        %v1951 = vshll.u32 2131351028, %v1942
        %v1952 = vshrl.u32 2102212464, %v1943
        %v1953 = vor.u32 %v1951, %v1952
        %v1954 = vshll.u32 2102212464, %v1942
        %v1955 = vshrl.u32 920167782, %v1943
        %v1956 = vor.u32 %v1954, %v1955
        %v1957 = vshll.u32 920167782, %v1942
        %v1958 = vshrl.u32 1326507024, %v1943
        %v1959 = vor.u32 %v1957, %v1958
        %vm1960 = vcmp.lt.s32.totalorder %v1941, 1
        %vm1961 = vcmp.lt.s32.totalorder %v1941, 2
        %vm1962 = vcmp.lt.s32.totalorder %v1941, 3
        %vm1963 = vcmp.lt.s32.totalorder %v1941, 4
        %v1964 = vsel %vm1960, %v1944, %v1947
        %v1965 = vsel %vm1963, %v1953, 2102212464
        %v1966 = vsel %vm1962, %v1950, %v1965
        %v1967 = vsel %vm1961, %v1964, %v1966
        %v1968 = vsel %vm1960, %v1947, %v1950
        %v1969 = vsel %vm1963, %v1956, 920167782
        %v1970 = vsel %vm1962, %v1953, %v1969
        %v1971 = vsel %vm1961, %v1968, %v1970
        %v1972 = vsel %vm1960, %v1950, %v1953
        %v1973 = vsel %vm1963, %v1959, 1326507024
        %v1974 = vsel %vm1962, %v1956, %v1973
        %v1975 = vsel %vm1961, %v1972, %v1974
        %v1976 = vshll.u32 %v1936, 8
        %v1977 = vmul.u32.u64.compose %v1976, %v1975
        %v1978 = vextract.low.u32 %v1977
        %v1979 = vextract.high.u32 %v1977
        %v1980 = vmul.u32.u64.compose %v1976, %v1971
        %v1981 = vextract.low.u32 %v1980
        %v1982 = vextract.high.u32 %v1980
        %v1983 = vmul.u32 %v1976, %v1967
        %v1984 = vadd.s32 %v1979, %v1981
        %vm1985 = vc.u32 %v1979, %v1981
        %v1986 = vadd.s32 %v1982, 1
        %v1987 = vsel %vm1985, %v1986, %v1982
        %v1988 = vadd.s32 %v1983, %v1987
        %v1989 = vadd.s32 %v1988, 536870912
        %v1990 = vshrl.u32 %v1989, 30
        %v1991 = vshll.u32 %v1990, 30
        %v1992 = vsub.s32 %v1988, %v1991
        %vm1993 = vcmp.lt.s32.totalorder %v1992, 0
        %v1994 = vsub.s32 0, %v1992
        %v1995 = vsel %vm1993, %v1994, %v1992
        %v1996 = vclz %v1995
        %v1997 = vsub.s32 %v1996, 2
        %vm1998 = vcmp.gt.s32.totalorder 0, %v1997
        %v1999 = vsel %vm1998, 0, %v1997
        %v2000 = vsub.s32 32, %v1999
        %v2001 = vshll.u32 %v1992, %v1999
        %v2002 = vshrl.u32 %v1984, %v2000
        %v2003 = vor.u32 %v2001, %v2002
        %v2004 = vsub.s32 4294967266, %v1999
        %v2005 = vadd.s32 %v2004, 127
        %v2006 = vshll.u32 %v2005, 23
        %v2007 = vor.u32 4788187, %v2006
        %v2008 = vand.u32 2147483647, %v2007
        %v2010 = vcvt.s32.f32 %v2003
        %v2011 = vmul.f32 %v2010, %v2008
        %v2012 = vxor.u32 %v2011, 2147483648
        %v2013 = vsel %vm1930, %v2012, %v2011
        %v2014 = vsub.s32 4, %v1990
        %v2015 = vsel %vm1930, %v2014, %v1990
        %v2016 = vsel %vm1929, %v1395, %v2013
        %v2017 = vsel %vm1929, 0, %v2015
        %v2018 = vcosq.f32.pop %v2016
        %v2019 = vsinq.f32.pop %v2016
        %vm2020 = vweird.f32 %v1395
        %v2021 = vadd.s32 %v2017, 3
        %v2022 = vand.u32 %v2021, 3
        %vm2023 = vcmp.lt.s32.totalorder %v2022, 2
        %vm2024 = vcmp.eq.s32.totalorder %v2022, 0
        %v2025 = vxor.u32 %v2019, 2147483648
        %v2026 = vsel %vm2024, %v2018, %v2025
        %vm2027 = vcmp.eq.s32.totalorder %v2022, 2
        %v2028 = vxor.u32 %v2018, 2147483648
        %v2029 = vsel %vm2027, %v2028, %v2019
        %v2030 = vsel %vm2023, %v2026, %v2029
        %v2031 = vsel %vm2020, nan, %v2030
        %v2032 = vand.u32 2147483647, %v1400
        %vm2033 = vcmp.le.f32.partialorder %v2032, 0.7853982
        %vm2034 = vcmp.lt.s32.totalorder %v1400, 0
        %v2035 = vand.u32 %v1400, 2139095040
        %v2036 = vshrl.u32 %v2035, 23
        %v2037 = vsub.s32 %v2036, 127
        %v2038 = vand.u32 2147483647, %v1400
        %v2039 = vand.u32 %v2038, 8388607
        %v2040 = vor.u32 %v2039, 8388608
        %v2041 = vsub.s32 0, %v2040
        %v2042 = vadd.s32 %v2037, 1
        %vm2043 = vcmp.gt.s32.totalorder %v2042, 0
        %v2044 = vsel %vm2043, %v2042, 0
        %v2045 = vshrl.u32 %v2044, 5
        %v2046 = vand.u32 %v2044, 31
        %v2047 = vsub.s32 32, %v2046
        %v2048 = vshrl.u32 683565275, %v2047
        %v2049 = vshll.u32 683565275, %v2046
        %v2050 = vshrl.u32 2475754826, %v2047
        %v2051 = vor.u32 %v2049, %v2050
        %v2052 = vshll.u32 2475754826, %v2046
        %v2053 = vshrl.u32 2131351028, %v2047
        %v2054 = vor.u32 %v2052, %v2053
        %v2055 = vshll.u32 2131351028, %v2046
        %v2056 = vshrl.u32 2102212464, %v2047
        %v2057 = vor.u32 %v2055, %v2056
        %v2058 = vshll.u32 2102212464, %v2046
        %v2059 = vshrl.u32 920167782, %v2047
        %v2060 = vor.u32 %v2058, %v2059
        %v2061 = vshll.u32 920167782, %v2046
        %v2062 = vshrl.u32 1326507024, %v2047
        %v2063 = vor.u32 %v2061, %v2062
        %vm2064 = vcmp.lt.s32.totalorder %v2045, 1
        %vm2065 = vcmp.lt.s32.totalorder %v2045, 2
        %vm2066 = vcmp.lt.s32.totalorder %v2045, 3
        %vm2067 = vcmp.lt.s32.totalorder %v2045, 4
        %v2068 = vsel %vm2064, %v2048, %v2051
        %v2069 = vsel %vm2067, %v2057, 2102212464
        %v2070 = vsel %vm2066, %v2054, %v2069
        %v2071 = vsel %vm2065, %v2068, %v2070
        %v2072 = vsel %vm2064, %v2051, %v2054
        %v2073 = vsel %vm2067, %v2060, 920167782
        %v2074 = vsel %vm2066, %v2057, %v2073
        %v2075 = vsel %vm2065, %v2072, %v2074
        %v2076 = vsel %vm2064, %v2054, %v2057
        %v2077 = vsel %vm2067, %v2063, 1326507024
        %v2078 = vsel %vm2066, %v2060, %v2077
        %v2079 = vsel %vm2065, %v2076, %v2078
        %v2080 = vshll.u32 %v2040, 8
        %v2081 = vmul.u32.u64.compose %v2080, %v2079
        %v2082 = vextract.low.u32 %v2081
        %v2083 = vextract.high.u32 %v2081
        %v2084 = vmul.u32.u64.compose %v2080, %v2075
        %v2085 = vextract.low.u32 %v2084
        %v2086 = vextract.high.u32 %v2084
        %v2087 = vmul.u32 %v2080, %v2071
        %v2088 = vadd.s32 %v2083, %v2085
        %vm2089 = vc.u32 %v2083, %v2085
        %v2090 = vadd.s32 %v2086, 1
        %v2091 = vsel %vm2089, %v2090, %v2086
        %v2092 = vadd.s32 %v2087, %v2091
        %v2093 = vadd.s32 %v2092, 536870912
        %v2094 = vshrl.u32 %v2093, 30
        %v2095 = vshll.u32 %v2094, 30
        %v2096 = vsub.s32 %v2092, %v2095
        %vm2097 = vcmp.lt.s32.totalorder %v2096, 0
        %v2098 = vsub.s32 0, %v2096
        %v2099 = vsel %vm2097, %v2098, %v2096
        %v2100 = vclz %v2099
        %v2101 = vsub.s32 %v2100, 2
        %vm2102 = vcmp.gt.s32.totalorder 0, %v2101
        %v2103 = vsel %vm2102, 0, %v2101
        %v2104 = vsub.s32 32, %v2103
        %v2105 = vshll.u32 %v2096, %v2103
        %v2106 = vshrl.u32 %v2088, %v2104
        %v2107 = vor.u32 %v2105, %v2106
        %v2108 = vsub.s32 4294967266, %v2103
        %v2109 = vadd.s32 %v2108, 127
        %v2110 = vshll.u32 %v2109, 23
        %v2111 = vor.u32 4788187, %v2110
        %v2112 = vand.u32 2147483647, %v2111
        %v2114 = vcvt.s32.f32 %v2107
        %v2115 = vmul.f32 %v2114, %v2112
        %v2116 = vxor.u32 %v2115, 2147483648
        %v2117 = vsel %vm2034, %v2116, %v2115
        %v2118 = vsub.s32 4, %v2094
        %v2119 = vsel %vm2034, %v2118, %v2094
        %v2120 = vsel %vm2033, %v1400, %v2117
        %v2121 = vsel %vm2033, 0, %v2119
        %v2122 = vcosq.f32.pop %v2120
        %v2123 = vsinq.f32.pop %v2120
        %vm2124 = vweird.f32 %v1400
        %v2125 = vadd.s32 %v2121, 3
        %v2126 = vand.u32 %v2125, 3
        %vm2127 = vcmp.lt.s32.totalorder %v2126, 2
        %vm2128 = vcmp.eq.s32.totalorder %v2126, 0
        %v2129 = vxor.u32 %v2123, 2147483648
        %v2130 = vsel %vm2128, %v2122, %v2129
        %vm2131 = vcmp.eq.s32.totalorder %v2126, 2
        %v2132 = vxor.u32 %v2122, 2147483648
        %v2133 = vsel %vm2131, %v2132, %v2123
        %v2134 = vsel %vm2127, %v2130, %v2133
        %v2135 = vsel %vm2124, nan, %v2134
        %v2136 = vand.u32 2147483647, %v1405
        %vm2137 = vcmp.le.f32.partialorder %v2136, 0.7853982
        %vm2138 = vcmp.lt.s32.totalorder %v1405, 0
        %v2139 = vand.u32 %v1405, 2139095040
        %v2140 = vshrl.u32 %v2139, 23
        %v2141 = vsub.s32 %v2140, 127
        %v2142 = vand.u32 2147483647, %v1405
        %v2143 = vand.u32 %v2142, 8388607
        %v2144 = vor.u32 %v2143, 8388608
        %v2145 = vsub.s32 0, %v2144
        %v2146 = vadd.s32 %v2141, 1
        %vm2147 = vcmp.gt.s32.totalorder %v2146, 0
        %v2148 = vsel %vm2147, %v2146, 0
        %v2149 = vshrl.u32 %v2148, 5
        %v2150 = vand.u32 %v2148, 31
        %v2151 = vsub.s32 32, %v2150
        %v2152 = vshrl.u32 683565275, %v2151
        %v2153 = vshll.u32 683565275, %v2150
        %v2154 = vshrl.u32 2475754826, %v2151
        %v2155 = vor.u32 %v2153, %v2154
        %v2156 = vshll.u32 2475754826, %v2150
        %v2157 = vshrl.u32 2131351028, %v2151
        %v2158 = vor.u32 %v2156, %v2157
        %v2159 = vshll.u32 2131351028, %v2150
        %v2160 = vshrl.u32 2102212464, %v2151
        %v2161 = vor.u32 %v2159, %v2160
        %v2162 = vshll.u32 2102212464, %v2150
        %v2163 = vshrl.u32 920167782, %v2151
        %v2164 = vor.u32 %v2162, %v2163
        %v2165 = vshll.u32 920167782, %v2150
        %v2166 = vshrl.u32 1326507024, %v2151
        %v2167 = vor.u32 %v2165, %v2166
        %vm2168 = vcmp.lt.s32.totalorder %v2149, 1
        %vm2169 = vcmp.lt.s32.totalorder %v2149, 2
        %vm2170 = vcmp.lt.s32.totalorder %v2149, 3
        %vm2171 = vcmp.lt.s32.totalorder %v2149, 4
        %v2172 = vsel %vm2168, %v2152, %v2155
        %v2173 = vsel %vm2171, %v2161, 2102212464
        %v2174 = vsel %vm2170, %v2158, %v2173
        %v2175 = vsel %vm2169, %v2172, %v2174
        %v2176 = vsel %vm2168, %v2155, %v2158
        %v2177 = vsel %vm2171, %v2164, 920167782
        %v2178 = vsel %vm2170, %v2161, %v2177
        %v2179 = vsel %vm2169, %v2176, %v2178
        %v2180 = vsel %vm2168, %v2158, %v2161
        %v2181 = vsel %vm2171, %v2167, 1326507024
        %v2182 = vsel %vm2170, %v2164, %v2181
        %v2183 = vsel %vm2169, %v2180, %v2182
        %v2184 = vshll.u32 %v2144, 8
        %v2185 = vmul.u32.u64.compose %v2184, %v2183
        %v2186 = vextract.low.u32 %v2185
        %v2187 = vextract.high.u32 %v2185
        %v2188 = vmul.u32.u64.compose %v2184, %v2179
        %v2189 = vextract.low.u32 %v2188
        %v2190 = vextract.high.u32 %v2188
        %v2191 = vmul.u32 %v2184, %v2175
        %v2192 = vadd.s32 %v2187, %v2189
        %vm2193 = vc.u32 %v2187, %v2189
        %v2194 = vadd.s32 %v2190, 1
        %v2195 = vsel %vm2193, %v2194, %v2190
        %v2196 = vadd.s32 %v2191, %v2195
        %v2197 = vadd.s32 %v2196, 536870912
        %v2198 = vshrl.u32 %v2197, 30
        %v2199 = vshll.u32 %v2198, 30
        %v2200 = vsub.s32 %v2196, %v2199
        %vm2201 = vcmp.lt.s32.totalorder %v2200, 0
        %v2202 = vsub.s32 0, %v2200
        %v2203 = vsel %vm2201, %v2202, %v2200
        %v2204 = vclz %v2203
        %v2205 = vsub.s32 %v2204, 2
        %vm2206 = vcmp.gt.s32.totalorder 0, %v2205
        %v2207 = vsel %vm2206, 0, %v2205
        %v2208 = vsub.s32 32, %v2207
        %v2209 = vshll.u32 %v2200, %v2207
        %v2210 = vshrl.u32 %v2192, %v2208
        %v2211 = vor.u32 %v2209, %v2210
        %v2212 = vsub.s32 4294967266, %v2207
        %v2213 = vadd.s32 %v2212, 127
        %v2214 = vshll.u32 %v2213, 23
        %v2215 = vor.u32 4788187, %v2214
        %v2216 = vand.u32 2147483647, %v2215
        %v2218 = vcvt.s32.f32 %v2211
        %v2219 = vmul.f32 %v2218, %v2216
        %v2220 = vxor.u32 %v2219, 2147483648
        %v2221 = vsel %vm2138, %v2220, %v2219
        %v2222 = vsub.s32 4, %v2198
        %v2223 = vsel %vm2138, %v2222, %v2198
        %v2224 = vsel %vm2137, %v1405, %v2221
        %v2225 = vsel %vm2137, 0, %v2223
        %v2226 = vcosq.f32.pop %v2224
        %v2227 = vsinq.f32.pop %v2224
        %vm2228 = vweird.f32 %v1405
        %v2229 = vadd.s32 %v2225, 3
        %v2230 = vand.u32 %v2229, 3
        %vm2231 = vcmp.lt.s32.totalorder %v2230, 2
        %vm2232 = vcmp.eq.s32.totalorder %v2230, 0
        %v2233 = vxor.u32 %v2227, 2147483648
        %v2234 = vsel %vm2232, %v2226, %v2233
        %vm2235 = vcmp.eq.s32.totalorder %v2230, 2
        %v2236 = vxor.u32 %v2226, 2147483648
        %v2237 = vsel %vm2235, %v2236, %v2227
        %v2238 = vsel %vm2231, %v2234, %v2237
        %v2239 = vsel %vm2228, nan, %v2238
        %s2240 = scalar_lea.vmem [#allocation2], 128
        %v2241 = vld [vmem:[%s2240] sm:$0xff]
        %v2242 = vld [vmem:[%s2240 + $0x8] sm:$0xff]
        %v2243 = vld [vmem:[%s2240 + $0x10] sm:$0xff]
        %v2244 = vld [vmem:[%s2240 + $0x18] sm:$0xff]
        %v2245 = vld [vmem:[%s2240 + $0x20] sm:$0xff]
        %v2246 = vld [vmem:[%s2240 + $0x28] sm:$0xff]
        %v2247 = vld [vmem:[%s2240 + $0x30] sm:$0xff]
        %v2248 = vld [vmem:[%s2240 + $0x38] sm:$0xff]
        %v2249 = vld [vmem:[%s2240 + $0x40] sm:$0xff]
        %v2250 = vld [vmem:[%s2240 + $0x48] sm:$0xff]
        %v2251 = vld [vmem:[%s2240 + $0x50] sm:$0xff]
        %v2252 = vld [vmem:[%s2240 + $0x58] sm:$0xff]
        %v2253 = vld [vmem:[%s2240 + $0x60] sm:$0xff]
        %v2254 = vld [vmem:[%s2240 + $0x68] sm:$0xff]
        %v2255 = vld [vmem:[%s2240 + $0x70] sm:$0xff]
        %v2256 = vld [vmem:[%s2240 + $0x78] sm:$0xff]
        %s2257 = scalar_lea.vmem %s4, 1
        %v2258 = vld [vmem:[%s2257] sm:$0x1]
        %v2260 = vlaneseq
        %v2261 = vshrl.u32 %v2260, 7
        %v2262 = vsub.s32 0, %v2261
        %v2263 = vrot.slane %v2258, %v2262
        %2265 = vmatprep.subr.mxu0 0.0
        %2266 = vmatpush1.msra.mxu0 %v2241
        %2267 = vmatprep.subr.mxu0 0.0
        %2268 = vmatpush1.msra.mxu0 %v2242
        %2269 = vmatprep.subr.mxu0 0.0
        %2270 = vmatpush1.msra.mxu0 %v2243
        %2271 = vmatprep.subr.mxu0 0.0
        %2272 = vmatpush1.msra.mxu0 %v2244
        %2273 = vmatprep.subr.mxu0 0.0
        %2274 = vmatpush1.msra.mxu0 %v2245
        %2275 = vmatprep.subr.mxu0 0.0
        %2276 = vmatpush1.msra.mxu0 %v2246
        %2277 = vmatprep.subr.mxu0 0.0
        %2278 = vmatpush1.msra.mxu0 %v2247
        %2279 = vmatprep.subr.mxu0 0.0
        %2280 = vmatpush1.msra.mxu0 %v2248
        %2281 = vmatprep.subr.mxu0 0.0
        %2282 = vmatpush1.msra.mxu0 %v2249
        %2283 = vmatprep.subr.mxu0 0.0
        %2284 = vmatpush1.msra.mxu0 %v2250
        %2285 = vmatprep.subr.mxu0 0.0
        %2286 = vmatpush1.msra.mxu0 %v2251
        %2287 = vmatprep.subr.mxu0 0.0
        %2288 = vmatpush1.msra.mxu0 %v2252
        %2289 = vmatprep.subr.mxu0 0.0
        %2290 = vmatpush1.msra.mxu0 %v2253
        %2291 = vmatprep.subr.mxu0 0.0
        %2292 = vmatpush1.msra.mxu0 %v2254
        %2293 = vmatprep.subr.mxu0 0.0
        %2294 = vmatpush1.msra.mxu0 %v2255
        %2295 = vmatprep.subr.mxu0 0.0
        %2296 = vmatpush1.msra.mxu0 %v2256
        %2297 = vmatprep.subr.mxu0 0.0
        %2298 = vmatpush1.msra.mxu0 0.0
        %2299 = vmatprep.subr.mxu0 0.0
        %2300 = vmatpush1.msra.mxu0 0.0
        %2301 = vmatprep.subr.mxu0 0.0
        %2302 = vmatpush1.msra.mxu0 0.0
        %2303 = vmatprep.subr.mxu0 0.0
        %2304 = vmatpush1.msra.mxu0 0.0
        %2305 = vmatprep.subr.mxu0 0.0
        %2306 = vmatpush1.msra.mxu0 0.0
        %2307 = vmatprep.subr.mxu0 0.0
        %2308 = vmatpush1.msra.mxu0 0.0
        %2309 = vmatprep.subr.mxu0 0.0
        %2310 = vmatpush1.msra.mxu0 0.0
        %2311 = vmatprep.subr.mxu0 0.0
        %2312 = vmatpush1.msra.mxu0 0.0
        %2313 = vmatprep.subr.mxu0 0.0
        %2314 = vmatpush1.msra.mxu0 0.0
        %2315 = vmatprep.subr.mxu0 0.0
        %2316 = vmatpush1.msra.mxu0 0.0
        %2317 = vmatprep.subr.mxu0 0.0
        %2318 = vmatpush1.msra.mxu0 0.0
        %2319 = vmatprep.subr.mxu0 0.0
        %2320 = vmatpush1.msra.mxu0 0.0
        %2321 = vmatprep.subr.mxu0 0.0
        %2322 = vmatpush1.msra.mxu0 0.0
        %2323 = vmatprep.subr.mxu0 0.0
        %2324 = vmatpush1.msra.mxu0 0.0
        %2325 = vmatprep.subr.mxu0 0.0
        %2326 = vmatpush1.msra.mxu0 0.0
        %2327 = vmatprep.subr.mxu0 0.0
        %2328 = vmatpush1.msra.mxu0 0.0
        %2329 = vmatprep.mubr.f32.mxu0 0.0
        %2330 = vmatmul.mubr.f32.gmra.mrb[0].mxu0 %v1511
        %v2331 = vpop.f32.mrb[0].mxu0
        %v2332 = vadd.f32 %v2263, %v2331
        %v2333 = vpop.f32.mrb[0].mxu0
        %2334 = vmatprep.mubr.f32.mxu0 0.0
        %2335 = vmatmul.mubr.f32.gmra.mrb[0].mxu0 %v1615
        %v2336 = vpop.f32.mrb[0].mxu0
        %v2337 = vadd.f32 %v2263, %v2336
        %v2338 = vpop.f32.mrb[0].mxu0
        %2339 = vmatprep.mubr.f32.mxu0 0.0
        %2340 = vmatmul.mubr.f32.gmra.mrb[0].mxu0 %v1719
        %v2341 = vpop.f32.mrb[0].mxu0
        %v2342 = vadd.f32 %v2263, %v2341
        %v2343 = vpop.f32.mrb[0].mxu0
        %2344 = vmatprep.mubr.f32.mxu0 0.0
        %2345 = vmatmul.mubr.f32.gmra.mrb[0].mxu0 %v1823
        %v2346 = vpop.f32.mrb[0].mxu0
        %v2347 = vadd.f32 %v2263, %v2346
        %v2348 = vpop.f32.mrb[0].mxu0
        %2349 = vmatprep.mubr.f32.mxu0 0.0
        %2350 = vmatmul.mubr.f32.gmra.mrb[0].mxu0 %v1927
        %v2351 = vpop.f32.mrb[0].mxu0
        %v2352 = vadd.f32 %v2263, %v2351
        %v2353 = vpop.f32.mrb[0].mxu0
        %2354 = vmatprep.mubr.f32.mxu0 0.0
        %2355 = vmatmul.mubr.f32.gmra.mrb[0].mxu0 %v2031
        %v2356 = vpop.f32.mrb[0].mxu0
        %v2357 = vadd.f32 %v2263, %v2356
        %v2358 = vpop.f32.mrb[0].mxu0
        %2359 = vmatprep.mubr.f32.mxu0 0.0
        %2360 = vmatmul.mubr.f32.gmra.mrb[0].mxu0 %v2135
        %v2361 = vpop.f32.mrb[0].mxu0
        %v2362 = vadd.f32 %v2263, %v2361
        %v2363 = vpop.f32.mrb[0].mxu0
        %2364 = vmatprep.mubr.f32.mxu0 0.0
        %2365 = vmatmul.mubr.f32.gmra.mrb[0].mxu0 %v2239
        %v2366 = vpop.f32.mrb[0].mxu0
        %v2367 = vadd.f32 %v2263, %v2366
        %v2368 = vpop.f32.mrb[0].mxu0
        %2369 = vdwg.mxu0
        %v2370 = vand.u32 2147483647, %v2332
        %vm2371 = vcmp.le.f32.partialorder %v2370, 0.7853982
        %vm2372 = vcmp.lt.s32.totalorder %v2332, 0
        %v2373 = vand.u32 %v2332, 2139095040
        %v2374 = vshrl.u32 %v2373, 23
        %v2375 = vsub.s32 %v2374, 127
        %v2376 = vand.u32 2147483647, %v2332
        %v2377 = vand.u32 %v2376, 8388607
        %v2378 = vor.u32 %v2377, 8388608
        %v2379 = vsub.s32 0, %v2378
        %v2380 = vadd.s32 %v2375, 1
        %vm2381 = vcmp.gt.s32.totalorder %v2380, 0
        %v2382 = vsel %vm2381, %v2380, 0
        %v2383 = vshrl.u32 %v2382, 5
        %v2384 = vand.u32 %v2382, 31
        %v2385 = vsub.s32 32, %v2384
        %v2386 = vshrl.u32 683565275, %v2385
        %v2387 = vshll.u32 683565275, %v2384
        %v2388 = vshrl.u32 2475754826, %v2385
        %v2389 = vor.u32 %v2387, %v2388
        %v2390 = vshll.u32 2475754826, %v2384
        %v2391 = vshrl.u32 2131351028, %v2385
        %v2392 = vor.u32 %v2390, %v2391
        %v2393 = vshll.u32 2131351028, %v2384
        %v2394 = vshrl.u32 2102212464, %v2385
        %v2395 = vor.u32 %v2393, %v2394
        %v2396 = vshll.u32 2102212464, %v2384
        %v2397 = vshrl.u32 920167782, %v2385
        %v2398 = vor.u32 %v2396, %v2397
        %v2399 = vshll.u32 920167782, %v2384
        %v2400 = vshrl.u32 1326507024, %v2385
        %v2401 = vor.u32 %v2399, %v2400
        %vm2402 = vcmp.lt.s32.totalorder %v2383, 1
        %vm2403 = vcmp.lt.s32.totalorder %v2383, 2
        %vm2404 = vcmp.lt.s32.totalorder %v2383, 3
        %vm2405 = vcmp.lt.s32.totalorder %v2383, 4
        %v2406 = vsel %vm2402, %v2386, %v2389
        %v2407 = vsel %vm2405, %v2395, 2102212464
        %v2408 = vsel %vm2404, %v2392, %v2407
        %v2409 = vsel %vm2403, %v2406, %v2408
        %v2410 = vsel %vm2402, %v2389, %v2392
        %v2411 = vsel %vm2405, %v2398, 920167782
        %v2412 = vsel %vm2404, %v2395, %v2411
        %v2413 = vsel %vm2403, %v2410, %v2412
        %v2414 = vsel %vm2402, %v2392, %v2395
        %v2415 = vsel %vm2405, %v2401, 1326507024
        %v2416 = vsel %vm2404, %v2398, %v2415
        %v2417 = vsel %vm2403, %v2414, %v2416
        %v2418 = vshll.u32 %v2378, 8
        %v2419 = vmul.u32.u64.compose %v2418, %v2417
        %v2420 = vextract.low.u32 %v2419
        %v2421 = vextract.high.u32 %v2419
        %v2422 = vmul.u32.u64.compose %v2418, %v2413
        %v2423 = vextract.low.u32 %v2422
        %v2424 = vextract.high.u32 %v2422
        %v2425 = vmul.u32 %v2418, %v2409
        %v2426 = vadd.s32 %v2421, %v2423
        %vm2427 = vc.u32 %v2421, %v2423
        %v2428 = vadd.s32 %v2424, 1
        %v2429 = vsel %vm2427, %v2428, %v2424
        %v2430 = vadd.s32 %v2425, %v2429
        %v2431 = vadd.s32 %v2430, 536870912
        %v2432 = vshrl.u32 %v2431, 30
        %v2433 = vshll.u32 %v2432, 30
        %v2434 = vsub.s32 %v2430, %v2433
        %vm2435 = vcmp.lt.s32.totalorder %v2434, 0
        %v2436 = vsub.s32 0, %v2434
        %v2437 = vsel %vm2435, %v2436, %v2434
        %v2438 = vclz %v2437
        %v2439 = vsub.s32 %v2438, 2
        %vm2440 = vcmp.gt.s32.totalorder 0, %v2439
        %v2441 = vsel %vm2440, 0, %v2439
        %v2442 = vsub.s32 32, %v2441
        %v2443 = vshll.u32 %v2434, %v2441
        %v2444 = vshrl.u32 %v2426, %v2442
        %v2445 = vor.u32 %v2443, %v2444
        %v2446 = vsub.s32 4294967266, %v2441
        %v2447 = vadd.s32 %v2446, 127
        %v2448 = vshll.u32 %v2447, 23
        %v2449 = vor.u32 4788187, %v2448
        %v2450 = vand.u32 2147483647, %v2449
        %v2452 = vcvt.s32.f32 %v2445
        %v2453 = vmul.f32 %v2452, %v2450
        %v2454 = vxor.u32 %v2453, 2147483648
        %v2455 = vsel %vm2372, %v2454, %v2453
        %v2456 = vsub.s32 4, %v2432
        %v2457 = vsel %vm2372, %v2456, %v2432
        %v2458 = vsel %vm2371, %v2332, %v2455
        %v2459 = vsel %vm2371, 0, %v2457
        %v2460 = vcosq.f32.pop %v2458
        %v2461 = vsinq.f32.pop %v2458
        %vm2462 = vweird.f32 %v2332
        %v2463 = vadd.s32 %v2459, 3
        %v2464 = vand.u32 %v2463, 3
        %vm2465 = vcmp.lt.s32.totalorder %v2464, 2
        %vm2466 = vcmp.eq.s32.totalorder %v2464, 0
        %v2467 = vxor.u32 %v2461, 2147483648
        %v2468 = vsel %vm2466, %v2460, %v2467
        %vm2469 = vcmp.eq.s32.totalorder %v2464, 2
        %v2470 = vxor.u32 %v2460, 2147483648
        %v2471 = vsel %vm2469, %v2470, %v2461
        %v2472 = vsel %vm2465, %v2468, %v2471
        %v2473 = vsel %vm2462, nan, %v2472
        %v2474 = vand.u32 2147483647, %v2337
        %vm2475 = vcmp.le.f32.partialorder %v2474, 0.7853982
        %vm2476 = vcmp.lt.s32.totalorder %v2337, 0
        %v2477 = vand.u32 %v2337, 2139095040
        %v2478 = vshrl.u32 %v2477, 23
        %v2479 = vsub.s32 %v2478, 127
        %v2480 = vand.u32 2147483647, %v2337
        %v2481 = vand.u32 %v2480, 8388607
        %v2482 = vor.u32 %v2481, 8388608
        %v2483 = vsub.s32 0, %v2482
        %v2484 = vadd.s32 %v2479, 1
        %vm2485 = vcmp.gt.s32.totalorder %v2484, 0
        %v2486 = vsel %vm2485, %v2484, 0
        %v2487 = vshrl.u32 %v2486, 5
        %v2488 = vand.u32 %v2486, 31
        %v2489 = vsub.s32 32, %v2488
        %v2490 = vshrl.u32 683565275, %v2489
        %v2491 = vshll.u32 683565275, %v2488
        %v2492 = vshrl.u32 2475754826, %v2489
        %v2493 = vor.u32 %v2491, %v2492
        %v2494 = vshll.u32 2475754826, %v2488
        %v2495 = vshrl.u32 2131351028, %v2489
        %v2496 = vor.u32 %v2494, %v2495
        %v2497 = vshll.u32 2131351028, %v2488
        %v2498 = vshrl.u32 2102212464, %v2489
        %v2499 = vor.u32 %v2497, %v2498
        %v2500 = vshll.u32 2102212464, %v2488
        %v2501 = vshrl.u32 920167782, %v2489
        %v2502 = vor.u32 %v2500, %v2501
        %v2503 = vshll.u32 920167782, %v2488
        %v2504 = vshrl.u32 1326507024, %v2489
        %v2505 = vor.u32 %v2503, %v2504
        %vm2506 = vcmp.lt.s32.totalorder %v2487, 1
        %vm2507 = vcmp.lt.s32.totalorder %v2487, 2
        %vm2508 = vcmp.lt.s32.totalorder %v2487, 3
        %vm2509 = vcmp.lt.s32.totalorder %v2487, 4
        %v2510 = vsel %vm2506, %v2490, %v2493
        %v2511 = vsel %vm2509, %v2499, 2102212464
        %v2512 = vsel %vm2508, %v2496, %v2511
        %v2513 = vsel %vm2507, %v2510, %v2512
        %v2514 = vsel %vm2506, %v2493, %v2496
        %v2515 = vsel %vm2509, %v2502, 920167782
        %v2516 = vsel %vm2508, %v2499, %v2515
        %v2517 = vsel %vm2507, %v2514, %v2516
        %v2518 = vsel %vm2506, %v2496, %v2499
        %v2519 = vsel %vm2509, %v2505, 1326507024
        %v2520 = vsel %vm2508, %v2502, %v2519
        %v2521 = vsel %vm2507, %v2518, %v2520
        %v2522 = vshll.u32 %v2482, 8
        %v2523 = vmul.u32.u64.compose %v2522, %v2521
        %v2524 = vextract.low.u32 %v2523
        %v2525 = vextract.high.u32 %v2523
        %v2526 = vmul.u32.u64.compose %v2522, %v2517
        %v2527 = vextract.low.u32 %v2526
        %v2528 = vextract.high.u32 %v2526
        %v2529 = vmul.u32 %v2522, %v2513
        %v2530 = vadd.s32 %v2525, %v2527
        %vm2531 = vc.u32 %v2525, %v2527
        %v2532 = vadd.s32 %v2528, 1
        %v2533 = vsel %vm2531, %v2532, %v2528
        %v2534 = vadd.s32 %v2529, %v2533
        %v2535 = vadd.s32 %v2534, 536870912
        %v2536 = vshrl.u32 %v2535, 30
        %v2537 = vshll.u32 %v2536, 30
        %v2538 = vsub.s32 %v2534, %v2537
        %vm2539 = vcmp.lt.s32.totalorder %v2538, 0
        %v2540 = vsub.s32 0, %v2538
        %v2541 = vsel %vm2539, %v2540, %v2538
        %v2542 = vclz %v2541
        %v2543 = vsub.s32 %v2542, 2
        %vm2544 = vcmp.gt.s32.totalorder 0, %v2543
        %v2545 = vsel %vm2544, 0, %v2543
        %v2546 = vsub.s32 32, %v2545
        %v2547 = vshll.u32 %v2538, %v2545
        %v2548 = vshrl.u32 %v2530, %v2546
        %v2549 = vor.u32 %v2547, %v2548
        %v2550 = vsub.s32 4294967266, %v2545
        %v2551 = vadd.s32 %v2550, 127
        %v2552 = vshll.u32 %v2551, 23
        %v2553 = vor.u32 4788187, %v2552
        %v2554 = vand.u32 2147483647, %v2553
        %v2556 = vcvt.s32.f32 %v2549
        %v2557 = vmul.f32 %v2556, %v2554
        %v2558 = vxor.u32 %v2557, 2147483648
        %v2559 = vsel %vm2476, %v2558, %v2557
        %v2560 = vsub.s32 4, %v2536
        %v2561 = vsel %vm2476, %v2560, %v2536
        %v2562 = vsel %vm2475, %v2337, %v2559
        %v2563 = vsel %vm2475, 0, %v2561
        %v2564 = vcosq.f32.pop %v2562
        %v2565 = vsinq.f32.pop %v2562
        %vm2566 = vweird.f32 %v2337
        %v2567 = vadd.s32 %v2563, 3
        %v2568 = vand.u32 %v2567, 3
        %vm2569 = vcmp.lt.s32.totalorder %v2568, 2
        %vm2570 = vcmp.eq.s32.totalorder %v2568, 0
        %v2571 = vxor.u32 %v2565, 2147483648
        %v2572 = vsel %vm2570, %v2564, %v2571
        %vm2573 = vcmp.eq.s32.totalorder %v2568, 2
        %v2574 = vxor.u32 %v2564, 2147483648
        %v2575 = vsel %vm2573, %v2574, %v2565
        %v2576 = vsel %vm2569, %v2572, %v2575
        %v2577 = vsel %vm2566, nan, %v2576
        %v2578 = vand.u32 2147483647, %v2342
        %vm2579 = vcmp.le.f32.partialorder %v2578, 0.7853982
        %vm2580 = vcmp.lt.s32.totalorder %v2342, 0
        %v2581 = vand.u32 %v2342, 2139095040
        %v2582 = vshrl.u32 %v2581, 23
        %v2583 = vsub.s32 %v2582, 127
        %v2584 = vand.u32 2147483647, %v2342
        %v2585 = vand.u32 %v2584, 8388607
        %v2586 = vor.u32 %v2585, 8388608
        %v2587 = vsub.s32 0, %v2586
        %v2588 = vadd.s32 %v2583, 1
        %vm2589 = vcmp.gt.s32.totalorder %v2588, 0
        %v2590 = vsel %vm2589, %v2588, 0
        %v2591 = vshrl.u32 %v2590, 5
        %v2592 = vand.u32 %v2590, 31
        %v2593 = vsub.s32 32, %v2592
        %v2594 = vshrl.u32 683565275, %v2593
        %v2595 = vshll.u32 683565275, %v2592
        %v2596 = vshrl.u32 2475754826, %v2593
        %v2597 = vor.u32 %v2595, %v2596
        %v2598 = vshll.u32 2475754826, %v2592
        %v2599 = vshrl.u32 2131351028, %v2593
        %v2600 = vor.u32 %v2598, %v2599
        %v2601 = vshll.u32 2131351028, %v2592
        %v2602 = vshrl.u32 2102212464, %v2593
        %v2603 = vor.u32 %v2601, %v2602
        %v2604 = vshll.u32 2102212464, %v2592
        %v2605 = vshrl.u32 920167782, %v2593
        %v2606 = vor.u32 %v2604, %v2605
        %v2607 = vshll.u32 920167782, %v2592
        %v2608 = vshrl.u32 1326507024, %v2593
        %v2609 = vor.u32 %v2607, %v2608
        %vm2610 = vcmp.lt.s32.totalorder %v2591, 1
        %vm2611 = vcmp.lt.s32.totalorder %v2591, 2
        %vm2612 = vcmp.lt.s32.totalorder %v2591, 3
        %vm2613 = vcmp.lt.s32.totalorder %v2591, 4
        %v2614 = vsel %vm2610, %v2594, %v2597
        %v2615 = vsel %vm2613, %v2603, 2102212464
        %v2616 = vsel %vm2612, %v2600, %v2615
        %v2617 = vsel %vm2611, %v2614, %v2616
        %v2618 = vsel %vm2610, %v2597, %v2600
        %v2619 = vsel %vm2613, %v2606, 920167782
        %v2620 = vsel %vm2612, %v2603, %v2619
        %v2621 = vsel %vm2611, %v2618, %v2620
        %v2622 = vsel %vm2610, %v2600, %v2603
        %v2623 = vsel %vm2613, %v2609, 1326507024
        %v2624 = vsel %vm2612, %v2606, %v2623
        %v2625 = vsel %vm2611, %v2622, %v2624
        %v2626 = vshll.u32 %v2586, 8
        %v2627 = vmul.u32.u64.compose %v2626, %v2625
        %v2628 = vextract.low.u32 %v2627
        %v2629 = vextract.high.u32 %v2627
        %v2630 = vmul.u32.u64.compose %v2626, %v2621
        %v2631 = vextract.low.u32 %v2630
        %v2632 = vextract.high.u32 %v2630
        %v2633 = vmul.u32 %v2626, %v2617
        %v2634 = vadd.s32 %v2629, %v2631
        %vm2635 = vc.u32 %v2629, %v2631
        %v2636 = vadd.s32 %v2632, 1
        %v2637 = vsel %vm2635, %v2636, %v2632
        %v2638 = vadd.s32 %v2633, %v2637
        %v2639 = vadd.s32 %v2638, 536870912
        %v2640 = vshrl.u32 %v2639, 30
        %v2641 = vshll.u32 %v2640, 30
        %v2642 = vsub.s32 %v2638, %v2641
        %vm2643 = vcmp.lt.s32.totalorder %v2642, 0
        %v2644 = vsub.s32 0, %v2642
        %v2645 = vsel %vm2643, %v2644, %v2642
        %v2646 = vclz %v2645
        %v2647 = vsub.s32 %v2646, 2
        %vm2648 = vcmp.gt.s32.totalorder 0, %v2647
        %v2649 = vsel %vm2648, 0, %v2647
        %v2650 = vsub.s32 32, %v2649
        %v2651 = vshll.u32 %v2642, %v2649
        %v2652 = vshrl.u32 %v2634, %v2650
        %v2653 = vor.u32 %v2651, %v2652
        %v2654 = vsub.s32 4294967266, %v2649
        %v2655 = vadd.s32 %v2654, 127
        %v2656 = vshll.u32 %v2655, 23
        %v2657 = vor.u32 4788187, %v2656
        %v2658 = vand.u32 2147483647, %v2657
        %v2660 = vcvt.s32.f32 %v2653
        %v2661 = vmul.f32 %v2660, %v2658
        %v2662 = vxor.u32 %v2661, 2147483648
        %v2663 = vsel %vm2580, %v2662, %v2661
        %v2664 = vsub.s32 4, %v2640
        %v2665 = vsel %vm2580, %v2664, %v2640
        %v2666 = vsel %vm2579, %v2342, %v2663
        %v2667 = vsel %vm2579, 0, %v2665
        %v2668 = vcosq.f32.pop %v2666
        %v2669 = vsinq.f32.pop %v2666
        %vm2670 = vweird.f32 %v2342
        %v2671 = vadd.s32 %v2667, 3
        %v2672 = vand.u32 %v2671, 3
        %vm2673 = vcmp.lt.s32.totalorder %v2672, 2
        %vm2674 = vcmp.eq.s32.totalorder %v2672, 0
        %v2675 = vxor.u32 %v2669, 2147483648
        %v2676 = vsel %vm2674, %v2668, %v2675
        %vm2677 = vcmp.eq.s32.totalorder %v2672, 2
        %v2678 = vxor.u32 %v2668, 2147483648
        %v2679 = vsel %vm2677, %v2678, %v2669
        %v2680 = vsel %vm2673, %v2676, %v2679
        %v2681 = vsel %vm2670, nan, %v2680
        %v2682 = vand.u32 2147483647, %v2347
        %vm2683 = vcmp.le.f32.partialorder %v2682, 0.7853982
        %vm2684 = vcmp.lt.s32.totalorder %v2347, 0
        %v2685 = vand.u32 %v2347, 2139095040
        %v2686 = vshrl.u32 %v2685, 23
        %v2687 = vsub.s32 %v2686, 127
        %v2688 = vand.u32 2147483647, %v2347
        %v2689 = vand.u32 %v2688, 8388607
        %v2690 = vor.u32 %v2689, 8388608
        %v2691 = vsub.s32 0, %v2690
        %v2692 = vadd.s32 %v2687, 1
        %vm2693 = vcmp.gt.s32.totalorder %v2692, 0
        %v2694 = vsel %vm2693, %v2692, 0
        %v2695 = vshrl.u32 %v2694, 5
        %v2696 = vand.u32 %v2694, 31
        %v2697 = vsub.s32 32, %v2696
        %v2698 = vshrl.u32 683565275, %v2697
        %v2699 = vshll.u32 683565275, %v2696
        %v2700 = vshrl.u32 2475754826, %v2697
        %v2701 = vor.u32 %v2699, %v2700
        %v2702 = vshll.u32 2475754826, %v2696
        %v2703 = vshrl.u32 2131351028, %v2697
        %v2704 = vor.u32 %v2702, %v2703
        %v2705 = vshll.u32 2131351028, %v2696
        %v2706 = vshrl.u32 2102212464, %v2697
        %v2707 = vor.u32 %v2705, %v2706
        %v2708 = vshll.u32 2102212464, %v2696
        %v2709 = vshrl.u32 920167782, %v2697
        %v2710 = vor.u32 %v2708, %v2709
        %v2711 = vshll.u32 920167782, %v2696
        %v2712 = vshrl.u32 1326507024, %v2697
        %v2713 = vor.u32 %v2711, %v2712
        %vm2714 = vcmp.lt.s32.totalorder %v2695, 1
        %vm2715 = vcmp.lt.s32.totalorder %v2695, 2
        %vm2716 = vcmp.lt.s32.totalorder %v2695, 3
        %vm2717 = vcmp.lt.s32.totalorder %v2695, 4
        %v2718 = vsel %vm2714, %v2698, %v2701
        %v2719 = vsel %vm2717, %v2707, 2102212464
        %v2720 = vsel %vm2716, %v2704, %v2719
        %v2721 = vsel %vm2715, %v2718, %v2720
        %v2722 = vsel %vm2714, %v2701, %v2704
        %v2723 = vsel %vm2717, %v2710, 920167782
        %v2724 = vsel %vm2716, %v2707, %v2723
        %v2725 = vsel %vm2715, %v2722, %v2724
        %v2726 = vsel %vm2714, %v2704, %v2707
        %v2727 = vsel %vm2717, %v2713, 1326507024
        %v2728 = vsel %vm2716, %v2710, %v2727
        %v2729 = vsel %vm2715, %v2726, %v2728
        %v2730 = vshll.u32 %v2690, 8
        %v2731 = vmul.u32.u64.compose %v2730, %v2729
        %v2732 = vextract.low.u32 %v2731
        %v2733 = vextract.high.u32 %v2731
        %v2734 = vmul.u32.u64.compose %v2730, %v2725
        %v2735 = vextract.low.u32 %v2734
        %v2736 = vextract.high.u32 %v2734
        %v2737 = vmul.u32 %v2730, %v2721
        %v2738 = vadd.s32 %v2733, %v2735
        %vm2739 = vc.u32 %v2733, %v2735
        %v2740 = vadd.s32 %v2736, 1
        %v2741 = vsel %vm2739, %v2740, %v2736
        %v2742 = vadd.s32 %v2737, %v2741
        %v2743 = vadd.s32 %v2742, 536870912
        %v2744 = vshrl.u32 %v2743, 30
        %v2745 = vshll.u32 %v2744, 30
        %v2746 = vsub.s32 %v2742, %v2745
        %vm2747 = vcmp.lt.s32.totalorder %v2746, 0
        %v2748 = vsub.s32 0, %v2746
        %v2749 = vsel %vm2747, %v2748, %v2746
        %v2750 = vclz %v2749
        %v2751 = vsub.s32 %v2750, 2
        %vm2752 = vcmp.gt.s32.totalorder 0, %v2751
        %v2753 = vsel %vm2752, 0, %v2751
        %v2754 = vsub.s32 32, %v2753
        %v2755 = vshll.u32 %v2746, %v2753
        %v2756 = vshrl.u32 %v2738, %v2754
        %v2757 = vor.u32 %v2755, %v2756
        %v2758 = vsub.s32 4294967266, %v2753
        %v2759 = vadd.s32 %v2758, 127
        %v2760 = vshll.u32 %v2759, 23
        %v2761 = vor.u32 4788187, %v2760
        %v2762 = vand.u32 2147483647, %v2761
        %v2764 = vcvt.s32.f32 %v2757
        %v2765 = vmul.f32 %v2764, %v2762
        %v2766 = vxor.u32 %v2765, 2147483648
        %v2767 = vsel %vm2684, %v2766, %v2765
        %v2768 = vsub.s32 4, %v2744
        %v2769 = vsel %vm2684, %v2768, %v2744
        %v2770 = vsel %vm2683, %v2347, %v2767
        %v2771 = vsel %vm2683, 0, %v2769
        %v2772 = vcosq.f32.pop %v2770
        %v2773 = vsinq.f32.pop %v2770
        %vm2774 = vweird.f32 %v2347
        %v2775 = vadd.s32 %v2771, 3
        %v2776 = vand.u32 %v2775, 3
        %vm2777 = vcmp.lt.s32.totalorder %v2776, 2
        %vm2778 = vcmp.eq.s32.totalorder %v2776, 0
        %v2779 = vxor.u32 %v2773, 2147483648
        %v2780 = vsel %vm2778, %v2772, %v2779
        %vm2781 = vcmp.eq.s32.totalorder %v2776, 2
        %v2782 = vxor.u32 %v2772, 2147483648
        %v2783 = vsel %vm2781, %v2782, %v2773
        %v2784 = vsel %vm2777, %v2780, %v2783
        %v2785 = vsel %vm2774, nan, %v2784
        %v2786 = vand.u32 2147483647, %v2352
        %vm2787 = vcmp.le.f32.partialorder %v2786, 0.7853982
        %vm2788 = vcmp.lt.s32.totalorder %v2352, 0
        %v2789 = vand.u32 %v2352, 2139095040
        %v2790 = vshrl.u32 %v2789, 23
        %v2791 = vsub.s32 %v2790, 127
        %v2792 = vand.u32 2147483647, %v2352
        %v2793 = vand.u32 %v2792, 8388607
        %v2794 = vor.u32 %v2793, 8388608
        %v2795 = vsub.s32 0, %v2794
        %v2796 = vadd.s32 %v2791, 1
        %vm2797 = vcmp.gt.s32.totalorder %v2796, 0
        %v2798 = vsel %vm2797, %v2796, 0
        %v2799 = vshrl.u32 %v2798, 5
        %v2800 = vand.u32 %v2798, 31
        %v2801 = vsub.s32 32, %v2800
        %v2802 = vshrl.u32 683565275, %v2801
        %v2803 = vshll.u32 683565275, %v2800
        %v2804 = vshrl.u32 2475754826, %v2801
        %v2805 = vor.u32 %v2803, %v2804
        %v2806 = vshll.u32 2475754826, %v2800
        %v2807 = vshrl.u32 2131351028, %v2801
        %v2808 = vor.u32 %v2806, %v2807
        %v2809 = vshll.u32 2131351028, %v2800
        %v2810 = vshrl.u32 2102212464, %v2801
        %v2811 = vor.u32 %v2809, %v2810
        %v2812 = vshll.u32 2102212464, %v2800
        %v2813 = vshrl.u32 920167782, %v2801
        %v2814 = vor.u32 %v2812, %v2813
        %v2815 = vshll.u32 920167782, %v2800
        %v2816 = vshrl.u32 1326507024, %v2801
        %v2817 = vor.u32 %v2815, %v2816
        %vm2818 = vcmp.lt.s32.totalorder %v2799, 1
        %vm2819 = vcmp.lt.s32.totalorder %v2799, 2
        %vm2820 = vcmp.lt.s32.totalorder %v2799, 3
        %vm2821 = vcmp.lt.s32.totalorder %v2799, 4
        %v2822 = vsel %vm2818, %v2802, %v2805
        %v2823 = vsel %vm2821, %v2811, 2102212464
        %v2824 = vsel %vm2820, %v2808, %v2823
        %v2825 = vsel %vm2819, %v2822, %v2824
        %v2826 = vsel %vm2818, %v2805, %v2808
        %v2827 = vsel %vm2821, %v2814, 920167782
        %v2828 = vsel %vm2820, %v2811, %v2827
        %v2829 = vsel %vm2819, %v2826, %v2828
        %v2830 = vsel %vm2818, %v2808, %v2811
        %v2831 = vsel %vm2821, %v2817, 1326507024
        %v2832 = vsel %vm2820, %v2814, %v2831
        %v2833 = vsel %vm2819, %v2830, %v2832
        %v2834 = vshll.u32 %v2794, 8
        %v2835 = vmul.u32.u64.compose %v2834, %v2833
        %v2836 = vextract.low.u32 %v2835
        %v2837 = vextract.high.u32 %v2835
        %v2838 = vmul.u32.u64.compose %v2834, %v2829
        %v2839 = vextract.low.u32 %v2838
        %v2840 = vextract.high.u32 %v2838
        %v2841 = vmul.u32 %v2834, %v2825
        %v2842 = vadd.s32 %v2837, %v2839
        %vm2843 = vc.u32 %v2837, %v2839
        %v2844 = vadd.s32 %v2840, 1
        %v2845 = vsel %vm2843, %v2844, %v2840
        %v2846 = vadd.s32 %v2841, %v2845
        %v2847 = vadd.s32 %v2846, 536870912
        %v2848 = vshrl.u32 %v2847, 30
        %v2849 = vshll.u32 %v2848, 30
        %v2850 = vsub.s32 %v2846, %v2849
        %vm2851 = vcmp.lt.s32.totalorder %v2850, 0
        %v2852 = vsub.s32 0, %v2850
        %v2853 = vsel %vm2851, %v2852, %v2850
        %v2854 = vclz %v2853
        %v2855 = vsub.s32 %v2854, 2
        %vm2856 = vcmp.gt.s32.totalorder 0, %v2855
        %v2857 = vsel %vm2856, 0, %v2855
        %v2858 = vsub.s32 32, %v2857
        %v2859 = vshll.u32 %v2850, %v2857
        %v2860 = vshrl.u32 %v2842, %v2858
        %v2861 = vor.u32 %v2859, %v2860
        %v2862 = vsub.s32 4294967266, %v2857
        %v2863 = vadd.s32 %v2862, 127
        %v2864 = vshll.u32 %v2863, 23
        %v2865 = vor.u32 4788187, %v2864
        %v2866 = vand.u32 2147483647, %v2865
        %v2868 = vcvt.s32.f32 %v2861
        %v2869 = vmul.f32 %v2868, %v2866
        %v2870 = vxor.u32 %v2869, 2147483648
        %v2871 = vsel %vm2788, %v2870, %v2869
        %v2872 = vsub.s32 4, %v2848
        %v2873 = vsel %vm2788, %v2872, %v2848
        %v2874 = vsel %vm2787, %v2352, %v2871
        %v2875 = vsel %vm2787, 0, %v2873
        %v2876 = vcosq.f32.pop %v2874
        %v2877 = vsinq.f32.pop %v2874
        %vm2878 = vweird.f32 %v2352
        %v2879 = vadd.s32 %v2875, 3
        %v2880 = vand.u32 %v2879, 3
        %vm2881 = vcmp.lt.s32.totalorder %v2880, 2
        %vm2882 = vcmp.eq.s32.totalorder %v2880, 0
        %v2883 = vxor.u32 %v2877, 2147483648
        %v2884 = vsel %vm2882, %v2876, %v2883
        %vm2885 = vcmp.eq.s32.totalorder %v2880, 2
        %v2886 = vxor.u32 %v2876, 2147483648
        %v2887 = vsel %vm2885, %v2886, %v2877
        %v2888 = vsel %vm2881, %v2884, %v2887
        %v2889 = vsel %vm2878, nan, %v2888
        %v2890 = vand.u32 2147483647, %v2357
        %vm2891 = vcmp.le.f32.partialorder %v2890, 0.7853982
        %vm2892 = vcmp.lt.s32.totalorder %v2357, 0
        %v2893 = vand.u32 %v2357, 2139095040
        %v2894 = vshrl.u32 %v2893, 23
        %v2895 = vsub.s32 %v2894, 127
        %v2896 = vand.u32 2147483647, %v2357
        %v2897 = vand.u32 %v2896, 8388607
        %v2898 = vor.u32 %v2897, 8388608
        %v2899 = vsub.s32 0, %v2898
        %v2900 = vadd.s32 %v2895, 1
        %vm2901 = vcmp.gt.s32.totalorder %v2900, 0
        %v2902 = vsel %vm2901, %v2900, 0
        %v2903 = vshrl.u32 %v2902, 5
        %v2904 = vand.u32 %v2902, 31
        %v2905 = vsub.s32 32, %v2904
        %v2906 = vshrl.u32 683565275, %v2905
        %v2907 = vshll.u32 683565275, %v2904
        %v2908 = vshrl.u32 2475754826, %v2905
        %v2909 = vor.u32 %v2907, %v2908
        %v2910 = vshll.u32 2475754826, %v2904
        %v2911 = vshrl.u32 2131351028, %v2905
        %v2912 = vor.u32 %v2910, %v2911
        %v2913 = vshll.u32 2131351028, %v2904
        %v2914 = vshrl.u32 2102212464, %v2905
        %v2915 = vor.u32 %v2913, %v2914
        %v2916 = vshll.u32 2102212464, %v2904
        %v2917 = vshrl.u32 920167782, %v2905
        %v2918 = vor.u32 %v2916, %v2917
        %v2919 = vshll.u32 920167782, %v2904
        %v2920 = vshrl.u32 1326507024, %v2905
        %v2921 = vor.u32 %v2919, %v2920
        %vm2922 = vcmp.lt.s32.totalorder %v2903, 1
        %vm2923 = vcmp.lt.s32.totalorder %v2903, 2
        %vm2924 = vcmp.lt.s32.totalorder %v2903, 3
        %vm2925 = vcmp.lt.s32.totalorder %v2903, 4
        %v2926 = vsel %vm2922, %v2906, %v2909
        %v2927 = vsel %vm2925, %v2915, 2102212464
        %v2928 = vsel %vm2924, %v2912, %v2927
        %v2929 = vsel %vm2923, %v2926, %v2928
        %v2930 = vsel %vm2922, %v2909, %v2912
        %v2931 = vsel %vm2925, %v2918, 920167782
        %v2932 = vsel %vm2924, %v2915, %v2931
        %v2933 = vsel %vm2923, %v2930, %v2932
        %v2934 = vsel %vm2922, %v2912, %v2915
        %v2935 = vsel %vm2925, %v2921, 1326507024
        %v2936 = vsel %vm2924, %v2918, %v2935
        %v2937 = vsel %vm2923, %v2934, %v2936
        %v2938 = vshll.u32 %v2898, 8
        %v2939 = vmul.u32.u64.compose %v2938, %v2937
        %v2940 = vextract.low.u32 %v2939
        %v2941 = vextract.high.u32 %v2939
        %v2942 = vmul.u32.u64.compose %v2938, %v2933
        %v2943 = vextract.low.u32 %v2942
        %v2944 = vextract.high.u32 %v2942
        %v2945 = vmul.u32 %v2938, %v2929
        %v2946 = vadd.s32 %v2941, %v2943
        %vm2947 = vc.u32 %v2941, %v2943
        %v2948 = vadd.s32 %v2944, 1
        %v2949 = vsel %vm2947, %v2948, %v2944
        %v2950 = vadd.s32 %v2945, %v2949
        %v2951 = vadd.s32 %v2950, 536870912
        %v2952 = vshrl.u32 %v2951, 30
        %v2953 = vshll.u32 %v2952, 30
        %v2954 = vsub.s32 %v2950, %v2953
        %vm2955 = vcmp.lt.s32.totalorder %v2954, 0
        %v2956 = vsub.s32 0, %v2954
        %v2957 = vsel %vm2955, %v2956, %v2954
        %v2958 = vclz %v2957
        %v2959 = vsub.s32 %v2958, 2
        %vm2960 = vcmp.gt.s32.totalorder 0, %v2959
        %v2961 = vsel %vm2960, 0, %v2959
        %v2962 = vsub.s32 32, %v2961
        %v2963 = vshll.u32 %v2954, %v2961
        %v2964 = vshrl.u32 %v2946, %v2962
        %v2965 = vor.u32 %v2963, %v2964
        %v2966 = vsub.s32 4294967266, %v2961
        %v2967 = vadd.s32 %v2966, 127
        %v2968 = vshll.u32 %v2967, 23
        %v2969 = vor.u32 4788187, %v2968
        %v2970 = vand.u32 2147483647, %v2969
        %v2972 = vcvt.s32.f32 %v2965
        %v2973 = vmul.f32 %v2972, %v2970
        %v2974 = vxor.u32 %v2973, 2147483648
        %v2975 = vsel %vm2892, %v2974, %v2973
        %v2976 = vsub.s32 4, %v2952
        %v2977 = vsel %vm2892, %v2976, %v2952
        %v2978 = vsel %vm2891, %v2357, %v2975
        %v2979 = vsel %vm2891, 0, %v2977
        %v2980 = vcosq.f32.pop %v2978
        %v2981 = vsinq.f32.pop %v2978
        %vm2982 = vweird.f32 %v2357
        %v2983 = vadd.s32 %v2979, 3
        %v2984 = vand.u32 %v2983, 3
        %vm2985 = vcmp.lt.s32.totalorder %v2984, 2
        %vm2986 = vcmp.eq.s32.totalorder %v2984, 0
        %v2987 = vxor.u32 %v2981, 2147483648
        %v2988 = vsel %vm2986, %v2980, %v2987
        %vm2989 = vcmp.eq.s32.totalorder %v2984, 2
        %v2990 = vxor.u32 %v2980, 2147483648
        %v2991 = vsel %vm2989, %v2990, %v2981
        %v2992 = vsel %vm2985, %v2988, %v2991
        %v2993 = vsel %vm2982, nan, %v2992
        %v2994 = vand.u32 2147483647, %v2362
        %vm2995 = vcmp.le.f32.partialorder %v2994, 0.7853982
        %vm2996 = vcmp.lt.s32.totalorder %v2362, 0
        %v2997 = vand.u32 %v2362, 2139095040
        %v2998 = vshrl.u32 %v2997, 23
        %v2999 = vsub.s32 %v2998, 127
        %v3000 = vand.u32 2147483647, %v2362
        %v3001 = vand.u32 %v3000, 8388607
        %v3002 = vor.u32 %v3001, 8388608
        %v3003 = vsub.s32 0, %v3002
        %v3004 = vadd.s32 %v2999, 1
        %vm3005 = vcmp.gt.s32.totalorder %v3004, 0
        %v3006 = vsel %vm3005, %v3004, 0
        %v3007 = vshrl.u32 %v3006, 5
        %v3008 = vand.u32 %v3006, 31
        %v3009 = vsub.s32 32, %v3008
        %v3010 = vshrl.u32 683565275, %v3009
        %v3011 = vshll.u32 683565275, %v3008
        %v3012 = vshrl.u32 2475754826, %v3009
        %v3013 = vor.u32 %v3011, %v3012
        %v3014 = vshll.u32 2475754826, %v3008
        %v3015 = vshrl.u32 2131351028, %v3009
        %v3016 = vor.u32 %v3014, %v3015
        %v3017 = vshll.u32 2131351028, %v3008
        %v3018 = vshrl.u32 2102212464, %v3009
        %v3019 = vor.u32 %v3017, %v3018
        %v3020 = vshll.u32 2102212464, %v3008
        %v3021 = vshrl.u32 920167782, %v3009
        %v3022 = vor.u32 %v3020, %v3021
        %v3023 = vshll.u32 920167782, %v3008
        %v3024 = vshrl.u32 1326507024, %v3009
        %v3025 = vor.u32 %v3023, %v3024
        %vm3026 = vcmp.lt.s32.totalorder %v3007, 1
        %vm3027 = vcmp.lt.s32.totalorder %v3007, 2
        %vm3028 = vcmp.lt.s32.totalorder %v3007, 3
        %vm3029 = vcmp.lt.s32.totalorder %v3007, 4
        %v3030 = vsel %vm3026, %v3010, %v3013
        %v3031 = vsel %vm3029, %v3019, 2102212464
        %v3032 = vsel %vm3028, %v3016, %v3031
        %v3033 = vsel %vm3027, %v3030, %v3032
        %v3034 = vsel %vm3026, %v3013, %v3016
        %v3035 = vsel %vm3029, %v3022, 920167782
        %v3036 = vsel %vm3028, %v3019, %v3035
        %v3037 = vsel %vm3027, %v3034, %v3036
        %v3038 = vsel %vm3026, %v3016, %v3019
        %v3039 = vsel %vm3029, %v3025, 1326507024
        %v3040 = vsel %vm3028, %v3022, %v3039
        %v3041 = vsel %vm3027, %v3038, %v3040
        %v3042 = vshll.u32 %v3002, 8
        %v3043 = vmul.u32.u64.compose %v3042, %v3041
        %v3044 = vextract.low.u32 %v3043
        %v3045 = vextract.high.u32 %v3043
        %v3046 = vmul.u32.u64.compose %v3042, %v3037
        %v3047 = vextract.low.u32 %v3046
        %v3048 = vextract.high.u32 %v3046
        %v3049 = vmul.u32 %v3042, %v3033
        %v3050 = vadd.s32 %v3045, %v3047
        %vm3051 = vc.u32 %v3045, %v3047
        %v3052 = vadd.s32 %v3048, 1
        %v3053 = vsel %vm3051, %v3052, %v3048
        %v3054 = vadd.s32 %v3049, %v3053
        %v3055 = vadd.s32 %v3054, 536870912
        %v3056 = vshrl.u32 %v3055, 30
        %v3057 = vshll.u32 %v3056, 30
        %v3058 = vsub.s32 %v3054, %v3057
        %vm3059 = vcmp.lt.s32.totalorder %v3058, 0
        %v3060 = vsub.s32 0, %v3058
        %v3061 = vsel %vm3059, %v3060, %v3058
        %v3062 = vclz %v3061
        %v3063 = vsub.s32 %v3062, 2
        %vm3064 = vcmp.gt.s32.totalorder 0, %v3063
        %v3065 = vsel %vm3064, 0, %v3063
        %v3066 = vsub.s32 32, %v3065
        %v3067 = vshll.u32 %v3058, %v3065
        %v3068 = vshrl.u32 %v3050, %v3066
        %v3069 = vor.u32 %v3067, %v3068
        %v3070 = vsub.s32 4294967266, %v3065
        %v3071 = vadd.s32 %v3070, 127
        %v3072 = vshll.u32 %v3071, 23
        %v3073 = vor.u32 4788187, %v3072
        %v3074 = vand.u32 2147483647, %v3073
        %v3076 = vcvt.s32.f32 %v3069
        %v3077 = vmul.f32 %v3076, %v3074
        %v3078 = vxor.u32 %v3077, 2147483648
        %v3079 = vsel %vm2996, %v3078, %v3077
        %v3080 = vsub.s32 4, %v3056
        %v3081 = vsel %vm2996, %v3080, %v3056
        %v3082 = vsel %vm2995, %v2362, %v3079
        %v3083 = vsel %vm2995, 0, %v3081
        %v3084 = vcosq.f32.pop %v3082
        %v3085 = vsinq.f32.pop %v3082
        %vm3086 = vweird.f32 %v2362
        %v3087 = vadd.s32 %v3083, 3
        %v3088 = vand.u32 %v3087, 3
        %vm3089 = vcmp.lt.s32.totalorder %v3088, 2
        %vm3090 = vcmp.eq.s32.totalorder %v3088, 0
        %v3091 = vxor.u32 %v3085, 2147483648
        %v3092 = vsel %vm3090, %v3084, %v3091
        %vm3093 = vcmp.eq.s32.totalorder %v3088, 2
        %v3094 = vxor.u32 %v3084, 2147483648
        %v3095 = vsel %vm3093, %v3094, %v3085
        %v3096 = vsel %vm3089, %v3092, %v3095
        %v3097 = vsel %vm3086, nan, %v3096
        %v3098 = vand.u32 2147483647, %v2367
        %vm3099 = vcmp.le.f32.partialorder %v3098, 0.7853982
        %vm3100 = vcmp.lt.s32.totalorder %v2367, 0
        %v3101 = vand.u32 %v2367, 2139095040
        %v3102 = vshrl.u32 %v3101, 23
        %v3103 = vsub.s32 %v3102, 127
        %v3104 = vand.u32 2147483647, %v2367
        %v3105 = vand.u32 %v3104, 8388607
        %v3106 = vor.u32 %v3105, 8388608
        %v3107 = vsub.s32 0, %v3106
        %v3108 = vadd.s32 %v3103, 1
        %vm3109 = vcmp.gt.s32.totalorder %v3108, 0
        %v3110 = vsel %vm3109, %v3108, 0
        %v3111 = vshrl.u32 %v3110, 5
        %v3112 = vand.u32 %v3110, 31
        %v3113 = vsub.s32 32, %v3112
        %v3114 = vshrl.u32 683565275, %v3113
        %v3115 = vshll.u32 683565275, %v3112
        %v3116 = vshrl.u32 2475754826, %v3113
        %v3117 = vor.u32 %v3115, %v3116
        %v3118 = vshll.u32 2475754826, %v3112
        %v3119 = vshrl.u32 2131351028, %v3113
        %v3120 = vor.u32 %v3118, %v3119
        %v3121 = vshll.u32 2131351028, %v3112
        %v3122 = vshrl.u32 2102212464, %v3113
        %v3123 = vor.u32 %v3121, %v3122
        %v3124 = vshll.u32 2102212464, %v3112
        %v3125 = vshrl.u32 920167782, %v3113
        %v3126 = vor.u32 %v3124, %v3125
        %v3127 = vshll.u32 920167782, %v3112
        %v3128 = vshrl.u32 1326507024, %v3113
        %v3129 = vor.u32 %v3127, %v3128
        %vm3130 = vcmp.lt.s32.totalorder %v3111, 1
        %vm3131 = vcmp.lt.s32.totalorder %v3111, 2
        %vm3132 = vcmp.lt.s32.totalorder %v3111, 3
        %vm3133 = vcmp.lt.s32.totalorder %v3111, 4
        %v3134 = vsel %vm3130, %v3114, %v3117
        %v3135 = vsel %vm3133, %v3123, 2102212464
        %v3136 = vsel %vm3132, %v3120, %v3135
        %v3137 = vsel %vm3131, %v3134, %v3136
        %v3138 = vsel %vm3130, %v3117, %v3120
        %v3139 = vsel %vm3133, %v3126, 920167782
        %v3140 = vsel %vm3132, %v3123, %v3139
        %v3141 = vsel %vm3131, %v3138, %v3140
        %v3142 = vsel %vm3130, %v3120, %v3123
        %v3143 = vsel %vm3133, %v3129, 1326507024
        %v3144 = vsel %vm3132, %v3126, %v3143
        %v3145 = vsel %vm3131, %v3142, %v3144
        %v3146 = vshll.u32 %v3106, 8
        %v3147 = vmul.u32.u64.compose %v3146, %v3145
        %v3148 = vextract.low.u32 %v3147
        %v3149 = vextract.high.u32 %v3147
        %v3150 = vmul.u32.u64.compose %v3146, %v3141
        %v3151 = vextract.low.u32 %v3150
        %v3152 = vextract.high.u32 %v3150
        %v3153 = vmul.u32 %v3146, %v3137
        %v3154 = vadd.s32 %v3149, %v3151
        %vm3155 = vc.u32 %v3149, %v3151
        %v3156 = vadd.s32 %v3152, 1
        %v3157 = vsel %vm3155, %v3156, %v3152
        %v3158 = vadd.s32 %v3153, %v3157
        %v3159 = vadd.s32 %v3158, 536870912
        %v3160 = vshrl.u32 %v3159, 30
        %v3161 = vshll.u32 %v3160, 30
        %v3162 = vsub.s32 %v3158, %v3161
        %vm3163 = vcmp.lt.s32.totalorder %v3162, 0
        %v3164 = vsub.s32 0, %v3162
        %v3165 = vsel %vm3163, %v3164, %v3162
        %v3166 = vclz %v3165
        %v3167 = vsub.s32 %v3166, 2
        %vm3168 = vcmp.gt.s32.totalorder 0, %v3167
        %v3169 = vsel %vm3168, 0, %v3167
        %v3170 = vsub.s32 32, %v3169
        %v3171 = vshll.u32 %v3162, %v3169
        %v3172 = vshrl.u32 %v3154, %v3170
        %v3173 = vor.u32 %v3171, %v3172
        %v3174 = vsub.s32 4294967266, %v3169
        %v3175 = vadd.s32 %v3174, 127
        %v3176 = vshll.u32 %v3175, 23
        %v3177 = vor.u32 4788187, %v3176
        %v3178 = vand.u32 2147483647, %v3177
        %v3180 = vcvt.s32.f32 %v3173
        %v3181 = vmul.f32 %v3180, %v3178
        %v3182 = vxor.u32 %v3181, 2147483648
        %v3183 = vsel %vm3100, %v3182, %v3181
        %v3184 = vsub.s32 4, %v3160
        %v3185 = vsel %vm3100, %v3184, %v3160
        %v3186 = vsel %vm3099, %v2367, %v3183
        %v3187 = vsel %vm3099, 0, %v3185
        %v3188 = vcosq.f32.pop %v3186
        %v3189 = vsinq.f32.pop %v3186
        %vm3190 = vweird.f32 %v2367
        %v3191 = vadd.s32 %v3187, 3
        %v3192 = vand.u32 %v3191, 3
        %vm3193 = vcmp.lt.s32.totalorder %v3192, 2
        %vm3194 = vcmp.eq.s32.totalorder %v3192, 0
        %v3195 = vxor.u32 %v3189, 2147483648
        %v3196 = vsel %vm3194, %v3188, %v3195
        %vm3197 = vcmp.eq.s32.totalorder %v3192, 2
        %v3198 = vxor.u32 %v3188, 2147483648
        %v3199 = vsel %vm3197, %v3198, %v3189
        %v3200 = vsel %vm3193, %v3196, %v3199
        %v3201 = vsel %vm3190, nan, %v3200
        %s3202 = scalar_lea.vmem [#allocation2], 256
        %v3203 = vld [vmem:[%s3202] sm:$0xff]
        %v3204 = vld [vmem:[%s3202 + $0x8] sm:$0xff]
        %v3205 = vld [vmem:[%s3202 + $0x10] sm:$0xff]
        %v3206 = vld [vmem:[%s3202 + $0x18] sm:$0xff]
        %v3207 = vld [vmem:[%s3202 + $0x20] sm:$0xff]
        %v3208 = vld [vmem:[%s3202 + $0x28] sm:$0xff]
        %v3209 = vld [vmem:[%s3202 + $0x30] sm:$0xff]
        %v3210 = vld [vmem:[%s3202 + $0x38] sm:$0xff]
        %v3211 = vld [vmem:[%s3202 + $0x40] sm:$0xff]
        %v3212 = vld [vmem:[%s3202 + $0x48] sm:$0xff]
        %v3213 = vld [vmem:[%s3202 + $0x50] sm:$0xff]
        %v3214 = vld [vmem:[%s3202 + $0x58] sm:$0xff]
        %v3215 = vld [vmem:[%s3202 + $0x60] sm:$0xff]
        %v3216 = vld [vmem:[%s3202 + $0x68] sm:$0xff]
        %v3217 = vld [vmem:[%s3202 + $0x70] sm:$0xff]
        %v3218 = vld [vmem:[%s3202 + $0x78] sm:$0xff]
        %s3219 = scalar_lea.vmem %s4, 2
        %v3220 = vld [vmem:[%s3219] sm:$0x1]
        %v3222 = vlaneseq
        %v3223 = vshrl.u32 %v3222, 7
        %v3224 = vsub.s32 0, %v3223
        %v3225 = vrot.slane %v3220, %v3224
        %3227 = vmatprep.subr.mxu0 0.0
        %3228 = vmatpush1.msra.mxu0 %v3203
        %3229 = vmatprep.subr.mxu0 0.0
        %3230 = vmatpush1.msra.mxu0 %v3204
        %3231 = vmatprep.subr.mxu0 0.0
        %3232 = vmatpush1.msra.mxu0 %v3205
        %3233 = vmatprep.subr.mxu0 0.0
        %3234 = vmatpush1.msra.mxu0 %v3206
        %3235 = vmatprep.subr.mxu0 0.0
        %3236 = vmatpush1.msra.mxu0 %v3207
        %3237 = vmatprep.subr.mxu0 0.0
        %3238 = vmatpush1.msra.mxu0 %v3208
        %3239 = vmatprep.subr.mxu0 0.0
        %3240 = vmatpush1.msra.mxu0 %v3209
        %3241 = vmatprep.subr.mxu0 0.0
        %3242 = vmatpush1.msra.mxu0 %v3210
        %3243 = vmatprep.subr.mxu0 0.0
        %3244 = vmatpush1.msra.mxu0 %v3211
        %3245 = vmatprep.subr.mxu0 0.0
        %3246 = vmatpush1.msra.mxu0 %v3212
        %3247 = vmatprep.subr.mxu0 0.0
        %3248 = vmatpush1.msra.mxu0 %v3213
        %3249 = vmatprep.subr.mxu0 0.0
        %3250 = vmatpush1.msra.mxu0 %v3214
        %3251 = vmatprep.subr.mxu0 0.0
        %3252 = vmatpush1.msra.mxu0 %v3215
        %3253 = vmatprep.subr.mxu0 0.0
        %3254 = vmatpush1.msra.mxu0 %v3216
        %3255 = vmatprep.subr.mxu0 0.0
        %3256 = vmatpush1.msra.mxu0 %v3217
        %3257 = vmatprep.subr.mxu0 0.0
        %3258 = vmatpush1.msra.mxu0 %v3218
        %3259 = vmatprep.subr.mxu0 0.0
        %3260 = vmatpush1.msra.mxu0 0.0
        %3261 = vmatprep.subr.mxu0 0.0
        %3262 = vmatpush1.msra.mxu0 0.0
        %3263 = vmatprep.subr.mxu0 0.0
        %3264 = vmatpush1.msra.mxu0 0.0
        %3265 = vmatprep.subr.mxu0 0.0
        %3266 = vmatpush1.msra.mxu0 0.0
        %3267 = vmatprep.subr.mxu0 0.0
        %3268 = vmatpush1.msra.mxu0 0.0
        %3269 = vmatprep.subr.mxu0 0.0
        %3270 = vmatpush1.msra.mxu0 0.0
        %3271 = vmatprep.subr.mxu0 0.0
        %3272 = vmatpush1.msra.mxu0 0.0
        %3273 = vmatprep.subr.mxu0 0.0
        %3274 = vmatpush1.msra.mxu0 0.0
        %3275 = vmatprep.subr.mxu0 0.0
        %3276 = vmatpush1.msra.mxu0 0.0
        %3277 = vmatprep.subr.mxu0 0.0
        %3278 = vmatpush1.msra.mxu0 0.0
        %3279 = vmatprep.subr.mxu0 0.0
        %3280 = vmatpush1.msra.mxu0 0.0
        %3281 = vmatprep.subr.mxu0 0.0
        %3282 = vmatpush1.msra.mxu0 0.0
        %3283 = vmatprep.subr.mxu0 0.0
        %3284 = vmatpush1.msra.mxu0 0.0
        %3285 = vmatprep.subr.mxu0 0.0
        %3286 = vmatpush1.msra.mxu0 0.0
        %3287 = vmatprep.subr.mxu0 0.0
        %3288 = vmatpush1.msra.mxu0 0.0
        %3289 = vmatprep.subr.mxu0 0.0
        %3290 = vmatpush1.msra.mxu0 0.0
        %3291 = vmatprep.mubr.f32.mxu0 0.0
        %3292 = vmatmul.mubr.f32.gmra.mrb[0].mxu0 %v2473
        %v3293 = vpop.f32.mrb[0].mxu0
        %v3294 = vadd.f32 %v3225, %v3293
        %v3295 = vpop.f32.mrb[0].mxu0
        %3296 = vmatprep.mubr.f32.mxu0 0.0
        %3297 = vmatmul.mubr.f32.gmra.mrb[0].mxu0 %v2577
        %v3298 = vpop.f32.mrb[0].mxu0
        %v3299 = vadd.f32 %v3225, %v3298
        %v3300 = vpop.f32.mrb[0].mxu0
        %3301 = vmatprep.mubr.f32.mxu0 0.0
        %3302 = vmatmul.mubr.f32.gmra.mrb[0].mxu0 %v2681
        %v3303 = vpop.f32.mrb[0].mxu0
        %v3304 = vadd.f32 %v3225, %v3303
        %v3305 = vpop.f32.mrb[0].mxu0
        %3306 = vmatprep.mubr.f32.mxu0 0.0
        %3307 = vmatmul.mubr.f32.gmra.mrb[0].mxu0 %v2785
        %v3308 = vpop.f32.mrb[0].mxu0
        %v3309 = vadd.f32 %v3225, %v3308
        %v3310 = vpop.f32.mrb[0].mxu0
        %3311 = vmatprep.mubr.f32.mxu0 0.0
        %3312 = vmatmul.mubr.f32.gmra.mrb[0].mxu0 %v2889
        %v3313 = vpop.f32.mrb[0].mxu0
        %v3314 = vadd.f32 %v3225, %v3313
        %v3315 = vpop.f32.mrb[0].mxu0
        %3316 = vmatprep.mubr.f32.mxu0 0.0
        %3317 = vmatmul.mubr.f32.gmra.mrb[0].mxu0 %v2993
        %v3318 = vpop.f32.mrb[0].mxu0
        %v3319 = vadd.f32 %v3225, %v3318
        %v3320 = vpop.f32.mrb[0].mxu0
        %3321 = vmatprep.mubr.f32.mxu0 0.0
        %3322 = vmatmul.mubr.f32.gmra.mrb[0].mxu0 %v3097
        %v3323 = vpop.f32.mrb[0].mxu0
        %v3324 = vadd.f32 %v3225, %v3323
        %v3325 = vpop.f32.mrb[0].mxu0
        %3326 = vmatprep.mubr.f32.mxu0 0.0
        %3327 = vmatmul.mubr.f32.gmra.mrb[0].mxu0 %v3201
        %v3328 = vpop.f32.mrb[0].mxu0
        %v3329 = vadd.f32 %v3225, %v3328
        %v3330 = vpop.f32.mrb[0].mxu0
        %3331 = vdwg.mxu0
        %v3332 = vand.u32 2147483647, %v3294
        %vm3333 = vcmp.le.f32.partialorder %v3332, 0.7853982
        %vm3334 = vcmp.lt.s32.totalorder %v3294, 0
        %v3335 = vand.u32 %v3294, 2139095040
        %v3336 = vshrl.u32 %v3335, 23
        %v3337 = vsub.s32 %v3336, 127
        %v3338 = vand.u32 2147483647, %v3294
        %v3339 = vand.u32 %v3338, 8388607
        %v3340 = vor.u32 %v3339, 8388608
        %v3341 = vsub.s32 0, %v3340
        %v3342 = vadd.s32 %v3337, 1
        %vm3343 = vcmp.gt.s32.totalorder %v3342, 0
        %v3344 = vsel %vm3343, %v3342, 0
        %v3345 = vshrl.u32 %v3344, 5
        %v3346 = vand.u32 %v3344, 31
        %v3347 = vsub.s32 32, %v3346
        %v3348 = vshrl.u32 683565275, %v3347
        %v3349 = vshll.u32 683565275, %v3346
        %v3350 = vshrl.u32 2475754826, %v3347
        %v3351 = vor.u32 %v3349, %v3350
        %v3352 = vshll.u32 2475754826, %v3346
        %v3353 = vshrl.u32 2131351028, %v3347
        %v3354 = vor.u32 %v3352, %v3353
        %v3355 = vshll.u32 2131351028, %v3346
        %v3356 = vshrl.u32 2102212464, %v3347
        %v3357 = vor.u32 %v3355, %v3356
        %v3358 = vshll.u32 2102212464, %v3346
        %v3359 = vshrl.u32 920167782, %v3347
        %v3360 = vor.u32 %v3358, %v3359
        %v3361 = vshll.u32 920167782, %v3346
        %v3362 = vshrl.u32 1326507024, %v3347
        %v3363 = vor.u32 %v3361, %v3362
        %vm3364 = vcmp.lt.s32.totalorder %v3345, 1
        %vm3365 = vcmp.lt.s32.totalorder %v3345, 2
        %vm3366 = vcmp.lt.s32.totalorder %v3345, 3
        %vm3367 = vcmp.lt.s32.totalorder %v3345, 4
        %v3368 = vsel %vm3364, %v3348, %v3351
        %v3369 = vsel %vm3367, %v3357, 2102212464
        %v3370 = vsel %vm3366, %v3354, %v3369
        %v3371 = vsel %vm3365, %v3368, %v3370
        %v3372 = vsel %vm3364, %v3351, %v3354
        %v3373 = vsel %vm3367, %v3360, 920167782
        %v3374 = vsel %vm3366, %v3357, %v3373
        %v3375 = vsel %vm3365, %v3372, %v3374
        %v3376 = vsel %vm3364, %v3354, %v3357
        %v3377 = vsel %vm3367, %v3363, 1326507024
        %v3378 = vsel %vm3366, %v3360, %v3377
        %v3379 = vsel %vm3365, %v3376, %v3378
        %v3380 = vshll.u32 %v3340, 8
        %v3381 = vmul.u32.u64.compose %v3380, %v3379
        %v3382 = vextract.low.u32 %v3381
        %v3383 = vextract.high.u32 %v3381
        %v3384 = vmul.u32.u64.compose %v3380, %v3375
        %v3385 = vextract.low.u32 %v3384
        %v3386 = vextract.high.u32 %v3384
        %v3387 = vmul.u32 %v3380, %v3371
        %v3388 = vadd.s32 %v3383, %v3385
        %vm3389 = vc.u32 %v3383, %v3385
        %v3390 = vadd.s32 %v3386, 1
        %v3391 = vsel %vm3389, %v3390, %v3386
        %v3392 = vadd.s32 %v3387, %v3391
        %v3393 = vadd.s32 %v3392, 536870912
        %v3394 = vshrl.u32 %v3393, 30
        %v3395 = vshll.u32 %v3394, 30
        %v3396 = vsub.s32 %v3392, %v3395
        %vm3397 = vcmp.lt.s32.totalorder %v3396, 0
        %v3398 = vsub.s32 0, %v3396
        %v3399 = vsel %vm3397, %v3398, %v3396
        %v3400 = vclz %v3399
        %v3401 = vsub.s32 %v3400, 2
        %vm3402 = vcmp.gt.s32.totalorder 0, %v3401
        %v3403 = vsel %vm3402, 0, %v3401
        %v3404 = vsub.s32 32, %v3403
        %v3405 = vshll.u32 %v3396, %v3403
        %v3406 = vshrl.u32 %v3388, %v3404
        %v3407 = vor.u32 %v3405, %v3406
        %v3408 = vsub.s32 4294967266, %v3403
        %v3409 = vadd.s32 %v3408, 127
        %v3410 = vshll.u32 %v3409, 23
        %v3411 = vor.u32 4788187, %v3410
        %v3412 = vand.u32 2147483647, %v3411
        %v3414 = vcvt.s32.f32 %v3407
        %v3415 = vmul.f32 %v3414, %v3412
        %v3416 = vxor.u32 %v3415, 2147483648
        %v3417 = vsel %vm3334, %v3416, %v3415
        %v3418 = vsub.s32 4, %v3394
        %v3419 = vsel %vm3334, %v3418, %v3394
        %v3420 = vsel %vm3333, %v3294, %v3417
        %v3421 = vsel %vm3333, 0, %v3419
        %v3422 = vcosq.f32.pop %v3420
        %v3423 = vsinq.f32.pop %v3420
        %vm3424 = vweird.f32 %v3294
        %v3425 = vadd.s32 %v3421, 3
        %v3426 = vand.u32 %v3425, 3
        %vm3427 = vcmp.lt.s32.totalorder %v3426, 2
        %vm3428 = vcmp.eq.s32.totalorder %v3426, 0
        %v3429 = vxor.u32 %v3423, 2147483648
        %v3430 = vsel %vm3428, %v3422, %v3429
        %vm3431 = vcmp.eq.s32.totalorder %v3426, 2
        %v3432 = vxor.u32 %v3422, 2147483648
        %v3433 = vsel %vm3431, %v3432, %v3423
        %v3434 = vsel %vm3427, %v3430, %v3433
        %v3435 = vsel %vm3424, nan, %v3434
        %v3436 = vand.u32 2147483647, %v3299
        %vm3437 = vcmp.le.f32.partialorder %v3436, 0.7853982
        %vm3438 = vcmp.lt.s32.totalorder %v3299, 0
        %v3439 = vand.u32 %v3299, 2139095040
        %v3440 = vshrl.u32 %v3439, 23
        %v3441 = vsub.s32 %v3440, 127
        %v3442 = vand.u32 2147483647, %v3299
        %v3443 = vand.u32 %v3442, 8388607
        %v3444 = vor.u32 %v3443, 8388608
        %v3445 = vsub.s32 0, %v3444
        %v3446 = vadd.s32 %v3441, 1
        %vm3447 = vcmp.gt.s32.totalorder %v3446, 0
        %v3448 = vsel %vm3447, %v3446, 0
        %v3449 = vshrl.u32 %v3448, 5
        %v3450 = vand.u32 %v3448, 31
        %v3451 = vsub.s32 32, %v3450
        %v3452 = vshrl.u32 683565275, %v3451
        %v3453 = vshll.u32 683565275, %v3450
        %v3454 = vshrl.u32 2475754826, %v3451
        %v3455 = vor.u32 %v3453, %v3454
        %v3456 = vshll.u32 2475754826, %v3450
        %v3457 = vshrl.u32 2131351028, %v3451
        %v3458 = vor.u32 %v3456, %v3457
        %v3459 = vshll.u32 2131351028, %v3450
        %v3460 = vshrl.u32 2102212464, %v3451
        %v3461 = vor.u32 %v3459, %v3460
        %v3462 = vshll.u32 2102212464, %v3450
        %v3463 = vshrl.u32 920167782, %v3451
        %v3464 = vor.u32 %v3462, %v3463
        %v3465 = vshll.u32 920167782, %v3450
        %v3466 = vshrl.u32 1326507024, %v3451
        %v3467 = vor.u32 %v3465, %v3466
        %vm3468 = vcmp.lt.s32.totalorder %v3449, 1
        %vm3469 = vcmp.lt.s32.totalorder %v3449, 2
        %vm3470 = vcmp.lt.s32.totalorder %v3449, 3
        %vm3471 = vcmp.lt.s32.totalorder %v3449, 4
        %v3472 = vsel %vm3468, %v3452, %v3455
        %v3473 = vsel %vm3471, %v3461, 2102212464
        %v3474 = vsel %vm3470, %v3458, %v3473
        %v3475 = vsel %vm3469, %v3472, %v3474
        %v3476 = vsel %vm3468, %v3455, %v3458
        %v3477 = vsel %vm3471, %v3464, 920167782
        %v3478 = vsel %vm3470, %v3461, %v3477
        %v3479 = vsel %vm3469, %v3476, %v3478
        %v3480 = vsel %vm3468, %v3458, %v3461
        %v3481 = vsel %vm3471, %v3467, 1326507024
        %v3482 = vsel %vm3470, %v3464, %v3481
        %v3483 = vsel %vm3469, %v3480, %v3482
        %v3484 = vshll.u32 %v3444, 8
        %v3485 = vmul.u32.u64.compose %v3484, %v3483
        %v3486 = vextract.low.u32 %v3485
        %v3487 = vextract.high.u32 %v3485
        %v3488 = vmul.u32.u64.compose %v3484, %v3479
        %v3489 = vextract.low.u32 %v3488
        %v3490 = vextract.high.u32 %v3488
        %v3491 = vmul.u32 %v3484, %v3475
        %v3492 = vadd.s32 %v3487, %v3489
        %vm3493 = vc.u32 %v3487, %v3489
        %v3494 = vadd.s32 %v3490, 1
        %v3495 = vsel %vm3493, %v3494, %v3490
        %v3496 = vadd.s32 %v3491, %v3495
        %v3497 = vadd.s32 %v3496, 536870912
        %v3498 = vshrl.u32 %v3497, 30
        %v3499 = vshll.u32 %v3498, 30
        %v3500 = vsub.s32 %v3496, %v3499
        %vm3501 = vcmp.lt.s32.totalorder %v3500, 0
        %v3502 = vsub.s32 0, %v3500
        %v3503 = vsel %vm3501, %v3502, %v3500
        %v3504 = vclz %v3503
        %v3505 = vsub.s32 %v3504, 2
        %vm3506 = vcmp.gt.s32.totalorder 0, %v3505
        %v3507 = vsel %vm3506, 0, %v3505
        %v3508 = vsub.s32 32, %v3507
        %v3509 = vshll.u32 %v3500, %v3507
        %v3510 = vshrl.u32 %v3492, %v3508
        %v3511 = vor.u32 %v3509, %v3510
        %v3512 = vsub.s32 4294967266, %v3507
        %v3513 = vadd.s32 %v3512, 127
        %v3514 = vshll.u32 %v3513, 23
        %v3515 = vor.u32 4788187, %v3514
        %v3516 = vand.u32 2147483647, %v3515
        %v3518 = vcvt.s32.f32 %v3511
        %v3519 = vmul.f32 %v3518, %v3516
        %v3520 = vxor.u32 %v3519, 2147483648
        %v3521 = vsel %vm3438, %v3520, %v3519
        %v3522 = vsub.s32 4, %v3498
        %v3523 = vsel %vm3438, %v3522, %v3498
        %v3524 = vsel %vm3437, %v3299, %v3521
        %v3525 = vsel %vm3437, 0, %v3523
        %v3526 = vcosq.f32.pop %v3524
        %v3527 = vsinq.f32.pop %v3524
        %vm3528 = vweird.f32 %v3299
        %v3529 = vadd.s32 %v3525, 3
        %v3530 = vand.u32 %v3529, 3
        %vm3531 = vcmp.lt.s32.totalorder %v3530, 2
        %vm3532 = vcmp.eq.s32.totalorder %v3530, 0
        %v3533 = vxor.u32 %v3527, 2147483648
        %v3534 = vsel %vm3532, %v3526, %v3533
        %vm3535 = vcmp.eq.s32.totalorder %v3530, 2
        %v3536 = vxor.u32 %v3526, 2147483648
        %v3537 = vsel %vm3535, %v3536, %v3527
        %v3538 = vsel %vm3531, %v3534, %v3537
        %v3539 = vsel %vm3528, nan, %v3538
        %v3540 = vand.u32 2147483647, %v3304
        %vm3541 = vcmp.le.f32.partialorder %v3540, 0.7853982
        %vm3542 = vcmp.lt.s32.totalorder %v3304, 0
        %v3543 = vand.u32 %v3304, 2139095040
        %v3544 = vshrl.u32 %v3543, 23
        %v3545 = vsub.s32 %v3544, 127
        %v3546 = vand.u32 2147483647, %v3304
        %v3547 = vand.u32 %v3546, 8388607
        %v3548 = vor.u32 %v3547, 8388608
        %v3549 = vsub.s32 0, %v3548
        %v3550 = vadd.s32 %v3545, 1
        %vm3551 = vcmp.gt.s32.totalorder %v3550, 0
        %v3552 = vsel %vm3551, %v3550, 0
        %v3553 = vshrl.u32 %v3552, 5
        %v3554 = vand.u32 %v3552, 31
        %v3555 = vsub.s32 32, %v3554
        %v3556 = vshrl.u32 683565275, %v3555
        %v3557 = vshll.u32 683565275, %v3554
        %v3558 = vshrl.u32 2475754826, %v3555
        %v3559 = vor.u32 %v3557, %v3558
        %v3560 = vshll.u32 2475754826, %v3554
        %v3561 = vshrl.u32 2131351028, %v3555
        %v3562 = vor.u32 %v3560, %v3561
        %v3563 = vshll.u32 2131351028, %v3554
        %v3564 = vshrl.u32 2102212464, %v3555
        %v3565 = vor.u32 %v3563, %v3564
        %v3566 = vshll.u32 2102212464, %v3554
        %v3567 = vshrl.u32 920167782, %v3555
        %v3568 = vor.u32 %v3566, %v3567
        %v3569 = vshll.u32 920167782, %v3554
        %v3570 = vshrl.u32 1326507024, %v3555
        %v3571 = vor.u32 %v3569, %v3570
        %vm3572 = vcmp.lt.s32.totalorder %v3553, 1
        %vm3573 = vcmp.lt.s32.totalorder %v3553, 2
        %vm3574 = vcmp.lt.s32.totalorder %v3553, 3
        %vm3575 = vcmp.lt.s32.totalorder %v3553, 4
        %v3576 = vsel %vm3572, %v3556, %v3559
        %v3577 = vsel %vm3575, %v3565, 2102212464
        %v3578 = vsel %vm3574, %v3562, %v3577
        %v3579 = vsel %vm3573, %v3576, %v3578
        %v3580 = vsel %vm3572, %v3559, %v3562
        %v3581 = vsel %vm3575, %v3568, 920167782
        %v3582 = vsel %vm3574, %v3565, %v3581
        %v3583 = vsel %vm3573, %v3580, %v3582
        %v3584 = vsel %vm3572, %v3562, %v3565
        %v3585 = vsel %vm3575, %v3571, 1326507024
        %v3586 = vsel %vm3574, %v3568, %v3585
        %v3587 = vsel %vm3573, %v3584, %v3586
        %v3588 = vshll.u32 %v3548, 8
        %v3589 = vmul.u32.u64.compose %v3588, %v3587
        %v3590 = vextract.low.u32 %v3589
        %v3591 = vextract.high.u32 %v3589
        %v3592 = vmul.u32.u64.compose %v3588, %v3583
        %v3593 = vextract.low.u32 %v3592
        %v3594 = vextract.high.u32 %v3592
        %v3595 = vmul.u32 %v3588, %v3579
        %v3596 = vadd.s32 %v3591, %v3593
        %vm3597 = vc.u32 %v3591, %v3593
        %v3598 = vadd.s32 %v3594, 1
        %v3599 = vsel %vm3597, %v3598, %v3594
        %v3600 = vadd.s32 %v3595, %v3599
        %v3601 = vadd.s32 %v3600, 536870912
        %v3602 = vshrl.u32 %v3601, 30
        %v3603 = vshll.u32 %v3602, 30
        %v3604 = vsub.s32 %v3600, %v3603
        %vm3605 = vcmp.lt.s32.totalorder %v3604, 0
        %v3606 = vsub.s32 0, %v3604
        %v3607 = vsel %vm3605, %v3606, %v3604
        %v3608 = vclz %v3607
        %v3609 = vsub.s32 %v3608, 2
        %vm3610 = vcmp.gt.s32.totalorder 0, %v3609
        %v3611 = vsel %vm3610, 0, %v3609
        %v3612 = vsub.s32 32, %v3611
        %v3613 = vshll.u32 %v3604, %v3611
        %v3614 = vshrl.u32 %v3596, %v3612
        %v3615 = vor.u32 %v3613, %v3614
        %v3616 = vsub.s32 4294967266, %v3611
        %v3617 = vadd.s32 %v3616, 127
        %v3618 = vshll.u32 %v3617, 23
        %v3619 = vor.u32 4788187, %v3618
        %v3620 = vand.u32 2147483647, %v3619
        %v3622 = vcvt.s32.f32 %v3615
        %v3623 = vmul.f32 %v3622, %v3620
        %v3624 = vxor.u32 %v3623, 2147483648
        %v3625 = vsel %vm3542, %v3624, %v3623
        %v3626 = vsub.s32 4, %v3602
        %v3627 = vsel %vm3542, %v3626, %v3602
        %v3628 = vsel %vm3541, %v3304, %v3625
        %v3629 = vsel %vm3541, 0, %v3627
        %v3630 = vcosq.f32.pop %v3628
        %v3631 = vsinq.f32.pop %v3628
        %vm3632 = vweird.f32 %v3304
        %v3633 = vadd.s32 %v3629, 3
        %v3634 = vand.u32 %v3633, 3
        %vm3635 = vcmp.lt.s32.totalorder %v3634, 2
        %vm3636 = vcmp.eq.s32.totalorder %v3634, 0
        %v3637 = vxor.u32 %v3631, 2147483648
        %v3638 = vsel %vm3636, %v3630, %v3637
        %vm3639 = vcmp.eq.s32.totalorder %v3634, 2
        %v3640 = vxor.u32 %v3630, 2147483648
        %v3641 = vsel %vm3639, %v3640, %v3631
        %v3642 = vsel %vm3635, %v3638, %v3641
        %v3643 = vsel %vm3632, nan, %v3642
        %v3644 = vand.u32 2147483647, %v3309
        %vm3645 = vcmp.le.f32.partialorder %v3644, 0.7853982
        %vm3646 = vcmp.lt.s32.totalorder %v3309, 0
        %v3647 = vand.u32 %v3309, 2139095040
        %v3648 = vshrl.u32 %v3647, 23
        %v3649 = vsub.s32 %v3648, 127
        %v3650 = vand.u32 2147483647, %v3309
        %v3651 = vand.u32 %v3650, 8388607
        %v3652 = vor.u32 %v3651, 8388608
        %v3653 = vsub.s32 0, %v3652
        %v3654 = vadd.s32 %v3649, 1
        %vm3655 = vcmp.gt.s32.totalorder %v3654, 0
        %v3656 = vsel %vm3655, %v3654, 0
        %v3657 = vshrl.u32 %v3656, 5
        %v3658 = vand.u32 %v3656, 31
        %v3659 = vsub.s32 32, %v3658
        %v3660 = vshrl.u32 683565275, %v3659
        %v3661 = vshll.u32 683565275, %v3658
        %v3662 = vshrl.u32 2475754826, %v3659
        %v3663 = vor.u32 %v3661, %v3662
        %v3664 = vshll.u32 2475754826, %v3658
        %v3665 = vshrl.u32 2131351028, %v3659
        %v3666 = vor.u32 %v3664, %v3665
        %v3667 = vshll.u32 2131351028, %v3658
        %v3668 = vshrl.u32 2102212464, %v3659
        %v3669 = vor.u32 %v3667, %v3668
        %v3670 = vshll.u32 2102212464, %v3658
        %v3671 = vshrl.u32 920167782, %v3659
        %v3672 = vor.u32 %v3670, %v3671
        %v3673 = vshll.u32 920167782, %v3658
        %v3674 = vshrl.u32 1326507024, %v3659
        %v3675 = vor.u32 %v3673, %v3674
        %vm3676 = vcmp.lt.s32.totalorder %v3657, 1
        %vm3677 = vcmp.lt.s32.totalorder %v3657, 2
        %vm3678 = vcmp.lt.s32.totalorder %v3657, 3
        %vm3679 = vcmp.lt.s32.totalorder %v3657, 4
        %v3680 = vsel %vm3676, %v3660, %v3663
        %v3681 = vsel %vm3679, %v3669, 2102212464
        %v3682 = vsel %vm3678, %v3666, %v3681
        %v3683 = vsel %vm3677, %v3680, %v3682
        %v3684 = vsel %vm3676, %v3663, %v3666
        %v3685 = vsel %vm3679, %v3672, 920167782
        %v3686 = vsel %vm3678, %v3669, %v3685
        %v3687 = vsel %vm3677, %v3684, %v3686
        %v3688 = vsel %vm3676, %v3666, %v3669
        %v3689 = vsel %vm3679, %v3675, 1326507024
        %v3690 = vsel %vm3678, %v3672, %v3689
        %v3691 = vsel %vm3677, %v3688, %v3690
        %v3692 = vshll.u32 %v3652, 8
        %v3693 = vmul.u32.u64.compose %v3692, %v3691
        %v3694 = vextract.low.u32 %v3693
        %v3695 = vextract.high.u32 %v3693
        %v3696 = vmul.u32.u64.compose %v3692, %v3687
        %v3697 = vextract.low.u32 %v3696
        %v3698 = vextract.high.u32 %v3696
        %v3699 = vmul.u32 %v3692, %v3683
        %v3700 = vadd.s32 %v3695, %v3697
        %vm3701 = vc.u32 %v3695, %v3697
        %v3702 = vadd.s32 %v3698, 1
        %v3703 = vsel %vm3701, %v3702, %v3698
        %v3704 = vadd.s32 %v3699, %v3703
        %v3705 = vadd.s32 %v3704, 536870912
        %v3706 = vshrl.u32 %v3705, 30
        %v3707 = vshll.u32 %v3706, 30
        %v3708 = vsub.s32 %v3704, %v3707
        %vm3709 = vcmp.lt.s32.totalorder %v3708, 0
        %v3710 = vsub.s32 0, %v3708
        %v3711 = vsel %vm3709, %v3710, %v3708
        %v3712 = vclz %v3711
        %v3713 = vsub.s32 %v3712, 2
        %vm3714 = vcmp.gt.s32.totalorder 0, %v3713
        %v3715 = vsel %vm3714, 0, %v3713
        %v3716 = vsub.s32 32, %v3715
        %v3717 = vshll.u32 %v3708, %v3715
        %v3718 = vshrl.u32 %v3700, %v3716
        %v3719 = vor.u32 %v3717, %v3718
        %v3720 = vsub.s32 4294967266, %v3715
        %v3721 = vadd.s32 %v3720, 127
        %v3722 = vshll.u32 %v3721, 23
        %v3723 = vor.u32 4788187, %v3722
        %v3724 = vand.u32 2147483647, %v3723
        %v3726 = vcvt.s32.f32 %v3719
        %v3727 = vmul.f32 %v3726, %v3724
        %v3728 = vxor.u32 %v3727, 2147483648
        %v3729 = vsel %vm3646, %v3728, %v3727
        %v3730 = vsub.s32 4, %v3706
        %v3731 = vsel %vm3646, %v3730, %v3706
        %v3732 = vsel %vm3645, %v3309, %v3729
        %v3733 = vsel %vm3645, 0, %v3731
        %v3734 = vcosq.f32.pop %v3732
        %v3735 = vsinq.f32.pop %v3732
        %vm3736 = vweird.f32 %v3309
        %v3737 = vadd.s32 %v3733, 3
        %v3738 = vand.u32 %v3737, 3
        %vm3739 = vcmp.lt.s32.totalorder %v3738, 2
        %vm3740 = vcmp.eq.s32.totalorder %v3738, 0
        %v3741 = vxor.u32 %v3735, 2147483648
        %v3742 = vsel %vm3740, %v3734, %v3741
        %vm3743 = vcmp.eq.s32.totalorder %v3738, 2
        %v3744 = vxor.u32 %v3734, 2147483648
        %v3745 = vsel %vm3743, %v3744, %v3735
        %v3746 = vsel %vm3739, %v3742, %v3745
        %v3747 = vsel %vm3736, nan, %v3746
        %v3748 = vand.u32 2147483647, %v3314
        %vm3749 = vcmp.le.f32.partialorder %v3748, 0.7853982
        %vm3750 = vcmp.lt.s32.totalorder %v3314, 0
        %v3751 = vand.u32 %v3314, 2139095040
        %v3752 = vshrl.u32 %v3751, 23
        %v3753 = vsub.s32 %v3752, 127
        %v3754 = vand.u32 2147483647, %v3314
        %v3755 = vand.u32 %v3754, 8388607
        %v3756 = vor.u32 %v3755, 8388608
        %v3757 = vsub.s32 0, %v3756
        %v3758 = vadd.s32 %v3753, 1
        %vm3759 = vcmp.gt.s32.totalorder %v3758, 0
        %v3760 = vsel %vm3759, %v3758, 0
        %v3761 = vshrl.u32 %v3760, 5
        %v3762 = vand.u32 %v3760, 31
        %v3763 = vsub.s32 32, %v3762
        %v3764 = vshrl.u32 683565275, %v3763
        %v3765 = vshll.u32 683565275, %v3762
        %v3766 = vshrl.u32 2475754826, %v3763
        %v3767 = vor.u32 %v3765, %v3766
        %v3768 = vshll.u32 2475754826, %v3762
        %v3769 = vshrl.u32 2131351028, %v3763
        %v3770 = vor.u32 %v3768, %v3769
        %v3771 = vshll.u32 2131351028, %v3762
        %v3772 = vshrl.u32 2102212464, %v3763
        %v3773 = vor.u32 %v3771, %v3772
        %v3774 = vshll.u32 2102212464, %v3762
        %v3775 = vshrl.u32 920167782, %v3763
        %v3776 = vor.u32 %v3774, %v3775
        %v3777 = vshll.u32 920167782, %v3762
        %v3778 = vshrl.u32 1326507024, %v3763
        %v3779 = vor.u32 %v3777, %v3778
        %vm3780 = vcmp.lt.s32.totalorder %v3761, 1
        %vm3781 = vcmp.lt.s32.totalorder %v3761, 2
        %vm3782 = vcmp.lt.s32.totalorder %v3761, 3
        %vm3783 = vcmp.lt.s32.totalorder %v3761, 4
        %v3784 = vsel %vm3780, %v3764, %v3767
        %v3785 = vsel %vm3783, %v3773, 2102212464
        %v3786 = vsel %vm3782, %v3770, %v3785
        %v3787 = vsel %vm3781, %v3784, %v3786
        %v3788 = vsel %vm3780, %v3767, %v3770
        %v3789 = vsel %vm3783, %v3776, 920167782
        %v3790 = vsel %vm3782, %v3773, %v3789
        %v3791 = vsel %vm3781, %v3788, %v3790
        %v3792 = vsel %vm3780, %v3770, %v3773
        %v3793 = vsel %vm3783, %v3779, 1326507024
        %v3794 = vsel %vm3782, %v3776, %v3793
        %v3795 = vsel %vm3781, %v3792, %v3794
        %v3796 = vshll.u32 %v3756, 8
        %v3797 = vmul.u32.u64.compose %v3796, %v3795
        %v3798 = vextract.low.u32 %v3797
        %v3799 = vextract.high.u32 %v3797
        %v3800 = vmul.u32.u64.compose %v3796, %v3791
        %v3801 = vextract.low.u32 %v3800
        %v3802 = vextract.high.u32 %v3800
        %v3803 = vmul.u32 %v3796, %v3787
        %v3804 = vadd.s32 %v3799, %v3801
        %vm3805 = vc.u32 %v3799, %v3801
        %v3806 = vadd.s32 %v3802, 1
        %v3807 = vsel %vm3805, %v3806, %v3802
        %v3808 = vadd.s32 %v3803, %v3807
        %v3809 = vadd.s32 %v3808, 536870912
        %v3810 = vshrl.u32 %v3809, 30
        %v3811 = vshll.u32 %v3810, 30
        %v3812 = vsub.s32 %v3808, %v3811
        %vm3813 = vcmp.lt.s32.totalorder %v3812, 0
        %v3814 = vsub.s32 0, %v3812
        %v3815 = vsel %vm3813, %v3814, %v3812
        %v3816 = vclz %v3815
        %v3817 = vsub.s32 %v3816, 2
        %vm3818 = vcmp.gt.s32.totalorder 0, %v3817
        %v3819 = vsel %vm3818, 0, %v3817
        %v3820 = vsub.s32 32, %v3819
        %v3821 = vshll.u32 %v3812, %v3819
        %v3822 = vshrl.u32 %v3804, %v3820
        %v3823 = vor.u32 %v3821, %v3822
        %v3824 = vsub.s32 4294967266, %v3819
        %v3825 = vadd.s32 %v3824, 127
        %v3826 = vshll.u32 %v3825, 23
        %v3827 = vor.u32 4788187, %v3826
        %v3828 = vand.u32 2147483647, %v3827
        %v3830 = vcvt.s32.f32 %v3823
        %v3831 = vmul.f32 %v3830, %v3828
        %v3832 = vxor.u32 %v3831, 2147483648
        %v3833 = vsel %vm3750, %v3832, %v3831
        %v3834 = vsub.s32 4, %v3810
        %v3835 = vsel %vm3750, %v3834, %v3810
        %v3836 = vsel %vm3749, %v3314, %v3833
        %v3837 = vsel %vm3749, 0, %v3835
        %v3838 = vcosq.f32.pop %v3836
        %v3839 = vsinq.f32.pop %v3836
        %vm3840 = vweird.f32 %v3314
        %v3841 = vadd.s32 %v3837, 3
        %v3842 = vand.u32 %v3841, 3
        %vm3843 = vcmp.lt.s32.totalorder %v3842, 2
        %vm3844 = vcmp.eq.s32.totalorder %v3842, 0
        %v3845 = vxor.u32 %v3839, 2147483648
        %v3846 = vsel %vm3844, %v3838, %v3845
        %vm3847 = vcmp.eq.s32.totalorder %v3842, 2
        %v3848 = vxor.u32 %v3838, 2147483648
        %v3849 = vsel %vm3847, %v3848, %v3839
        %v3850 = vsel %vm3843, %v3846, %v3849
        %v3851 = vsel %vm3840, nan, %v3850
        %v3852 = vand.u32 2147483647, %v3319
        %vm3853 = vcmp.le.f32.partialorder %v3852, 0.7853982
        %vm3854 = vcmp.lt.s32.totalorder %v3319, 0
        %v3855 = vand.u32 %v3319, 2139095040
        %v3856 = vshrl.u32 %v3855, 23
        %v3857 = vsub.s32 %v3856, 127
        %v3858 = vand.u32 2147483647, %v3319
        %v3859 = vand.u32 %v3858, 8388607
        %v3860 = vor.u32 %v3859, 8388608
        %v3861 = vsub.s32 0, %v3860
        %v3862 = vadd.s32 %v3857, 1
        %vm3863 = vcmp.gt.s32.totalorder %v3862, 0
        %v3864 = vsel %vm3863, %v3862, 0
        %v3865 = vshrl.u32 %v3864, 5
        %v3866 = vand.u32 %v3864, 31
        %v3867 = vsub.s32 32, %v3866
        %v3868 = vshrl.u32 683565275, %v3867
        %v3869 = vshll.u32 683565275, %v3866
        %v3870 = vshrl.u32 2475754826, %v3867
        %v3871 = vor.u32 %v3869, %v3870
        %v3872 = vshll.u32 2475754826, %v3866
        %v3873 = vshrl.u32 2131351028, %v3867
        %v3874 = vor.u32 %v3872, %v3873
        %v3875 = vshll.u32 2131351028, %v3866
        %v3876 = vshrl.u32 2102212464, %v3867
        %v3877 = vor.u32 %v3875, %v3876
        %v3878 = vshll.u32 2102212464, %v3866
        %v3879 = vshrl.u32 920167782, %v3867
        %v3880 = vor.u32 %v3878, %v3879
        %v3881 = vshll.u32 920167782, %v3866
        %v3882 = vshrl.u32 1326507024, %v3867
        %v3883 = vor.u32 %v3881, %v3882
        %vm3884 = vcmp.lt.s32.totalorder %v3865, 1
        %vm3885 = vcmp.lt.s32.totalorder %v3865, 2
        %vm3886 = vcmp.lt.s32.totalorder %v3865, 3
        %vm3887 = vcmp.lt.s32.totalorder %v3865, 4
        %v3888 = vsel %vm3884, %v3868, %v3871
        %v3889 = vsel %vm3887, %v3877, 2102212464
        %v3890 = vsel %vm3886, %v3874, %v3889
        %v3891 = vsel %vm3885, %v3888, %v3890
        %v3892 = vsel %vm3884, %v3871, %v3874
        %v3893 = vsel %vm3887, %v3880, 920167782
        %v3894 = vsel %vm3886, %v3877, %v3893
        %v3895 = vsel %vm3885, %v3892, %v3894
        %v3896 = vsel %vm3884, %v3874, %v3877
        %v3897 = vsel %vm3887, %v3883, 1326507024
        %v3898 = vsel %vm3886, %v3880, %v3897
        %v3899 = vsel %vm3885, %v3896, %v3898
        %v3900 = vshll.u32 %v3860, 8
        %v3901 = vmul.u32.u64.compose %v3900, %v3899
        %v3902 = vextract.low.u32 %v3901
        %v3903 = vextract.high.u32 %v3901
        %v3904 = vmul.u32.u64.compose %v3900, %v3895
        %v3905 = vextract.low.u32 %v3904
        %v3906 = vextract.high.u32 %v3904
        %v3907 = vmul.u32 %v3900, %v3891
        %v3908 = vadd.s32 %v3903, %v3905
        %vm3909 = vc.u32 %v3903, %v3905
        %v3910 = vadd.s32 %v3906, 1
        %v3911 = vsel %vm3909, %v3910, %v3906
        %v3912 = vadd.s32 %v3907, %v3911
        %v3913 = vadd.s32 %v3912, 536870912
        %v3914 = vshrl.u32 %v3913, 30
        %v3915 = vshll.u32 %v3914, 30
        %v3916 = vsub.s32 %v3912, %v3915
        %vm3917 = vcmp.lt.s32.totalorder %v3916, 0
        %v3918 = vsub.s32 0, %v3916
        %v3919 = vsel %vm3917, %v3918, %v3916
        %v3920 = vclz %v3919
        %v3921 = vsub.s32 %v3920, 2
        %vm3922 = vcmp.gt.s32.totalorder 0, %v3921
        %v3923 = vsel %vm3922, 0, %v3921
        %v3924 = vsub.s32 32, %v3923
        %v3925 = vshll.u32 %v3916, %v3923
        %v3926 = vshrl.u32 %v3908, %v3924
        %v3927 = vor.u32 %v3925, %v3926
        %v3928 = vsub.s32 4294967266, %v3923
        %v3929 = vadd.s32 %v3928, 127
        %v3930 = vshll.u32 %v3929, 23
        %v3931 = vor.u32 4788187, %v3930
        %v3932 = vand.u32 2147483647, %v3931
        %v3934 = vcvt.s32.f32 %v3927
        %v3935 = vmul.f32 %v3934, %v3932
        %v3936 = vxor.u32 %v3935, 2147483648
        %v3937 = vsel %vm3854, %v3936, %v3935
        %v3938 = vsub.s32 4, %v3914
        %v3939 = vsel %vm3854, %v3938, %v3914
        %v3940 = vsel %vm3853, %v3319, %v3937
        %v3941 = vsel %vm3853, 0, %v3939
        %v3942 = vcosq.f32.pop %v3940
        %v3943 = vsinq.f32.pop %v3940
        %vm3944 = vweird.f32 %v3319
        %v3945 = vadd.s32 %v3941, 3
        %v3946 = vand.u32 %v3945, 3
        %vm3947 = vcmp.lt.s32.totalorder %v3946, 2
        %vm3948 = vcmp.eq.s32.totalorder %v3946, 0
        %v3949 = vxor.u32 %v3943, 2147483648
        %v3950 = vsel %vm3948, %v3942, %v3949
        %vm3951 = vcmp.eq.s32.totalorder %v3946, 2
        %v3952 = vxor.u32 %v3942, 2147483648
        %v3953 = vsel %vm3951, %v3952, %v3943
        %v3954 = vsel %vm3947, %v3950, %v3953
        %v3955 = vsel %vm3944, nan, %v3954
        %v3956 = vand.u32 2147483647, %v3324
        %vm3957 = vcmp.le.f32.partialorder %v3956, 0.7853982
        %vm3958 = vcmp.lt.s32.totalorder %v3324, 0
        %v3959 = vand.u32 %v3324, 2139095040
        %v3960 = vshrl.u32 %v3959, 23
        %v3961 = vsub.s32 %v3960, 127
        %v3962 = vand.u32 2147483647, %v3324
        %v3963 = vand.u32 %v3962, 8388607
        %v3964 = vor.u32 %v3963, 8388608
        %v3965 = vsub.s32 0, %v3964
        %v3966 = vadd.s32 %v3961, 1
        %vm3967 = vcmp.gt.s32.totalorder %v3966, 0
        %v3968 = vsel %vm3967, %v3966, 0
        %v3969 = vshrl.u32 %v3968, 5
        %v3970 = vand.u32 %v3968, 31
        %v3971 = vsub.s32 32, %v3970
        %v3972 = vshrl.u32 683565275, %v3971
        %v3973 = vshll.u32 683565275, %v3970
        %v3974 = vshrl.u32 2475754826, %v3971
        %v3975 = vor.u32 %v3973, %v3974
        %v3976 = vshll.u32 2475754826, %v3970
        %v3977 = vshrl.u32 2131351028, %v3971
        %v3978 = vor.u32 %v3976, %v3977
        %v3979 = vshll.u32 2131351028, %v3970
        %v3980 = vshrl.u32 2102212464, %v3971
        %v3981 = vor.u32 %v3979, %v3980
        %v3982 = vshll.u32 2102212464, %v3970
        %v3983 = vshrl.u32 920167782, %v3971
        %v3984 = vor.u32 %v3982, %v3983
        %v3985 = vshll.u32 920167782, %v3970
        %v3986 = vshrl.u32 1326507024, %v3971
        %v3987 = vor.u32 %v3985, %v3986
        %vm3988 = vcmp.lt.s32.totalorder %v3969, 1
        %vm3989 = vcmp.lt.s32.totalorder %v3969, 2
        %vm3990 = vcmp.lt.s32.totalorder %v3969, 3
        %vm3991 = vcmp.lt.s32.totalorder %v3969, 4
        %v3992 = vsel %vm3988, %v3972, %v3975
        %v3993 = vsel %vm3991, %v3981, 2102212464
        %v3994 = vsel %vm3990, %v3978, %v3993
        %v3995 = vsel %vm3989, %v3992, %v3994
        %v3996 = vsel %vm3988, %v3975, %v3978
        %v3997 = vsel %vm3991, %v3984, 920167782
        %v3998 = vsel %vm3990, %v3981, %v3997
        %v3999 = vsel %vm3989, %v3996, %v3998
        %v4000 = vsel %vm3988, %v3978, %v3981
        %v4001 = vsel %vm3991, %v3987, 1326507024
        %v4002 = vsel %vm3990, %v3984, %v4001
        %v4003 = vsel %vm3989, %v4000, %v4002
        %v4004 = vshll.u32 %v3964, 8
        %v4005 = vmul.u32.u64.compose %v4004, %v4003
        %v4006 = vextract.low.u32 %v4005
        %v4007 = vextract.high.u32 %v4005
        %v4008 = vmul.u32.u64.compose %v4004, %v3999
        %v4009 = vextract.low.u32 %v4008
        %v4010 = vextract.high.u32 %v4008
        %v4011 = vmul.u32 %v4004, %v3995
        %v4012 = vadd.s32 %v4007, %v4009
        %vm4013 = vc.u32 %v4007, %v4009
        %v4014 = vadd.s32 %v4010, 1
        %v4015 = vsel %vm4013, %v4014, %v4010
        %v4016 = vadd.s32 %v4011, %v4015
        %v4017 = vadd.s32 %v4016, 536870912
        %v4018 = vshrl.u32 %v4017, 30
        %v4019 = vshll.u32 %v4018, 30
        %v4020 = vsub.s32 %v4016, %v4019
        %vm4021 = vcmp.lt.s32.totalorder %v4020, 0
        %v4022 = vsub.s32 0, %v4020
        %v4023 = vsel %vm4021, %v4022, %v4020
        %v4024 = vclz %v4023
        %v4025 = vsub.s32 %v4024, 2
        %vm4026 = vcmp.gt.s32.totalorder 0, %v4025
        %v4027 = vsel %vm4026, 0, %v4025
        %v4028 = vsub.s32 32, %v4027
        %v4029 = vshll.u32 %v4020, %v4027
        %v4030 = vshrl.u32 %v4012, %v4028
        %v4031 = vor.u32 %v4029, %v4030
        %v4032 = vsub.s32 4294967266, %v4027
        %v4033 = vadd.s32 %v4032, 127
        %v4034 = vshll.u32 %v4033, 23
        %v4035 = vor.u32 4788187, %v4034
        %v4036 = vand.u32 2147483647, %v4035
        %v4038 = vcvt.s32.f32 %v4031
        %v4039 = vmul.f32 %v4038, %v4036
        %v4040 = vxor.u32 %v4039, 2147483648
        %v4041 = vsel %vm3958, %v4040, %v4039
        %v4042 = vsub.s32 4, %v4018
        %v4043 = vsel %vm3958, %v4042, %v4018
        %v4044 = vsel %vm3957, %v3324, %v4041
        %v4045 = vsel %vm3957, 0, %v4043
        %v4046 = vcosq.f32.pop %v4044
        %v4047 = vsinq.f32.pop %v4044
        %vm4048 = vweird.f32 %v3324
        %v4049 = vadd.s32 %v4045, 3
        %v4050 = vand.u32 %v4049, 3
        %vm4051 = vcmp.lt.s32.totalorder %v4050, 2
        %vm4052 = vcmp.eq.s32.totalorder %v4050, 0
        %v4053 = vxor.u32 %v4047, 2147483648
        %v4054 = vsel %vm4052, %v4046, %v4053
        %vm4055 = vcmp.eq.s32.totalorder %v4050, 2
        %v4056 = vxor.u32 %v4046, 2147483648
        %v4057 = vsel %vm4055, %v4056, %v4047
        %v4058 = vsel %vm4051, %v4054, %v4057
        %v4059 = vsel %vm4048, nan, %v4058
        %v4060 = vand.u32 2147483647, %v3329
        %vm4061 = vcmp.le.f32.partialorder %v4060, 0.7853982
        %vm4062 = vcmp.lt.s32.totalorder %v3329, 0
        %v4063 = vand.u32 %v3329, 2139095040
        %v4064 = vshrl.u32 %v4063, 23
        %v4065 = vsub.s32 %v4064, 127
        %v4066 = vand.u32 2147483647, %v3329
        %v4067 = vand.u32 %v4066, 8388607
        %v4068 = vor.u32 %v4067, 8388608
        %v4069 = vsub.s32 0, %v4068
        %v4070 = vadd.s32 %v4065, 1
        %vm4071 = vcmp.gt.s32.totalorder %v4070, 0
        %v4072 = vsel %vm4071, %v4070, 0
        %v4073 = vshrl.u32 %v4072, 5
        %v4074 = vand.u32 %v4072, 31
        %v4075 = vsub.s32 32, %v4074
        %v4076 = vshrl.u32 683565275, %v4075
        %v4077 = vshll.u32 683565275, %v4074
        %v4078 = vshrl.u32 2475754826, %v4075
        %v4079 = vor.u32 %v4077, %v4078
        %v4080 = vshll.u32 2475754826, %v4074
        %v4081 = vshrl.u32 2131351028, %v4075
        %v4082 = vor.u32 %v4080, %v4081
        %v4083 = vshll.u32 2131351028, %v4074
        %v4084 = vshrl.u32 2102212464, %v4075
        %v4085 = vor.u32 %v4083, %v4084
        %v4086 = vshll.u32 2102212464, %v4074
        %v4087 = vshrl.u32 920167782, %v4075
        %v4088 = vor.u32 %v4086, %v4087
        %v4089 = vshll.u32 920167782, %v4074
        %v4090 = vshrl.u32 1326507024, %v4075
        %v4091 = vor.u32 %v4089, %v4090
        %vm4092 = vcmp.lt.s32.totalorder %v4073, 1
        %vm4093 = vcmp.lt.s32.totalorder %v4073, 2
        %vm4094 = vcmp.lt.s32.totalorder %v4073, 3
        %vm4095 = vcmp.lt.s32.totalorder %v4073, 4
        %v4096 = vsel %vm4092, %v4076, %v4079
        %v4097 = vsel %vm4095, %v4085, 2102212464
        %v4098 = vsel %vm4094, %v4082, %v4097
        %v4099 = vsel %vm4093, %v4096, %v4098
        %v4100 = vsel %vm4092, %v4079, %v4082
        %v4101 = vsel %vm4095, %v4088, 920167782
        %v4102 = vsel %vm4094, %v4085, %v4101
        %v4103 = vsel %vm4093, %v4100, %v4102
        %v4104 = vsel %vm4092, %v4082, %v4085
        %v4105 = vsel %vm4095, %v4091, 1326507024
        %v4106 = vsel %vm4094, %v4088, %v4105
        %v4107 = vsel %vm4093, %v4104, %v4106
        %v4108 = vshll.u32 %v4068, 8
        %v4109 = vmul.u32.u64.compose %v4108, %v4107
        %v4110 = vextract.low.u32 %v4109
        %v4111 = vextract.high.u32 %v4109
        %v4112 = vmul.u32.u64.compose %v4108, %v4103
        %v4113 = vextract.low.u32 %v4112
        %v4114 = vextract.high.u32 %v4112
        %v4115 = vmul.u32 %v4108, %v4099
        %v4116 = vadd.s32 %v4111, %v4113
        %vm4117 = vc.u32 %v4111, %v4113
        %v4118 = vadd.s32 %v4114, 1
        %v4119 = vsel %vm4117, %v4118, %v4114
        %v4120 = vadd.s32 %v4115, %v4119
        %v4121 = vadd.s32 %v4120, 536870912
        %v4122 = vshrl.u32 %v4121, 30
        %v4123 = vshll.u32 %v4122, 30
        %v4124 = vsub.s32 %v4120, %v4123
        %vm4125 = vcmp.lt.s32.totalorder %v4124, 0
        %v4126 = vsub.s32 0, %v4124
        %v4127 = vsel %vm4125, %v4126, %v4124
        %v4128 = vclz %v4127
        %v4129 = vsub.s32 %v4128, 2
        %vm4130 = vcmp.gt.s32.totalorder 0, %v4129
        %v4131 = vsel %vm4130, 0, %v4129
        %v4132 = vsub.s32 32, %v4131
        %v4133 = vshll.u32 %v4124, %v4131
        %v4134 = vshrl.u32 %v4116, %v4132
        %v4135 = vor.u32 %v4133, %v4134
        %v4136 = vsub.s32 4294967266, %v4131
        %v4137 = vadd.s32 %v4136, 127
        %v4138 = vshll.u32 %v4137, 23
        %v4139 = vor.u32 4788187, %v4138
        %v4140 = vand.u32 2147483647, %v4139
        %v4142 = vcvt.s32.f32 %v4135
        %v4143 = vmul.f32 %v4142, %v4140
        %v4144 = vxor.u32 %v4143, 2147483648
        %v4145 = vsel %vm4062, %v4144, %v4143
        %v4146 = vsub.s32 4, %v4122
        %v4147 = vsel %vm4062, %v4146, %v4122
        %v4148 = vsel %vm4061, %v3329, %v4145
        %v4149 = vsel %vm4061, 0, %v4147
        %v4150 = vcosq.f32.pop %v4148
        %v4151 = vsinq.f32.pop %v4148
        %vm4152 = vweird.f32 %v3329
        %v4153 = vadd.s32 %v4149, 3
        %v4154 = vand.u32 %v4153, 3
        %vm4155 = vcmp.lt.s32.totalorder %v4154, 2
        %vm4156 = vcmp.eq.s32.totalorder %v4154, 0
        %v4157 = vxor.u32 %v4151, 2147483648
        %v4158 = vsel %vm4156, %v4150, %v4157
        %vm4159 = vcmp.eq.s32.totalorder %v4154, 2
        %v4160 = vxor.u32 %v4150, 2147483648
        %v4161 = vsel %vm4159, %v4160, %v4151
        %v4162 = vsel %vm4155, %v4158, %v4161
        %v4163 = vsel %vm4152, nan, %v4162
        %s4164 = scalar_lea.vmem [#allocation2], 384
        %v4165 = vld [vmem:[%s4164] sm:$0xff]
        %v4166 = vld [vmem:[%s4164 + $0x8] sm:$0xff]
        %v4167 = vld [vmem:[%s4164 + $0x10] sm:$0xff]
        %v4168 = vld [vmem:[%s4164 + $0x18] sm:$0xff]
        %v4169 = vld [vmem:[%s4164 + $0x20] sm:$0xff]
        %v4170 = vld [vmem:[%s4164 + $0x28] sm:$0xff]
        %v4171 = vld [vmem:[%s4164 + $0x30] sm:$0xff]
        %v4172 = vld [vmem:[%s4164 + $0x38] sm:$0xff]
        %v4173 = vld [vmem:[%s4164 + $0x40] sm:$0xff]
        %v4174 = vld [vmem:[%s4164 + $0x48] sm:$0xff]
        %v4175 = vld [vmem:[%s4164 + $0x50] sm:$0xff]
        %v4176 = vld [vmem:[%s4164 + $0x58] sm:$0xff]
        %v4177 = vld [vmem:[%s4164 + $0x60] sm:$0xff]
        %v4178 = vld [vmem:[%s4164 + $0x68] sm:$0xff]
        %v4179 = vld [vmem:[%s4164 + $0x70] sm:$0xff]
        %v4180 = vld [vmem:[%s4164 + $0x78] sm:$0xff]
        %s4181 = scalar_lea.vmem %s4, 3
        %v4182 = vld [vmem:[%s4181] sm:$0x1]
        %v4184 = vlaneseq
        %v4185 = vshrl.u32 %v4184, 7
        %v4186 = vsub.s32 0, %v4185
        %v4187 = vrot.slane %v4182, %v4186
        %4189 = vmatprep.subr.mxu0 0.0
        %4190 = vmatpush1.msra.mxu0 %v4165
        %4191 = vmatprep.subr.mxu0 0.0
        %4192 = vmatpush1.msra.mxu0 %v4166
        %4193 = vmatprep.subr.mxu0 0.0
        %4194 = vmatpush1.msra.mxu0 %v4167
        %4195 = vmatprep.subr.mxu0 0.0
        %4196 = vmatpush1.msra.mxu0 %v4168
        %4197 = vmatprep.subr.mxu0 0.0
        %4198 = vmatpush1.msra.mxu0 %v4169
        %4199 = vmatprep.subr.mxu0 0.0
        %4200 = vmatpush1.msra.mxu0 %v4170
        %4201 = vmatprep.subr.mxu0 0.0
        %4202 = vmatpush1.msra.mxu0 %v4171
        %4203 = vmatprep.subr.mxu0 0.0
        %4204 = vmatpush1.msra.mxu0 %v4172
        %4205 = vmatprep.subr.mxu0 0.0
        %4206 = vmatpush1.msra.mxu0 %v4173
        %4207 = vmatprep.subr.mxu0 0.0
        %4208 = vmatpush1.msra.mxu0 %v4174
        %4209 = vmatprep.subr.mxu0 0.0
        %4210 = vmatpush1.msra.mxu0 %v4175
        %4211 = vmatprep.subr.mxu0 0.0
        %4212 = vmatpush1.msra.mxu0 %v4176
        %4213 = vmatprep.subr.mxu0 0.0
        %4214 = vmatpush1.msra.mxu0 %v4177
        %4215 = vmatprep.subr.mxu0 0.0
        %4216 = vmatpush1.msra.mxu0 %v4178
        %4217 = vmatprep.subr.mxu0 0.0
        %4218 = vmatpush1.msra.mxu0 %v4179
        %4219 = vmatprep.subr.mxu0 0.0
        %4220 = vmatpush1.msra.mxu0 %v4180
        %4221 = vmatprep.subr.mxu0 0.0
        %4222 = vmatpush1.msra.mxu0 0.0
        %4223 = vmatprep.subr.mxu0 0.0
        %4224 = vmatpush1.msra.mxu0 0.0
        %4225 = vmatprep.subr.mxu0 0.0
        %4226 = vmatpush1.msra.mxu0 0.0
        %4227 = vmatprep.subr.mxu0 0.0
        %4228 = vmatpush1.msra.mxu0 0.0
        %4229 = vmatprep.subr.mxu0 0.0
        %4230 = vmatpush1.msra.mxu0 0.0
        %4231 = vmatprep.subr.mxu0 0.0
        %4232 = vmatpush1.msra.mxu0 0.0
        %4233 = vmatprep.subr.mxu0 0.0
        %4234 = vmatpush1.msra.mxu0 0.0
        %4235 = vmatprep.subr.mxu0 0.0
        %4236 = vmatpush1.msra.mxu0 0.0
        %4237 = vmatprep.subr.mxu0 0.0
        %4238 = vmatpush1.msra.mxu0 0.0
        %4239 = vmatprep.subr.mxu0 0.0
        %4240 = vmatpush1.msra.mxu0 0.0
        %4241 = vmatprep.subr.mxu0 0.0
        %4242 = vmatpush1.msra.mxu0 0.0
        %4243 = vmatprep.subr.mxu0 0.0
        %4244 = vmatpush1.msra.mxu0 0.0
        %4245 = vmatprep.subr.mxu0 0.0
        %4246 = vmatpush1.msra.mxu0 0.0
        %4247 = vmatprep.subr.mxu0 0.0
        %4248 = vmatpush1.msra.mxu0 0.0
        %4249 = vmatprep.subr.mxu0 0.0
        %4250 = vmatpush1.msra.mxu0 0.0
        %4251 = vmatprep.subr.mxu0 0.0
        %4252 = vmatpush1.msra.mxu0 0.0
        %4253 = vmatprep.mubr.f32.mxu0 0.0
        %4254 = vmatmul.mubr.f32.gmra.mrb[0].mxu0 %v3435
        %v4255 = vpop.f32.mrb[0].mxu0
        %v4256 = vadd.f32 %v4187, %v4255
        %v4257 = vpop.f32.mrb[0].mxu0
        %4258 = vmatprep.mubr.f32.mxu0 0.0
        %4259 = vmatmul.mubr.f32.gmra.mrb[0].mxu0 %v3539
        %v4260 = vpop.f32.mrb[0].mxu0
        %v4261 = vadd.f32 %v4187, %v4260
        %v4262 = vpop.f32.mrb[0].mxu0
        %4263 = vmatprep.mubr.f32.mxu0 0.0
        %4264 = vmatmul.mubr.f32.gmra.mrb[0].mxu0 %v3643
        %v4265 = vpop.f32.mrb[0].mxu0
        %v4266 = vadd.f32 %v4187, %v4265
        %v4267 = vpop.f32.mrb[0].mxu0
        %4268 = vmatprep.mubr.f32.mxu0 0.0
        %4269 = vmatmul.mubr.f32.gmra.mrb[0].mxu0 %v3747
        %v4270 = vpop.f32.mrb[0].mxu0
        %v4271 = vadd.f32 %v4187, %v4270
        %v4272 = vpop.f32.mrb[0].mxu0
        %4273 = vmatprep.mubr.f32.mxu0 0.0
        %4274 = vmatmul.mubr.f32.gmra.mrb[0].mxu0 %v3851
        %v4275 = vpop.f32.mrb[0].mxu0
        %v4276 = vadd.f32 %v4187, %v4275
        %v4277 = vpop.f32.mrb[0].mxu0
        %4278 = vmatprep.mubr.f32.mxu0 0.0
        %4279 = vmatmul.mubr.f32.gmra.mrb[0].mxu0 %v3955
        %v4280 = vpop.f32.mrb[0].mxu0
        %v4281 = vadd.f32 %v4187, %v4280
        %v4282 = vpop.f32.mrb[0].mxu0
        %4283 = vmatprep.mubr.f32.mxu0 0.0
        %4284 = vmatmul.mubr.f32.gmra.mrb[0].mxu0 %v4059
        %v4285 = vpop.f32.mrb[0].mxu0
        %v4286 = vadd.f32 %v4187, %v4285
        %v4287 = vpop.f32.mrb[0].mxu0
        %4288 = vmatprep.mubr.f32.mxu0 0.0
        %4289 = vmatmul.mubr.f32.gmra.mrb[0].mxu0 %v4163
        %v4290 = vpop.f32.mrb[0].mxu0
        %v4291 = vadd.f32 %v4187, %v4290
        %v4292 = vpop.f32.mrb[0].mxu0
        %4293 = vdwg.mxu0
        %v4294 = vand.u32 2147483647, %v4256
        %vm4295 = vcmp.le.f32.partialorder %v4294, 0.7853982
        %vm4296 = vcmp.lt.s32.totalorder %v4256, 0
        %v4297 = vand.u32 %v4256, 2139095040
        %v4298 = vshrl.u32 %v4297, 23
        %v4299 = vsub.s32 %v4298, 127
        %v4300 = vand.u32 2147483647, %v4256
        %v4301 = vand.u32 %v4300, 8388607
        %v4302 = vor.u32 %v4301, 8388608
        %v4303 = vsub.s32 0, %v4302
        %v4304 = vadd.s32 %v4299, 1
        %vm4305 = vcmp.gt.s32.totalorder %v4304, 0
        %v4306 = vsel %vm4305, %v4304, 0
        %v4307 = vshrl.u32 %v4306, 5
        %v4308 = vand.u32 %v4306, 31
        %v4309 = vsub.s32 32, %v4308
        %v4310 = vshrl.u32 683565275, %v4309
        %v4311 = vshll.u32 683565275, %v4308
        %v4312 = vshrl.u32 2475754826, %v4309
        %v4313 = vor.u32 %v4311, %v4312
        %v4314 = vshll.u32 2475754826, %v4308
        %v4315 = vshrl.u32 2131351028, %v4309
        %v4316 = vor.u32 %v4314, %v4315
        %v4317 = vshll.u32 2131351028, %v4308
        %v4318 = vshrl.u32 2102212464, %v4309
        %v4319 = vor.u32 %v4317, %v4318
        %v4320 = vshll.u32 2102212464, %v4308
        %v4321 = vshrl.u32 920167782, %v4309
        %v4322 = vor.u32 %v4320, %v4321
        %v4323 = vshll.u32 920167782, %v4308
        %v4324 = vshrl.u32 1326507024, %v4309
        %v4325 = vor.u32 %v4323, %v4324
        %vm4326 = vcmp.lt.s32.totalorder %v4307, 1
        %vm4327 = vcmp.lt.s32.totalorder %v4307, 2
        %vm4328 = vcmp.lt.s32.totalorder %v4307, 3
        %vm4329 = vcmp.lt.s32.totalorder %v4307, 4
        %v4330 = vsel %vm4326, %v4310, %v4313
        %v4331 = vsel %vm4329, %v4319, 2102212464
        %v4332 = vsel %vm4328, %v4316, %v4331
        %v4333 = vsel %vm4327, %v4330, %v4332
        %v4334 = vsel %vm4326, %v4313, %v4316
        %v4335 = vsel %vm4329, %v4322, 920167782
        %v4336 = vsel %vm4328, %v4319, %v4335
        %v4337 = vsel %vm4327, %v4334, %v4336
        %v4338 = vsel %vm4326, %v4316, %v4319
        %v4339 = vsel %vm4329, %v4325, 1326507024
        %v4340 = vsel %vm4328, %v4322, %v4339
        %v4341 = vsel %vm4327, %v4338, %v4340
        %v4342 = vshll.u32 %v4302, 8
        %v4343 = vmul.u32.u64.compose %v4342, %v4341
        %v4344 = vextract.low.u32 %v4343
        %v4345 = vextract.high.u32 %v4343
        %v4346 = vmul.u32.u64.compose %v4342, %v4337
        %v4347 = vextract.low.u32 %v4346
        %v4348 = vextract.high.u32 %v4346
        %v4349 = vmul.u32 %v4342, %v4333
        %v4350 = vadd.s32 %v4345, %v4347
        %vm4351 = vc.u32 %v4345, %v4347
        %v4352 = vadd.s32 %v4348, 1
        %v4353 = vsel %vm4351, %v4352, %v4348
        %v4354 = vadd.s32 %v4349, %v4353
        %v4355 = vadd.s32 %v4354, 536870912
        %v4356 = vshrl.u32 %v4355, 30
        %v4357 = vshll.u32 %v4356, 30
        %v4358 = vsub.s32 %v4354, %v4357
        %vm4359 = vcmp.lt.s32.totalorder %v4358, 0
        %v4360 = vsub.s32 0, %v4358
        %v4361 = vsel %vm4359, %v4360, %v4358
        %v4362 = vclz %v4361
        %v4363 = vsub.s32 %v4362, 2
        %vm4364 = vcmp.gt.s32.totalorder 0, %v4363
        %v4365 = vsel %vm4364, 0, %v4363
        %v4366 = vsub.s32 32, %v4365
        %v4367 = vshll.u32 %v4358, %v4365
        %v4368 = vshrl.u32 %v4350, %v4366
        %v4369 = vor.u32 %v4367, %v4368
        %v4370 = vsub.s32 4294967266, %v4365
        %v4371 = vadd.s32 %v4370, 127
        %v4372 = vshll.u32 %v4371, 23
        %v4373 = vor.u32 4788187, %v4372
        %v4374 = vand.u32 2147483647, %v4373
        %v4376 = vcvt.s32.f32 %v4369
        %v4377 = vmul.f32 %v4376, %v4374
        %v4378 = vxor.u32 %v4377, 2147483648
        %v4379 = vsel %vm4296, %v4378, %v4377
        %v4380 = vsub.s32 4, %v4356
        %v4381 = vsel %vm4296, %v4380, %v4356
        %v4382 = vsel %vm4295, %v4256, %v4379
        %v4383 = vsel %vm4295, 0, %v4381
        %v4384 = vcosq.f32.pop %v4382
        %v4385 = vsinq.f32.pop %v4382
        %vm4386 = vweird.f32 %v4256
        %v4387 = vadd.s32 %v4383, 3
        %v4388 = vand.u32 %v4387, 3
        %vm4389 = vcmp.lt.s32.totalorder %v4388, 2
        %vm4390 = vcmp.eq.s32.totalorder %v4388, 0
        %v4391 = vxor.u32 %v4385, 2147483648
        %v4392 = vsel %vm4390, %v4384, %v4391
        %vm4393 = vcmp.eq.s32.totalorder %v4388, 2
        %v4394 = vxor.u32 %v4384, 2147483648
        %v4395 = vsel %vm4393, %v4394, %v4385
        %v4396 = vsel %vm4389, %v4392, %v4395
        %v4397 = vsel %vm4386, nan, %v4396
        %v4398 = vand.u32 2147483647, %v4261
        %vm4399 = vcmp.le.f32.partialorder %v4398, 0.7853982
        %vm4400 = vcmp.lt.s32.totalorder %v4261, 0
        %v4401 = vand.u32 %v4261, 2139095040
        %v4402 = vshrl.u32 %v4401, 23
        %v4403 = vsub.s32 %v4402, 127
        %v4404 = vand.u32 2147483647, %v4261
        %v4405 = vand.u32 %v4404, 8388607
        %v4406 = vor.u32 %v4405, 8388608
        %v4407 = vsub.s32 0, %v4406
        %v4408 = vadd.s32 %v4403, 1
        %vm4409 = vcmp.gt.s32.totalorder %v4408, 0
        %v4410 = vsel %vm4409, %v4408, 0
        %v4411 = vshrl.u32 %v4410, 5
        %v4412 = vand.u32 %v4410, 31
        %v4413 = vsub.s32 32, %v4412
        %v4414 = vshrl.u32 683565275, %v4413
        %v4415 = vshll.u32 683565275, %v4412
        %v4416 = vshrl.u32 2475754826, %v4413
        %v4417 = vor.u32 %v4415, %v4416
        %v4418 = vshll.u32 2475754826, %v4412
        %v4419 = vshrl.u32 2131351028, %v4413
        %v4420 = vor.u32 %v4418, %v4419
        %v4421 = vshll.u32 2131351028, %v4412
        %v4422 = vshrl.u32 2102212464, %v4413
        %v4423 = vor.u32 %v4421, %v4422
        %v4424 = vshll.u32 2102212464, %v4412
        %v4425 = vshrl.u32 920167782, %v4413
        %v4426 = vor.u32 %v4424, %v4425
        %v4427 = vshll.u32 920167782, %v4412
        %v4428 = vshrl.u32 1326507024, %v4413
        %v4429 = vor.u32 %v4427, %v4428
        %vm4430 = vcmp.lt.s32.totalorder %v4411, 1
        %vm4431 = vcmp.lt.s32.totalorder %v4411, 2
        %vm4432 = vcmp.lt.s32.totalorder %v4411, 3
        %vm4433 = vcmp.lt.s32.totalorder %v4411, 4
        %v4434 = vsel %vm4430, %v4414, %v4417
        %v4435 = vsel %vm4433, %v4423, 2102212464
        %v4436 = vsel %vm4432, %v4420, %v4435
        %v4437 = vsel %vm4431, %v4434, %v4436
        %v4438 = vsel %vm4430, %v4417, %v4420
        %v4439 = vsel %vm4433, %v4426, 920167782
        %v4440 = vsel %vm4432, %v4423, %v4439
        %v4441 = vsel %vm4431, %v4438, %v4440
        %v4442 = vsel %vm4430, %v4420, %v4423
        %v4443 = vsel %vm4433, %v4429, 1326507024
        %v4444 = vsel %vm4432, %v4426, %v4443
        %v4445 = vsel %vm4431, %v4442, %v4444
        %v4446 = vshll.u32 %v4406, 8
        %v4447 = vmul.u32.u64.compose %v4446, %v4445
        %v4448 = vextract.low.u32 %v4447
        %v4449 = vextract.high.u32 %v4447
        %v4450 = vmul.u32.u64.compose %v4446, %v4441
        %v4451 = vextract.low.u32 %v4450
        %v4452 = vextract.high.u32 %v4450
        %v4453 = vmul.u32 %v4446, %v4437
        %v4454 = vadd.s32 %v4449, %v4451
        %vm4455 = vc.u32 %v4449, %v4451
        %v4456 = vadd.s32 %v4452, 1
        %v4457 = vsel %vm4455, %v4456, %v4452
        %v4458 = vadd.s32 %v4453, %v4457
        %v4459 = vadd.s32 %v4458, 536870912
        %v4460 = vshrl.u32 %v4459, 30
        %v4461 = vshll.u32 %v4460, 30
        %v4462 = vsub.s32 %v4458, %v4461
        %vm4463 = vcmp.lt.s32.totalorder %v4462, 0
        %v4464 = vsub.s32 0, %v4462
        %v4465 = vsel %vm4463, %v4464, %v4462
        %v4466 = vclz %v4465
        %v4467 = vsub.s32 %v4466, 2
        %vm4468 = vcmp.gt.s32.totalorder 0, %v4467
        %v4469 = vsel %vm4468, 0, %v4467
        %v4470 = vsub.s32 32, %v4469
        %v4471 = vshll.u32 %v4462, %v4469
        %v4472 = vshrl.u32 %v4454, %v4470
        %v4473 = vor.u32 %v4471, %v4472
        %v4474 = vsub.s32 4294967266, %v4469
        %v4475 = vadd.s32 %v4474, 127
        %v4476 = vshll.u32 %v4475, 23
        %v4477 = vor.u32 4788187, %v4476
        %v4478 = vand.u32 2147483647, %v4477
        %v4480 = vcvt.s32.f32 %v4473
        %v4481 = vmul.f32 %v4480, %v4478
        %v4482 = vxor.u32 %v4481, 2147483648
        %v4483 = vsel %vm4400, %v4482, %v4481
        %v4484 = vsub.s32 4, %v4460
        %v4485 = vsel %vm4400, %v4484, %v4460
        %v4486 = vsel %vm4399, %v4261, %v4483
        %v4487 = vsel %vm4399, 0, %v4485
        %v4488 = vcosq.f32.pop %v4486
        %v4489 = vsinq.f32.pop %v4486
        %vm4490 = vweird.f32 %v4261
        %v4491 = vadd.s32 %v4487, 3
        %v4492 = vand.u32 %v4491, 3
        %vm4493 = vcmp.lt.s32.totalorder %v4492, 2
        %vm4494 = vcmp.eq.s32.totalorder %v4492, 0
        %v4495 = vxor.u32 %v4489, 2147483648
        %v4496 = vsel %vm4494, %v4488, %v4495
        %vm4497 = vcmp.eq.s32.totalorder %v4492, 2
        %v4498 = vxor.u32 %v4488, 2147483648
        %v4499 = vsel %vm4497, %v4498, %v4489
        %v4500 = vsel %vm4493, %v4496, %v4499
        %v4501 = vsel %vm4490, nan, %v4500
        %v4502 = vand.u32 2147483647, %v4266
        %vm4503 = vcmp.le.f32.partialorder %v4502, 0.7853982
        %vm4504 = vcmp.lt.s32.totalorder %v4266, 0
        %v4505 = vand.u32 %v4266, 2139095040
        %v4506 = vshrl.u32 %v4505, 23
        %v4507 = vsub.s32 %v4506, 127
        %v4508 = vand.u32 2147483647, %v4266
        %v4509 = vand.u32 %v4508, 8388607
        %v4510 = vor.u32 %v4509, 8388608
        %v4511 = vsub.s32 0, %v4510
        %v4512 = vadd.s32 %v4507, 1
        %vm4513 = vcmp.gt.s32.totalorder %v4512, 0
        %v4514 = vsel %vm4513, %v4512, 0
        %v4515 = vshrl.u32 %v4514, 5
        %v4516 = vand.u32 %v4514, 31
        %v4517 = vsub.s32 32, %v4516
        %v4518 = vshrl.u32 683565275, %v4517
        %v4519 = vshll.u32 683565275, %v4516
        %v4520 = vshrl.u32 2475754826, %v4517
        %v4521 = vor.u32 %v4519, %v4520
        %v4522 = vshll.u32 2475754826, %v4516
        %v4523 = vshrl.u32 2131351028, %v4517
        %v4524 = vor.u32 %v4522, %v4523
        %v4525 = vshll.u32 2131351028, %v4516
        %v4526 = vshrl.u32 2102212464, %v4517
        %v4527 = vor.u32 %v4525, %v4526
        %v4528 = vshll.u32 2102212464, %v4516
        %v4529 = vshrl.u32 920167782, %v4517
        %v4530 = vor.u32 %v4528, %v4529
        %v4531 = vshll.u32 920167782, %v4516
        %v4532 = vshrl.u32 1326507024, %v4517
        %v4533 = vor.u32 %v4531, %v4532
        %vm4534 = vcmp.lt.s32.totalorder %v4515, 1
        %vm4535 = vcmp.lt.s32.totalorder %v4515, 2
        %vm4536 = vcmp.lt.s32.totalorder %v4515, 3
        %vm4537 = vcmp.lt.s32.totalorder %v4515, 4
        %v4538 = vsel %vm4534, %v4518, %v4521
        %v4539 = vsel %vm4537, %v4527, 2102212464
        %v4540 = vsel %vm4536, %v4524, %v4539
        %v4541 = vsel %vm4535, %v4538, %v4540
        %v4542 = vsel %vm4534, %v4521, %v4524
        %v4543 = vsel %vm4537, %v4530, 920167782
        %v4544 = vsel %vm4536, %v4527, %v4543
        %v4545 = vsel %vm4535, %v4542, %v4544
        %v4546 = vsel %vm4534, %v4524, %v4527
        %v4547 = vsel %vm4537, %v4533, 1326507024
        %v4548 = vsel %vm4536, %v4530, %v4547
        %v4549 = vsel %vm4535, %v4546, %v4548
        %v4550 = vshll.u32 %v4510, 8
        %v4551 = vmul.u32.u64.compose %v4550, %v4549
        %v4552 = vextract.low.u32 %v4551
        %v4553 = vextract.high.u32 %v4551
        %v4554 = vmul.u32.u64.compose %v4550, %v4545
        %v4555 = vextract.low.u32 %v4554
        %v4556 = vextract.high.u32 %v4554
        %v4557 = vmul.u32 %v4550, %v4541
        %v4558 = vadd.s32 %v4553, %v4555
        %vm4559 = vc.u32 %v4553, %v4555
        %v4560 = vadd.s32 %v4556, 1
        %v4561 = vsel %vm4559, %v4560, %v4556
        %v4562 = vadd.s32 %v4557, %v4561
        %v4563 = vadd.s32 %v4562, 536870912
        %v4564 = vshrl.u32 %v4563, 30
        %v4565 = vshll.u32 %v4564, 30
        %v4566 = vsub.s32 %v4562, %v4565
        %vm4567 = vcmp.lt.s32.totalorder %v4566, 0
        %v4568 = vsub.s32 0, %v4566
        %v4569 = vsel %vm4567, %v4568, %v4566
        %v4570 = vclz %v4569
        %v4571 = vsub.s32 %v4570, 2
        %vm4572 = vcmp.gt.s32.totalorder 0, %v4571
        %v4573 = vsel %vm4572, 0, %v4571
        %v4574 = vsub.s32 32, %v4573
        %v4575 = vshll.u32 %v4566, %v4573
        %v4576 = vshrl.u32 %v4558, %v4574
        %v4577 = vor.u32 %v4575, %v4576
        %v4578 = vsub.s32 4294967266, %v4573
        %v4579 = vadd.s32 %v4578, 127
        %v4580 = vshll.u32 %v4579, 23
        %v4581 = vor.u32 4788187, %v4580
        %v4582 = vand.u32 2147483647, %v4581
        %v4584 = vcvt.s32.f32 %v4577
        %v4585 = vmul.f32 %v4584, %v4582
        %v4586 = vxor.u32 %v4585, 2147483648
        %v4587 = vsel %vm4504, %v4586, %v4585
        %v4588 = vsub.s32 4, %v4564
        %v4589 = vsel %vm4504, %v4588, %v4564
        %v4590 = vsel %vm4503, %v4266, %v4587
        %v4591 = vsel %vm4503, 0, %v4589
        %v4592 = vcosq.f32.pop %v4590
        %v4593 = vsinq.f32.pop %v4590
        %vm4594 = vweird.f32 %v4266
        %v4595 = vadd.s32 %v4591, 3
        %v4596 = vand.u32 %v4595, 3
        %vm4597 = vcmp.lt.s32.totalorder %v4596, 2
        %vm4598 = vcmp.eq.s32.totalorder %v4596, 0
        %v4599 = vxor.u32 %v4593, 2147483648
        %v4600 = vsel %vm4598, %v4592, %v4599
        %vm4601 = vcmp.eq.s32.totalorder %v4596, 2
        %v4602 = vxor.u32 %v4592, 2147483648
        %v4603 = vsel %vm4601, %v4602, %v4593
        %v4604 = vsel %vm4597, %v4600, %v4603
        %v4605 = vsel %vm4594, nan, %v4604
        %v4606 = vand.u32 2147483647, %v4271
        %vm4607 = vcmp.le.f32.partialorder %v4606, 0.7853982
        %vm4608 = vcmp.lt.s32.totalorder %v4271, 0
        %v4609 = vand.u32 %v4271, 2139095040
        %v4610 = vshrl.u32 %v4609, 23
        %v4611 = vsub.s32 %v4610, 127
        %v4612 = vand.u32 2147483647, %v4271
        %v4613 = vand.u32 %v4612, 8388607
        %v4614 = vor.u32 %v4613, 8388608
        %v4615 = vsub.s32 0, %v4614
        %v4616 = vadd.s32 %v4611, 1
        %vm4617 = vcmp.gt.s32.totalorder %v4616, 0
        %v4618 = vsel %vm4617, %v4616, 0
        %v4619 = vshrl.u32 %v4618, 5
        %v4620 = vand.u32 %v4618, 31
        %v4621 = vsub.s32 32, %v4620
        %v4622 = vshrl.u32 683565275, %v4621
        %v4623 = vshll.u32 683565275, %v4620
        %v4624 = vshrl.u32 2475754826, %v4621
        %v4625 = vor.u32 %v4623, %v4624
        %v4626 = vshll.u32 2475754826, %v4620
        %v4627 = vshrl.u32 2131351028, %v4621
        %v4628 = vor.u32 %v4626, %v4627
        %v4629 = vshll.u32 2131351028, %v4620
        %v4630 = vshrl.u32 2102212464, %v4621
        %v4631 = vor.u32 %v4629, %v4630
        %v4632 = vshll.u32 2102212464, %v4620
        %v4633 = vshrl.u32 920167782, %v4621
        %v4634 = vor.u32 %v4632, %v4633
        %v4635 = vshll.u32 920167782, %v4620
        %v4636 = vshrl.u32 1326507024, %v4621
        %v4637 = vor.u32 %v4635, %v4636
        %vm4638 = vcmp.lt.s32.totalorder %v4619, 1
        %vm4639 = vcmp.lt.s32.totalorder %v4619, 2
        %vm4640 = vcmp.lt.s32.totalorder %v4619, 3
        %vm4641 = vcmp.lt.s32.totalorder %v4619, 4
        %v4642 = vsel %vm4638, %v4622, %v4625
        %v4643 = vsel %vm4641, %v4631, 2102212464
        %v4644 = vsel %vm4640, %v4628, %v4643
        %v4645 = vsel %vm4639, %v4642, %v4644
        %v4646 = vsel %vm4638, %v4625, %v4628
        %v4647 = vsel %vm4641, %v4634, 920167782
        %v4648 = vsel %vm4640, %v4631, %v4647
        %v4649 = vsel %vm4639, %v4646, %v4648
        %v4650 = vsel %vm4638, %v4628, %v4631
        %v4651 = vsel %vm4641, %v4637, 1326507024
        %v4652 = vsel %vm4640, %v4634, %v4651
        %v4653 = vsel %vm4639, %v4650, %v4652
        %v4654 = vshll.u32 %v4614, 8
        %v4655 = vmul.u32.u64.compose %v4654, %v4653
        %v4656 = vextract.low.u32 %v4655
        %v4657 = vextract.high.u32 %v4655
        %v4658 = vmul.u32.u64.compose %v4654, %v4649
        %v4659 = vextract.low.u32 %v4658
        %v4660 = vextract.high.u32 %v4658
        %v4661 = vmul.u32 %v4654, %v4645
        %v4662 = vadd.s32 %v4657, %v4659
        %vm4663 = vc.u32 %v4657, %v4659
        %v4664 = vadd.s32 %v4660, 1
        %v4665 = vsel %vm4663, %v4664, %v4660
        %v4666 = vadd.s32 %v4661, %v4665
        %v4667 = vadd.s32 %v4666, 536870912
        %v4668 = vshrl.u32 %v4667, 30
        %v4669 = vshll.u32 %v4668, 30
        %v4670 = vsub.s32 %v4666, %v4669
        %vm4671 = vcmp.lt.s32.totalorder %v4670, 0
        %v4672 = vsub.s32 0, %v4670
        %v4673 = vsel %vm4671, %v4672, %v4670
        %v4674 = vclz %v4673
        %v4675 = vsub.s32 %v4674, 2
        %vm4676 = vcmp.gt.s32.totalorder 0, %v4675
        %v4677 = vsel %vm4676, 0, %v4675
        %v4678 = vsub.s32 32, %v4677
        %v4679 = vshll.u32 %v4670, %v4677
        %v4680 = vshrl.u32 %v4662, %v4678
        %v4681 = vor.u32 %v4679, %v4680
        %v4682 = vsub.s32 4294967266, %v4677
        %v4683 = vadd.s32 %v4682, 127
        %v4684 = vshll.u32 %v4683, 23
        %v4685 = vor.u32 4788187, %v4684
        %v4686 = vand.u32 2147483647, %v4685
        %v4688 = vcvt.s32.f32 %v4681
        %v4689 = vmul.f32 %v4688, %v4686
        %v4690 = vxor.u32 %v4689, 2147483648
        %v4691 = vsel %vm4608, %v4690, %v4689
        %v4692 = vsub.s32 4, %v4668
        %v4693 = vsel %vm4608, %v4692, %v4668
        %v4694 = vsel %vm4607, %v4271, %v4691
        %v4695 = vsel %vm4607, 0, %v4693
        %v4696 = vcosq.f32.pop %v4694
        %v4697 = vsinq.f32.pop %v4694
        %vm4698 = vweird.f32 %v4271
        %v4699 = vadd.s32 %v4695, 3
        %v4700 = vand.u32 %v4699, 3
        %vm4701 = vcmp.lt.s32.totalorder %v4700, 2
        %vm4702 = vcmp.eq.s32.totalorder %v4700, 0
        %v4703 = vxor.u32 %v4697, 2147483648
        %v4704 = vsel %vm4702, %v4696, %v4703
        %vm4705 = vcmp.eq.s32.totalorder %v4700, 2
        %v4706 = vxor.u32 %v4696, 2147483648
        %v4707 = vsel %vm4705, %v4706, %v4697
        %v4708 = vsel %vm4701, %v4704, %v4707
        %v4709 = vsel %vm4698, nan, %v4708
        %v4710 = vand.u32 2147483647, %v4276
        %vm4711 = vcmp.le.f32.partialorder %v4710, 0.7853982
        %vm4712 = vcmp.lt.s32.totalorder %v4276, 0
        %v4713 = vand.u32 %v4276, 2139095040
        %v4714 = vshrl.u32 %v4713, 23
        %v4715 = vsub.s32 %v4714, 127
        %v4716 = vand.u32 2147483647, %v4276
        %v4717 = vand.u32 %v4716, 8388607
        %v4718 = vor.u32 %v4717, 8388608
        %v4719 = vsub.s32 0, %v4718
        %v4720 = vadd.s32 %v4715, 1
        %vm4721 = vcmp.gt.s32.totalorder %v4720, 0
        %v4722 = vsel %vm4721, %v4720, 0
        %v4723 = vshrl.u32 %v4722, 5
        %v4724 = vand.u32 %v4722, 31
        %v4725 = vsub.s32 32, %v4724
        %v4726 = vshrl.u32 683565275, %v4725
        %v4727 = vshll.u32 683565275, %v4724
        %v4728 = vshrl.u32 2475754826, %v4725
        %v4729 = vor.u32 %v4727, %v4728
        %v4730 = vshll.u32 2475754826, %v4724
        %v4731 = vshrl.u32 2131351028, %v4725
        %v4732 = vor.u32 %v4730, %v4731
        %v4733 = vshll.u32 2131351028, %v4724
        %v4734 = vshrl.u32 2102212464, %v4725
        %v4735 = vor.u32 %v4733, %v4734
        %v4736 = vshll.u32 2102212464, %v4724
        %v4737 = vshrl.u32 920167782, %v4725
        %v4738 = vor.u32 %v4736, %v4737
        %v4739 = vshll.u32 920167782, %v4724
        %v4740 = vshrl.u32 1326507024, %v4725
        %v4741 = vor.u32 %v4739, %v4740
        %vm4742 = vcmp.lt.s32.totalorder %v4723, 1
        %vm4743 = vcmp.lt.s32.totalorder %v4723, 2
        %vm4744 = vcmp.lt.s32.totalorder %v4723, 3
        %vm4745 = vcmp.lt.s32.totalorder %v4723, 4
        %v4746 = vsel %vm4742, %v4726, %v4729
        %v4747 = vsel %vm4745, %v4735, 2102212464
        %v4748 = vsel %vm4744, %v4732, %v4747
        %v4749 = vsel %vm4743, %v4746, %v4748
        %v4750 = vsel %vm4742, %v4729, %v4732
        %v4751 = vsel %vm4745, %v4738, 920167782
        %v4752 = vsel %vm4744, %v4735, %v4751
        %v4753 = vsel %vm4743, %v4750, %v4752
        %v4754 = vsel %vm4742, %v4732, %v4735
        %v4755 = vsel %vm4745, %v4741, 1326507024
        %v4756 = vsel %vm4744, %v4738, %v4755
        %v4757 = vsel %vm4743, %v4754, %v4756
        %v4758 = vshll.u32 %v4718, 8
        %v4759 = vmul.u32.u64.compose %v4758, %v4757
        %v4760 = vextract.low.u32 %v4759
        %v4761 = vextract.high.u32 %v4759
        %v4762 = vmul.u32.u64.compose %v4758, %v4753
        %v4763 = vextract.low.u32 %v4762
        %v4764 = vextract.high.u32 %v4762
        %v4765 = vmul.u32 %v4758, %v4749
        %v4766 = vadd.s32 %v4761, %v4763
        %vm4767 = vc.u32 %v4761, %v4763
        %v4768 = vadd.s32 %v4764, 1
        %v4769 = vsel %vm4767, %v4768, %v4764
        %v4770 = vadd.s32 %v4765, %v4769
        %v4771 = vadd.s32 %v4770, 536870912
        %v4772 = vshrl.u32 %v4771, 30
        %v4773 = vshll.u32 %v4772, 30
        %v4774 = vsub.s32 %v4770, %v4773
        %vm4775 = vcmp.lt.s32.totalorder %v4774, 0
        %v4776 = vsub.s32 0, %v4774
        %v4777 = vsel %vm4775, %v4776, %v4774
        %v4778 = vclz %v4777
        %v4779 = vsub.s32 %v4778, 2
        %vm4780 = vcmp.gt.s32.totalorder 0, %v4779
        %v4781 = vsel %vm4780, 0, %v4779
        %v4782 = vsub.s32 32, %v4781
        %v4783 = vshll.u32 %v4774, %v4781
        %v4784 = vshrl.u32 %v4766, %v4782
        %v4785 = vor.u32 %v4783, %v4784
        %v4786 = vsub.s32 4294967266, %v4781
        %v4787 = vadd.s32 %v4786, 127
        %v4788 = vshll.u32 %v4787, 23
        %v4789 = vor.u32 4788187, %v4788
        %v4790 = vand.u32 2147483647, %v4789
        %v4792 = vcvt.s32.f32 %v4785
        %v4793 = vmul.f32 %v4792, %v4790
        %v4794 = vxor.u32 %v4793, 2147483648
        %v4795 = vsel %vm4712, %v4794, %v4793
        %v4796 = vsub.s32 4, %v4772
        %v4797 = vsel %vm4712, %v4796, %v4772
        %v4798 = vsel %vm4711, %v4276, %v4795
        %v4799 = vsel %vm4711, 0, %v4797
        %v4800 = vcosq.f32.pop %v4798
        %v4801 = vsinq.f32.pop %v4798
        %vm4802 = vweird.f32 %v4276
        %v4803 = vadd.s32 %v4799, 3
        %v4804 = vand.u32 %v4803, 3
        %vm4805 = vcmp.lt.s32.totalorder %v4804, 2
        %vm4806 = vcmp.eq.s32.totalorder %v4804, 0
        %v4807 = vxor.u32 %v4801, 2147483648
        %v4808 = vsel %vm4806, %v4800, %v4807
        %vm4809 = vcmp.eq.s32.totalorder %v4804, 2
        %v4810 = vxor.u32 %v4800, 2147483648
        %v4811 = vsel %vm4809, %v4810, %v4801
        %v4812 = vsel %vm4805, %v4808, %v4811
        %v4813 = vsel %vm4802, nan, %v4812
        %v4814 = vand.u32 2147483647, %v4281
        %vm4815 = vcmp.le.f32.partialorder %v4814, 0.7853982
        %vm4816 = vcmp.lt.s32.totalorder %v4281, 0
        %v4817 = vand.u32 %v4281, 2139095040
        %v4818 = vshrl.u32 %v4817, 23
        %v4819 = vsub.s32 %v4818, 127
        %v4820 = vand.u32 2147483647, %v4281
        %v4821 = vand.u32 %v4820, 8388607
        %v4822 = vor.u32 %v4821, 8388608
        %v4823 = vsub.s32 0, %v4822
        %v4824 = vadd.s32 %v4819, 1
        %vm4825 = vcmp.gt.s32.totalorder %v4824, 0
        %v4826 = vsel %vm4825, %v4824, 0
        %v4827 = vshrl.u32 %v4826, 5
        %v4828 = vand.u32 %v4826, 31
        %v4829 = vsub.s32 32, %v4828
        %v4830 = vshrl.u32 683565275, %v4829
        %v4831 = vshll.u32 683565275, %v4828
        %v4832 = vshrl.u32 2475754826, %v4829
        %v4833 = vor.u32 %v4831, %v4832
        %v4834 = vshll.u32 2475754826, %v4828
        %v4835 = vshrl.u32 2131351028, %v4829
        %v4836 = vor.u32 %v4834, %v4835
        %v4837 = vshll.u32 2131351028, %v4828
        %v4838 = vshrl.u32 2102212464, %v4829
        %v4839 = vor.u32 %v4837, %v4838
        %v4840 = vshll.u32 2102212464, %v4828
        %v4841 = vshrl.u32 920167782, %v4829
        %v4842 = vor.u32 %v4840, %v4841
        %v4843 = vshll.u32 920167782, %v4828
        %v4844 = vshrl.u32 1326507024, %v4829
        %v4845 = vor.u32 %v4843, %v4844
        %vm4846 = vcmp.lt.s32.totalorder %v4827, 1
        %vm4847 = vcmp.lt.s32.totalorder %v4827, 2
        %vm4848 = vcmp.lt.s32.totalorder %v4827, 3
        %vm4849 = vcmp.lt.s32.totalorder %v4827, 4
        %v4850 = vsel %vm4846, %v4830, %v4833
        %v4851 = vsel %vm4849, %v4839, 2102212464
        %v4852 = vsel %vm4848, %v4836, %v4851
        %v4853 = vsel %vm4847, %v4850, %v4852
        %v4854 = vsel %vm4846, %v4833, %v4836
        %v4855 = vsel %vm4849, %v4842, 920167782
        %v4856 = vsel %vm4848, %v4839, %v4855
        %v4857 = vsel %vm4847, %v4854, %v4856
        %v4858 = vsel %vm4846, %v4836, %v4839
        %v4859 = vsel %vm4849, %v4845, 1326507024
        %v4860 = vsel %vm4848, %v4842, %v4859
        %v4861 = vsel %vm4847, %v4858, %v4860
        %v4862 = vshll.u32 %v4822, 8
        %v4863 = vmul.u32.u64.compose %v4862, %v4861
        %v4864 = vextract.low.u32 %v4863
        %v4865 = vextract.high.u32 %v4863
        %v4866 = vmul.u32.u64.compose %v4862, %v4857
        %v4867 = vextract.low.u32 %v4866
        %v4868 = vextract.high.u32 %v4866
        %v4869 = vmul.u32 %v4862, %v4853
        %v4870 = vadd.s32 %v4865, %v4867
        %vm4871 = vc.u32 %v4865, %v4867
        %v4872 = vadd.s32 %v4868, 1
        %v4873 = vsel %vm4871, %v4872, %v4868
        %v4874 = vadd.s32 %v4869, %v4873
        %v4875 = vadd.s32 %v4874, 536870912
        %v4876 = vshrl.u32 %v4875, 30
        %v4877 = vshll.u32 %v4876, 30
        %v4878 = vsub.s32 %v4874, %v4877
        %vm4879 = vcmp.lt.s32.totalorder %v4878, 0
        %v4880 = vsub.s32 0, %v4878
        %v4881 = vsel %vm4879, %v4880, %v4878
        %v4882 = vclz %v4881
        %v4883 = vsub.s32 %v4882, 2
        %vm4884 = vcmp.gt.s32.totalorder 0, %v4883
        %v4885 = vsel %vm4884, 0, %v4883
        %v4886 = vsub.s32 32, %v4885
        %v4887 = vshll.u32 %v4878, %v4885
        %v4888 = vshrl.u32 %v4870, %v4886
        %v4889 = vor.u32 %v4887, %v4888
        %v4890 = vsub.s32 4294967266, %v4885
        %v4891 = vadd.s32 %v4890, 127
        %v4892 = vshll.u32 %v4891, 23
        %v4893 = vor.u32 4788187, %v4892
        %v4894 = vand.u32 2147483647, %v4893
        %v4896 = vcvt.s32.f32 %v4889
        %v4897 = vmul.f32 %v4896, %v4894
        %v4898 = vxor.u32 %v4897, 2147483648
        %v4899 = vsel %vm4816, %v4898, %v4897
        %v4900 = vsub.s32 4, %v4876
        %v4901 = vsel %vm4816, %v4900, %v4876
        %v4902 = vsel %vm4815, %v4281, %v4899
        %v4903 = vsel %vm4815, 0, %v4901
        %v4904 = vcosq.f32.pop %v4902
        %v4905 = vsinq.f32.pop %v4902
        %vm4906 = vweird.f32 %v4281
        %v4907 = vadd.s32 %v4903, 3
        %v4908 = vand.u32 %v4907, 3
        %vm4909 = vcmp.lt.s32.totalorder %v4908, 2
        %vm4910 = vcmp.eq.s32.totalorder %v4908, 0
        %v4911 = vxor.u32 %v4905, 2147483648
        %v4912 = vsel %vm4910, %v4904, %v4911
        %vm4913 = vcmp.eq.s32.totalorder %v4908, 2
        %v4914 = vxor.u32 %v4904, 2147483648
        %v4915 = vsel %vm4913, %v4914, %v4905
        %v4916 = vsel %vm4909, %v4912, %v4915
        %v4917 = vsel %vm4906, nan, %v4916
        %v4918 = vand.u32 2147483647, %v4286
        %vm4919 = vcmp.le.f32.partialorder %v4918, 0.7853982
        %vm4920 = vcmp.lt.s32.totalorder %v4286, 0
        %v4921 = vand.u32 %v4286, 2139095040
        %v4922 = vshrl.u32 %v4921, 23
        %v4923 = vsub.s32 %v4922, 127
        %v4924 = vand.u32 2147483647, %v4286
        %v4925 = vand.u32 %v4924, 8388607
        %v4926 = vor.u32 %v4925, 8388608
        %v4927 = vsub.s32 0, %v4926
        %v4928 = vadd.s32 %v4923, 1
        %vm4929 = vcmp.gt.s32.totalorder %v4928, 0
        %v4930 = vsel %vm4929, %v4928, 0
        %v4931 = vshrl.u32 %v4930, 5
        %v4932 = vand.u32 %v4930, 31
        %v4933 = vsub.s32 32, %v4932
        %v4934 = vshrl.u32 683565275, %v4933
        %v4935 = vshll.u32 683565275, %v4932
        %v4936 = vshrl.u32 2475754826, %v4933
        %v4937 = vor.u32 %v4935, %v4936
        %v4938 = vshll.u32 2475754826, %v4932
        %v4939 = vshrl.u32 2131351028, %v4933
        %v4940 = vor.u32 %v4938, %v4939
        %v4941 = vshll.u32 2131351028, %v4932
        %v4942 = vshrl.u32 2102212464, %v4933
        %v4943 = vor.u32 %v4941, %v4942
        %v4944 = vshll.u32 2102212464, %v4932
        %v4945 = vshrl.u32 920167782, %v4933
        %v4946 = vor.u32 %v4944, %v4945
        %v4947 = vshll.u32 920167782, %v4932
        %v4948 = vshrl.u32 1326507024, %v4933
        %v4949 = vor.u32 %v4947, %v4948
        %vm4950 = vcmp.lt.s32.totalorder %v4931, 1
        %vm4951 = vcmp.lt.s32.totalorder %v4931, 2
        %vm4952 = vcmp.lt.s32.totalorder %v4931, 3
        %vm4953 = vcmp.lt.s32.totalorder %v4931, 4
        %v4954 = vsel %vm4950, %v4934, %v4937
        %v4955 = vsel %vm4953, %v4943, 2102212464
        %v4956 = vsel %vm4952, %v4940, %v4955
        %v4957 = vsel %vm4951, %v4954, %v4956
        %v4958 = vsel %vm4950, %v4937, %v4940
        %v4959 = vsel %vm4953, %v4946, 920167782
        %v4960 = vsel %vm4952, %v4943, %v4959
        %v4961 = vsel %vm4951, %v4958, %v4960
        %v4962 = vsel %vm4950, %v4940, %v4943
        %v4963 = vsel %vm4953, %v4949, 1326507024
        %v4964 = vsel %vm4952, %v4946, %v4963
        %v4965 = vsel %vm4951, %v4962, %v4964
        %v4966 = vshll.u32 %v4926, 8
        %v4967 = vmul.u32.u64.compose %v4966, %v4965
        %v4968 = vextract.low.u32 %v4967
        %v4969 = vextract.high.u32 %v4967
        %v4970 = vmul.u32.u64.compose %v4966, %v4961
        %v4971 = vextract.low.u32 %v4970
        %v4972 = vextract.high.u32 %v4970
        %v4973 = vmul.u32 %v4966, %v4957
        %v4974 = vadd.s32 %v4969, %v4971
        %vm4975 = vc.u32 %v4969, %v4971
        %v4976 = vadd.s32 %v4972, 1
        %v4977 = vsel %vm4975, %v4976, %v4972
        %v4978 = vadd.s32 %v4973, %v4977
        %v4979 = vadd.s32 %v4978, 536870912
        %v4980 = vshrl.u32 %v4979, 30
        %v4981 = vshll.u32 %v4980, 30
        %v4982 = vsub.s32 %v4978, %v4981
        %vm4983 = vcmp.lt.s32.totalorder %v4982, 0
        %v4984 = vsub.s32 0, %v4982
        %v4985 = vsel %vm4983, %v4984, %v4982
        %v4986 = vclz %v4985
        %v4987 = vsub.s32 %v4986, 2
        %vm4988 = vcmp.gt.s32.totalorder 0, %v4987
        %v4989 = vsel %vm4988, 0, %v4987
        %v4990 = vsub.s32 32, %v4989
        %v4991 = vshll.u32 %v4982, %v4989
        %v4992 = vshrl.u32 %v4974, %v4990
        %v4993 = vor.u32 %v4991, %v4992
        %v4994 = vsub.s32 4294967266, %v4989
        %v4995 = vadd.s32 %v4994, 127
        %v4996 = vshll.u32 %v4995, 23
        %v4997 = vor.u32 4788187, %v4996
        %v4998 = vand.u32 2147483647, %v4997
        %v5000 = vcvt.s32.f32 %v4993
        %v5001 = vmul.f32 %v5000, %v4998
        %v5002 = vxor.u32 %v5001, 2147483648
        %v5003 = vsel %vm4920, %v5002, %v5001
        %v5004 = vsub.s32 4, %v4980
        %v5005 = vsel %vm4920, %v5004, %v4980
        %v5006 = vsel %vm4919, %v4286, %v5003
        %v5007 = vsel %vm4919, 0, %v5005
        %v5008 = vcosq.f32.pop %v5006
        %v5009 = vsinq.f32.pop %v5006
        %vm5010 = vweird.f32 %v4286
        %v5011 = vadd.s32 %v5007, 3
        %v5012 = vand.u32 %v5011, 3
        %vm5013 = vcmp.lt.s32.totalorder %v5012, 2
        %vm5014 = vcmp.eq.s32.totalorder %v5012, 0
        %v5015 = vxor.u32 %v5009, 2147483648
        %v5016 = vsel %vm5014, %v5008, %v5015
        %vm5017 = vcmp.eq.s32.totalorder %v5012, 2
        %v5018 = vxor.u32 %v5008, 2147483648
        %v5019 = vsel %vm5017, %v5018, %v5009
        %v5020 = vsel %vm5013, %v5016, %v5019
        %v5021 = vsel %vm5010, nan, %v5020
        %v5022 = vand.u32 2147483647, %v4291
        %vm5023 = vcmp.le.f32.partialorder %v5022, 0.7853982
        %vm5024 = vcmp.lt.s32.totalorder %v4291, 0
        %v5025 = vand.u32 %v4291, 2139095040
        %v5026 = vshrl.u32 %v5025, 23
        %v5027 = vsub.s32 %v5026, 127
        %v5028 = vand.u32 2147483647, %v4291
        %v5029 = vand.u32 %v5028, 8388607
        %v5030 = vor.u32 %v5029, 8388608
        %v5031 = vsub.s32 0, %v5030
        %v5032 = vadd.s32 %v5027, 1
        %vm5033 = vcmp.gt.s32.totalorder %v5032, 0
        %v5034 = vsel %vm5033, %v5032, 0
        %v5035 = vshrl.u32 %v5034, 5
        %v5036 = vand.u32 %v5034, 31
        %v5037 = vsub.s32 32, %v5036
        %v5038 = vshrl.u32 683565275, %v5037
        %v5039 = vshll.u32 683565275, %v5036
        %v5040 = vshrl.u32 2475754826, %v5037
        %v5041 = vor.u32 %v5039, %v5040
        %v5042 = vshll.u32 2475754826, %v5036
        %v5043 = vshrl.u32 2131351028, %v5037
        %v5044 = vor.u32 %v5042, %v5043
        %v5045 = vshll.u32 2131351028, %v5036
        %v5046 = vshrl.u32 2102212464, %v5037
        %v5047 = vor.u32 %v5045, %v5046
        %v5048 = vshll.u32 2102212464, %v5036
        %v5049 = vshrl.u32 920167782, %v5037
        %v5050 = vor.u32 %v5048, %v5049
        %v5051 = vshll.u32 920167782, %v5036
        %v5052 = vshrl.u32 1326507024, %v5037
        %v5053 = vor.u32 %v5051, %v5052
        %vm5054 = vcmp.lt.s32.totalorder %v5035, 1
        %vm5055 = vcmp.lt.s32.totalorder %v5035, 2
        %vm5056 = vcmp.lt.s32.totalorder %v5035, 3
        %vm5057 = vcmp.lt.s32.totalorder %v5035, 4
        %v5058 = vsel %vm5054, %v5038, %v5041
        %v5059 = vsel %vm5057, %v5047, 2102212464
        %v5060 = vsel %vm5056, %v5044, %v5059
        %v5061 = vsel %vm5055, %v5058, %v5060
        %v5062 = vsel %vm5054, %v5041, %v5044
        %v5063 = vsel %vm5057, %v5050, 920167782
        %v5064 = vsel %vm5056, %v5047, %v5063
        %v5065 = vsel %vm5055, %v5062, %v5064
        %v5066 = vsel %vm5054, %v5044, %v5047
        %v5067 = vsel %vm5057, %v5053, 1326507024
        %v5068 = vsel %vm5056, %v5050, %v5067
        %v5069 = vsel %vm5055, %v5066, %v5068
        %v5070 = vshll.u32 %v5030, 8
        %v5071 = vmul.u32.u64.compose %v5070, %v5069
        %v5072 = vextract.low.u32 %v5071
        %v5073 = vextract.high.u32 %v5071
        %v5074 = vmul.u32.u64.compose %v5070, %v5065
        %v5075 = vextract.low.u32 %v5074
        %v5076 = vextract.high.u32 %v5074
        %v5077 = vmul.u32 %v5070, %v5061
        %v5078 = vadd.s32 %v5073, %v5075
        %vm5079 = vc.u32 %v5073, %v5075
        %v5080 = vadd.s32 %v5076, 1
        %v5081 = vsel %vm5079, %v5080, %v5076
        %v5082 = vadd.s32 %v5077, %v5081
        %v5083 = vadd.s32 %v5082, 536870912
        %v5084 = vshrl.u32 %v5083, 30
        %v5085 = vshll.u32 %v5084, 30
        %v5086 = vsub.s32 %v5082, %v5085
        %vm5087 = vcmp.lt.s32.totalorder %v5086, 0
        %v5088 = vsub.s32 0, %v5086
        %v5089 = vsel %vm5087, %v5088, %v5086
        %v5090 = vclz %v5089
        %v5091 = vsub.s32 %v5090, 2
        %vm5092 = vcmp.gt.s32.totalorder 0, %v5091
        %v5093 = vsel %vm5092, 0, %v5091
        %v5094 = vsub.s32 32, %v5093
        %v5095 = vshll.u32 %v5086, %v5093
        %v5096 = vshrl.u32 %v5078, %v5094
        %v5097 = vor.u32 %v5095, %v5096
        %v5098 = vsub.s32 4294967266, %v5093
        %v5099 = vadd.s32 %v5098, 127
        %v5100 = vshll.u32 %v5099, 23
        %v5101 = vor.u32 4788187, %v5100
        %v5102 = vand.u32 2147483647, %v5101
        %v5104 = vcvt.s32.f32 %v5097
        %v5105 = vmul.f32 %v5104, %v5102
        %v5106 = vxor.u32 %v5105, 2147483648
        %v5107 = vsel %vm5024, %v5106, %v5105
        %v5108 = vsub.s32 4, %v5084
        %v5109 = vsel %vm5024, %v5108, %v5084
        %v5110 = vsel %vm5023, %v4291, %v5107
        %v5111 = vsel %vm5023, 0, %v5109
        %v5112 = vcosq.f32.pop %v5110
        %v5113 = vsinq.f32.pop %v5110
        %vm5114 = vweird.f32 %v4291
        %v5115 = vadd.s32 %v5111, 3
        %v5116 = vand.u32 %v5115, 3
        %vm5117 = vcmp.lt.s32.totalorder %v5116, 2
        %vm5118 = vcmp.eq.s32.totalorder %v5116, 0
        %v5119 = vxor.u32 %v5113, 2147483648
        %v5120 = vsel %vm5118, %v5112, %v5119
        %vm5121 = vcmp.eq.s32.totalorder %v5116, 2
        %v5122 = vxor.u32 %v5112, 2147483648
        %v5123 = vsel %vm5121, %v5122, %v5113
        %v5124 = vsel %vm5117, %v5120, %v5123
        %v5125 = vsel %vm5114, nan, %v5124
        %s5126 = scalar_lea.vmem [#allocation2], 512
        %v5127 = vld [vmem:[%s5126] sm:$0xff]
        %v5128 = vld [vmem:[%s5126 + $0x8] sm:$0xff]
        %v5129 = vld [vmem:[%s5126 + $0x10] sm:$0xff]
        %v5130 = vld [vmem:[%s5126 + $0x18] sm:$0xff]
        %v5131 = vld [vmem:[%s5126 + $0x20] sm:$0xff]
        %v5132 = vld [vmem:[%s5126 + $0x28] sm:$0xff]
        %v5133 = vld [vmem:[%s5126 + $0x30] sm:$0xff]
        %v5134 = vld [vmem:[%s5126 + $0x38] sm:$0xff]
        %v5135 = vld [vmem:[%s5126 + $0x40] sm:$0xff]
        %v5136 = vld [vmem:[%s5126 + $0x48] sm:$0xff]
        %v5137 = vld [vmem:[%s5126 + $0x50] sm:$0xff]
        %v5138 = vld [vmem:[%s5126 + $0x58] sm:$0xff]
        %v5139 = vld [vmem:[%s5126 + $0x60] sm:$0xff]
        %v5140 = vld [vmem:[%s5126 + $0x68] sm:$0xff]
        %v5141 = vld [vmem:[%s5126 + $0x70] sm:$0xff]
        %v5142 = vld [vmem:[%s5126 + $0x78] sm:$0xff]
        %s5143 = scalar_lea.vmem %s4, 4
        %v5144 = vld [vmem:[%s5143] sm:$0x1]
        %v5146 = vlaneseq
        %v5147 = vshrl.u32 %v5146, 7
        %v5148 = vsub.s32 0, %v5147
        %v5149 = vrot.slane %v5144, %v5148
        %5151 = vmatprep.subr.mxu0 0.0
        %5152 = vmatpush1.msra.mxu0 %v5127
        %5153 = vmatprep.subr.mxu0 0.0
        %5154 = vmatpush1.msra.mxu0 %v5128
        %5155 = vmatprep.subr.mxu0 0.0
        %5156 = vmatpush1.msra.mxu0 %v5129
        %5157 = vmatprep.subr.mxu0 0.0
        %5158 = vmatpush1.msra.mxu0 %v5130
        %5159 = vmatprep.subr.mxu0 0.0
        %5160 = vmatpush1.msra.mxu0 %v5131
        %5161 = vmatprep.subr.mxu0 0.0
        %5162 = vmatpush1.msra.mxu0 %v5132
        %5163 = vmatprep.subr.mxu0 0.0
        %5164 = vmatpush1.msra.mxu0 %v5133
        %5165 = vmatprep.subr.mxu0 0.0
        %5166 = vmatpush1.msra.mxu0 %v5134
        %5167 = vmatprep.subr.mxu0 0.0
        %5168 = vmatpush1.msra.mxu0 %v5135
        %5169 = vmatprep.subr.mxu0 0.0
        %5170 = vmatpush1.msra.mxu0 %v5136
        %5171 = vmatprep.subr.mxu0 0.0
        %5172 = vmatpush1.msra.mxu0 %v5137
        %5173 = vmatprep.subr.mxu0 0.0
        %5174 = vmatpush1.msra.mxu0 %v5138
        %5175 = vmatprep.subr.mxu0 0.0
        %5176 = vmatpush1.msra.mxu0 %v5139
        %5177 = vmatprep.subr.mxu0 0.0
        %5178 = vmatpush1.msra.mxu0 %v5140
        %5179 = vmatprep.subr.mxu0 0.0
        %5180 = vmatpush1.msra.mxu0 %v5141
        %5181 = vmatprep.subr.mxu0 0.0
        %5182 = vmatpush1.msra.mxu0 %v5142
        %5183 = vmatprep.subr.mxu0 0.0
        %5184 = vmatpush1.msra.mxu0 0.0
        %5185 = vmatprep.subr.mxu0 0.0
        %5186 = vmatpush1.msra.mxu0 0.0
        %5187 = vmatprep.subr.mxu0 0.0
        %5188 = vmatpush1.msra.mxu0 0.0
        %5189 = vmatprep.subr.mxu0 0.0
        %5190 = vmatpush1.msra.mxu0 0.0
        %5191 = vmatprep.subr.mxu0 0.0
        %5192 = vmatpush1.msra.mxu0 0.0
        %5193 = vmatprep.subr.mxu0 0.0
        %5194 = vmatpush1.msra.mxu0 0.0
        %5195 = vmatprep.subr.mxu0 0.0
        %5196 = vmatpush1.msra.mxu0 0.0
        %5197 = vmatprep.subr.mxu0 0.0
        %5198 = vmatpush1.msra.mxu0 0.0
        %5199 = vmatprep.subr.mxu0 0.0
        %5200 = vmatpush1.msra.mxu0 0.0
        %5201 = vmatprep.subr.mxu0 0.0
        %5202 = vmatpush1.msra.mxu0 0.0
        %5203 = vmatprep.subr.mxu0 0.0
        %5204 = vmatpush1.msra.mxu0 0.0
        %5205 = vmatprep.subr.mxu0 0.0
        %5206 = vmatpush1.msra.mxu0 0.0
        %5207 = vmatprep.subr.mxu0 0.0
        %5208 = vmatpush1.msra.mxu0 0.0
        %5209 = vmatprep.subr.mxu0 0.0
        %5210 = vmatpush1.msra.mxu0 0.0
        %5211 = vmatprep.subr.mxu0 0.0
        %5212 = vmatpush1.msra.mxu0 0.0
        %5213 = vmatprep.subr.mxu0 0.0
        %5214 = vmatpush1.msra.mxu0 0.0
        %5215 = vmatprep.mubr.f32.mxu0 0.0
        %5216 = vmatmul.mubr.f32.gmra.mrb[0].mxu0 %v4397
        %v5217 = vpop.f32.mrb[0].mxu0
        %v5218 = vadd.f32 %v5149, %v5217
        %v5219 = vpop.f32.mrb[0].mxu0
        %5220 = vmatprep.mubr.f32.mxu0 0.0
        %5221 = vmatmul.mubr.f32.gmra.mrb[0].mxu0 %v4501
        %v5222 = vpop.f32.mrb[0].mxu0
        %v5223 = vadd.f32 %v5149, %v5222
        %v5224 = vpop.f32.mrb[0].mxu0
        %5225 = vmatprep.mubr.f32.mxu0 0.0
        %5226 = vmatmul.mubr.f32.gmra.mrb[0].mxu0 %v4605
        %v5227 = vpop.f32.mrb[0].mxu0
        %v5228 = vadd.f32 %v5149, %v5227
        %v5229 = vpop.f32.mrb[0].mxu0
        %5230 = vmatprep.mubr.f32.mxu0 0.0
        %5231 = vmatmul.mubr.f32.gmra.mrb[0].mxu0 %v4709
        %v5232 = vpop.f32.mrb[0].mxu0
        %v5233 = vadd.f32 %v5149, %v5232
        %v5234 = vpop.f32.mrb[0].mxu0
        %5235 = vmatprep.mubr.f32.mxu0 0.0
        %5236 = vmatmul.mubr.f32.gmra.mrb[0].mxu0 %v4813
        %v5237 = vpop.f32.mrb[0].mxu0
        %v5238 = vadd.f32 %v5149, %v5237
        %v5239 = vpop.f32.mrb[0].mxu0
        %5240 = vmatprep.mubr.f32.mxu0 0.0
        %5241 = vmatmul.mubr.f32.gmra.mrb[0].mxu0 %v4917
        %v5242 = vpop.f32.mrb[0].mxu0
        %v5243 = vadd.f32 %v5149, %v5242
        %v5244 = vpop.f32.mrb[0].mxu0
        %5245 = vmatprep.mubr.f32.mxu0 0.0
        %5246 = vmatmul.mubr.f32.gmra.mrb[0].mxu0 %v5021
        %v5247 = vpop.f32.mrb[0].mxu0
        %v5248 = vadd.f32 %v5149, %v5247
        %v5249 = vpop.f32.mrb[0].mxu0
        %5250 = vmatprep.mubr.f32.mxu0 0.0
        %5251 = vmatmul.mubr.f32.gmra.mrb[0].mxu0 %v5125
        %v5252 = vpop.f32.mrb[0].mxu0
        %v5253 = vadd.f32 %v5149, %v5252
        %v5254 = vpop.f32.mrb[0].mxu0
        %5255 = vdwg.mxu0
        %v5256 = vand.u32 2147483647, %v5218
        %vm5257 = vcmp.le.f32.partialorder %v5256, 0.7853982
        %vm5258 = vcmp.lt.s32.totalorder %v5218, 0
        %v5259 = vand.u32 %v5218, 2139095040
        %v5260 = vshrl.u32 %v5259, 23
        %v5261 = vsub.s32 %v5260, 127
        %v5262 = vand.u32 2147483647, %v5218
        %v5263 = vand.u32 %v5262, 8388607
        %v5264 = vor.u32 %v5263, 8388608
        %v5265 = vsub.s32 0, %v5264
        %v5266 = vadd.s32 %v5261, 1
        %vm5267 = vcmp.gt.s32.totalorder %v5266, 0
        %v5268 = vsel %vm5267, %v5266, 0
        %v5269 = vshrl.u32 %v5268, 5
        %v5270 = vand.u32 %v5268, 31
        %v5271 = vsub.s32 32, %v5270
        %v5272 = vshrl.u32 683565275, %v5271
        %v5273 = vshll.u32 683565275, %v5270
        %v5274 = vshrl.u32 2475754826, %v5271
        %v5275 = vor.u32 %v5273, %v5274
        %v5276 = vshll.u32 2475754826, %v5270
        %v5277 = vshrl.u32 2131351028, %v5271
        %v5278 = vor.u32 %v5276, %v5277
        %v5279 = vshll.u32 2131351028, %v5270
        %v5280 = vshrl.u32 2102212464, %v5271
        %v5281 = vor.u32 %v5279, %v5280
        %v5282 = vshll.u32 2102212464, %v5270
        %v5283 = vshrl.u32 920167782, %v5271
        %v5284 = vor.u32 %v5282, %v5283
        %v5285 = vshll.u32 920167782, %v5270
        %v5286 = vshrl.u32 1326507024, %v5271
        %v5287 = vor.u32 %v5285, %v5286
        %vm5288 = vcmp.lt.s32.totalorder %v5269, 1
        %vm5289 = vcmp.lt.s32.totalorder %v5269, 2
        %vm5290 = vcmp.lt.s32.totalorder %v5269, 3
        %vm5291 = vcmp.lt.s32.totalorder %v5269, 4
        %v5292 = vsel %vm5288, %v5272, %v5275
        %v5293 = vsel %vm5291, %v5281, 2102212464
        %v5294 = vsel %vm5290, %v5278, %v5293
        %v5295 = vsel %vm5289, %v5292, %v5294
        %v5296 = vsel %vm5288, %v5275, %v5278
        %v5297 = vsel %vm5291, %v5284, 920167782
        %v5298 = vsel %vm5290, %v5281, %v5297
        %v5299 = vsel %vm5289, %v5296, %v5298
        %v5300 = vsel %vm5288, %v5278, %v5281
        %v5301 = vsel %vm5291, %v5287, 1326507024
        %v5302 = vsel %vm5290, %v5284, %v5301
        %v5303 = vsel %vm5289, %v5300, %v5302
        %v5304 = vshll.u32 %v5264, 8
        %v5305 = vmul.u32.u64.compose %v5304, %v5303
        %v5306 = vextract.low.u32 %v5305
        %v5307 = vextract.high.u32 %v5305
        %v5308 = vmul.u32.u64.compose %v5304, %v5299
        %v5309 = vextract.low.u32 %v5308
        %v5310 = vextract.high.u32 %v5308
        %v5311 = vmul.u32 %v5304, %v5295
        %v5312 = vadd.s32 %v5307, %v5309
        %vm5313 = vc.u32 %v5307, %v5309
        %v5314 = vadd.s32 %v5310, 1
        %v5315 = vsel %vm5313, %v5314, %v5310
        %v5316 = vadd.s32 %v5311, %v5315
        %v5317 = vadd.s32 %v5316, 536870912
        %v5318 = vshrl.u32 %v5317, 30
        %v5319 = vshll.u32 %v5318, 30
        %v5320 = vsub.s32 %v5316, %v5319
        %vm5321 = vcmp.lt.s32.totalorder %v5320, 0
        %v5322 = vsub.s32 0, %v5320
        %v5323 = vsel %vm5321, %v5322, %v5320
        %v5324 = vclz %v5323
        %v5325 = vsub.s32 %v5324, 2
        %vm5326 = vcmp.gt.s32.totalorder 0, %v5325
        %v5327 = vsel %vm5326, 0, %v5325
        %v5328 = vsub.s32 32, %v5327
        %v5329 = vshll.u32 %v5320, %v5327
        %v5330 = vshrl.u32 %v5312, %v5328
        %v5331 = vor.u32 %v5329, %v5330
        %v5332 = vsub.s32 4294967266, %v5327
        %v5333 = vadd.s32 %v5332, 127
        %v5334 = vshll.u32 %v5333, 23
        %v5335 = vor.u32 4788187, %v5334
        %v5336 = vand.u32 2147483647, %v5335
        %v5338 = vcvt.s32.f32 %v5331
        %v5339 = vmul.f32 %v5338, %v5336
        %v5340 = vxor.u32 %v5339, 2147483648
        %v5341 = vsel %vm5258, %v5340, %v5339
        %v5342 = vsub.s32 4, %v5318
        %v5343 = vsel %vm5258, %v5342, %v5318
        %v5344 = vsel %vm5257, %v5218, %v5341
        %v5345 = vsel %vm5257, 0, %v5343
        %v5346 = vcosq.f32.pop %v5344
        %v5347 = vsinq.f32.pop %v5344
        %vm5348 = vweird.f32 %v5218
        %v5349 = vadd.s32 %v5345, 3
        %v5350 = vand.u32 %v5349, 3
        %vm5351 = vcmp.lt.s32.totalorder %v5350, 2
        %vm5352 = vcmp.eq.s32.totalorder %v5350, 0
        %v5353 = vxor.u32 %v5347, 2147483648
        %v5354 = vsel %vm5352, %v5346, %v5353
        %vm5355 = vcmp.eq.s32.totalorder %v5350, 2
        %v5356 = vxor.u32 %v5346, 2147483648
        %v5357 = vsel %vm5355, %v5356, %v5347
        %v5358 = vsel %vm5351, %v5354, %v5357
        %v5359 = vsel %vm5348, nan, %v5358
        %v5360 = vand.u32 2147483647, %v5223
        %vm5361 = vcmp.le.f32.partialorder %v5360, 0.7853982
        %vm5362 = vcmp.lt.s32.totalorder %v5223, 0
        %v5363 = vand.u32 %v5223, 2139095040
        %v5364 = vshrl.u32 %v5363, 23
        %v5365 = vsub.s32 %v5364, 127
        %v5366 = vand.u32 2147483647, %v5223
        %v5367 = vand.u32 %v5366, 8388607
        %v5368 = vor.u32 %v5367, 8388608
        %v5369 = vsub.s32 0, %v5368
        %v5370 = vadd.s32 %v5365, 1
        %vm5371 = vcmp.gt.s32.totalorder %v5370, 0
        %v5372 = vsel %vm5371, %v5370, 0
        %v5373 = vshrl.u32 %v5372, 5
        %v5374 = vand.u32 %v5372, 31
        %v5375 = vsub.s32 32, %v5374
        %v5376 = vshrl.u32 683565275, %v5375
        %v5377 = vshll.u32 683565275, %v5374
        %v5378 = vshrl.u32 2475754826, %v5375
        %v5379 = vor.u32 %v5377, %v5378
        %v5380 = vshll.u32 2475754826, %v5374
        %v5381 = vshrl.u32 2131351028, %v5375
        %v5382 = vor.u32 %v5380, %v5381
        %v5383 = vshll.u32 2131351028, %v5374
        %v5384 = vshrl.u32 2102212464, %v5375
        %v5385 = vor.u32 %v5383, %v5384
        %v5386 = vshll.u32 2102212464, %v5374
        %v5387 = vshrl.u32 920167782, %v5375
        %v5388 = vor.u32 %v5386, %v5387
        %v5389 = vshll.u32 920167782, %v5374
        %v5390 = vshrl.u32 1326507024, %v5375
        %v5391 = vor.u32 %v5389, %v5390
        %vm5392 = vcmp.lt.s32.totalorder %v5373, 1
        %vm5393 = vcmp.lt.s32.totalorder %v5373, 2
        %vm5394 = vcmp.lt.s32.totalorder %v5373, 3
        %vm5395 = vcmp.lt.s32.totalorder %v5373, 4
        %v5396 = vsel %vm5392, %v5376, %v5379
        %v5397 = vsel %vm5395, %v5385, 2102212464
        %v5398 = vsel %vm5394, %v5382, %v5397
        %v5399 = vsel %vm5393, %v5396, %v5398
        %v5400 = vsel %vm5392, %v5379, %v5382
        %v5401 = vsel %vm5395, %v5388, 920167782
        %v5402 = vsel %vm5394, %v5385, %v5401
        %v5403 = vsel %vm5393, %v5400, %v5402
        %v5404 = vsel %vm5392, %v5382, %v5385
        %v5405 = vsel %vm5395, %v5391, 1326507024
        %v5406 = vsel %vm5394, %v5388, %v5405
        %v5407 = vsel %vm5393, %v5404, %v5406
        %v5408 = vshll.u32 %v5368, 8
        %v5409 = vmul.u32.u64.compose %v5408, %v5407
        %v5410 = vextract.low.u32 %v5409
        %v5411 = vextract.high.u32 %v5409
        %v5412 = vmul.u32.u64.compose %v5408, %v5403
        %v5413 = vextract.low.u32 %v5412
        %v5414 = vextract.high.u32 %v5412
        %v5415 = vmul.u32 %v5408, %v5399
        %v5416 = vadd.s32 %v5411, %v5413
        %vm5417 = vc.u32 %v5411, %v5413
        %v5418 = vadd.s32 %v5414, 1
        %v5419 = vsel %vm5417, %v5418, %v5414
        %v5420 = vadd.s32 %v5415, %v5419
        %v5421 = vadd.s32 %v5420, 536870912
        %v5422 = vshrl.u32 %v5421, 30
        %v5423 = vshll.u32 %v5422, 30
        %v5424 = vsub.s32 %v5420, %v5423
        %vm5425 = vcmp.lt.s32.totalorder %v5424, 0
        %v5426 = vsub.s32 0, %v5424
        %v5427 = vsel %vm5425, %v5426, %v5424
        %v5428 = vclz %v5427
        %v5429 = vsub.s32 %v5428, 2
        %vm5430 = vcmp.gt.s32.totalorder 0, %v5429
        %v5431 = vsel %vm5430, 0, %v5429
        %v5432 = vsub.s32 32, %v5431
        %v5433 = vshll.u32 %v5424, %v5431
        %v5434 = vshrl.u32 %v5416, %v5432
        %v5435 = vor.u32 %v5433, %v5434
        %v5436 = vsub.s32 4294967266, %v5431
        %v5437 = vadd.s32 %v5436, 127
        %v5438 = vshll.u32 %v5437, 23
        %v5439 = vor.u32 4788187, %v5438
        %v5440 = vand.u32 2147483647, %v5439
        %v5442 = vcvt.s32.f32 %v5435
        %v5443 = vmul.f32 %v5442, %v5440
        %v5444 = vxor.u32 %v5443, 2147483648
        %v5445 = vsel %vm5362, %v5444, %v5443
        %v5446 = vsub.s32 4, %v5422
        %v5447 = vsel %vm5362, %v5446, %v5422
        %v5448 = vsel %vm5361, %v5223, %v5445
        %v5449 = vsel %vm5361, 0, %v5447
        %v5450 = vcosq.f32.pop %v5448
        %v5451 = vsinq.f32.pop %v5448
        %vm5452 = vweird.f32 %v5223
        %v5453 = vadd.s32 %v5449, 3
        %v5454 = vand.u32 %v5453, 3
        %vm5455 = vcmp.lt.s32.totalorder %v5454, 2
        %vm5456 = vcmp.eq.s32.totalorder %v5454, 0
        %v5457 = vxor.u32 %v5451, 2147483648
        %v5458 = vsel %vm5456, %v5450, %v5457
        %vm5459 = vcmp.eq.s32.totalorder %v5454, 2
        %v5460 = vxor.u32 %v5450, 2147483648
        %v5461 = vsel %vm5459, %v5460, %v5451
        %v5462 = vsel %vm5455, %v5458, %v5461
        %v5463 = vsel %vm5452, nan, %v5462
        %v5464 = vand.u32 2147483647, %v5228
        %vm5465 = vcmp.le.f32.partialorder %v5464, 0.7853982
        %vm5466 = vcmp.lt.s32.totalorder %v5228, 0
        %v5467 = vand.u32 %v5228, 2139095040
        %v5468 = vshrl.u32 %v5467, 23
        %v5469 = vsub.s32 %v5468, 127
        %v5470 = vand.u32 2147483647, %v5228
        %v5471 = vand.u32 %v5470, 8388607
        %v5472 = vor.u32 %v5471, 8388608
        %v5473 = vsub.s32 0, %v5472
        %v5474 = vadd.s32 %v5469, 1
        %vm5475 = vcmp.gt.s32.totalorder %v5474, 0
        %v5476 = vsel %vm5475, %v5474, 0
        %v5477 = vshrl.u32 %v5476, 5
        %v5478 = vand.u32 %v5476, 31
        %v5479 = vsub.s32 32, %v5478
        %v5480 = vshrl.u32 683565275, %v5479
        %v5481 = vshll.u32 683565275, %v5478
        %v5482 = vshrl.u32 2475754826, %v5479
        %v5483 = vor.u32 %v5481, %v5482
        %v5484 = vshll.u32 2475754826, %v5478
        %v5485 = vshrl.u32 2131351028, %v5479
        %v5486 = vor.u32 %v5484, %v5485
        %v5487 = vshll.u32 2131351028, %v5478
        %v5488 = vshrl.u32 2102212464, %v5479
        %v5489 = vor.u32 %v5487, %v5488
        %v5490 = vshll.u32 2102212464, %v5478
        %v5491 = vshrl.u32 920167782, %v5479
        %v5492 = vor.u32 %v5490, %v5491
        %v5493 = vshll.u32 920167782, %v5478
        %v5494 = vshrl.u32 1326507024, %v5479
        %v5495 = vor.u32 %v5493, %v5494
        %vm5496 = vcmp.lt.s32.totalorder %v5477, 1
        %vm5497 = vcmp.lt.s32.totalorder %v5477, 2
        %vm5498 = vcmp.lt.s32.totalorder %v5477, 3
        %vm5499 = vcmp.lt.s32.totalorder %v5477, 4
        %v5500 = vsel %vm5496, %v5480, %v5483
        %v5501 = vsel %vm5499, %v5489, 2102212464
        %v5502 = vsel %vm5498, %v5486, %v5501
        %v5503 = vsel %vm5497, %v5500, %v5502
        %v5504 = vsel %vm5496, %v5483, %v5486
        %v5505 = vsel %vm5499, %v5492, 920167782
        %v5506 = vsel %vm5498, %v5489, %v5505
        %v5507 = vsel %vm5497, %v5504, %v5506
        %v5508 = vsel %vm5496, %v5486, %v5489
        %v5509 = vsel %vm5499, %v5495, 1326507024
        %v5510 = vsel %vm5498, %v5492, %v5509
        %v5511 = vsel %vm5497, %v5508, %v5510
        %v5512 = vshll.u32 %v5472, 8
        %v5513 = vmul.u32.u64.compose %v5512, %v5511
        %v5514 = vextract.low.u32 %v5513
        %v5515 = vextract.high.u32 %v5513
        %v5516 = vmul.u32.u64.compose %v5512, %v5507
        %v5517 = vextract.low.u32 %v5516
        %v5518 = vextract.high.u32 %v5516
        %v5519 = vmul.u32 %v5512, %v5503
        %v5520 = vadd.s32 %v5515, %v5517
        %vm5521 = vc.u32 %v5515, %v5517
        %v5522 = vadd.s32 %v5518, 1
        %v5523 = vsel %vm5521, %v5522, %v5518
        %v5524 = vadd.s32 %v5519, %v5523
        %v5525 = vadd.s32 %v5524, 536870912
        %v5526 = vshrl.u32 %v5525, 30
        %v5527 = vshll.u32 %v5526, 30
        %v5528 = vsub.s32 %v5524, %v5527
        %vm5529 = vcmp.lt.s32.totalorder %v5528, 0
        %v5530 = vsub.s32 0, %v5528
        %v5531 = vsel %vm5529, %v5530, %v5528
        %v5532 = vclz %v5531
        %v5533 = vsub.s32 %v5532, 2
        %vm5534 = vcmp.gt.s32.totalorder 0, %v5533
        %v5535 = vsel %vm5534, 0, %v5533
        %v5536 = vsub.s32 32, %v5535
        %v5537 = vshll.u32 %v5528, %v5535
        %v5538 = vshrl.u32 %v5520, %v5536
        %v5539 = vor.u32 %v5537, %v5538
        %v5540 = vsub.s32 4294967266, %v5535
        %v5541 = vadd.s32 %v5540, 127
        %v5542 = vshll.u32 %v5541, 23
        %v5543 = vor.u32 4788187, %v5542
        %v5544 = vand.u32 2147483647, %v5543
        %v5546 = vcvt.s32.f32 %v5539
        %v5547 = vmul.f32 %v5546, %v5544
        %v5548 = vxor.u32 %v5547, 2147483648
        %v5549 = vsel %vm5466, %v5548, %v5547
        %v5550 = vsub.s32 4, %v5526
        %v5551 = vsel %vm5466, %v5550, %v5526
        %v5552 = vsel %vm5465, %v5228, %v5549
        %v5553 = vsel %vm5465, 0, %v5551
        %v5554 = vcosq.f32.pop %v5552
        %v5555 = vsinq.f32.pop %v5552
        %vm5556 = vweird.f32 %v5228
        %v5557 = vadd.s32 %v5553, 3
        %v5558 = vand.u32 %v5557, 3
        %vm5559 = vcmp.lt.s32.totalorder %v5558, 2
        %vm5560 = vcmp.eq.s32.totalorder %v5558, 0
        %v5561 = vxor.u32 %v5555, 2147483648
        %v5562 = vsel %vm5560, %v5554, %v5561
        %vm5563 = vcmp.eq.s32.totalorder %v5558, 2
        %v5564 = vxor.u32 %v5554, 2147483648
        %v5565 = vsel %vm5563, %v5564, %v5555
        %v5566 = vsel %vm5559, %v5562, %v5565
        %v5567 = vsel %vm5556, nan, %v5566
        %v5568 = vand.u32 2147483647, %v5233
        %vm5569 = vcmp.le.f32.partialorder %v5568, 0.7853982
        %vm5570 = vcmp.lt.s32.totalorder %v5233, 0
        %v5571 = vand.u32 %v5233, 2139095040
        %v5572 = vshrl.u32 %v5571, 23
        %v5573 = vsub.s32 %v5572, 127
        %v5574 = vand.u32 2147483647, %v5233
        %v5575 = vand.u32 %v5574, 8388607
        %v5576 = vor.u32 %v5575, 8388608
        %v5577 = vsub.s32 0, %v5576
        %v5578 = vadd.s32 %v5573, 1
        %vm5579 = vcmp.gt.s32.totalorder %v5578, 0
        %v5580 = vsel %vm5579, %v5578, 0
        %v5581 = vshrl.u32 %v5580, 5
        %v5582 = vand.u32 %v5580, 31
        %v5583 = vsub.s32 32, %v5582
        %v5584 = vshrl.u32 683565275, %v5583
        %v5585 = vshll.u32 683565275, %v5582
        %v5586 = vshrl.u32 2475754826, %v5583
        %v5587 = vor.u32 %v5585, %v5586
        %v5588 = vshll.u32 2475754826, %v5582
        %v5589 = vshrl.u32 2131351028, %v5583
        %v5590 = vor.u32 %v5588, %v5589
        %v5591 = vshll.u32 2131351028, %v5582
        %v5592 = vshrl.u32 2102212464, %v5583
        %v5593 = vor.u32 %v5591, %v5592
        %v5594 = vshll.u32 2102212464, %v5582
        %v5595 = vshrl.u32 920167782, %v5583
        %v5596 = vor.u32 %v5594, %v5595
        %v5597 = vshll.u32 920167782, %v5582
        %v5598 = vshrl.u32 1326507024, %v5583
        %v5599 = vor.u32 %v5597, %v5598
        %vm5600 = vcmp.lt.s32.totalorder %v5581, 1
        %vm5601 = vcmp.lt.s32.totalorder %v5581, 2
        %vm5602 = vcmp.lt.s32.totalorder %v5581, 3
        %vm5603 = vcmp.lt.s32.totalorder %v5581, 4
        %v5604 = vsel %vm5600, %v5584, %v5587
        %v5605 = vsel %vm5603, %v5593, 2102212464
        %v5606 = vsel %vm5602, %v5590, %v5605
        %v5607 = vsel %vm5601, %v5604, %v5606
        %v5608 = vsel %vm5600, %v5587, %v5590
        %v5609 = vsel %vm5603, %v5596, 920167782
        %v5610 = vsel %vm5602, %v5593, %v5609
        %v5611 = vsel %vm5601, %v5608, %v5610
        %v5612 = vsel %vm5600, %v5590, %v5593
        %v5613 = vsel %vm5603, %v5599, 1326507024
        %v5614 = vsel %vm5602, %v5596, %v5613
        %v5615 = vsel %vm5601, %v5612, %v5614
        %v5616 = vshll.u32 %v5576, 8
        %v5617 = vmul.u32.u64.compose %v5616, %v5615
        %v5618 = vextract.low.u32 %v5617
        %v5619 = vextract.high.u32 %v5617
        %v5620 = vmul.u32.u64.compose %v5616, %v5611
        %v5621 = vextract.low.u32 %v5620
        %v5622 = vextract.high.u32 %v5620
        %v5623 = vmul.u32 %v5616, %v5607
        %v5624 = vadd.s32 %v5619, %v5621
        %vm5625 = vc.u32 %v5619, %v5621
        %v5626 = vadd.s32 %v5622, 1
        %v5627 = vsel %vm5625, %v5626, %v5622
        %v5628 = vadd.s32 %v5623, %v5627
        %v5629 = vadd.s32 %v5628, 536870912
        %v5630 = vshrl.u32 %v5629, 30
        %v5631 = vshll.u32 %v5630, 30
        %v5632 = vsub.s32 %v5628, %v5631
        %vm5633 = vcmp.lt.s32.totalorder %v5632, 0
        %v5634 = vsub.s32 0, %v5632
        %v5635 = vsel %vm5633, %v5634, %v5632
        %v5636 = vclz %v5635
        %v5637 = vsub.s32 %v5636, 2
        %vm5638 = vcmp.gt.s32.totalorder 0, %v5637
        %v5639 = vsel %vm5638, 0, %v5637
        %v5640 = vsub.s32 32, %v5639
        %v5641 = vshll.u32 %v5632, %v5639
        %v5642 = vshrl.u32 %v5624, %v5640
        %v5643 = vor.u32 %v5641, %v5642
        %v5644 = vsub.s32 4294967266, %v5639
        %v5645 = vadd.s32 %v5644, 127
        %v5646 = vshll.u32 %v5645, 23
        %v5647 = vor.u32 4788187, %v5646
        %v5648 = vand.u32 2147483647, %v5647
        %v5650 = vcvt.s32.f32 %v5643
        %v5651 = vmul.f32 %v5650, %v5648
        %v5652 = vxor.u32 %v5651, 2147483648
        %v5653 = vsel %vm5570, %v5652, %v5651
        %v5654 = vsub.s32 4, %v5630
        %v5655 = vsel %vm5570, %v5654, %v5630
        %v5656 = vsel %vm5569, %v5233, %v5653
        %v5657 = vsel %vm5569, 0, %v5655
        %v5658 = vcosq.f32.pop %v5656
        %v5659 = vsinq.f32.pop %v5656
        %vm5660 = vweird.f32 %v5233
        %v5661 = vadd.s32 %v5657, 3
        %v5662 = vand.u32 %v5661, 3
        %vm5663 = vcmp.lt.s32.totalorder %v5662, 2
        %vm5664 = vcmp.eq.s32.totalorder %v5662, 0
        %v5665 = vxor.u32 %v5659, 2147483648
        %v5666 = vsel %vm5664, %v5658, %v5665
        %vm5667 = vcmp.eq.s32.totalorder %v5662, 2
        %v5668 = vxor.u32 %v5658, 2147483648
        %v5669 = vsel %vm5667, %v5668, %v5659
        %v5670 = vsel %vm5663, %v5666, %v5669
        %v5671 = vsel %vm5660, nan, %v5670
        %v5672 = vand.u32 2147483647, %v5238
        %vm5673 = vcmp.le.f32.partialorder %v5672, 0.7853982
        %vm5674 = vcmp.lt.s32.totalorder %v5238, 0
        %v5675 = vand.u32 %v5238, 2139095040
        %v5676 = vshrl.u32 %v5675, 23
        %v5677 = vsub.s32 %v5676, 127
        %v5678 = vand.u32 2147483647, %v5238
        %v5679 = vand.u32 %v5678, 8388607
        %v5680 = vor.u32 %v5679, 8388608
        %v5681 = vsub.s32 0, %v5680
        %v5682 = vadd.s32 %v5677, 1
        %vm5683 = vcmp.gt.s32.totalorder %v5682, 0
        %v5684 = vsel %vm5683, %v5682, 0
        %v5685 = vshrl.u32 %v5684, 5
        %v5686 = vand.u32 %v5684, 31
        %v5687 = vsub.s32 32, %v5686
        %v5688 = vshrl.u32 683565275, %v5687
        %v5689 = vshll.u32 683565275, %v5686
        %v5690 = vshrl.u32 2475754826, %v5687
        %v5691 = vor.u32 %v5689, %v5690
        %v5692 = vshll.u32 2475754826, %v5686
        %v5693 = vshrl.u32 2131351028, %v5687
        %v5694 = vor.u32 %v5692, %v5693
        %v5695 = vshll.u32 2131351028, %v5686
        %v5696 = vshrl.u32 2102212464, %v5687
        %v5697 = vor.u32 %v5695, %v5696
        %v5698 = vshll.u32 2102212464, %v5686
        %v5699 = vshrl.u32 920167782, %v5687
        %v5700 = vor.u32 %v5698, %v5699
        %v5701 = vshll.u32 920167782, %v5686
        %v5702 = vshrl.u32 1326507024, %v5687
        %v5703 = vor.u32 %v5701, %v5702
        %vm5704 = vcmp.lt.s32.totalorder %v5685, 1
        %vm5705 = vcmp.lt.s32.totalorder %v5685, 2
        %vm5706 = vcmp.lt.s32.totalorder %v5685, 3
        %vm5707 = vcmp.lt.s32.totalorder %v5685, 4
        %v5708 = vsel %vm5704, %v5688, %v5691
        %v5709 = vsel %vm5707, %v5697, 2102212464
        %v5710 = vsel %vm5706, %v5694, %v5709
        %v5711 = vsel %vm5705, %v5708, %v5710
        %v5712 = vsel %vm5704, %v5691, %v5694
        %v5713 = vsel %vm5707, %v5700, 920167782
        %v5714 = vsel %vm5706, %v5697, %v5713
        %v5715 = vsel %vm5705, %v5712, %v5714
        %v5716 = vsel %vm5704, %v5694, %v5697
        %v5717 = vsel %vm5707, %v5703, 1326507024
        %v5718 = vsel %vm5706, %v5700, %v5717
        %v5719 = vsel %vm5705, %v5716, %v5718
        %v5720 = vshll.u32 %v5680, 8
        %v5721 = vmul.u32.u64.compose %v5720, %v5719
        %v5722 = vextract.low.u32 %v5721
        %v5723 = vextract.high.u32 %v5721
        %v5724 = vmul.u32.u64.compose %v5720, %v5715
        %v5725 = vextract.low.u32 %v5724
        %v5726 = vextract.high.u32 %v5724
        %v5727 = vmul.u32 %v5720, %v5711
        %v5728 = vadd.s32 %v5723, %v5725
        %vm5729 = vc.u32 %v5723, %v5725
        %v5730 = vadd.s32 %v5726, 1
        %v5731 = vsel %vm5729, %v5730, %v5726
        %v5732 = vadd.s32 %v5727, %v5731
        %v5733 = vadd.s32 %v5732, 536870912
        %v5734 = vshrl.u32 %v5733, 30
        %v5735 = vshll.u32 %v5734, 30
        %v5736 = vsub.s32 %v5732, %v5735
        %vm5737 = vcmp.lt.s32.totalorder %v5736, 0
        %v5738 = vsub.s32 0, %v5736
        %v5739 = vsel %vm5737, %v5738, %v5736
        %v5740 = vclz %v5739
        %v5741 = vsub.s32 %v5740, 2
        %vm5742 = vcmp.gt.s32.totalorder 0, %v5741
        %v5743 = vsel %vm5742, 0, %v5741
        %v5744 = vsub.s32 32, %v5743
        %v5745 = vshll.u32 %v5736, %v5743
        %v5746 = vshrl.u32 %v5728, %v5744
        %v5747 = vor.u32 %v5745, %v5746
        %v5748 = vsub.s32 4294967266, %v5743
        %v5749 = vadd.s32 %v5748, 127
        %v5750 = vshll.u32 %v5749, 23
        %v5751 = vor.u32 4788187, %v5750
        %v5752 = vand.u32 2147483647, %v5751
        %v5754 = vcvt.s32.f32 %v5747
        %v5755 = vmul.f32 %v5754, %v5752
        %v5756 = vxor.u32 %v5755, 2147483648
        %v5757 = vsel %vm5674, %v5756, %v5755
        %v5758 = vsub.s32 4, %v5734
        %v5759 = vsel %vm5674, %v5758, %v5734
        %v5760 = vsel %vm5673, %v5238, %v5757
        %v5761 = vsel %vm5673, 0, %v5759
        %v5762 = vcosq.f32.pop %v5760
        %v5763 = vsinq.f32.pop %v5760
        %vm5764 = vweird.f32 %v5238
        %v5765 = vadd.s32 %v5761, 3
        %v5766 = vand.u32 %v5765, 3
        %vm5767 = vcmp.lt.s32.totalorder %v5766, 2
        %vm5768 = vcmp.eq.s32.totalorder %v5766, 0
        %v5769 = vxor.u32 %v5763, 2147483648
        %v5770 = vsel %vm5768, %v5762, %v5769
        %vm5771 = vcmp.eq.s32.totalorder %v5766, 2
        %v5772 = vxor.u32 %v5762, 2147483648
        %v5773 = vsel %vm5771, %v5772, %v5763
        %v5774 = vsel %vm5767, %v5770, %v5773
        %v5775 = vsel %vm5764, nan, %v5774
        %v5776 = vand.u32 2147483647, %v5243
        %vm5777 = vcmp.le.f32.partialorder %v5776, 0.7853982
        %vm5778 = vcmp.lt.s32.totalorder %v5243, 0
        %v5779 = vand.u32 %v5243, 2139095040
        %v5780 = vshrl.u32 %v5779, 23
        %v5781 = vsub.s32 %v5780, 127
        %v5782 = vand.u32 2147483647, %v5243
        %v5783 = vand.u32 %v5782, 8388607
        %v5784 = vor.u32 %v5783, 8388608
        %v5785 = vsub.s32 0, %v5784
        %v5786 = vadd.s32 %v5781, 1
        %vm5787 = vcmp.gt.s32.totalorder %v5786, 0
        %v5788 = vsel %vm5787, %v5786, 0
        %v5789 = vshrl.u32 %v5788, 5
        %v5790 = vand.u32 %v5788, 31
        %v5791 = vsub.s32 32, %v5790
        %v5792 = vshrl.u32 683565275, %v5791
        %v5793 = vshll.u32 683565275, %v5790
        %v5794 = vshrl.u32 2475754826, %v5791
        %v5795 = vor.u32 %v5793, %v5794
        %v5796 = vshll.u32 2475754826, %v5790
        %v5797 = vshrl.u32 2131351028, %v5791
        %v5798 = vor.u32 %v5796, %v5797
        %v5799 = vshll.u32 2131351028, %v5790
        %v5800 = vshrl.u32 2102212464, %v5791
        %v5801 = vor.u32 %v5799, %v5800
        %v5802 = vshll.u32 2102212464, %v5790
        %v5803 = vshrl.u32 920167782, %v5791
        %v5804 = vor.u32 %v5802, %v5803
        %v5805 = vshll.u32 920167782, %v5790
        %v5806 = vshrl.u32 1326507024, %v5791
        %v5807 = vor.u32 %v5805, %v5806
        %vm5808 = vcmp.lt.s32.totalorder %v5789, 1
        %vm5809 = vcmp.lt.s32.totalorder %v5789, 2
        %vm5810 = vcmp.lt.s32.totalorder %v5789, 3
        %vm5811 = vcmp.lt.s32.totalorder %v5789, 4
        %v5812 = vsel %vm5808, %v5792, %v5795
        %v5813 = vsel %vm5811, %v5801, 2102212464
        %v5814 = vsel %vm5810, %v5798, %v5813
        %v5815 = vsel %vm5809, %v5812, %v5814
        %v5816 = vsel %vm5808, %v5795, %v5798
        %v5817 = vsel %vm5811, %v5804, 920167782
        %v5818 = vsel %vm5810, %v5801, %v5817
        %v5819 = vsel %vm5809, %v5816, %v5818
        %v5820 = vsel %vm5808, %v5798, %v5801
        %v5821 = vsel %vm5811, %v5807, 1326507024
        %v5822 = vsel %vm5810, %v5804, %v5821
        %v5823 = vsel %vm5809, %v5820, %v5822
        %v5824 = vshll.u32 %v5784, 8
        %v5825 = vmul.u32.u64.compose %v5824, %v5823
        %v5826 = vextract.low.u32 %v5825
        %v5827 = vextract.high.u32 %v5825
        %v5828 = vmul.u32.u64.compose %v5824, %v5819
        %v5829 = vextract.low.u32 %v5828
        %v5830 = vextract.high.u32 %v5828
        %v5831 = vmul.u32 %v5824, %v5815
        %v5832 = vadd.s32 %v5827, %v5829
        %vm5833 = vc.u32 %v5827, %v5829
        %v5834 = vadd.s32 %v5830, 1
        %v5835 = vsel %vm5833, %v5834, %v5830
        %v5836 = vadd.s32 %v5831, %v5835
        %v5837 = vadd.s32 %v5836, 536870912
        %v5838 = vshrl.u32 %v5837, 30
        %v5839 = vshll.u32 %v5838, 30
        %v5840 = vsub.s32 %v5836, %v5839
        %vm5841 = vcmp.lt.s32.totalorder %v5840, 0
        %v5842 = vsub.s32 0, %v5840
        %v5843 = vsel %vm5841, %v5842, %v5840
        %v5844 = vclz %v5843
        %v5845 = vsub.s32 %v5844, 2
        %vm5846 = vcmp.gt.s32.totalorder 0, %v5845
        %v5847 = vsel %vm5846, 0, %v5845
        %v5848 = vsub.s32 32, %v5847
        %v5849 = vshll.u32 %v5840, %v5847
        %v5850 = vshrl.u32 %v5832, %v5848
        %v5851 = vor.u32 %v5849, %v5850
        %v5852 = vsub.s32 4294967266, %v5847
        %v5853 = vadd.s32 %v5852, 127
        %v5854 = vshll.u32 %v5853, 23
        %v5855 = vor.u32 4788187, %v5854
        %v5856 = vand.u32 2147483647, %v5855
        %v5858 = vcvt.s32.f32 %v5851
        %v5859 = vmul.f32 %v5858, %v5856
        %v5860 = vxor.u32 %v5859, 2147483648
        %v5861 = vsel %vm5778, %v5860, %v5859
        %v5862 = vsub.s32 4, %v5838
        %v5863 = vsel %vm5778, %v5862, %v5838
        %v5864 = vsel %vm5777, %v5243, %v5861
        %v5865 = vsel %vm5777, 0, %v5863
        %v5866 = vcosq.f32.pop %v5864
        %v5867 = vsinq.f32.pop %v5864
        %vm5868 = vweird.f32 %v5243
        %v5869 = vadd.s32 %v5865, 3
        %v5870 = vand.u32 %v5869, 3
        %vm5871 = vcmp.lt.s32.totalorder %v5870, 2
        %vm5872 = vcmp.eq.s32.totalorder %v5870, 0
        %v5873 = vxor.u32 %v5867, 2147483648
        %v5874 = vsel %vm5872, %v5866, %v5873
        %vm5875 = vcmp.eq.s32.totalorder %v5870, 2
        %v5876 = vxor.u32 %v5866, 2147483648
        %v5877 = vsel %vm5875, %v5876, %v5867
        %v5878 = vsel %vm5871, %v5874, %v5877
        %v5879 = vsel %vm5868, nan, %v5878
        %v5880 = vand.u32 2147483647, %v5248
        %vm5881 = vcmp.le.f32.partialorder %v5880, 0.7853982
        %vm5882 = vcmp.lt.s32.totalorder %v5248, 0
        %v5883 = vand.u32 %v5248, 2139095040
        %v5884 = vshrl.u32 %v5883, 23
        %v5885 = vsub.s32 %v5884, 127
        %v5886 = vand.u32 2147483647, %v5248
        %v5887 = vand.u32 %v5886, 8388607
        %v5888 = vor.u32 %v5887, 8388608
        %v5889 = vsub.s32 0, %v5888
        %v5890 = vadd.s32 %v5885, 1
        %vm5891 = vcmp.gt.s32.totalorder %v5890, 0
        %v5892 = vsel %vm5891, %v5890, 0
        %v5893 = vshrl.u32 %v5892, 5
        %v5894 = vand.u32 %v5892, 31
        %v5895 = vsub.s32 32, %v5894
        %v5896 = vshrl.u32 683565275, %v5895
        %v5897 = vshll.u32 683565275, %v5894
        %v5898 = vshrl.u32 2475754826, %v5895
        %v5899 = vor.u32 %v5897, %v5898
        %v5900 = vshll.u32 2475754826, %v5894
        %v5901 = vshrl.u32 2131351028, %v5895
        %v5902 = vor.u32 %v5900, %v5901
        %v5903 = vshll.u32 2131351028, %v5894
        %v5904 = vshrl.u32 2102212464, %v5895
        %v5905 = vor.u32 %v5903, %v5904
        %v5906 = vshll.u32 2102212464, %v5894
        %v5907 = vshrl.u32 920167782, %v5895
        %v5908 = vor.u32 %v5906, %v5907
        %v5909 = vshll.u32 920167782, %v5894
        %v5910 = vshrl.u32 1326507024, %v5895
        %v5911 = vor.u32 %v5909, %v5910
        %vm5912 = vcmp.lt.s32.totalorder %v5893, 1
        %vm5913 = vcmp.lt.s32.totalorder %v5893, 2
        %vm5914 = vcmp.lt.s32.totalorder %v5893, 3
        %vm5915 = vcmp.lt.s32.totalorder %v5893, 4
        %v5916 = vsel %vm5912, %v5896, %v5899
        %v5917 = vsel %vm5915, %v5905, 2102212464
        %v5918 = vsel %vm5914, %v5902, %v5917
        %v5919 = vsel %vm5913, %v5916, %v5918
        %v5920 = vsel %vm5912, %v5899, %v5902
        %v5921 = vsel %vm5915, %v5908, 920167782
        %v5922 = vsel %vm5914, %v5905, %v5921
        %v5923 = vsel %vm5913, %v5920, %v5922
        %v5924 = vsel %vm5912, %v5902, %v5905
        %v5925 = vsel %vm5915, %v5911, 1326507024
        %v5926 = vsel %vm5914, %v5908, %v5925
        %v5927 = vsel %vm5913, %v5924, %v5926
        %v5928 = vshll.u32 %v5888, 8
        %v5929 = vmul.u32.u64.compose %v5928, %v5927
        %v5930 = vextract.low.u32 %v5929
        %v5931 = vextract.high.u32 %v5929
        %v5932 = vmul.u32.u64.compose %v5928, %v5923
        %v5933 = vextract.low.u32 %v5932
        %v5934 = vextract.high.u32 %v5932
        %v5935 = vmul.u32 %v5928, %v5919
        %v5936 = vadd.s32 %v5931, %v5933
        %vm5937 = vc.u32 %v5931, %v5933
        %v5938 = vadd.s32 %v5934, 1
        %v5939 = vsel %vm5937, %v5938, %v5934
        %v5940 = vadd.s32 %v5935, %v5939
        %v5941 = vadd.s32 %v5940, 536870912
        %v5942 = vshrl.u32 %v5941, 30
        %v5943 = vshll.u32 %v5942, 30
        %v5944 = vsub.s32 %v5940, %v5943
        %vm5945 = vcmp.lt.s32.totalorder %v5944, 0
        %v5946 = vsub.s32 0, %v5944
        %v5947 = vsel %vm5945, %v5946, %v5944
        %v5948 = vclz %v5947
        %v5949 = vsub.s32 %v5948, 2
        %vm5950 = vcmp.gt.s32.totalorder 0, %v5949
        %v5951 = vsel %vm5950, 0, %v5949
        %v5952 = vsub.s32 32, %v5951
        %v5953 = vshll.u32 %v5944, %v5951
        %v5954 = vshrl.u32 %v5936, %v5952
        %v5955 = vor.u32 %v5953, %v5954
        %v5956 = vsub.s32 4294967266, %v5951
        %v5957 = vadd.s32 %v5956, 127
        %v5958 = vshll.u32 %v5957, 23
        %v5959 = vor.u32 4788187, %v5958
        %v5960 = vand.u32 2147483647, %v5959
        %v5962 = vcvt.s32.f32 %v5955
        %v5963 = vmul.f32 %v5962, %v5960
        %v5964 = vxor.u32 %v5963, 2147483648
        %v5965 = vsel %vm5882, %v5964, %v5963
        %v5966 = vsub.s32 4, %v5942
        %v5967 = vsel %vm5882, %v5966, %v5942
        %v5968 = vsel %vm5881, %v5248, %v5965
        %v5969 = vsel %vm5881, 0, %v5967
        %v5970 = vcosq.f32.pop %v5968
        %v5971 = vsinq.f32.pop %v5968
        %vm5972 = vweird.f32 %v5248
        %v5973 = vadd.s32 %v5969, 3
        %v5974 = vand.u32 %v5973, 3
        %vm5975 = vcmp.lt.s32.totalorder %v5974, 2
        %vm5976 = vcmp.eq.s32.totalorder %v5974, 0
        %v5977 = vxor.u32 %v5971, 2147483648
        %v5978 = vsel %vm5976, %v5970, %v5977
        %vm5979 = vcmp.eq.s32.totalorder %v5974, 2
        %v5980 = vxor.u32 %v5970, 2147483648
        %v5981 = vsel %vm5979, %v5980, %v5971
        %v5982 = vsel %vm5975, %v5978, %v5981
        %v5983 = vsel %vm5972, nan, %v5982
        %v5984 = vand.u32 2147483647, %v5253
        %vm5985 = vcmp.le.f32.partialorder %v5984, 0.7853982
        %vm5986 = vcmp.lt.s32.totalorder %v5253, 0
        %v5987 = vand.u32 %v5253, 2139095040
        %v5988 = vshrl.u32 %v5987, 23
        %v5989 = vsub.s32 %v5988, 127
        %v5990 = vand.u32 2147483647, %v5253
        %v5991 = vand.u32 %v5990, 8388607
        %v5992 = vor.u32 %v5991, 8388608
        %v5993 = vsub.s32 0, %v5992
        %v5994 = vadd.s32 %v5989, 1
        %vm5995 = vcmp.gt.s32.totalorder %v5994, 0
        %v5996 = vsel %vm5995, %v5994, 0
        %v5997 = vshrl.u32 %v5996, 5
        %v5998 = vand.u32 %v5996, 31
        %v5999 = vsub.s32 32, %v5998
        %v6000 = vshrl.u32 683565275, %v5999
        %v6001 = vshll.u32 683565275, %v5998
        %v6002 = vshrl.u32 2475754826, %v5999
        %v6003 = vor.u32 %v6001, %v6002
        %v6004 = vshll.u32 2475754826, %v5998
        %v6005 = vshrl.u32 2131351028, %v5999
        %v6006 = vor.u32 %v6004, %v6005
        %v6007 = vshll.u32 2131351028, %v5998
        %v6008 = vshrl.u32 2102212464, %v5999
        %v6009 = vor.u32 %v6007, %v6008
        %v6010 = vshll.u32 2102212464, %v5998
        %v6011 = vshrl.u32 920167782, %v5999
        %v6012 = vor.u32 %v6010, %v6011
        %v6013 = vshll.u32 920167782, %v5998
        %v6014 = vshrl.u32 1326507024, %v5999
        %v6015 = vor.u32 %v6013, %v6014
        %vm6016 = vcmp.lt.s32.totalorder %v5997, 1
        %vm6017 = vcmp.lt.s32.totalorder %v5997, 2
        %vm6018 = vcmp.lt.s32.totalorder %v5997, 3
        %vm6019 = vcmp.lt.s32.totalorder %v5997, 4
        %v6020 = vsel %vm6016, %v6000, %v6003
        %v6021 = vsel %vm6019, %v6009, 2102212464
        %v6022 = vsel %vm6018, %v6006, %v6021
        %v6023 = vsel %vm6017, %v6020, %v6022
        %v6024 = vsel %vm6016, %v6003, %v6006
        %v6025 = vsel %vm6019, %v6012, 920167782
        %v6026 = vsel %vm6018, %v6009, %v6025
        %v6027 = vsel %vm6017, %v6024, %v6026
        %v6028 = vsel %vm6016, %v6006, %v6009
        %v6029 = vsel %vm6019, %v6015, 1326507024
        %v6030 = vsel %vm6018, %v6012, %v6029
        %v6031 = vsel %vm6017, %v6028, %v6030
        %v6032 = vshll.u32 %v5992, 8
        %v6033 = vmul.u32.u64.compose %v6032, %v6031
        %v6034 = vextract.low.u32 %v6033
        %v6035 = vextract.high.u32 %v6033
        %v6036 = vmul.u32.u64.compose %v6032, %v6027
        %v6037 = vextract.low.u32 %v6036
        %v6038 = vextract.high.u32 %v6036
        %v6039 = vmul.u32 %v6032, %v6023
        %v6040 = vadd.s32 %v6035, %v6037
        %vm6041 = vc.u32 %v6035, %v6037
        %v6042 = vadd.s32 %v6038, 1
        %v6043 = vsel %vm6041, %v6042, %v6038
        %v6044 = vadd.s32 %v6039, %v6043
        %v6045 = vadd.s32 %v6044, 536870912
        %v6046 = vshrl.u32 %v6045, 30
        %v6047 = vshll.u32 %v6046, 30
        %v6048 = vsub.s32 %v6044, %v6047
        %vm6049 = vcmp.lt.s32.totalorder %v6048, 0
        %v6050 = vsub.s32 0, %v6048
        %v6051 = vsel %vm6049, %v6050, %v6048
        %v6052 = vclz %v6051
        %v6053 = vsub.s32 %v6052, 2
        %vm6054 = vcmp.gt.s32.totalorder 0, %v6053
        %v6055 = vsel %vm6054, 0, %v6053
        %v6056 = vsub.s32 32, %v6055
        %v6057 = vshll.u32 %v6048, %v6055
        %v6058 = vshrl.u32 %v6040, %v6056
        %v6059 = vor.u32 %v6057, %v6058
        %v6060 = vsub.s32 4294967266, %v6055
        %v6061 = vadd.s32 %v6060, 127
        %v6062 = vshll.u32 %v6061, 23
        %v6063 = vor.u32 4788187, %v6062
        %v6064 = vand.u32 2147483647, %v6063
        %v6066 = vcvt.s32.f32 %v6059
        %v6067 = vmul.f32 %v6066, %v6064
        %v6068 = vxor.u32 %v6067, 2147483648
        %v6069 = vsel %vm5986, %v6068, %v6067
        %v6070 = vsub.s32 4, %v6046
        %v6071 = vsel %vm5986, %v6070, %v6046
        %v6072 = vsel %vm5985, %v5253, %v6069
        %v6073 = vsel %vm5985, 0, %v6071
        %v6074 = vcosq.f32.pop %v6072
        %v6075 = vsinq.f32.pop %v6072
        %vm6076 = vweird.f32 %v5253
        %v6077 = vadd.s32 %v6073, 3
        %v6078 = vand.u32 %v6077, 3
        %vm6079 = vcmp.lt.s32.totalorder %v6078, 2
        %vm6080 = vcmp.eq.s32.totalorder %v6078, 0
        %v6081 = vxor.u32 %v6075, 2147483648
        %v6082 = vsel %vm6080, %v6074, %v6081
        %vm6083 = vcmp.eq.s32.totalorder %v6078, 2
        %v6084 = vxor.u32 %v6074, 2147483648
        %v6085 = vsel %vm6083, %v6084, %v6075
        %v6086 = vsel %vm6079, %v6082, %v6085
        %v6087 = vsel %vm6076, nan, %v6086
        %s6088 = scalar_lea.vmem [#allocation2], 640
        %v6089 = vld [vmem:[%s6088] sm:$0xff]
        %v6090 = vld [vmem:[%s6088 + $0x8] sm:$0xff]
        %v6091 = vld [vmem:[%s6088 + $0x10] sm:$0xff]
        %v6092 = vld [vmem:[%s6088 + $0x18] sm:$0xff]
        %v6093 = vld [vmem:[%s6088 + $0x20] sm:$0xff]
        %v6094 = vld [vmem:[%s6088 + $0x28] sm:$0xff]
        %v6095 = vld [vmem:[%s6088 + $0x30] sm:$0xff]
        %v6096 = vld [vmem:[%s6088 + $0x38] sm:$0xff]
        %v6097 = vld [vmem:[%s6088 + $0x40] sm:$0xff]
        %v6098 = vld [vmem:[%s6088 + $0x48] sm:$0xff]
        %v6099 = vld [vmem:[%s6088 + $0x50] sm:$0xff]
        %v6100 = vld [vmem:[%s6088 + $0x58] sm:$0xff]
        %v6101 = vld [vmem:[%s6088 + $0x60] sm:$0xff]
        %v6102 = vld [vmem:[%s6088 + $0x68] sm:$0xff]
        %v6103 = vld [vmem:[%s6088 + $0x70] sm:$0xff]
        %v6104 = vld [vmem:[%s6088 + $0x78] sm:$0xff]
        %s6105 = scalar_lea.vmem %s4, 5
        %v6106 = vld [vmem:[%s6105] sm:$0x1]
        %v6108 = vlaneseq
        %v6109 = vshrl.u32 %v6108, 7
        %v6110 = vsub.s32 0, %v6109
        %v6111 = vrot.slane %v6106, %v6110
        %6113 = vmatprep.subr.mxu0 0.0
        %6114 = vmatpush1.msra.mxu0 %v6089
        %6115 = vmatprep.subr.mxu0 0.0
        %6116 = vmatpush1.msra.mxu0 %v6090
        %6117 = vmatprep.subr.mxu0 0.0
        %6118 = vmatpush1.msra.mxu0 %v6091
        %6119 = vmatprep.subr.mxu0 0.0
        %6120 = vmatpush1.msra.mxu0 %v6092
        %6121 = vmatprep.subr.mxu0 0.0
        %6122 = vmatpush1.msra.mxu0 %v6093
        %6123 = vmatprep.subr.mxu0 0.0
        %6124 = vmatpush1.msra.mxu0 %v6094
        %6125 = vmatprep.subr.mxu0 0.0
        %6126 = vmatpush1.msra.mxu0 %v6095
        %6127 = vmatprep.subr.mxu0 0.0
        %6128 = vmatpush1.msra.mxu0 %v6096
        %6129 = vmatprep.subr.mxu0 0.0
        %6130 = vmatpush1.msra.mxu0 %v6097
        %6131 = vmatprep.subr.mxu0 0.0
        %6132 = vmatpush1.msra.mxu0 %v6098
        %6133 = vmatprep.subr.mxu0 0.0
        %6134 = vmatpush1.msra.mxu0 %v6099
        %6135 = vmatprep.subr.mxu0 0.0
        %6136 = vmatpush1.msra.mxu0 %v6100
        %6137 = vmatprep.subr.mxu0 0.0
        %6138 = vmatpush1.msra.mxu0 %v6101
        %6139 = vmatprep.subr.mxu0 0.0
        %6140 = vmatpush1.msra.mxu0 %v6102
        %6141 = vmatprep.subr.mxu0 0.0
        %6142 = vmatpush1.msra.mxu0 %v6103
        %6143 = vmatprep.subr.mxu0 0.0
        %6144 = vmatpush1.msra.mxu0 %v6104
        %6145 = vmatprep.subr.mxu0 0.0
        %6146 = vmatpush1.msra.mxu0 0.0
        %6147 = vmatprep.subr.mxu0 0.0
        %6148 = vmatpush1.msra.mxu0 0.0
        %6149 = vmatprep.subr.mxu0 0.0
        %6150 = vmatpush1.msra.mxu0 0.0
        %6151 = vmatprep.subr.mxu0 0.0
        %6152 = vmatpush1.msra.mxu0 0.0
        %6153 = vmatprep.subr.mxu0 0.0
        %6154 = vmatpush1.msra.mxu0 0.0
        %6155 = vmatprep.subr.mxu0 0.0
        %6156 = vmatpush1.msra.mxu0 0.0
        %6157 = vmatprep.subr.mxu0 0.0
        %6158 = vmatpush1.msra.mxu0 0.0
        %6159 = vmatprep.subr.mxu0 0.0
        %6160 = vmatpush1.msra.mxu0 0.0
        %6161 = vmatprep.subr.mxu0 0.0
        %6162 = vmatpush1.msra.mxu0 0.0
        %6163 = vmatprep.subr.mxu0 0.0
        %6164 = vmatpush1.msra.mxu0 0.0
        %6165 = vmatprep.subr.mxu0 0.0
        %6166 = vmatpush1.msra.mxu0 0.0
        %6167 = vmatprep.subr.mxu0 0.0
        %6168 = vmatpush1.msra.mxu0 0.0
        %6169 = vmatprep.subr.mxu0 0.0
        %6170 = vmatpush1.msra.mxu0 0.0
        %6171 = vmatprep.subr.mxu0 0.0
        %6172 = vmatpush1.msra.mxu0 0.0
        %6173 = vmatprep.subr.mxu0 0.0
        %6174 = vmatpush1.msra.mxu0 0.0
        %6175 = vmatprep.subr.mxu0 0.0
        %6176 = vmatpush1.msra.mxu0 0.0
        %6177 = vmatprep.mubr.f32.mxu0 0.0
        %6178 = vmatmul.mubr.f32.gmra.mrb[0].mxu0 %v5359
        %v6179 = vpop.f32.mrb[0].mxu0
        %v6180 = vadd.f32 %v6111, %v6179
        %v6181 = vpop.f32.mrb[0].mxu0
        %6182 = vmatprep.mubr.f32.mxu0 0.0
        %6183 = vmatmul.mubr.f32.gmra.mrb[0].mxu0 %v5463
        %v6184 = vpop.f32.mrb[0].mxu0
        %v6185 = vadd.f32 %v6111, %v6184
        %v6186 = vpop.f32.mrb[0].mxu0
        %6187 = vmatprep.mubr.f32.mxu0 0.0
        %6188 = vmatmul.mubr.f32.gmra.mrb[0].mxu0 %v5567
        %v6189 = vpop.f32.mrb[0].mxu0
        %v6190 = vadd.f32 %v6111, %v6189
        %v6191 = vpop.f32.mrb[0].mxu0
        %6192 = vmatprep.mubr.f32.mxu0 0.0
        %6193 = vmatmul.mubr.f32.gmra.mrb[0].mxu0 %v5671
        %v6194 = vpop.f32.mrb[0].mxu0
        %v6195 = vadd.f32 %v6111, %v6194
        %v6196 = vpop.f32.mrb[0].mxu0
        %6197 = vmatprep.mubr.f32.mxu0 0.0
        %6198 = vmatmul.mubr.f32.gmra.mrb[0].mxu0 %v5775
        %v6199 = vpop.f32.mrb[0].mxu0
        %v6200 = vadd.f32 %v6111, %v6199
        %v6201 = vpop.f32.mrb[0].mxu0
        %6202 = vmatprep.mubr.f32.mxu0 0.0
        %6203 = vmatmul.mubr.f32.gmra.mrb[0].mxu0 %v5879
        %v6204 = vpop.f32.mrb[0].mxu0
        %v6205 = vadd.f32 %v6111, %v6204
        %v6206 = vpop.f32.mrb[0].mxu0
        %6207 = vmatprep.mubr.f32.mxu0 0.0
        %6208 = vmatmul.mubr.f32.gmra.mrb[0].mxu0 %v5983
        %v6209 = vpop.f32.mrb[0].mxu0
        %v6210 = vadd.f32 %v6111, %v6209
        %v6211 = vpop.f32.mrb[0].mxu0
        %6212 = vmatprep.mubr.f32.mxu0 0.0
        %6213 = vmatmul.mubr.f32.gmra.mrb[0].mxu0 %v6087
        %v6214 = vpop.f32.mrb[0].mxu0
        %v6215 = vadd.f32 %v6111, %v6214
        %v6216 = vpop.f32.mrb[0].mxu0
        %6217 = vdwg.mxu0
        %v6218 = vand.u32 2147483647, %v6180
        %vm6219 = vcmp.le.f32.partialorder %v6218, 0.7853982
        %vm6220 = vcmp.lt.s32.totalorder %v6180, 0
        %v6221 = vand.u32 %v6180, 2139095040
        %v6222 = vshrl.u32 %v6221, 23
        %v6223 = vsub.s32 %v6222, 127
        %v6224 = vand.u32 2147483647, %v6180
        %v6225 = vand.u32 %v6224, 8388607
        %v6226 = vor.u32 %v6225, 8388608
        %v6227 = vsub.s32 0, %v6226
        %v6228 = vadd.s32 %v6223, 1
        %vm6229 = vcmp.gt.s32.totalorder %v6228, 0
        %v6230 = vsel %vm6229, %v6228, 0
        %v6231 = vshrl.u32 %v6230, 5
        %v6232 = vand.u32 %v6230, 31
        %v6233 = vsub.s32 32, %v6232
        %v6234 = vshrl.u32 683565275, %v6233
        %v6235 = vshll.u32 683565275, %v6232
        %v6236 = vshrl.u32 2475754826, %v6233
        %v6237 = vor.u32 %v6235, %v6236
        %v6238 = vshll.u32 2475754826, %v6232
        %v6239 = vshrl.u32 2131351028, %v6233
        %v6240 = vor.u32 %v6238, %v6239
        %v6241 = vshll.u32 2131351028, %v6232
        %v6242 = vshrl.u32 2102212464, %v6233
        %v6243 = vor.u32 %v6241, %v6242
        %v6244 = vshll.u32 2102212464, %v6232
        %v6245 = vshrl.u32 920167782, %v6233
        %v6246 = vor.u32 %v6244, %v6245
        %v6247 = vshll.u32 920167782, %v6232
        %v6248 = vshrl.u32 1326507024, %v6233
        %v6249 = vor.u32 %v6247, %v6248
        %vm6250 = vcmp.lt.s32.totalorder %v6231, 1
        %vm6251 = vcmp.lt.s32.totalorder %v6231, 2
        %vm6252 = vcmp.lt.s32.totalorder %v6231, 3
        %vm6253 = vcmp.lt.s32.totalorder %v6231, 4
        %v6254 = vsel %vm6250, %v6234, %v6237
        %v6255 = vsel %vm6253, %v6243, 2102212464
        %v6256 = vsel %vm6252, %v6240, %v6255
        %v6257 = vsel %vm6251, %v6254, %v6256
        %v6258 = vsel %vm6250, %v6237, %v6240
        %v6259 = vsel %vm6253, %v6246, 920167782
        %v6260 = vsel %vm6252, %v6243, %v6259
        %v6261 = vsel %vm6251, %v6258, %v6260
        %v6262 = vsel %vm6250, %v6240, %v6243
        %v6263 = vsel %vm6253, %v6249, 1326507024
        %v6264 = vsel %vm6252, %v6246, %v6263
        %v6265 = vsel %vm6251, %v6262, %v6264
        %v6266 = vshll.u32 %v6226, 8
        %v6267 = vmul.u32.u64.compose %v6266, %v6265
        %v6268 = vextract.low.u32 %v6267
        %v6269 = vextract.high.u32 %v6267
        %v6270 = vmul.u32.u64.compose %v6266, %v6261
        %v6271 = vextract.low.u32 %v6270
        %v6272 = vextract.high.u32 %v6270
        %v6273 = vmul.u32 %v6266, %v6257
        %v6274 = vadd.s32 %v6269, %v6271
        %vm6275 = vc.u32 %v6269, %v6271
        %v6276 = vadd.s32 %v6272, 1
        %v6277 = vsel %vm6275, %v6276, %v6272
        %v6278 = vadd.s32 %v6273, %v6277
        %v6279 = vadd.s32 %v6278, 536870912
        %v6280 = vshrl.u32 %v6279, 30
        %v6281 = vshll.u32 %v6280, 30
        %v6282 = vsub.s32 %v6278, %v6281
        %vm6283 = vcmp.lt.s32.totalorder %v6282, 0
        %v6284 = vsub.s32 0, %v6282
        %v6285 = vsel %vm6283, %v6284, %v6282
        %v6286 = vclz %v6285
        %v6287 = vsub.s32 %v6286, 2
        %vm6288 = vcmp.gt.s32.totalorder 0, %v6287
        %v6289 = vsel %vm6288, 0, %v6287
        %v6290 = vsub.s32 32, %v6289
        %v6291 = vshll.u32 %v6282, %v6289
        %v6292 = vshrl.u32 %v6274, %v6290
        %v6293 = vor.u32 %v6291, %v6292
        %v6294 = vsub.s32 4294967266, %v6289
        %v6295 = vadd.s32 %v6294, 127
        %v6296 = vshll.u32 %v6295, 23
        %v6297 = vor.u32 4788187, %v6296
        %v6298 = vand.u32 2147483647, %v6297
        %v6300 = vcvt.s32.f32 %v6293
        %v6301 = vmul.f32 %v6300, %v6298
        %v6302 = vxor.u32 %v6301, 2147483648
        %v6303 = vsel %vm6220, %v6302, %v6301
        %v6304 = vsub.s32 4, %v6280
        %v6305 = vsel %vm6220, %v6304, %v6280
        %v6306 = vsel %vm6219, %v6180, %v6303
        %v6307 = vsel %vm6219, 0, %v6305
        %v6308 = vcosq.f32.pop %v6306
        %v6309 = vsinq.f32.pop %v6306
        %vm6310 = vweird.f32 %v6180
        %v6311 = vadd.s32 %v6307, 3
        %v6312 = vand.u32 %v6311, 3
        %vm6313 = vcmp.lt.s32.totalorder %v6312, 2
        %vm6314 = vcmp.eq.s32.totalorder %v6312, 0
        %v6315 = vxor.u32 %v6309, 2147483648
        %v6316 = vsel %vm6314, %v6308, %v6315
        %vm6317 = vcmp.eq.s32.totalorder %v6312, 2
        %v6318 = vxor.u32 %v6308, 2147483648
        %v6319 = vsel %vm6317, %v6318, %v6309
        %v6320 = vsel %vm6313, %v6316, %v6319
        %v6321 = vsel %vm6310, nan, %v6320
        %v6322 = vand.u32 2147483647, %v6185
        %vm6323 = vcmp.le.f32.partialorder %v6322, 0.7853982
        %vm6324 = vcmp.lt.s32.totalorder %v6185, 0
        %v6325 = vand.u32 %v6185, 2139095040
        %v6326 = vshrl.u32 %v6325, 23
        %v6327 = vsub.s32 %v6326, 127
        %v6328 = vand.u32 2147483647, %v6185
        %v6329 = vand.u32 %v6328, 8388607
        %v6330 = vor.u32 %v6329, 8388608
        %v6331 = vsub.s32 0, %v6330
        %v6332 = vadd.s32 %v6327, 1
        %vm6333 = vcmp.gt.s32.totalorder %v6332, 0
        %v6334 = vsel %vm6333, %v6332, 0
        %v6335 = vshrl.u32 %v6334, 5
        %v6336 = vand.u32 %v6334, 31
        %v6337 = vsub.s32 32, %v6336
        %v6338 = vshrl.u32 683565275, %v6337
        %v6339 = vshll.u32 683565275, %v6336
        %v6340 = vshrl.u32 2475754826, %v6337
        %v6341 = vor.u32 %v6339, %v6340
        %v6342 = vshll.u32 2475754826, %v6336
        %v6343 = vshrl.u32 2131351028, %v6337
        %v6344 = vor.u32 %v6342, %v6343
        %v6345 = vshll.u32 2131351028, %v6336
        %v6346 = vshrl.u32 2102212464, %v6337
        %v6347 = vor.u32 %v6345, %v6346
        %v6348 = vshll.u32 2102212464, %v6336
        %v6349 = vshrl.u32 920167782, %v6337
        %v6350 = vor.u32 %v6348, %v6349
        %v6351 = vshll.u32 920167782, %v6336
        %v6352 = vshrl.u32 1326507024, %v6337
        %v6353 = vor.u32 %v6351, %v6352
        %vm6354 = vcmp.lt.s32.totalorder %v6335, 1
        %vm6355 = vcmp.lt.s32.totalorder %v6335, 2
        %vm6356 = vcmp.lt.s32.totalorder %v6335, 3
        %vm6357 = vcmp.lt.s32.totalorder %v6335, 4
        %v6358 = vsel %vm6354, %v6338, %v6341
        %v6359 = vsel %vm6357, %v6347, 2102212464
        %v6360 = vsel %vm6356, %v6344, %v6359
        %v6361 = vsel %vm6355, %v6358, %v6360
        %v6362 = vsel %vm6354, %v6341, %v6344
        %v6363 = vsel %vm6357, %v6350, 920167782
        %v6364 = vsel %vm6356, %v6347, %v6363
        %v6365 = vsel %vm6355, %v6362, %v6364
        %v6366 = vsel %vm6354, %v6344, %v6347
        %v6367 = vsel %vm6357, %v6353, 1326507024
        %v6368 = vsel %vm6356, %v6350, %v6367
        %v6369 = vsel %vm6355, %v6366, %v6368
        %v6370 = vshll.u32 %v6330, 8
        %v6371 = vmul.u32.u64.compose %v6370, %v6369
        %v6372 = vextract.low.u32 %v6371
        %v6373 = vextract.high.u32 %v6371
        %v6374 = vmul.u32.u64.compose %v6370, %v6365
        %v6375 = vextract.low.u32 %v6374
        %v6376 = vextract.high.u32 %v6374
        %v6377 = vmul.u32 %v6370, %v6361
        %v6378 = vadd.s32 %v6373, %v6375
        %vm6379 = vc.u32 %v6373, %v6375
        %v6380 = vadd.s32 %v6376, 1
        %v6381 = vsel %vm6379, %v6380, %v6376
        %v6382 = vadd.s32 %v6377, %v6381
        %v6383 = vadd.s32 %v6382, 536870912
        %v6384 = vshrl.u32 %v6383, 30
        %v6385 = vshll.u32 %v6384, 30
        %v6386 = vsub.s32 %v6382, %v6385
        %vm6387 = vcmp.lt.s32.totalorder %v6386, 0
        %v6388 = vsub.s32 0, %v6386
        %v6389 = vsel %vm6387, %v6388, %v6386
        %v6390 = vclz %v6389
        %v6391 = vsub.s32 %v6390, 2
        %vm6392 = vcmp.gt.s32.totalorder 0, %v6391
        %v6393 = vsel %vm6392, 0, %v6391
        %v6394 = vsub.s32 32, %v6393
        %v6395 = vshll.u32 %v6386, %v6393
        %v6396 = vshrl.u32 %v6378, %v6394
        %v6397 = vor.u32 %v6395, %v6396
        %v6398 = vsub.s32 4294967266, %v6393
        %v6399 = vadd.s32 %v6398, 127
        %v6400 = vshll.u32 %v6399, 23
        %v6401 = vor.u32 4788187, %v6400
        %v6402 = vand.u32 2147483647, %v6401
        %v6404 = vcvt.s32.f32 %v6397
        %v6405 = vmul.f32 %v6404, %v6402
        %v6406 = vxor.u32 %v6405, 2147483648
        %v6407 = vsel %vm6324, %v6406, %v6405
        %v6408 = vsub.s32 4, %v6384
        %v6409 = vsel %vm6324, %v6408, %v6384
        %v6410 = vsel %vm6323, %v6185, %v6407
        %v6411 = vsel %vm6323, 0, %v6409
        %v6412 = vcosq.f32.pop %v6410
        %v6413 = vsinq.f32.pop %v6410
        %vm6414 = vweird.f32 %v6185
        %v6415 = vadd.s32 %v6411, 3
        %v6416 = vand.u32 %v6415, 3
        %vm6417 = vcmp.lt.s32.totalorder %v6416, 2
        %vm6418 = vcmp.eq.s32.totalorder %v6416, 0
        %v6419 = vxor.u32 %v6413, 2147483648
        %v6420 = vsel %vm6418, %v6412, %v6419
        %vm6421 = vcmp.eq.s32.totalorder %v6416, 2
        %v6422 = vxor.u32 %v6412, 2147483648
        %v6423 = vsel %vm6421, %v6422, %v6413
        %v6424 = vsel %vm6417, %v6420, %v6423
        %v6425 = vsel %vm6414, nan, %v6424
        %v6426 = vand.u32 2147483647, %v6190
        %vm6427 = vcmp.le.f32.partialorder %v6426, 0.7853982
        %vm6428 = vcmp.lt.s32.totalorder %v6190, 0
        %v6429 = vand.u32 %v6190, 2139095040
        %v6430 = vshrl.u32 %v6429, 23
        %v6431 = vsub.s32 %v6430, 127
        %v6432 = vand.u32 2147483647, %v6190
        %v6433 = vand.u32 %v6432, 8388607
        %v6434 = vor.u32 %v6433, 8388608
        %v6435 = vsub.s32 0, %v6434
        %v6436 = vadd.s32 %v6431, 1
        %vm6437 = vcmp.gt.s32.totalorder %v6436, 0
        %v6438 = vsel %vm6437, %v6436, 0
        %v6439 = vshrl.u32 %v6438, 5
        %v6440 = vand.u32 %v6438, 31
        %v6441 = vsub.s32 32, %v6440
        %v6442 = vshrl.u32 683565275, %v6441
        %v6443 = vshll.u32 683565275, %v6440
        %v6444 = vshrl.u32 2475754826, %v6441
        %v6445 = vor.u32 %v6443, %v6444
        %v6446 = vshll.u32 2475754826, %v6440
        %v6447 = vshrl.u32 2131351028, %v6441
        %v6448 = vor.u32 %v6446, %v6447
        %v6449 = vshll.u32 2131351028, %v6440
        %v6450 = vshrl.u32 2102212464, %v6441
        %v6451 = vor.u32 %v6449, %v6450
        %v6452 = vshll.u32 2102212464, %v6440
        %v6453 = vshrl.u32 920167782, %v6441
        %v6454 = vor.u32 %v6452, %v6453
        %v6455 = vshll.u32 920167782, %v6440
        %v6456 = vshrl.u32 1326507024, %v6441
        %v6457 = vor.u32 %v6455, %v6456
        %vm6458 = vcmp.lt.s32.totalorder %v6439, 1
        %vm6459 = vcmp.lt.s32.totalorder %v6439, 2
        %vm6460 = vcmp.lt.s32.totalorder %v6439, 3
        %vm6461 = vcmp.lt.s32.totalorder %v6439, 4
        %v6462 = vsel %vm6458, %v6442, %v6445
        %v6463 = vsel %vm6461, %v6451, 2102212464
        %v6464 = vsel %vm6460, %v6448, %v6463
        %v6465 = vsel %vm6459, %v6462, %v6464
        %v6466 = vsel %vm6458, %v6445, %v6448
        %v6467 = vsel %vm6461, %v6454, 920167782
        %v6468 = vsel %vm6460, %v6451, %v6467
        %v6469 = vsel %vm6459, %v6466, %v6468
        %v6470 = vsel %vm6458, %v6448, %v6451
        %v6471 = vsel %vm6461, %v6457, 1326507024
        %v6472 = vsel %vm6460, %v6454, %v6471
        %v6473 = vsel %vm6459, %v6470, %v6472
        %v6474 = vshll.u32 %v6434, 8
        %v6475 = vmul.u32.u64.compose %v6474, %v6473
        %v6476 = vextract.low.u32 %v6475
        %v6477 = vextract.high.u32 %v6475
        %v6478 = vmul.u32.u64.compose %v6474, %v6469
        %v6479 = vextract.low.u32 %v6478
        %v6480 = vextract.high.u32 %v6478
        %v6481 = vmul.u32 %v6474, %v6465
        %v6482 = vadd.s32 %v6477, %v6479
        %vm6483 = vc.u32 %v6477, %v6479
        %v6484 = vadd.s32 %v6480, 1
        %v6485 = vsel %vm6483, %v6484, %v6480
        %v6486 = vadd.s32 %v6481, %v6485
        %v6487 = vadd.s32 %v6486, 536870912
        %v6488 = vshrl.u32 %v6487, 30
        %v6489 = vshll.u32 %v6488, 30
        %v6490 = vsub.s32 %v6486, %v6489
        %vm6491 = vcmp.lt.s32.totalorder %v6490, 0
        %v6492 = vsub.s32 0, %v6490
        %v6493 = vsel %vm6491, %v6492, %v6490
        %v6494 = vclz %v6493
        %v6495 = vsub.s32 %v6494, 2
        %vm6496 = vcmp.gt.s32.totalorder 0, %v6495
        %v6497 = vsel %vm6496, 0, %v6495
        %v6498 = vsub.s32 32, %v6497
        %v6499 = vshll.u32 %v6490, %v6497
        %v6500 = vshrl.u32 %v6482, %v6498
        %v6501 = vor.u32 %v6499, %v6500
        %v6502 = vsub.s32 4294967266, %v6497
        %v6503 = vadd.s32 %v6502, 127
        %v6504 = vshll.u32 %v6503, 23
        %v6505 = vor.u32 4788187, %v6504
        %v6506 = vand.u32 2147483647, %v6505
        %v6508 = vcvt.s32.f32 %v6501
        %v6509 = vmul.f32 %v6508, %v6506
        %v6510 = vxor.u32 %v6509, 2147483648
        %v6511 = vsel %vm6428, %v6510, %v6509
        %v6512 = vsub.s32 4, %v6488
        %v6513 = vsel %vm6428, %v6512, %v6488
        %v6514 = vsel %vm6427, %v6190, %v6511
        %v6515 = vsel %vm6427, 0, %v6513
        %v6516 = vcosq.f32.pop %v6514
        %v6517 = vsinq.f32.pop %v6514
        %vm6518 = vweird.f32 %v6190
        %v6519 = vadd.s32 %v6515, 3
        %v6520 = vand.u32 %v6519, 3
        %vm6521 = vcmp.lt.s32.totalorder %v6520, 2
        %vm6522 = vcmp.eq.s32.totalorder %v6520, 0
        %v6523 = vxor.u32 %v6517, 2147483648
        %v6524 = vsel %vm6522, %v6516, %v6523
        %vm6525 = vcmp.eq.s32.totalorder %v6520, 2
        %v6526 = vxor.u32 %v6516, 2147483648
        %v6527 = vsel %vm6525, %v6526, %v6517
        %v6528 = vsel %vm6521, %v6524, %v6527
        %v6529 = vsel %vm6518, nan, %v6528
        %v6530 = vand.u32 2147483647, %v6195
        %vm6531 = vcmp.le.f32.partialorder %v6530, 0.7853982
        %vm6532 = vcmp.lt.s32.totalorder %v6195, 0
        %v6533 = vand.u32 %v6195, 2139095040
        %v6534 = vshrl.u32 %v6533, 23
        %v6535 = vsub.s32 %v6534, 127
        %v6536 = vand.u32 2147483647, %v6195
        %v6537 = vand.u32 %v6536, 8388607
        %v6538 = vor.u32 %v6537, 8388608
        %v6539 = vsub.s32 0, %v6538
        %v6540 = vadd.s32 %v6535, 1
        %vm6541 = vcmp.gt.s32.totalorder %v6540, 0
        %v6542 = vsel %vm6541, %v6540, 0
        %v6543 = vshrl.u32 %v6542, 5
        %v6544 = vand.u32 %v6542, 31
        %v6545 = vsub.s32 32, %v6544
        %v6546 = vshrl.u32 683565275, %v6545
        %v6547 = vshll.u32 683565275, %v6544
        %v6548 = vshrl.u32 2475754826, %v6545
        %v6549 = vor.u32 %v6547, %v6548
        %v6550 = vshll.u32 2475754826, %v6544
        %v6551 = vshrl.u32 2131351028, %v6545
        %v6552 = vor.u32 %v6550, %v6551
        %v6553 = vshll.u32 2131351028, %v6544
        %v6554 = vshrl.u32 2102212464, %v6545
        %v6555 = vor.u32 %v6553, %v6554
        %v6556 = vshll.u32 2102212464, %v6544
        %v6557 = vshrl.u32 920167782, %v6545
        %v6558 = vor.u32 %v6556, %v6557
        %v6559 = vshll.u32 920167782, %v6544
        %v6560 = vshrl.u32 1326507024, %v6545
        %v6561 = vor.u32 %v6559, %v6560
        %vm6562 = vcmp.lt.s32.totalorder %v6543, 1
        %vm6563 = vcmp.lt.s32.totalorder %v6543, 2
        %vm6564 = vcmp.lt.s32.totalorder %v6543, 3
        %vm6565 = vcmp.lt.s32.totalorder %v6543, 4
        %v6566 = vsel %vm6562, %v6546, %v6549
        %v6567 = vsel %vm6565, %v6555, 2102212464
        %v6568 = vsel %vm6564, %v6552, %v6567
        %v6569 = vsel %vm6563, %v6566, %v6568
        %v6570 = vsel %vm6562, %v6549, %v6552
        %v6571 = vsel %vm6565, %v6558, 920167782
        %v6572 = vsel %vm6564, %v6555, %v6571
        %v6573 = vsel %vm6563, %v6570, %v6572
        %v6574 = vsel %vm6562, %v6552, %v6555
        %v6575 = vsel %vm6565, %v6561, 1326507024
        %v6576 = vsel %vm6564, %v6558, %v6575
        %v6577 = vsel %vm6563, %v6574, %v6576
        %v6578 = vshll.u32 %v6538, 8
        %v6579 = vmul.u32.u64.compose %v6578, %v6577
        %v6580 = vextract.low.u32 %v6579
        %v6581 = vextract.high.u32 %v6579
        %v6582 = vmul.u32.u64.compose %v6578, %v6573
        %v6583 = vextract.low.u32 %v6582
        %v6584 = vextract.high.u32 %v6582
        %v6585 = vmul.u32 %v6578, %v6569
        %v6586 = vadd.s32 %v6581, %v6583
        %vm6587 = vc.u32 %v6581, %v6583
        %v6588 = vadd.s32 %v6584, 1
        %v6589 = vsel %vm6587, %v6588, %v6584
        %v6590 = vadd.s32 %v6585, %v6589
        %v6591 = vadd.s32 %v6590, 536870912
        %v6592 = vshrl.u32 %v6591, 30
        %v6593 = vshll.u32 %v6592, 30
        %v6594 = vsub.s32 %v6590, %v6593
        %vm6595 = vcmp.lt.s32.totalorder %v6594, 0
        %v6596 = vsub.s32 0, %v6594
        %v6597 = vsel %vm6595, %v6596, %v6594
        %v6598 = vclz %v6597
        %v6599 = vsub.s32 %v6598, 2
        %vm6600 = vcmp.gt.s32.totalorder 0, %v6599
        %v6601 = vsel %vm6600, 0, %v6599
        %v6602 = vsub.s32 32, %v6601
        %v6603 = vshll.u32 %v6594, %v6601
        %v6604 = vshrl.u32 %v6586, %v6602
        %v6605 = vor.u32 %v6603, %v6604
        %v6606 = vsub.s32 4294967266, %v6601
        %v6607 = vadd.s32 %v6606, 127
        %v6608 = vshll.u32 %v6607, 23
        %v6609 = vor.u32 4788187, %v6608
        %v6610 = vand.u32 2147483647, %v6609
        %v6612 = vcvt.s32.f32 %v6605
        %v6613 = vmul.f32 %v6612, %v6610
        %v6614 = vxor.u32 %v6613, 2147483648
        %v6615 = vsel %vm6532, %v6614, %v6613
        %v6616 = vsub.s32 4, %v6592
        %v6617 = vsel %vm6532, %v6616, %v6592
        %v6618 = vsel %vm6531, %v6195, %v6615
        %v6619 = vsel %vm6531, 0, %v6617
        %v6620 = vcosq.f32.pop %v6618
        %v6621 = vsinq.f32.pop %v6618
        %vm6622 = vweird.f32 %v6195
        %v6623 = vadd.s32 %v6619, 3
        %v6624 = vand.u32 %v6623, 3
        %vm6625 = vcmp.lt.s32.totalorder %v6624, 2
        %vm6626 = vcmp.eq.s32.totalorder %v6624, 0
        %v6627 = vxor.u32 %v6621, 2147483648
        %v6628 = vsel %vm6626, %v6620, %v6627
        %vm6629 = vcmp.eq.s32.totalorder %v6624, 2
        %v6630 = vxor.u32 %v6620, 2147483648
        %v6631 = vsel %vm6629, %v6630, %v6621
        %v6632 = vsel %vm6625, %v6628, %v6631
        %v6633 = vsel %vm6622, nan, %v6632
        %v6634 = vand.u32 2147483647, %v6200
        %vm6635 = vcmp.le.f32.partialorder %v6634, 0.7853982
        %vm6636 = vcmp.lt.s32.totalorder %v6200, 0
        %v6637 = vand.u32 %v6200, 2139095040
        %v6638 = vshrl.u32 %v6637, 23
        %v6639 = vsub.s32 %v6638, 127
        %v6640 = vand.u32 2147483647, %v6200
        %v6641 = vand.u32 %v6640, 8388607
        %v6642 = vor.u32 %v6641, 8388608
        %v6643 = vsub.s32 0, %v6642
        %v6644 = vadd.s32 %v6639, 1
        %vm6645 = vcmp.gt.s32.totalorder %v6644, 0
        %v6646 = vsel %vm6645, %v6644, 0
        %v6647 = vshrl.u32 %v6646, 5
        %v6648 = vand.u32 %v6646, 31
        %v6649 = vsub.s32 32, %v6648
        %v6650 = vshrl.u32 683565275, %v6649
        %v6651 = vshll.u32 683565275, %v6648
        %v6652 = vshrl.u32 2475754826, %v6649
        %v6653 = vor.u32 %v6651, %v6652
        %v6654 = vshll.u32 2475754826, %v6648
        %v6655 = vshrl.u32 2131351028, %v6649
        %v6656 = vor.u32 %v6654, %v6655
        %v6657 = vshll.u32 2131351028, %v6648
        %v6658 = vshrl.u32 2102212464, %v6649
        %v6659 = vor.u32 %v6657, %v6658
        %v6660 = vshll.u32 2102212464, %v6648
        %v6661 = vshrl.u32 920167782, %v6649
        %v6662 = vor.u32 %v6660, %v6661
        %v6663 = vshll.u32 920167782, %v6648
        %v6664 = vshrl.u32 1326507024, %v6649
        %v6665 = vor.u32 %v6663, %v6664
        %vm6666 = vcmp.lt.s32.totalorder %v6647, 1
        %vm6667 = vcmp.lt.s32.totalorder %v6647, 2
        %vm6668 = vcmp.lt.s32.totalorder %v6647, 3
        %vm6669 = vcmp.lt.s32.totalorder %v6647, 4
        %v6670 = vsel %vm6666, %v6650, %v6653
        %v6671 = vsel %vm6669, %v6659, 2102212464
        %v6672 = vsel %vm6668, %v6656, %v6671
        %v6673 = vsel %vm6667, %v6670, %v6672
        %v6674 = vsel %vm6666, %v6653, %v6656
        %v6675 = vsel %vm6669, %v6662, 920167782
        %v6676 = vsel %vm6668, %v6659, %v6675
        %v6677 = vsel %vm6667, %v6674, %v6676
        %v6678 = vsel %vm6666, %v6656, %v6659
        %v6679 = vsel %vm6669, %v6665, 1326507024
        %v6680 = vsel %vm6668, %v6662, %v6679
        %v6681 = vsel %vm6667, %v6678, %v6680
        %v6682 = vshll.u32 %v6642, 8
        %v6683 = vmul.u32.u64.compose %v6682, %v6681
        %v6684 = vextract.low.u32 %v6683
        %v6685 = vextract.high.u32 %v6683
        %v6686 = vmul.u32.u64.compose %v6682, %v6677
        %v6687 = vextract.low.u32 %v6686
        %v6688 = vextract.high.u32 %v6686
        %v6689 = vmul.u32 %v6682, %v6673
        %v6690 = vadd.s32 %v6685, %v6687
        %vm6691 = vc.u32 %v6685, %v6687
        %v6692 = vadd.s32 %v6688, 1
        %v6693 = vsel %vm6691, %v6692, %v6688
        %v6694 = vadd.s32 %v6689, %v6693
        %v6695 = vadd.s32 %v6694, 536870912
        %v6696 = vshrl.u32 %v6695, 30
        %v6697 = vshll.u32 %v6696, 30
        %v6698 = vsub.s32 %v6694, %v6697
        %vm6699 = vcmp.lt.s32.totalorder %v6698, 0
        %v6700 = vsub.s32 0, %v6698
        %v6701 = vsel %vm6699, %v6700, %v6698
        %v6702 = vclz %v6701
        %v6703 = vsub.s32 %v6702, 2
        %vm6704 = vcmp.gt.s32.totalorder 0, %v6703
        %v6705 = vsel %vm6704, 0, %v6703
        %v6706 = vsub.s32 32, %v6705
        %v6707 = vshll.u32 %v6698, %v6705
        %v6708 = vshrl.u32 %v6690, %v6706
        %v6709 = vor.u32 %v6707, %v6708
        %v6710 = vsub.s32 4294967266, %v6705
        %v6711 = vadd.s32 %v6710, 127
        %v6712 = vshll.u32 %v6711, 23
        %v6713 = vor.u32 4788187, %v6712
        %v6714 = vand.u32 2147483647, %v6713
        %v6716 = vcvt.s32.f32 %v6709
        %v6717 = vmul.f32 %v6716, %v6714
        %v6718 = vxor.u32 %v6717, 2147483648
        %v6719 = vsel %vm6636, %v6718, %v6717
        %v6720 = vsub.s32 4, %v6696
        %v6721 = vsel %vm6636, %v6720, %v6696
        %v6722 = vsel %vm6635, %v6200, %v6719
        %v6723 = vsel %vm6635, 0, %v6721
        %v6724 = vcosq.f32.pop %v6722
        %v6725 = vsinq.f32.pop %v6722
        %vm6726 = vweird.f32 %v6200
        %v6727 = vadd.s32 %v6723, 3
        %v6728 = vand.u32 %v6727, 3
        %vm6729 = vcmp.lt.s32.totalorder %v6728, 2
        %vm6730 = vcmp.eq.s32.totalorder %v6728, 0
        %v6731 = vxor.u32 %v6725, 2147483648
        %v6732 = vsel %vm6730, %v6724, %v6731
        %vm6733 = vcmp.eq.s32.totalorder %v6728, 2
        %v6734 = vxor.u32 %v6724, 2147483648
        %v6735 = vsel %vm6733, %v6734, %v6725
        %v6736 = vsel %vm6729, %v6732, %v6735
        %v6737 = vsel %vm6726, nan, %v6736
        %v6738 = vand.u32 2147483647, %v6205
        %vm6739 = vcmp.le.f32.partialorder %v6738, 0.7853982
        %vm6740 = vcmp.lt.s32.totalorder %v6205, 0
        %v6741 = vand.u32 %v6205, 2139095040
        %v6742 = vshrl.u32 %v6741, 23
        %v6743 = vsub.s32 %v6742, 127
        %v6744 = vand.u32 2147483647, %v6205
        %v6745 = vand.u32 %v6744, 8388607
        %v6746 = vor.u32 %v6745, 8388608
        %v6747 = vsub.s32 0, %v6746
        %v6748 = vadd.s32 %v6743, 1
        %vm6749 = vcmp.gt.s32.totalorder %v6748, 0
        %v6750 = vsel %vm6749, %v6748, 0
        %v6751 = vshrl.u32 %v6750, 5
        %v6752 = vand.u32 %v6750, 31
        %v6753 = vsub.s32 32, %v6752
        %v6754 = vshrl.u32 683565275, %v6753
        %v6755 = vshll.u32 683565275, %v6752
        %v6756 = vshrl.u32 2475754826, %v6753
        %v6757 = vor.u32 %v6755, %v6756
        %v6758 = vshll.u32 2475754826, %v6752
        %v6759 = vshrl.u32 2131351028, %v6753
        %v6760 = vor.u32 %v6758, %v6759
        %v6761 = vshll.u32 2131351028, %v6752
        %v6762 = vshrl.u32 2102212464, %v6753
        %v6763 = vor.u32 %v6761, %v6762
        %v6764 = vshll.u32 2102212464, %v6752
        %v6765 = vshrl.u32 920167782, %v6753
        %v6766 = vor.u32 %v6764, %v6765
        %v6767 = vshll.u32 920167782, %v6752
        %v6768 = vshrl.u32 1326507024, %v6753
        %v6769 = vor.u32 %v6767, %v6768
        %vm6770 = vcmp.lt.s32.totalorder %v6751, 1
        %vm6771 = vcmp.lt.s32.totalorder %v6751, 2
        %vm6772 = vcmp.lt.s32.totalorder %v6751, 3
        %vm6773 = vcmp.lt.s32.totalorder %v6751, 4
        %v6774 = vsel %vm6770, %v6754, %v6757
        %v6775 = vsel %vm6773, %v6763, 2102212464
        %v6776 = vsel %vm6772, %v6760, %v6775
        %v6777 = vsel %vm6771, %v6774, %v6776
        %v6778 = vsel %vm6770, %v6757, %v6760
        %v6779 = vsel %vm6773, %v6766, 920167782
        %v6780 = vsel %vm6772, %v6763, %v6779
        %v6781 = vsel %vm6771, %v6778, %v6780
        %v6782 = vsel %vm6770, %v6760, %v6763
        %v6783 = vsel %vm6773, %v6769, 1326507024
        %v6784 = vsel %vm6772, %v6766, %v6783
        %v6785 = vsel %vm6771, %v6782, %v6784
        %v6786 = vshll.u32 %v6746, 8
        %v6787 = vmul.u32.u64.compose %v6786, %v6785
        %v6788 = vextract.low.u32 %v6787
        %v6789 = vextract.high.u32 %v6787
        %v6790 = vmul.u32.u64.compose %v6786, %v6781
        %v6791 = vextract.low.u32 %v6790
        %v6792 = vextract.high.u32 %v6790
        %v6793 = vmul.u32 %v6786, %v6777
        %v6794 = vadd.s32 %v6789, %v6791
        %vm6795 = vc.u32 %v6789, %v6791
        %v6796 = vadd.s32 %v6792, 1
        %v6797 = vsel %vm6795, %v6796, %v6792
        %v6798 = vadd.s32 %v6793, %v6797
        %v6799 = vadd.s32 %v6798, 536870912
        %v6800 = vshrl.u32 %v6799, 30
        %v6801 = vshll.u32 %v6800, 30
        %v6802 = vsub.s32 %v6798, %v6801
        %vm6803 = vcmp.lt.s32.totalorder %v6802, 0
        %v6804 = vsub.s32 0, %v6802
        %v6805 = vsel %vm6803, %v6804, %v6802
        %v6806 = vclz %v6805
        %v6807 = vsub.s32 %v6806, 2
        %vm6808 = vcmp.gt.s32.totalorder 0, %v6807
        %v6809 = vsel %vm6808, 0, %v6807
        %v6810 = vsub.s32 32, %v6809
        %v6811 = vshll.u32 %v6802, %v6809
        %v6812 = vshrl.u32 %v6794, %v6810
        %v6813 = vor.u32 %v6811, %v6812
        %v6814 = vsub.s32 4294967266, %v6809
        %v6815 = vadd.s32 %v6814, 127
        %v6816 = vshll.u32 %v6815, 23
        %v6817 = vor.u32 4788187, %v6816
        %v6818 = vand.u32 2147483647, %v6817
        %v6820 = vcvt.s32.f32 %v6813
        %v6821 = vmul.f32 %v6820, %v6818
        %v6822 = vxor.u32 %v6821, 2147483648
        %v6823 = vsel %vm6740, %v6822, %v6821
        %v6824 = vsub.s32 4, %v6800
        %v6825 = vsel %vm6740, %v6824, %v6800
        %v6826 = vsel %vm6739, %v6205, %v6823
        %v6827 = vsel %vm6739, 0, %v6825
        %v6828 = vcosq.f32.pop %v6826
        %v6829 = vsinq.f32.pop %v6826
        %vm6830 = vweird.f32 %v6205
        %v6831 = vadd.s32 %v6827, 3
        %v6832 = vand.u32 %v6831, 3
        %vm6833 = vcmp.lt.s32.totalorder %v6832, 2
        %vm6834 = vcmp.eq.s32.totalorder %v6832, 0
        %v6835 = vxor.u32 %v6829, 2147483648
        %v6836 = vsel %vm6834, %v6828, %v6835
        %vm6837 = vcmp.eq.s32.totalorder %v6832, 2
        %v6838 = vxor.u32 %v6828, 2147483648
        %v6839 = vsel %vm6837, %v6838, %v6829
        %v6840 = vsel %vm6833, %v6836, %v6839
        %v6841 = vsel %vm6830, nan, %v6840
        %v6842 = vand.u32 2147483647, %v6210
        %vm6843 = vcmp.le.f32.partialorder %v6842, 0.7853982
        %vm6844 = vcmp.lt.s32.totalorder %v6210, 0
        %v6845 = vand.u32 %v6210, 2139095040
        %v6846 = vshrl.u32 %v6845, 23
        %v6847 = vsub.s32 %v6846, 127
        %v6848 = vand.u32 2147483647, %v6210
        %v6849 = vand.u32 %v6848, 8388607
        %v6850 = vor.u32 %v6849, 8388608
        %v6851 = vsub.s32 0, %v6850
        %v6852 = vadd.s32 %v6847, 1
        %vm6853 = vcmp.gt.s32.totalorder %v6852, 0
        %v6854 = vsel %vm6853, %v6852, 0
        %v6855 = vshrl.u32 %v6854, 5
        %v6856 = vand.u32 %v6854, 31
        %v6857 = vsub.s32 32, %v6856
        %v6858 = vshrl.u32 683565275, %v6857
        %v6859 = vshll.u32 683565275, %v6856
        %v6860 = vshrl.u32 2475754826, %v6857
        %v6861 = vor.u32 %v6859, %v6860
        %v6862 = vshll.u32 2475754826, %v6856
        %v6863 = vshrl.u32 2131351028, %v6857
        %v6864 = vor.u32 %v6862, %v6863
        %v6865 = vshll.u32 2131351028, %v6856
        %v6866 = vshrl.u32 2102212464, %v6857
        %v6867 = vor.u32 %v6865, %v6866
        %v6868 = vshll.u32 2102212464, %v6856
        %v6869 = vshrl.u32 920167782, %v6857
        %v6870 = vor.u32 %v6868, %v6869
        %v6871 = vshll.u32 920167782, %v6856
        %v6872 = vshrl.u32 1326507024, %v6857
        %v6873 = vor.u32 %v6871, %v6872
        %vm6874 = vcmp.lt.s32.totalorder %v6855, 1
        %vm6875 = vcmp.lt.s32.totalorder %v6855, 2
        %vm6876 = vcmp.lt.s32.totalorder %v6855, 3
        %vm6877 = vcmp.lt.s32.totalorder %v6855, 4
        %v6878 = vsel %vm6874, %v6858, %v6861
        %v6879 = vsel %vm6877, %v6867, 2102212464
        %v6880 = vsel %vm6876, %v6864, %v6879
        %v6881 = vsel %vm6875, %v6878, %v6880
        %v6882 = vsel %vm6874, %v6861, %v6864
        %v6883 = vsel %vm6877, %v6870, 920167782
        %v6884 = vsel %vm6876, %v6867, %v6883
        %v6885 = vsel %vm6875, %v6882, %v6884
        %v6886 = vsel %vm6874, %v6864, %v6867
        %v6887 = vsel %vm6877, %v6873, 1326507024
        %v6888 = vsel %vm6876, %v6870, %v6887
        %v6889 = vsel %vm6875, %v6886, %v6888
        %v6890 = vshll.u32 %v6850, 8
        %v6891 = vmul.u32.u64.compose %v6890, %v6889
        %v6892 = vextract.low.u32 %v6891
        %v6893 = vextract.high.u32 %v6891
        %v6894 = vmul.u32.u64.compose %v6890, %v6885
        %v6895 = vextract.low.u32 %v6894
        %v6896 = vextract.high.u32 %v6894
        %v6897 = vmul.u32 %v6890, %v6881
        %v6898 = vadd.s32 %v6893, %v6895
        %vm6899 = vc.u32 %v6893, %v6895
        %v6900 = vadd.s32 %v6896, 1
        %v6901 = vsel %vm6899, %v6900, %v6896
        %v6902 = vadd.s32 %v6897, %v6901
        %v6903 = vadd.s32 %v6902, 536870912
        %v6904 = vshrl.u32 %v6903, 30
        %v6905 = vshll.u32 %v6904, 30
        %v6906 = vsub.s32 %v6902, %v6905
        %vm6907 = vcmp.lt.s32.totalorder %v6906, 0
        %v6908 = vsub.s32 0, %v6906
        %v6909 = vsel %vm6907, %v6908, %v6906
        %v6910 = vclz %v6909
        %v6911 = vsub.s32 %v6910, 2
        %vm6912 = vcmp.gt.s32.totalorder 0, %v6911
        %v6913 = vsel %vm6912, 0, %v6911
        %v6914 = vsub.s32 32, %v6913
        %v6915 = vshll.u32 %v6906, %v6913
        %v6916 = vshrl.u32 %v6898, %v6914
        %v6917 = vor.u32 %v6915, %v6916
        %v6918 = vsub.s32 4294967266, %v6913
        %v6919 = vadd.s32 %v6918, 127
        %v6920 = vshll.u32 %v6919, 23
        %v6921 = vor.u32 4788187, %v6920
        %v6922 = vand.u32 2147483647, %v6921
        %v6924 = vcvt.s32.f32 %v6917
        %v6925 = vmul.f32 %v6924, %v6922
        %v6926 = vxor.u32 %v6925, 2147483648
        %v6927 = vsel %vm6844, %v6926, %v6925
        %v6928 = vsub.s32 4, %v6904
        %v6929 = vsel %vm6844, %v6928, %v6904
        %v6930 = vsel %vm6843, %v6210, %v6927
        %v6931 = vsel %vm6843, 0, %v6929
        %v6932 = vcosq.f32.pop %v6930
        %v6933 = vsinq.f32.pop %v6930
        %vm6934 = vweird.f32 %v6210
        %v6935 = vadd.s32 %v6931, 3
        %v6936 = vand.u32 %v6935, 3
        %vm6937 = vcmp.lt.s32.totalorder %v6936, 2
        %vm6938 = vcmp.eq.s32.totalorder %v6936, 0
        %v6939 = vxor.u32 %v6933, 2147483648
        %v6940 = vsel %vm6938, %v6932, %v6939
        %vm6941 = vcmp.eq.s32.totalorder %v6936, 2
        %v6942 = vxor.u32 %v6932, 2147483648
        %v6943 = vsel %vm6941, %v6942, %v6933
        %v6944 = vsel %vm6937, %v6940, %v6943
        %v6945 = vsel %vm6934, nan, %v6944
        %v6946 = vand.u32 2147483647, %v6215
        %vm6947 = vcmp.le.f32.partialorder %v6946, 0.7853982
        %vm6948 = vcmp.lt.s32.totalorder %v6215, 0
        %v6949 = vand.u32 %v6215, 2139095040
        %v6950 = vshrl.u32 %v6949, 23
        %v6951 = vsub.s32 %v6950, 127
        %v6952 = vand.u32 2147483647, %v6215
        %v6953 = vand.u32 %v6952, 8388607
        %v6954 = vor.u32 %v6953, 8388608
        %v6955 = vsub.s32 0, %v6954
        %v6956 = vadd.s32 %v6951, 1
        %vm6957 = vcmp.gt.s32.totalorder %v6956, 0
        %v6958 = vsel %vm6957, %v6956, 0
        %v6959 = vshrl.u32 %v6958, 5
        %v6960 = vand.u32 %v6958, 31
        %v6961 = vsub.s32 32, %v6960
        %v6962 = vshrl.u32 683565275, %v6961
        %v6963 = vshll.u32 683565275, %v6960
        %v6964 = vshrl.u32 2475754826, %v6961
        %v6965 = vor.u32 %v6963, %v6964
        %v6966 = vshll.u32 2475754826, %v6960
        %v6967 = vshrl.u32 2131351028, %v6961
        %v6968 = vor.u32 %v6966, %v6967
        %v6969 = vshll.u32 2131351028, %v6960
        %v6970 = vshrl.u32 2102212464, %v6961
        %v6971 = vor.u32 %v6969, %v6970
        %v6972 = vshll.u32 2102212464, %v6960
        %v6973 = vshrl.u32 920167782, %v6961
        %v6974 = vor.u32 %v6972, %v6973
        %v6975 = vshll.u32 920167782, %v6960
        %v6976 = vshrl.u32 1326507024, %v6961
        %v6977 = vor.u32 %v6975, %v6976
        %vm6978 = vcmp.lt.s32.totalorder %v6959, 1
        %vm6979 = vcmp.lt.s32.totalorder %v6959, 2
        %vm6980 = vcmp.lt.s32.totalorder %v6959, 3
        %vm6981 = vcmp.lt.s32.totalorder %v6959, 4
        %v6982 = vsel %vm6978, %v6962, %v6965
        %v6983 = vsel %vm6981, %v6971, 2102212464
        %v6984 = vsel %vm6980, %v6968, %v6983
        %v6985 = vsel %vm6979, %v6982, %v6984
        %v6986 = vsel %vm6978, %v6965, %v6968
        %v6987 = vsel %vm6981, %v6974, 920167782
        %v6988 = vsel %vm6980, %v6971, %v6987
        %v6989 = vsel %vm6979, %v6986, %v6988
        %v6990 = vsel %vm6978, %v6968, %v6971
        %v6991 = vsel %vm6981, %v6977, 1326507024
        %v6992 = vsel %vm6980, %v6974, %v6991
        %v6993 = vsel %vm6979, %v6990, %v6992
        %v6994 = vshll.u32 %v6954, 8
        %v6995 = vmul.u32.u64.compose %v6994, %v6993
        %v6996 = vextract.low.u32 %v6995
        %v6997 = vextract.high.u32 %v6995
        %v6998 = vmul.u32.u64.compose %v6994, %v6989
        %v6999 = vextract.low.u32 %v6998
        %v7000 = vextract.high.u32 %v6998
        %v7001 = vmul.u32 %v6994, %v6985
        %v7002 = vadd.s32 %v6997, %v6999
        %vm7003 = vc.u32 %v6997, %v6999
        %v7004 = vadd.s32 %v7000, 1
        %v7005 = vsel %vm7003, %v7004, %v7000
        %v7006 = vadd.s32 %v7001, %v7005
        %v7007 = vadd.s32 %v7006, 536870912
        %v7008 = vshrl.u32 %v7007, 30
        %v7009 = vshll.u32 %v7008, 30
        %v7010 = vsub.s32 %v7006, %v7009
        %vm7011 = vcmp.lt.s32.totalorder %v7010, 0
        %v7012 = vsub.s32 0, %v7010
        %v7013 = vsel %vm7011, %v7012, %v7010
        %v7014 = vclz %v7013
        %v7015 = vsub.s32 %v7014, 2
        %vm7016 = vcmp.gt.s32.totalorder 0, %v7015
        %v7017 = vsel %vm7016, 0, %v7015
        %v7018 = vsub.s32 32, %v7017
        %v7019 = vshll.u32 %v7010, %v7017
        %v7020 = vshrl.u32 %v7002, %v7018
        %v7021 = vor.u32 %v7019, %v7020
        %v7022 = vsub.s32 4294967266, %v7017
        %v7023 = vadd.s32 %v7022, 127
        %v7024 = vshll.u32 %v7023, 23
        %v7025 = vor.u32 4788187, %v7024
        %v7026 = vand.u32 2147483647, %v7025
        %v7028 = vcvt.s32.f32 %v7021
        %v7029 = vmul.f32 %v7028, %v7026
        %v7030 = vxor.u32 %v7029, 2147483648
        %v7031 = vsel %vm6948, %v7030, %v7029
        %v7032 = vsub.s32 4, %v7008
        %v7033 = vsel %vm6948, %v7032, %v7008
        %v7034 = vsel %vm6947, %v6215, %v7031
        %v7035 = vsel %vm6947, 0, %v7033
        %v7036 = vcosq.f32.pop %v7034
        %v7037 = vsinq.f32.pop %v7034
        %vm7038 = vweird.f32 %v6215
        %v7039 = vadd.s32 %v7035, 3
        %v7040 = vand.u32 %v7039, 3
        %vm7041 = vcmp.lt.s32.totalorder %v7040, 2
        %vm7042 = vcmp.eq.s32.totalorder %v7040, 0
        %v7043 = vxor.u32 %v7037, 2147483648
        %v7044 = vsel %vm7042, %v7036, %v7043
        %vm7045 = vcmp.eq.s32.totalorder %v7040, 2
        %v7046 = vxor.u32 %v7036, 2147483648
        %v7047 = vsel %vm7045, %v7046, %v7037
        %v7048 = vsel %vm7041, %v7044, %v7047
        %v7049 = vsel %vm7038, nan, %v7048
        %v7050 = vld [vmem:[%s5] sm:$0xff]
        %v7051 = vld [vmem:[%s5 + $0x8] sm:$0xff]
        %v7052 = vld [vmem:[%s5 + $0x10] sm:$0xff]
        %v7053 = vld [vmem:[%s5 + $0x18] sm:$0xff]
        %v7054 = vld [vmem:[%s5 + $0x20] sm:$0xff]
        %v7055 = vld [vmem:[%s5 + $0x28] sm:$0xff]
        %v7056 = vld [vmem:[%s5 + $0x30] sm:$0xff]
        %v7057 = vld [vmem:[%s5 + $0x38] sm:$0xff]
        %v7058 = vld [vmem:[%s5 + $0x40] sm:$0xff]
        %v7059 = vld [vmem:[%s5 + $0x48] sm:$0xff]
        %v7060 = vld [vmem:[%s5 + $0x50] sm:$0xff]
        %v7061 = vld [vmem:[%s5 + $0x58] sm:$0xff]
        %v7062 = vld [vmem:[%s5 + $0x60] sm:$0xff]
        %v7063 = vld [vmem:[%s5 + $0x68] sm:$0xff]
        %v7064 = vld [vmem:[%s5 + $0x70] sm:$0xff]
        %v7065 = vld [vmem:[%s5 + $0x78] sm:$0xff]
        %v7066 = vld [vmem:[%s6] sm:$0x1]
        %v7068 = vlaneseq
        %v7069 = vshrl.u32 %v7068, 7
        %v7070 = vsub.s32 0, %v7069
        %v7071 = vrot.slane %v7066, %v7070
        %7073 = vmatprep.subr.mxu0 0.0
        %7074 = vmatpush1.msra.mxu0 %v7050
        %7075 = vmatprep.subr.mxu0 0.0
        %7076 = vmatpush1.msra.mxu0 %v7051
        %7077 = vmatprep.subr.mxu0 0.0
        %7078 = vmatpush1.msra.mxu0 %v7052
        %7079 = vmatprep.subr.mxu0 0.0
        %7080 = vmatpush1.msra.mxu0 %v7053
        %7081 = vmatprep.subr.mxu0 0.0
        %7082 = vmatpush1.msra.mxu0 %v7054
        %7083 = vmatprep.subr.mxu0 0.0
        %7084 = vmatpush1.msra.mxu0 %v7055
        %7085 = vmatprep.subr.mxu0 0.0
        %7086 = vmatpush1.msra.mxu0 %v7056
        %7087 = vmatprep.subr.mxu0 0.0
        %7088 = vmatpush1.msra.mxu0 %v7057
        %7089 = vmatprep.subr.mxu0 0.0
        %7090 = vmatpush1.msra.mxu0 %v7058
        %7091 = vmatprep.subr.mxu0 0.0
        %7092 = vmatpush1.msra.mxu0 %v7059
        %7093 = vmatprep.subr.mxu0 0.0
        %7094 = vmatpush1.msra.mxu0 %v7060
        %7095 = vmatprep.subr.mxu0 0.0
        %7096 = vmatpush1.msra.mxu0 %v7061
        %7097 = vmatprep.subr.mxu0 0.0
        %7098 = vmatpush1.msra.mxu0 %v7062
        %7099 = vmatprep.subr.mxu0 0.0
        %7100 = vmatpush1.msra.mxu0 %v7063
        %7101 = vmatprep.subr.mxu0 0.0
        %7102 = vmatpush1.msra.mxu0 %v7064
        %7103 = vmatprep.subr.mxu0 0.0
        %7104 = vmatpush1.msra.mxu0 %v7065
        %7105 = vmatprep.subr.mxu0 0.0
        %7106 = vmatpush1.msra.mxu0 0.0
        %7107 = vmatprep.subr.mxu0 0.0
        %7108 = vmatpush1.msra.mxu0 0.0
        %7109 = vmatprep.subr.mxu0 0.0
        %7110 = vmatpush1.msra.mxu0 0.0
        %7111 = vmatprep.subr.mxu0 0.0
        %7112 = vmatpush1.msra.mxu0 0.0
        %7113 = vmatprep.subr.mxu0 0.0
        %7114 = vmatpush1.msra.mxu0 0.0
        %7115 = vmatprep.subr.mxu0 0.0
        %7116 = vmatpush1.msra.mxu0 0.0
        %7117 = vmatprep.subr.mxu0 0.0
        %7118 = vmatpush1.msra.mxu0 0.0
        %7119 = vmatprep.subr.mxu0 0.0
        %7120 = vmatpush1.msra.mxu0 0.0
        %7121 = vmatprep.subr.mxu0 0.0
        %7122 = vmatpush1.msra.mxu0 0.0
        %7123 = vmatprep.subr.mxu0 0.0
        %7124 = vmatpush1.msra.mxu0 0.0
        %7125 = vmatprep.subr.mxu0 0.0
        %7126 = vmatpush1.msra.mxu0 0.0
        %7127 = vmatprep.subr.mxu0 0.0
        %7128 = vmatpush1.msra.mxu0 0.0
        %7129 = vmatprep.subr.mxu0 0.0
        %7130 = vmatpush1.msra.mxu0 0.0
        %7131 = vmatprep.subr.mxu0 0.0
        %7132 = vmatpush1.msra.mxu0 0.0
        %7133 = vmatprep.subr.mxu0 0.0
        %7134 = vmatpush1.msra.mxu0 0.0
        %7135 = vmatprep.subr.mxu0 0.0
        %7136 = vmatpush1.msra.mxu0 0.0
        %7137 = vmatprep.mubr.f32.mxu0 0.0
        %7138 = vmatmul.mubr.f32.gmra.mrb[0].mxu0 %v6321
        %v7139 = vpop.f32.mrb[0].mxu0
        %v7140 = vadd.f32 %v7071, %v7139
        %v7141 = vpop.f32.mrb[0].mxu0
        %7142 = vmatprep.mubr.f32.mxu0 0.0
        %7143 = vmatmul.mubr.f32.gmra.mrb[0].mxu0 %v6425
        %v7144 = vpop.f32.mrb[0].mxu0
        %v7145 = vadd.f32 %v7071, %v7144
        %v7146 = vpop.f32.mrb[0].mxu0
        %7147 = vmatprep.mubr.f32.mxu0 0.0
        %7148 = vmatmul.mubr.f32.gmra.mrb[0].mxu0 %v6529
        %v7149 = vpop.f32.mrb[0].mxu0
        %v7150 = vadd.f32 %v7071, %v7149
        %v7151 = vpop.f32.mrb[0].mxu0
        %7152 = vmatprep.mubr.f32.mxu0 0.0
        %7153 = vmatmul.mubr.f32.gmra.mrb[0].mxu0 %v6633
        %v7154 = vpop.f32.mrb[0].mxu0
        %v7155 = vadd.f32 %v7071, %v7154
        %v7156 = vpop.f32.mrb[0].mxu0
        %7157 = vmatprep.mubr.f32.mxu0 0.0
        %7158 = vmatmul.mubr.f32.gmra.mrb[0].mxu0 %v6737
        %v7159 = vpop.f32.mrb[0].mxu0
        %v7160 = vadd.f32 %v7071, %v7159
        %v7161 = vpop.f32.mrb[0].mxu0
        %7162 = vmatprep.mubr.f32.mxu0 0.0
        %7163 = vmatmul.mubr.f32.gmra.mrb[0].mxu0 %v6841
        %v7164 = vpop.f32.mrb[0].mxu0
        %v7165 = vadd.f32 %v7071, %v7164
        %v7166 = vpop.f32.mrb[0].mxu0
        %7167 = vmatprep.mubr.f32.mxu0 0.0
        %7168 = vmatmul.mubr.f32.gmra.mrb[0].mxu0 %v6945
        %v7169 = vpop.f32.mrb[0].mxu0
        %v7170 = vadd.f32 %v7071, %v7169
        %v7171 = vpop.f32.mrb[0].mxu0
        %7172 = vmatprep.mubr.f32.mxu0 0.0
        %7173 = vmatmul.mubr.f32.gmra.mrb[0].mxu0 %v7049
        %v7174 = vpop.f32.mrb[0].mxu0
        %v7175 = vadd.f32 %v7071, %v7174
        %v7176 = vpop.f32.mrb[0].mxu0
        %7177 = vdwg.mxu0
        %vm7178 = vcmask 31744
        %7179 = vst.msk [vmem:[%s295] sm:$0xff] %vm7178, %v7140
        %7180 = vst.msk [vmem:[%s295 + $0x8] sm:$0xff] %vm7178, %v7145
        %7181 = vst.msk [vmem:[%s295 + $0x10] sm:$0xff] %vm7178, %v7150
        %7182 = vst.msk [vmem:[%s295 + $0x18] sm:$0xff] %vm7178, %v7155
        %7183 = vst.msk [vmem:[%s295 + $0x20] sm:$0xff] %vm7178, %v7160
        %7184 = vst.msk [vmem:[%s295 + $0x28] sm:$0xff] %vm7178, %v7165
        %7185 = vst.msk [vmem:[%s295 + $0x30] sm:$0xff] %vm7178, %v7170
        %7186 = vst.msk [vmem:[%s295 + $0x38] sm:$0xff] %vm7178, %v7175
        %s7187 = smul.u32 8, %s19
        %p7188 = scmp.lt.s32.totalorder %s7187, 15
        %s7189 = scalar_select %p7188, %s7187, 15
        %s7190 = smul.addr %s7189, 8
        %s7191 = scalar_lea.vmem %s7, %s7190
        // Predicated region
        $region53: #{tpu_custom_call.1} parent=47 // pred_check
          %p7192 = pneg %p189
        $region54: #{tpu_custom_call.1} parent=47 // pred_check_branch
          %7194 = sbr.rel (%p7192) target = $region56
        $region55: #{tpu_custom_call.1} parent=47 // pred_region
          %s7195 = smul.u32 8, %s19
        $region56: #{tpu_custom_call.1} parent=47 // pred_fallthru
          _
      $region48: #{tpu_custom_call.1} parent=5 // pred_fallthru
        _
      %p7196 = scmp.le.s32.totalorder 2, %s14
      // Predicated region
      $region57: #{tpu_custom_call.1} parent=5 // pred_check
        %p7197 = pneg %p7196
      $region58: #{tpu_custom_call.1} parent=5 // pred_check_branch
        %7199 = sbr.rel (%p7197) target = $region60
      $region59: #{tpu_custom_call.1} parent=5 // pred_region
        %s7200 = ssub.s32 %s14, 2
        // Predicated region
        $region61: #{tpu_custom_call.1} parent=59 // pred_check
          %p7201 = pneg %p195
        $region62: #{tpu_custom_call.1} parent=59 // pred_check_branch
          %7203 = sbr.rel (%p7201) target = $region64
        $region63: #{tpu_custom_call.1} parent=59 // pred_region
          %s7204 = smul.u32 8, %s20
          %p7205 = scmp.lt.s32.totalorder %s7204, 15
          %s7206 = scalar_select %p7205, %s7204, 15
          %s7207 = smul.addr %s7206, 8
          %s7208 = scalar_lea.vmem %s7, %s7207
        $region64: #{tpu_custom_call.1} parent=59 // pred_fallthru
          _
      $region60: #{tpu_custom_call.1} parent=5 // pred_fallthru
        _
    $region6: #{tpu_custom_call.1} parent=1 // loop_footer
      %s18 = sadd.s32 1, %s14
    $region7: #{tpu_custom_call.1} parent=1 // loop_footer_branch
      %13 = sbr.rel target = $region3
    $region8: #{tpu_custom_call.1} parent=1 // loop_exit
      _
    %7209 = vsyncpa [#allocation3], 1
    %s7210 = scalar_lea.sflag [#allocation3], 1
    %7211 = vsyncpa %s7210, 1

</llo_original>
